<compile_context>
chip_gen: v7x
topology: tpu7x:2x2x1
jax: 0.10.0
libtpu: 0.0.40
codegen_flags: <defaults>
</compile_context>

<pallas_src>
import math
import functools

import jax
import jax.numpy as jnp
from jax.experimental import pallas as pl
from jax.experimental.pallas import tpu as pltpu  # noqa: F401


# --------------------------------------------------------------------------------------
# Fused forward kernel
# --------------------------------------------------------------------------------------

def _layer_norm(y, g, b, eps):
    mu = jnp.mean(y, axis=-1, keepdims=True)
    var = jnp.mean((y - mu) ** 2, axis=-1, keepdims=True)
    return (y - mu) * jax.lax.rsqrt(var + eps) * g + b


def fused_forward_kernel(
        p1_ref, w1_ref, s1_ref, c1_ref,              # patching conv + folded BN
        shift_ref,                                   # (n_off, BL, BL) row-shift bank
        w2_ref, s2_ref, c2_ref,                      # embed conv + folded BN
        wg_ref, wpw_ref, s3_ref, c3_ref,             # grouped + pointwise conv + BN
        pe_ref, spec_ref, bias_ref,                  # tAPE, scaled spec mask, -inf bias
        m1_ref, wv1_ref, vmask_ref,                  # attn 1: folded QK^T, V, head masks
        gt1_ref, bt1_ref, gl1_ref, bl1_ref,
        m2_ref, wv2_ref,                             # attn 2: folded QK^T, V
        gt2_ref, bt2_ref, gl2_ref, bl2_ref,
        pool_ref, wout_ref, bout_ref,                # GAP matrix + classifier
        o_ref,
        *, eps, embed_idx, dw_idx):
    f32 = jnp.float32

    # ---- patching_layer: Conv1d(1, 8, k=8, stride=4, 'valid') + BN + ReLU ------------
    # patches were built host-side with pure slice/reshape (no gather): (B*L, 8)
    h = jnp.dot(p1_ref[...], w1_ref[...], preferred_element_type=f32)       # (BL, 8)
    h = jnp.maximum(h * s1_ref[...] + c1_ref[...], 0.0)

    # ---- embed_layer: Conv1d(8, 32, k=8, 'same') + BN + ReLU -------------------------
    # For each contributing tap: shift rows within the batch block (block-diagonal 0/1
    # matmul) then mix channels with a (8, 32) matmul.
    acc = jnp.zeros((h.shape[0], w2_ref.shape[2]), f32)
    for j, bi in enumerate(embed_idx):               # static tap -> bank index
        shifted = jnp.dot(shift_ref[bi], h, preferred_element_type=f32)
        acc = acc + jnp.dot(shifted, w2_ref[j], preferred_element_type=f32)
    h = jnp.maximum(acc * s2_ref[...] + c2_ref[...], 0.0)   # (BL, 32), chans [even|odd]

    # ---- embed_layer2: grouped Conv1d(32->16,k=32,g=16) + 1x1 conv + BN + ReLU -------
    # Depthwise taps stay sparse: shift rows, per-channel scale (VPU).  The
    # 2-channels-per-group sum + 1x1 pointwise conv are folded into one (32,16) matmul.
    dw = jnp.zeros_like(h)
    for j, bi in enumerate(dw_idx):
        shifted = jnp.dot(shift_ref[bi], h, preferred_element_type=f32)
        dw = dw + shifted * wg_ref[j]                # wg_ref[j]: (1, 32) per-tap weights
    y = jnp.dot(dw, wpw_ref[...], preferred_element_type=f32)               # (BL, 16)
    x_src = jnp.maximum(y * s3_ref[...] + c3_ref[...], 0.0)

    pe = pe_ref[...]          # (BL, E)  tAPE tiled over batch
    spec = spec_ref[...]      # (BL, BL) (|i-j|/n)*scale inside batch blocks, 0 outside
    bias = bias_ref[...]      # (BL, BL) 0 inside batch blocks, -1e30 outside

    # ---- one attention block (+ to_out LayerNorm, optional residual, LayerNorm) ------
    def attn_block(x, m_ref, wv_ref, g_to, b_to, g_ln, b_ln, residual):
        xp = x + pe                                          # tAPE (dropout = identity)
        v = jnp.dot(xp, wv_ref[...], preferred_element_type=f32)      # (BL, E) all heads
        out = jnp.zeros_like(x)
        num_heads = m_ref.shape[0]
        for hh in range(num_heads):
            # scores via the folded matrix: (xp @ Wq_h)(xp @ Wk_h)^T == xp @ M_h @ xp^T
            qm = jnp.dot(xp, m_ref[hh], preferred_element_type=f32)         # (BL, E)
            s = jax.lax.dot_general(qm, xp, (((1,), (1,)), ((), ())),
                                    preferred_element_type=f32)             # (BL, BL)
            s = s * spec + bias                  # multiplicative spec + cross-batch mask
            s = s - jnp.max(s, axis=-1, keepdims=True)
            p = jnp.exp(s)
            p = p * pl.reciprocal(jnp.sum(p, axis=-1, keepdims=True), approx=True)
            # head column mask == old head-placed V projection (exactly equal)
            out = out + jnp.dot(p, v * vmask_ref[hh], preferred_element_type=f32)
        out = _layer_norm(out, g_to, b_to, eps)              # Attention.to_out
        if residual:
            out = out + x                                    # att + x_src
        return _layer_norm(out, g_ln, b_ln, eps)             # LayerNorm1 / LayerNorm2

    att = attn_block(x_src, m1_ref, wv1_ref,
                     gt1_ref[...], bt1_ref[...], gl1_ref[...], bl1_ref[...],
                     residual=True)
    att = attn_block(att, m2_ref, wv2_ref,
                     gt2_ref[...], bt2_ref[...], gl2_ref[...], bl2_ref[...],
                     residual=False)

    # ---- gap + flatten + Linear(16, num_classes): fused epilogue ----------------------
    pooled = jnp.dot(pool_ref[...], att, preferred_element_type=f32)        # (B, E)
    o_ref[...] = jnp.dot(pooled, wout_ref[...],
                         preferred_element_type=f32) + bout_ref[...]


# --------------------------------------------------------------------------------------
# Wrapper
# --------------------------------------------------------------------------------------

def forward(x, params, *, embed_idx, dw_idx):
    B = x.shape[0]
    x2 = x.reshape(B, -1)                                    # (B, L_in); C_in == 1
    L = (x2.shape[1] - 8) // 4 + 1
    # stride-4 / k=8 'valid' im2col by pure slice + reshape + concat (no gather):
    p1 = jnp.concatenate(
        [x2[:, 0:4 * L].reshape(B, L, 4),
         x2[:, 4:4 * L + 4].reshape(B, L, 4)], axis=-1).reshape(B * L, 8)

    operands = (
        p1, params['w1'], params['s1'], params['c1'],
        params['shift'],
        params['w2'], params['s2'], params['c2'],
        params['wg'], params['wpw'], params['s3'], params['c3'],
        params['pe'], params['spec'], params['bias'],
        params['m1'], params['wv1'], params['vmask'],
        params['g_to1'], params['b_to1'], params['g_ln1'], params['b_ln1'],
        params['m2'], params['wv2'],
        params['g_to2'], params['b_to2'], params['g_ln2'], params['b_ln2'],
        params['pool'], params['w_out'], params['b_out'],
    )
    num_classes = params['w_out'].shape[1]

    def full_spec(a):
        return pl.BlockSpec(a.shape, lambda *_, n=a.ndim: (0,) * n)

    return pl.pallas_call(
        functools.partial(fused_forward_kernel, eps=1e-5,
                          embed_idx=embed_idx, dw_idx=dw_idx),
        out_shape=jax.ShapeDtypeStruct((B, num_classes), jnp.float32),
        in_specs=[full_spec(a) for a in operands],
        out_specs=pl.BlockSpec((B, num_classes), lambda *_: (0, 0)),
    )(*operands)


# --------------------------------------------------------------------------------------
# Parameters (inference-mode, BN folded, kernel-friendly layouts)
# --------------------------------------------------------------------------------------

def _rnd(k, shape, s=0.1):
    return jax.random.normal(k, shape, dtype=jnp.float32) * s


def init_params(key, *, batch, emb0=8, e1=32, e2=16, num_classes=3, dim_ff=16,
                num_heads=4):
    ks = iter(jax.random.split(key, 32))
    eps_bn = 1e-5
    bn_scale = 1.0 / jnp.sqrt(jnp.float32(1.0 + eps_bn))     # running_var = 1 at init
    B, L = batch, dim_ff
    BL = B * L
    p = {}

    # --- patching_layer: Conv1d(1, 8, k=8, stride=4) + BN(8) + ReLU --------------------
    w = _rnd(next(ks), (emb0, 1, 8)); b = _rnd(next(ks), (emb0,))
    g = 1.0 + _rnd(next(ks), (emb0,)); be = _rnd(next(ks), (emb0,))
    s = g * bn_scale
    p['w1'] = w.reshape(emb0, 8).T                           # (k, c_out)
    p['s1'] = s.reshape(1, -1)
    p['c1'] = (be + s * b).reshape(1, -1)

    # --- shared row-shift bank: block-diagonal 0/1 matrices, contributing offsets only -
    k2, k3 = 8, 32
    pad2, pad3 = (k2 - 1) // 2, (k3 - 1) // 2                # PyTorch 'same' left pads
    embed_taps = [t for t in range(k2) if abs(t - pad2) <= L - 1]
    embed_offs = [t - pad2 for t in embed_taps]              # -3 .. +4
    dw_taps = [t for t in range(k3) if abs(t - pad3) <= L - 1]   # drop all-zero taps
    dw_offs = [t - pad3 for t in dw_taps]                    # -15 .. +15 (no +16)
    all_offs = sorted(set(embed_offs + dw_offs))
    off2idx = {o: i for i, o in enumerate(all_offs)}
    embed_idx = tuple(off2idx[o] for o in embed_offs)
    dw_idx = tuple(off2idx[o] for o in dw_offs)

    r = jnp.arange(BL)
    rows, cols = r[:, None], r[None, :]
    same = (rows // L) == (cols // L)
    p['shift'] = jnp.stack(
        [jnp.where((cols == rows + o) & same, 1.0, 0.0) for o in all_offs]
    ).astype(jnp.float32)                                    # (n_off, BL, BL)

    # --- embed_layer: Conv1d(8, 32, k=8, 'same') + BN(32) + ReLU -----------------------
    # output channels permuted to [even | odd] so the grouped conv's two inputs per
    # group become the two contiguous 16-channel halves downstream.
    perm = jnp.concatenate([jnp.arange(0, e1, 2), jnp.arange(1, e1, 2)])
    w = _rnd(next(ks), (e1, emb0, k2)); b = _rnd(next(ks), (e1,))
    g = 1.0 + _rnd(next(ks), (e1,)); be = _rnd(next(ks), (e1,))
    s = g * bn_scale
    w2 = jnp.transpose(w, (2, 1, 0))[:, :, perm]             # (k, c_in, c_out_perm)
    p['w2'] = w2[jnp.array(embed_taps)]                      # contributing taps only
    p['s2'] = s[perm].reshape(1, -1)
    p['c2'] = (be + s * b)[perm].reshape(1, -1)

    # --- embed_layer2: grouped Conv1d(32->16,k=32,g=16,no bias) + 1x1 conv + BN(16) ----
    wg = _rnd(next(ks), (e2, 2, k3))                         # (out, in/group, k)
    wpw = _rnd(next(ks), (e2, e2))                           # 1x1 conv (out, in)
    g = 1.0 + _rnd(next(ks), (e2,)); be = _rnd(next(ks), (e2,))
    # wg_packed[t, m] = wg[m,0,t] (even half); wg_packed[t, 16+m] = wg[m,1,t] (odd half)
    wg_packed = jnp.concatenate([wg[:, 0, :].T, wg[:, 1, :].T], axis=1)     # (k3, 32)
    p['wg'] = wg_packed[jnp.array(dw_taps)][:, None, :]                     # (n_dw,1,32)
    # fold the even/odd pair-sum and the pointwise conv into one (32, 16) matmul
    p['wpw'] = jnp.concatenate([wpw.T, wpw.T], axis=0)                      # (32, 16)
    p['s3'] = (g * bn_scale).reshape(1, -1)
    p['c3'] = be.reshape(1, -1)

    # --- tAPE positional encoding (d_model = e2, max_len = dim_ff, scale_factor = 1) ---
    position = jnp.arange(dim_ff, dtype=jnp.float32)[:, None]
    div_term = jnp.exp(jnp.arange(0, e2, 2, dtype=jnp.float32)
                       * (-math.log(10000.0) / e2))
    pe = jnp.zeros((dim_ff, e2), dtype=jnp.float32)
    pe = pe.at[:, 0::2].set(jnp.sin(position * div_term * (e2 / dim_ff)))
    pe = pe.at[:, 1::2].set(jnp.cos(position * div_term * (e2 / dim_ff)))
    p['pe'] = jnp.tile(pe, (B, 1))                                          # (BL, e2)

    # --- spec_attn_wghts (|i-j|/n), attention scale and cross-batch additive mask ------
    scale = float(e2) ** (-0.5)                              # emb_size ** -0.5
    spec = jnp.abs((rows % L) - (cols % L)).astype(jnp.float32) / float(L)
    p['spec'] = jnp.where(same, spec * scale, 0.0)                          # (BL, BL)
    p['bias'] = jnp.where(same, 0.0, -1e30).astype(jnp.float32)             # (BL, BL)

    # --- attention layers 1 & 2: folded per-head Wq@Wk^T, shared V, head column masks --
    d = e2 // num_heads
    col = jnp.arange(e2)
    p['vmask'] = jnp.stack(
        [((col >= h * d) & (col < (h + 1) * d)).astype(jnp.float32)
         for h in range(num_heads)])[:, None, :]             # (H, 1, E)
    for i in (1, 2):
        aq = _rnd(next(ks), (e2, e2))                        # nn.Linear weight (out, in)
        ak = _rnd(next(ks), (e2, e2))
        av = _rnd(next(ks), (e2, e2))
        # M_h = Wq_h @ Wk_h^T, with Wq_h = aq[h*d:(h+1)*d, :].T  (x @ aq.T per-head cols)
        p[f'm{i}'] = jnp.stack(
            [aq[h * d:(h + 1) * d, :].T @ ak[h * d:(h + 1) * d, :]
             for h in range(num_heads)])                     # (H, E, E)
        p[f'wv{i}'] = av.T                                   # (E, E), all heads at once
        p[f'g_to{i}'] = (1.0 + _rnd(next(ks), (e2,))).reshape(1, -1)   # Attention.to_out
        p[f'b_to{i}'] = _rnd(next(ks), (e2,)).reshape(1, -1)
        p[f'g_ln{i}'] = (1.0 + _rnd(next(ks), (e2,))).reshape(1, -1)   # LayerNorm1/2
        p[f'b_ln{i}'] = _rnd(next(ks), (e2,)).reshape(1, -1)

    # --- gap (as a constant (B, BL) matmul) + final Linear(16, num_classes) ------------
    p['pool'] = jnp.where(jnp.arange(B)[:, None] == (r[None, :] // L),
                          1.0 / L, 0.0).astype(jnp.float32)                 # (B, BL)
    p['w_out'] = _rnd(next(ks), (num_classes, e2)).T
    p['b_out'] = _rnd(next(ks), (num_classes,)).reshape(1, -1)
    return p, embed_idx, dw_idx


# --------------------------------------------------------------------------------------

if __name__ == "__main__":
    # Module config: emb_size=8 (patching channels), num_heads=4, dropout=0.0 (eval),
    # num_classes=3, dim_ff=16, num_features unused in forward.
    B = 2
    DIM_FF = 16                      # sequence length after the patching conv
    L_IN = (DIM_FF - 1) * 4 + 8      # 68: 'valid' stride-4 k=8 conv yields dim_ff steps
    NUM_HEADS = 4
    NUM_CLASSES = 3

    key = jax.random.PRNGKey(0)
    kx, kp = jax.random.split(key)
    x = jax.random.normal(kx, (B, 1, L_IN), dtype=jnp.float32)
    params, embed_idx, dw_idx = init_params(
        kp, batch=B, emb0=8, e1=32, e2=16,
        num_classes=NUM_CLASSES, dim_ff=DIM_FF, num_heads=NUM_HEADS)

    fwd = jax.jit(functools.partial(forward, embed_idx=embed_idx, dw_idx=dw_idx))
    out = jax.block_until_ready(fwd(x, params))

    assert out.shape == (B, NUM_CLASSES), out.shape
    assert bool(jnp.all(jnp.isfinite(out)))
    print("KERNEL_OK")
</pallas_src>

<mosaic_0001>
module attributes {stable_mosaic.version = 11 : i64} {
  func.func @fused_forward_kernel(%arg0: memref<32x8xf32, #tpu.memory_space<vmem>>, %arg1: memref<8x8xf32, #tpu.memory_space<vmem>>, %arg2: memref<1x8xf32, #tpu.memory_space<vmem>>, %arg3: memref<1x8xf32, #tpu.memory_space<vmem>>, %arg4: memref<31x32x32xf32, #tpu.memory_space<vmem>>, %arg5: memref<8x8x32xf32, #tpu.memory_space<vmem>>, %arg6: memref<1x32xf32, #tpu.memory_space<vmem>>, %arg7: memref<1x32xf32, #tpu.memory_space<vmem>>, %arg8: memref<31x1x32xf32, #tpu.memory_space<vmem>>, %arg9: memref<32x16xf32, #tpu.memory_space<vmem>>, %arg10: memref<1x16xf32, #tpu.memory_space<vmem>>, %arg11: memref<1x16xf32, #tpu.memory_space<vmem>>, %arg12: memref<32x16xf32, #tpu.memory_space<vmem>>, %arg13: memref<32x32xf32, #tpu.memory_space<vmem>>, %arg14: memref<32x32xf32, #tpu.memory_space<vmem>>, %arg15: memref<4x16x16xf32, #tpu.memory_space<vmem>>, %arg16: memref<16x16xf32, #tpu.memory_space<vmem>>, %arg17: memref<4x1x16xf32, #tpu.memory_space<vmem>>, %arg18: memref<1x16xf32, #tpu.memory_space<vmem>>, %arg19: memref<1x16xf32, #tpu.memory_space<vmem>>, %arg20: memref<1x16xf32, #tpu.memory_space<vmem>>, %arg21: memref<1x16xf32, #tpu.memory_space<vmem>>, %arg22: memref<4x16x16xf32, #tpu.memory_space<vmem>>, %arg23: memref<16x16xf32, #tpu.memory_space<vmem>>, %arg24: memref<1x16xf32, #tpu.memory_space<vmem>>, %arg25: memref<1x16xf32, #tpu.memory_space<vmem>>, %arg26: memref<1x16xf32, #tpu.memory_space<vmem>>, %arg27: memref<1x16xf32, #tpu.memory_space<vmem>>, %arg28: memref<2x32xf32, #tpu.memory_space<vmem>>, %arg29: memref<16x3xf32, #tpu.memory_space<vmem>>, %arg30: memref<1x3xf32, #tpu.memory_space<vmem>>, %arg31: memref<2x3xf32, #tpu.memory_space<vmem>>) attributes {dimension_semantics = [], scalar_prefetch = 0 : i64, scratch_operands = 0 : i64, tpu.core_type = #tpu.core_type<tc>} {
    %c0 = arith.constant 0 : index
    %c0_0 = arith.constant 0 : index
    %0 = vector.load %arg0[%c0, %c0_0] : memref<32x8xf32, #tpu.memory_space<vmem>>, vector<32x8xf32>
    %c0_1 = arith.constant 0 : index
    %c0_2 = arith.constant 0 : index
    %1 = vector.load %arg1[%c0_1, %c0_2] : memref<8x8xf32, #tpu.memory_space<vmem>>, vector<8x8xf32>
    %cst = arith.constant dense<0.000000e+00> : vector<32x8xf32>
    %2 = tpu.matmul %0, %1, %cst {dimension_numbers = #tpu.dot_dimension_numbers<[1], [0], [0], [1], [0, 0, 1, 1], [], []>} : vector<32x8xf32>, vector<8x8xf32>, vector<32x8xf32> -> vector<32x8xf32>
    %c0_3 = arith.constant 0 : index
    %c0_4 = arith.constant 0 : index
    %3 = vector.load %arg2[%c0_3, %c0_4] : memref<1x8xf32, #tpu.memory_space<vmem>>, vector<1x8xf32>
    %4 = vector.broadcast %3 : vector<1x8xf32> to vector<32x8xf32>
    %5 = arith.mulf %2, %4 : vector<32x8xf32>
    %c0_5 = arith.constant 0 : index
    %c0_6 = arith.constant 0 : index
    %6 = vector.load %arg3[%c0_5, %c0_6] : memref<1x8xf32, #tpu.memory_space<vmem>>, vector<1x8xf32>
    %7 = vector.broadcast %6 : vector<1x8xf32> to vector<32x8xf32>
    %8 = arith.addf %5, %7 : vector<32x8xf32>
    %cst_7 = arith.constant 0.000000e+00 : f32
    %9 = vector.broadcast %cst_7 : f32 to vector<32x8xf32>
    %10 = arith.maximumf %8, %9 : vector<32x8xf32>
    %cst_8 = arith.constant 0.000000e+00 : f32
    %11 = vector.broadcast %cst_8 : f32 to vector<32x32xf32>
    %c12 = arith.constant 12 : index
    %c0_9 = arith.constant 0 : index
    %c0_10 = arith.constant 0 : index
    %12 = vector.load %arg4[%c12, %c0_9, %c0_10] : memref<31x32x32xf32, #tpu.memory_space<vmem>>, vector<1x32x32xf32>
    %13 = vector.shape_cast %12 : vector<1x32x32xf32> to vector<32x32xf32>
    %cst_11 = arith.constant dense<0.000000e+00> : vector<32x8xf32>
    %14 = tpu.matmul %13, %10, %cst_11 {dimension_numbers = #tpu.dot_dimension_numbers<[1], [0], [0], [1], [0, 0, 1, 1], [], []>} : vector<32x32xf32>, vector<32x8xf32>, vector<32x8xf32> -> vector<32x8xf32>
    %c0_12 = arith.constant 0 : index
    %c0_13 = arith.constant 0 : index
    %c0_14 = arith.constant 0 : index
    %15 = vector.load %arg5[%c0_12, %c0_13, %c0_14] : memref<8x8x32xf32, #tpu.memory_space<vmem>>, vector<1x8x32xf32>
    %16 = vector.shape_cast %15 : vector<1x8x32xf32> to vector<8x32xf32>
    %cst_15 = arith.constant dense<0.000000e+00> : vector<32x32xf32>
    %17 = tpu.matmul %14, %16, %cst_15 {dimension_numbers = #tpu.dot_dimension_numbers<[1], [0], [0], [1], [0, 0, 1, 1], [], []>} : vector<32x8xf32>, vector<8x32xf32>, vector<32x32xf32> -> vector<32x32xf32>
    %18 = arith.addf %11, %17 : vector<32x32xf32>
    %c13 = arith.constant 13 : index
    %c0_16 = arith.constant 0 : index
    %c0_17 = arith.constant 0 : index
    %19 = vector.load %arg4[%c13, %c0_16, %c0_17] : memref<31x32x32xf32, #tpu.memory_space<vmem>>, vector<1x32x32xf32>
    %20 = vector.shape_cast %19 : vector<1x32x32xf32> to vector<32x32xf32>
    %cst_18 = arith.constant dense<0.000000e+00> : vector<32x8xf32>
    %21 = tpu.matmul %20, %10, %cst_18 {dimension_numbers = #tpu.dot_dimension_numbers<[1], [0], [0], [1], [0, 0, 1, 1], [], []>} : vector<32x32xf32>, vector<32x8xf32>, vector<32x8xf32> -> vector<32x8xf32>
    %c1 = arith.constant 1 : index
    %c0_19 = arith.constant 0 : index
    %c0_20 = arith.constant 0 : index
    %22 = vector.load %arg5[%c1, %c0_19, %c0_20] : memref<8x8x32xf32, #tpu.memory_space<vmem>>, vector<1x8x32xf32>
    %23 = vector.shape_cast %22 : vector<1x8x32xf32> to vector<8x32xf32>
    %cst_21 = arith.constant dense<0.000000e+00> : vector<32x32xf32>
    %24 = tpu.matmul %21, %23, %cst_21 {dimension_numbers = #tpu.dot_dimension_numbers<[1], [0], [0], [1], [0, 0, 1, 1], [], []>} : vector<32x8xf32>, vector<8x32xf32>, vector<32x32xf32> -> vector<32x32xf32>
    %25 = arith.addf %18, %24 : vector<32x32xf32>
    %c14 = arith.constant 14 : index
    %c0_22 = arith.constant 0 : index
    %c0_23 = arith.constant 0 : index
    %26 = vector.load %arg4[%c14, %c0_22, %c0_23] : memref<31x32x32xf32, #tpu.memory_space<vmem>>, vector<1x32x32xf32>
    %27 = vector.shape_cast %26 : vector<1x32x32xf32> to vector<32x32xf32>
    %cst_24 = arith.constant dense<0.000000e+00> : vector<32x8xf32>
    %28 = tpu.matmul %27, %10, %cst_24 {dimension_numbers = #tpu.dot_dimension_numbers<[1], [0], [0], [1], [0, 0, 1, 1], [], []>} : vector<32x32xf32>, vector<32x8xf32>, vector<32x8xf32> -> vector<32x8xf32>
    %c2 = arith.constant 2 : index
    %c0_25 = arith.constant 0 : index
    %c0_26 = arith.constant 0 : index
    %29 = vector.load %arg5[%c2, %c0_25, %c0_26] : memref<8x8x32xf32, #tpu.memory_space<vmem>>, vector<1x8x32xf32>
    %30 = vector.shape_cast %29 : vector<1x8x32xf32> to vector<8x32xf32>
    %cst_27 = arith.constant dense<0.000000e+00> : vector<32x32xf32>
    %31 = tpu.matmul %28, %30, %cst_27 {dimension_numbers = #tpu.dot_dimension_numbers<[1], [0], [0], [1], [0, 0, 1, 1], [], []>} : vector<32x8xf32>, vector<8x32xf32>, vector<32x32xf32> -> vector<32x32xf32>
    %32 = arith.addf %25, %31 : vector<32x32xf32>
    %c15 = arith.constant 15 : index
    %c0_28 = arith.constant 0 : index
    %c0_29 = arith.constant 0 : index
    %33 = vector.load %arg4[%c15, %c0_28, %c0_29] : memref<31x32x32xf32, #tpu.memory_space<vmem>>, vector<1x32x32xf32>
    %34 = vector.shape_cast %33 : vector<1x32x32xf32> to vector<32x32xf32>
    %cst_30 = arith.constant dense<0.000000e+00> : vector<32x8xf32>
    %35 = tpu.matmul %34, %10, %cst_30 {dimension_numbers = #tpu.dot_dimension_numbers<[1], [0], [0], [1], [0, 0, 1, 1], [], []>} : vector<32x32xf32>, vector<32x8xf32>, vector<32x8xf32> -> vector<32x8xf32>
    %c3 = arith.constant 3 : index
    %c0_31 = arith.constant 0 : index
    %c0_32 = arith.constant 0 : index
    %36 = vector.load %arg5[%c3, %c0_31, %c0_32] : memref<8x8x32xf32, #tpu.memory_space<vmem>>, vector<1x8x32xf32>
    %37 = vector.shape_cast %36 : vector<1x8x32xf32> to vector<8x32xf32>
    %cst_33 = arith.constant dense<0.000000e+00> : vector<32x32xf32>
    %38 = tpu.matmul %35, %37, %cst_33 {dimension_numbers = #tpu.dot_dimension_numbers<[1], [0], [0], [1], [0, 0, 1, 1], [], []>} : vector<32x8xf32>, vector<8x32xf32>, vector<32x32xf32> -> vector<32x32xf32>
    %39 = arith.addf %32, %38 : vector<32x32xf32>
    %c16 = arith.constant 16 : index
    %c0_34 = arith.constant 0 : index
    %c0_35 = arith.constant 0 : index
    %40 = vector.load %arg4[%c16, %c0_34, %c0_35] : memref<31x32x32xf32, #tpu.memory_space<vmem>>, vector<1x32x32xf32>
    %41 = vector.shape_cast %40 : vector<1x32x32xf32> to vector<32x32xf32>
    %cst_36 = arith.constant dense<0.000000e+00> : vector<32x8xf32>
    %42 = tpu.matmul %41, %10, %cst_36 {dimension_numbers = #tpu.dot_dimension_numbers<[1], [0], [0], [1], [0, 0, 1, 1], [], []>} : vector<32x32xf32>, vector<32x8xf32>, vector<32x8xf32> -> vector<32x8xf32>
    %c4 = arith.constant 4 : index
    %c0_37 = arith.constant 0 : index
    %c0_38 = arith.constant 0 : index
    %43 = vector.load %arg5[%c4, %c0_37, %c0_38] : memref<8x8x32xf32, #tpu.memory_space<vmem>>, vector<1x8x32xf32>
    %44 = vector.shape_cast %43 : vector<1x8x32xf32> to vector<8x32xf32>
    %cst_39 = arith.constant dense<0.000000e+00> : vector<32x32xf32>
    %45 = tpu.matmul %42, %44, %cst_39 {dimension_numbers = #tpu.dot_dimension_numbers<[1], [0], [0], [1], [0, 0, 1, 1], [], []>} : vector<32x8xf32>, vector<8x32xf32>, vector<32x32xf32> -> vector<32x32xf32>
    %46 = arith.addf %39, %45 : vector<32x32xf32>
    %c17 = arith.constant 17 : index
    %c0_40 = arith.constant 0 : index
    %c0_41 = arith.constant 0 : index
    %47 = vector.load %arg4[%c17, %c0_40, %c0_41] : memref<31x32x32xf32, #tpu.memory_space<vmem>>, vector<1x32x32xf32>
    %48 = vector.shape_cast %47 : vector<1x32x32xf32> to vector<32x32xf32>
    %cst_42 = arith.constant dense<0.000000e+00> : vector<32x8xf32>
    %49 = tpu.matmul %48, %10, %cst_42 {dimension_numbers = #tpu.dot_dimension_numbers<[1], [0], [0], [1], [0, 0, 1, 1], [], []>} : vector<32x32xf32>, vector<32x8xf32>, vector<32x8xf32> -> vector<32x8xf32>
    %c5 = arith.constant 5 : index
    %c0_43 = arith.constant 0 : index
    %c0_44 = arith.constant 0 : index
    %50 = vector.load %arg5[%c5, %c0_43, %c0_44] : memref<8x8x32xf32, #tpu.memory_space<vmem>>, vector<1x8x32xf32>
    %51 = vector.shape_cast %50 : vector<1x8x32xf32> to vector<8x32xf32>
    %cst_45 = arith.constant dense<0.000000e+00> : vector<32x32xf32>
    %52 = tpu.matmul %49, %51, %cst_45 {dimension_numbers = #tpu.dot_dimension_numbers<[1], [0], [0], [1], [0, 0, 1, 1], [], []>} : vector<32x8xf32>, vector<8x32xf32>, vector<32x32xf32> -> vector<32x32xf32>
    %53 = arith.addf %46, %52 : vector<32x32xf32>
    %c18 = arith.constant 18 : index
    %c0_46 = arith.constant 0 : index
    %c0_47 = arith.constant 0 : index
    %54 = vector.load %arg4[%c18, %c0_46, %c0_47] : memref<31x32x32xf32, #tpu.memory_space<vmem>>, vector<1x32x32xf32>
    %55 = vector.shape_cast %54 : vector<1x32x32xf32> to vector<32x32xf32>
    %cst_48 = arith.constant dense<0.000000e+00> : vector<32x8xf32>
    %56 = tpu.matmul %55, %10, %cst_48 {dimension_numbers = #tpu.dot_dimension_numbers<[1], [0], [0], [1], [0, 0, 1, 1], [], []>} : vector<32x32xf32>, vector<32x8xf32>, vector<32x8xf32> -> vector<32x8xf32>
    %c6 = arith.constant 6 : index
    %c0_49 = arith.constant 0 : index
    %c0_50 = arith.constant 0 : index
    %57 = vector.load %arg5[%c6, %c0_49, %c0_50] : memref<8x8x32xf32, #tpu.memory_space<vmem>>, vector<1x8x32xf32>
    %58 = vector.shape_cast %57 : vector<1x8x32xf32> to vector<8x32xf32>
    %cst_51 = arith.constant dense<0.000000e+00> : vector<32x32xf32>
    %59 = tpu.matmul %56, %58, %cst_51 {dimension_numbers = #tpu.dot_dimension_numbers<[1], [0], [0], [1], [0, 0, 1, 1], [], []>} : vector<32x8xf32>, vector<8x32xf32>, vector<32x32xf32> -> vector<32x32xf32>
    %60 = arith.addf %53, %59 : vector<32x32xf32>
    %c19 = arith.constant 19 : index
    %c0_52 = arith.constant 0 : index
    %c0_53 = arith.constant 0 : index
    %61 = vector.load %arg4[%c19, %c0_52, %c0_53] : memref<31x32x32xf32, #tpu.memory_space<vmem>>, vector<1x32x32xf32>
    %62 = vector.shape_cast %61 : vector<1x32x32xf32> to vector<32x32xf32>
    %cst_54 = arith.constant dense<0.000000e+00> : vector<32x8xf32>
    %63 = tpu.matmul %62, %10, %cst_54 {dimension_numbers = #tpu.dot_dimension_numbers<[1], [0], [0], [1], [0, 0, 1, 1], [], []>} : vector<32x32xf32>, vector<32x8xf32>, vector<32x8xf32> -> vector<32x8xf32>
    %c7 = arith.constant 7 : index
    %c0_55 = arith.constant 0 : index
    %c0_56 = arith.constant 0 : index
    %64 = vector.load %arg5[%c7, %c0_55, %c0_56] : memref<8x8x32xf32, #tpu.memory_space<vmem>>, vector<1x8x32xf32>
    %65 = vector.shape_cast %64 : vector<1x8x32xf32> to vector<8x32xf32>
    %cst_57 = arith.constant dense<0.000000e+00> : vector<32x32xf32>
    %66 = tpu.matmul %63, %65, %cst_57 {dimension_numbers = #tpu.dot_dimension_numbers<[1], [0], [0], [1], [0, 0, 1, 1], [], []>} : vector<32x8xf32>, vector<8x32xf32>, vector<32x32xf32> -> vector<32x32xf32>
    %67 = arith.addf %60, %66 : vector<32x32xf32>
    %c0_58 = arith.constant 0 : index
    %c0_59 = arith.constant 0 : index
    %68 = vector.load %arg6[%c0_58, %c0_59] : memref<1x32xf32, #tpu.memory_space<vmem>>, vector<1x32xf32>
    %69 = vector.broadcast %68 : vector<1x32xf32> to vector<32x32xf32>
    %70 = arith.mulf %67, %69 : vector<32x32xf32>
    %c0_60 = arith.constant 0 : index
    %c0_61 = arith.constant 0 : index
    %71 = vector.load %arg7[%c0_60, %c0_61] : memref<1x32xf32, #tpu.memory_space<vmem>>, vector<1x32xf32>
    %72 = vector.broadcast %71 : vector<1x32xf32> to vector<32x32xf32>
    %73 = arith.addf %70, %72 : vector<32x32xf32>
    %cst_62 = arith.constant 0.000000e+00 : f32
    %74 = vector.broadcast %cst_62 : f32 to vector<32x32xf32>
    %75 = arith.maximumf %73, %74 : vector<32x32xf32>
    %cst_63 = arith.constant 0.000000e+00 : f32
    %76 = vector.broadcast %cst_63 : f32 to vector<32x32xf32>
    %c0_64 = arith.constant 0 : index
    %c0_65 = arith.constant 0 : index
    %c0_66 = arith.constant 0 : index
    %77 = vector.load %arg4[%c0_64, %c0_65, %c0_66] : memref<31x32x32xf32, #tpu.memory_space<vmem>>, vector<1x32x32xf32>
    %78 = vector.shape_cast %77 : vector<1x32x32xf32> to vector<32x32xf32>
    %cst_67 = arith.constant dense<0.000000e+00> : vector<32x32xf32>
    %79 = tpu.matmul %78, %75, %cst_67 {dimension_numbers = #tpu.dot_dimension_numbers<[1], [0], [0], [1], [0, 0, 1, 1], [], []>} : vector<32x32xf32>, vector<32x32xf32>, vector<32x32xf32> -> vector<32x32xf32>
    %c0_68 = arith.constant 0 : index
    %c0_69 = arith.constant 0 : index
    %c0_70 = arith.constant 0 : index
    %80 = vector.load %arg8[%c0_68, %c0_69, %c0_70] : memref<31x1x32xf32, #tpu.memory_space<vmem>>, vector<1x1x32xf32>
    %81 = vector.shape_cast %80 : vector<1x1x32xf32> to vector<1x32xf32>
    %82 = vector.broadcast %81 : vector<1x32xf32> to vector<32x32xf32>
    %83 = arith.mulf %79, %82 : vector<32x32xf32>
    %84 = arith.addf %76, %83 : vector<32x32xf32>
    %c1_71 = arith.constant 1 : index
    %c0_72 = arith.constant 0 : index
    %c0_73 = arith.constant 0 : index
    %85 = vector.load %arg4[%c1_71, %c0_72, %c0_73] : memref<31x32x32xf32, #tpu.memory_space<vmem>>, vector<1x32x32xf32>
    %86 = vector.shape_cast %85 : vector<1x32x32xf32> to vector<32x32xf32>
    %cst_74 = arith.constant dense<0.000000e+00> : vector<32x32xf32>
    %87 = tpu.matmul %86, %75, %cst_74 {dimension_numbers = #tpu.dot_dimension_numbers<[1], [0], [0], [1], [0, 0, 1, 1], [], []>} : vector<32x32xf32>, vector<32x32xf32>, vector<32x32xf32> -> vector<32x32xf32>
    %c1_75 = arith.constant 1 : index
    %c0_76 = arith.constant 0 : index
    %c0_77 = arith.constant 0 : index
    %88 = vector.load %arg8[%c1_75, %c0_76, %c0_77] : memref<31x1x32xf32, #tpu.memory_space<vmem>>, vector<1x1x32xf32>
    %89 = vector.shape_cast %88 : vector<1x1x32xf32> to vector<1x32xf32>
    %90 = vector.broadcast %89 : vector<1x32xf32> to vector<32x32xf32>
    %91 = arith.mulf %87, %90 : vector<32x32xf32>
    %92 = arith.addf %84, %91 : vector<32x32xf32>
    %c2_78 = arith.constant 2 : index
    %c0_79 = arith.constant 0 : index
    %c0_80 = arith.constant 0 : index
    %93 = vector.load %arg4[%c2_78, %c0_79, %c0_80] : memref<31x32x32xf32, #tpu.memory_space<vmem>>, vector<1x32x32xf32>
    %94 = vector.shape_cast %93 : vector<1x32x32xf32> to vector<32x32xf32>
    %cst_81 = arith.constant dense<0.000000e+00> : vector<32x32xf32>
    %95 = tpu.matmul %94, %75, %cst_81 {dimension_numbers = #tpu.dot_dimension_numbers<[1], [0], [0], [1], [0, 0, 1, 1], [], []>} : vector<32x32xf32>, vector<32x32xf32>, vector<32x32xf32> -> vector<32x32xf32>
    %c2_82 = arith.constant 2 : index
    %c0_83 = arith.constant 0 : index
    %c0_84 = arith.constant 0 : index
    %96 = vector.load %arg8[%c2_82, %c0_83, %c0_84] : memref<31x1x32xf32, #tpu.memory_space<vmem>>, vector<1x1x32xf32>
    %97 = vector.shape_cast %96 : vector<1x1x32xf32> to vector<1x32xf32>
    %98 = vector.broadcast %97 : vector<1x32xf32> to vector<32x32xf32>
    %99 = arith.mulf %95, %98 : vector<32x32xf32>
    %100 = arith.addf %92, %99 : vector<32x32xf32>
    %c3_85 = arith.constant 3 : index
    %c0_86 = arith.constant 0 : index
    %c0_87 = arith.constant 0 : index
    %101 = vector.load %arg4[%c3_85, %c0_86, %c0_87] : memref<31x32x32xf32, #tpu.memory_space<vmem>>, vector<1x32x32xf32>
    %102 = vector.shape_cast %101 : vector<1x32x32xf32> to vector<32x32xf32>
    %cst_88 = arith.constant dense<0.000000e+00> : vector<32x32xf32>
    %103 = tpu.matmul %102, %75, %cst_88 {dimension_numbers = #tpu.dot_dimension_numbers<[1], [0], [0], [1], [0, 0, 1, 1], [], []>} : vector<32x32xf32>, vector<32x32xf32>, vector<32x32xf32> -> vector<32x32xf32>
    %c3_89 = arith.constant 3 : index
    %c0_90 = arith.constant 0 : index
    %c0_91 = arith.constant 0 : index
    %104 = vector.load %arg8[%c3_89, %c0_90, %c0_91] : memref<31x1x32xf32, #tpu.memory_space<vmem>>, vector<1x1x32xf32>
    %105 = vector.shape_cast %104 : vector<1x1x32xf32> to vector<1x32xf32>
    %106 = vector.broadcast %105 : vector<1x32xf32> to vector<32x32xf32>
    %107 = arith.mulf %103, %106 : vector<32x32xf32>
    %108 = arith.addf %100, %107 : vector<32x32xf32>
    %c4_92 = arith.constant 4 : index
    %c0_93 = arith.constant 0 : index
    %c0_94 = arith.constant 0 : index
    %109 = vector.load %arg4[%c4_92, %c0_93, %c0_94] : memref<31x32x32xf32, #tpu.memory_space<vmem>>, vector<1x32x32xf32>
    %110 = vector.shape_cast %109 : vector<1x32x32xf32> to vector<32x32xf32>
    %cst_95 = arith.constant dense<0.000000e+00> : vector<32x32xf32>
    %111 = tpu.matmul %110, %75, %cst_95 {dimension_numbers = #tpu.dot_dimension_numbers<[1], [0], [0], [1], [0, 0, 1, 1], [], []>} : vector<32x32xf32>, vector<32x32xf32>, vector<32x32xf32> -> vector<32x32xf32>
    %c4_96 = arith.constant 4 : index
    %c0_97 = arith.constant 0 : index
    %c0_98 = arith.constant 0 : index
    %112 = vector.load %arg8[%c4_96, %c0_97, %c0_98] : memref<31x1x32xf32, #tpu.memory_space<vmem>>, vector<1x1x32xf32>
    %113 = vector.shape_cast %112 : vector<1x1x32xf32> to vector<1x32xf32>
    %114 = vector.broadcast %113 : vector<1x32xf32> to vector<32x32xf32>
    %115 = arith.mulf %111, %114 : vector<32x32xf32>
    %116 = arith.addf %108, %115 : vector<32x32xf32>
    %c5_99 = arith.constant 5 : index
    %c0_100 = arith.constant 0 : index
    %c0_101 = arith.constant 0 : index
    %117 = vector.load %arg4[%c5_99, %c0_100, %c0_101] : memref<31x32x32xf32, #tpu.memory_space<vmem>>, vector<1x32x32xf32>
    %118 = vector.shape_cast %117 : vector<1x32x32xf32> to vector<32x32xf32>
    %cst_102 = arith.constant dense<0.000000e+00> : vector<32x32xf32>
    %119 = tpu.matmul %118, %75, %cst_102 {dimension_numbers = #tpu.dot_dimension_numbers<[1], [0], [0], [1], [0, 0, 1, 1], [], []>} : vector<32x32xf32>, vector<32x32xf32>, vector<32x32xf32> -> vector<32x32xf32>
    %c5_103 = arith.constant 5 : index
    %c0_104 = arith.constant 0 : index
    %c0_105 = arith.constant 0 : index
    %120 = vector.load %arg8[%c5_103, %c0_104, %c0_105] : memref<31x1x32xf32, #tpu.memory_space<vmem>>, vector<1x1x32xf32>
    %121 = vector.shape_cast %120 : vector<1x1x32xf32> to vector<1x32xf32>
    %122 = vector.broadcast %121 : vector<1x32xf32> to vector<32x32xf32>
    %123 = arith.mulf %119, %122 : vector<32x32xf32>
    %124 = arith.addf %116, %123 : vector<32x32xf32>
    %c6_106 = arith.constant 6 : index
    %c0_107 = arith.constant 0 : index
    %c0_108 = arith.constant 0 : index
    %125 = vector.load %arg4[%c6_106, %c0_107, %c0_108] : memref<31x32x32xf32, #tpu.memory_space<vmem>>, vector<1x32x32xf32>
    %126 = vector.shape_cast %125 : vector<1x32x32xf32> to vector<32x32xf32>
    %cst_109 = arith.constant dense<0.000000e+00> : vector<32x32xf32>
    %127 = tpu.matmul %126, %75, %cst_109 {dimension_numbers = #tpu.dot_dimension_numbers<[1], [0], [0], [1], [0, 0, 1, 1], [], []>} : vector<32x32xf32>, vector<32x32xf32>, vector<32x32xf32> -> vector<32x32xf32>
    %c6_110 = arith.constant 6 : index
    %c0_111 = arith.constant 0 : index
    %c0_112 = arith.constant 0 : index
    %128 = vector.load %arg8[%c6_110, %c0_111, %c0_112] : memref<31x1x32xf32, #tpu.memory_space<vmem>>, vector<1x1x32xf32>
    %129 = vector.shape_cast %128 : vector<1x1x32xf32> to vector<1x32xf32>
    %130 = vector.broadcast %129 : vector<1x32xf32> to vector<32x32xf32>
    %131 = arith.mulf %127, %130 : vector<32x32xf32>
    %132 = arith.addf %124, %131 : vector<32x32xf32>
    %c7_113 = arith.constant 7 : index
    %c0_114 = arith.constant 0 : index
    %c0_115 = arith.constant 0 : index
    %133 = vector.load %arg4[%c7_113, %c0_114, %c0_115] : memref<31x32x32xf32, #tpu.memory_space<vmem>>, vector<1x32x32xf32>
    %134 = vector.shape_cast %133 : vector<1x32x32xf32> to vector<32x32xf32>
    %cst_116 = arith.constant dense<0.000000e+00> : vector<32x32xf32>
    %135 = tpu.matmul %134, %75, %cst_116 {dimension_numbers = #tpu.dot_dimension_numbers<[1], [0], [0], [1], [0, 0, 1, 1], [], []>} : vector<32x32xf32>, vector<32x32xf32>, vector<32x32xf32> -> vector<32x32xf32>
    %c7_117 = arith.constant 7 : index
    %c0_118 = arith.constant 0 : index
    %c0_119 = arith.constant 0 : index
    %136 = vector.load %arg8[%c7_117, %c0_118, %c0_119] : memref<31x1x32xf32, #tpu.memory_space<vmem>>, vector<1x1x32xf32>
    %137 = vector.shape_cast %136 : vector<1x1x32xf32> to vector<1x32xf32>
    %138 = vector.broadcast %137 : vector<1x32xf32> to vector<32x32xf32>
    %139 = arith.mulf %135, %138 : vector<32x32xf32>
    %140 = arith.addf %132, %139 : vector<32x32xf32>
    %c8 = arith.constant 8 : index
    %c0_120 = arith.constant 0 : index
    %c0_121 = arith.constant 0 : index
    %141 = vector.load %arg4[%c8, %c0_120, %c0_121] : memref<31x32x32xf32, #tpu.memory_space<vmem>>, vector<1x32x32xf32>
    %142 = vector.shape_cast %141 : vector<1x32x32xf32> to vector<32x32xf32>
    %cst_122 = arith.constant dense<0.000000e+00> : vector<32x32xf32>
    %143 = tpu.matmul %142, %75, %cst_122 {dimension_numbers = #tpu.dot_dimension_numbers<[1], [0], [0], [1], [0, 0, 1, 1], [], []>} : vector<32x32xf32>, vector<32x32xf32>, vector<32x32xf32> -> vector<32x32xf32>
    %c8_123 = arith.constant 8 : index
    %c0_124 = arith.constant 0 : index
    %c0_125 = arith.constant 0 : index
    %144 = vector.load %arg8[%c8_123, %c0_124, %c0_125] : memref<31x1x32xf32, #tpu.memory_space<vmem>>, vector<1x1x32xf32>
    %145 = vector.shape_cast %144 : vector<1x1x32xf32> to vector<1x32xf32>
    %146 = vector.broadcast %145 : vector<1x32xf32> to vector<32x32xf32>
    %147 = arith.mulf %143, %146 : vector<32x32xf32>
    %148 = arith.addf %140, %147 : vector<32x32xf32>
    %c9 = arith.constant 9 : index
    %c0_126 = arith.constant 0 : index
    %c0_127 = arith.constant 0 : index
    %149 = vector.load %arg4[%c9, %c0_126, %c0_127] : memref<31x32x32xf32, #tpu.memory_space<vmem>>, vector<1x32x32xf32>
    %150 = vector.shape_cast %149 : vector<1x32x32xf32> to vector<32x32xf32>
    %cst_128 = arith.constant dense<0.000000e+00> : vector<32x32xf32>
    %151 = tpu.matmul %150, %75, %cst_128 {dimension_numbers = #tpu.dot_dimension_numbers<[1], [0], [0], [1], [0, 0, 1, 1], [], []>} : vector<32x32xf32>, vector<32x32xf32>, vector<32x32xf32> -> vector<32x32xf32>
    %c9_129 = arith.constant 9 : index
    %c0_130 = arith.constant 0 : index
    %c0_131 = arith.constant 0 : index
    %152 = vector.load %arg8[%c9_129, %c0_130, %c0_131] : memref<31x1x32xf32, #tpu.memory_space<vmem>>, vector<1x1x32xf32>
    %153 = vector.shape_cast %152 : vector<1x1x32xf32> to vector<1x32xf32>
    %154 = vector.broadcast %153 : vector<1x32xf32> to vector<32x32xf32>
    %155 = arith.mulf %151, %154 : vector<32x32xf32>
    %156 = arith.addf %148, %155 : vector<32x32xf32>
    %c10 = arith.constant 10 : index
    %c0_132 = arith.constant 0 : index
    %c0_133 = arith.constant 0 : index
    %157 = vector.load %arg4[%c10, %c0_132, %c0_133] : memref<31x32x32xf32, #tpu.memory_space<vmem>>, vector<1x32x32xf32>
    %158 = vector.shape_cast %157 : vector<1x32x32xf32> to vector<32x32xf32>
    %cst_134 = arith.constant dense<0.000000e+00> : vector<32x32xf32>
    %159 = tpu.matmul %158, %75, %cst_134 {dimension_numbers = #tpu.dot_dimension_numbers<[1], [0], [0], [1], [0, 0, 1, 1], [], []>} : vector<32x32xf32>, vector<32x32xf32>, vector<32x32xf32> -> vector<32x32xf32>
    %c10_135 = arith.constant 10 : index
    %c0_136 = arith.constant 0 : index
    %c0_137 = arith.constant 0 : index
    %160 = vector.load %arg8[%c10_135, %c0_136, %c0_137] : memref<31x1x32xf32, #tpu.memory_space<vmem>>, vector<1x1x32xf32>
    %161 = vector.shape_cast %160 : vector<1x1x32xf32> to vector<1x32xf32>
    %162 = vector.broadcast %161 : vector<1x32xf32> to vector<32x32xf32>
    %163 = arith.mulf %159, %162 : vector<32x32xf32>
    %164 = arith.addf %156, %163 : vector<32x32xf32>
    %c11 = arith.constant 11 : index
    %c0_138 = arith.constant 0 : index
    %c0_139 = arith.constant 0 : index
    %165 = vector.load %arg4[%c11, %c0_138, %c0_139] : memref<31x32x32xf32, #tpu.memory_space<vmem>>, vector<1x32x32xf32>
    %166 = vector.shape_cast %165 : vector<1x32x32xf32> to vector<32x32xf32>
    %cst_140 = arith.constant dense<0.000000e+00> : vector<32x32xf32>
    %167 = tpu.matmul %166, %75, %cst_140 {dimension_numbers = #tpu.dot_dimension_numbers<[1], [0], [0], [1], [0, 0, 1, 1], [], []>} : vector<32x32xf32>, vector<32x32xf32>, vector<32x32xf32> -> vector<32x32xf32>
    %c11_141 = arith.constant 11 : index
    %c0_142 = arith.constant 0 : index
    %c0_143 = arith.constant 0 : index
    %168 = vector.load %arg8[%c11_141, %c0_142, %c0_143] : memref<31x1x32xf32, #tpu.memory_space<vmem>>, vector<1x1x32xf32>
    %169 = vector.shape_cast %168 : vector<1x1x32xf32> to vector<1x32xf32>
    %170 = vector.broadcast %169 : vector<1x32xf32> to vector<32x32xf32>
    %171 = arith.mulf %167, %170 : vector<32x32xf32>
    %172 = arith.addf %164, %171 : vector<32x32xf32>
    %c12_144 = arith.constant 12 : index
    %c0_145 = arith.constant 0 : index
    %c0_146 = arith.constant 0 : index
    %173 = vector.load %arg4[%c12_144, %c0_145, %c0_146] : memref<31x32x32xf32, #tpu.memory_space<vmem>>, vector<1x32x32xf32>
    %174 = vector.shape_cast %173 : vector<1x32x32xf32> to vector<32x32xf32>
    %cst_147 = arith.constant dense<0.000000e+00> : vector<32x32xf32>
    %175 = tpu.matmul %174, %75, %cst_147 {dimension_numbers = #tpu.dot_dimension_numbers<[1], [0], [0], [1], [0, 0, 1, 1], [], []>} : vector<32x32xf32>, vector<32x32xf32>, vector<32x32xf32> -> vector<32x32xf32>
    %c12_148 = arith.constant 12 : index
    %c0_149 = arith.constant 0 : index
    %c0_150 = arith.constant 0 : index
    %176 = vector.load %arg8[%c12_148, %c0_149, %c0_150] : memref<31x1x32xf32, #tpu.memory_space<vmem>>, vector<1x1x32xf32>
    %177 = vector.shape_cast %176 : vector<1x1x32xf32> to vector<1x32xf32>
    %178 = vector.broadcast %177 : vector<1x32xf32> to vector<32x32xf32>
    %179 = arith.mulf %175, %178 : vector<32x32xf32>
    %180 = arith.addf %172, %179 : vector<32x32xf32>
    %c13_151 = arith.constant 13 : index
    %c0_152 = arith.constant 0 : index
    %c0_153 = arith.constant 0 : index
    %181 = vector.load %arg4[%c13_151, %c0_152, %c0_153] : memref<31x32x32xf32, #tpu.memory_space<vmem>>, vector<1x32x32xf32>
    %182 = vector.shape_cast %181 : vector<1x32x32xf32> to vector<32x32xf32>
    %cst_154 = arith.constant dense<0.000000e+00> : vector<32x32xf32>
    %183 = tpu.matmul %182, %75, %cst_154 {dimension_numbers = #tpu.dot_dimension_numbers<[1], [0], [0], [1], [0, 0, 1, 1], [], []>} : vector<32x32xf32>, vector<32x32xf32>, vector<32x32xf32> -> vector<32x32xf32>
    %c13_155 = arith.constant 13 : index
    %c0_156 = arith.constant 0 : index
    %c0_157 = arith.constant 0 : index
    %184 = vector.load %arg8[%c13_155, %c0_156, %c0_157] : memref<31x1x32xf32, #tpu.memory_space<vmem>>, vector<1x1x32xf32>
    %185 = vector.shape_cast %184 : vector<1x1x32xf32> to vector<1x32xf32>
    %186 = vector.broadcast %185 : vector<1x32xf32> to vector<32x32xf32>
    %187 = arith.mulf %183, %186 : vector<32x32xf32>
    %188 = arith.addf %180, %187 : vector<32x32xf32>
    %c14_158 = arith.constant 14 : index
    %c0_159 = arith.constant 0 : index
    %c0_160 = arith.constant 0 : index
    %189 = vector.load %arg4[%c14_158, %c0_159, %c0_160] : memref<31x32x32xf32, #tpu.memory_space<vmem>>, vector<1x32x32xf32>
    %190 = vector.shape_cast %189 : vector<1x32x32xf32> to vector<32x32xf32>
    %cst_161 = arith.constant dense<0.000000e+00> : vector<32x32xf32>
    %191 = tpu.matmul %190, %75, %cst_161 {dimension_numbers = #tpu.dot_dimension_numbers<[1], [0], [0], [1], [0, 0, 1, 1], [], []>} : vector<32x32xf32>, vector<32x32xf32>, vector<32x32xf32> -> vector<32x32xf32>
    %c14_162 = arith.constant 14 : index
    %c0_163 = arith.constant 0 : index
    %c0_164 = arith.constant 0 : index
    %192 = vector.load %arg8[%c14_162, %c0_163, %c0_164] : memref<31x1x32xf32, #tpu.memory_space<vmem>>, vector<1x1x32xf32>
    %193 = vector.shape_cast %192 : vector<1x1x32xf32> to vector<1x32xf32>
    %194 = vector.broadcast %193 : vector<1x32xf32> to vector<32x32xf32>
    %195 = arith.mulf %191, %194 : vector<32x32xf32>
    %196 = arith.addf %188, %195 : vector<32x32xf32>
    %c15_165 = arith.constant 15 : index
    %c0_166 = arith.constant 0 : index
    %c0_167 = arith.constant 0 : index
    %197 = vector.load %arg4[%c15_165, %c0_166, %c0_167] : memref<31x32x32xf32, #tpu.memory_space<vmem>>, vector<1x32x32xf32>
    %198 = vector.shape_cast %197 : vector<1x32x32xf32> to vector<32x32xf32>
    %cst_168 = arith.constant dense<0.000000e+00> : vector<32x32xf32>
    %199 = tpu.matmul %198, %75, %cst_168 {dimension_numbers = #tpu.dot_dimension_numbers<[1], [0], [0], [1], [0, 0, 1, 1], [], []>} : vector<32x32xf32>, vector<32x32xf32>, vector<32x32xf32> -> vector<32x32xf32>
    %c15_169 = arith.constant 15 : index
    %c0_170 = arith.constant 0 : index
    %c0_171 = arith.constant 0 : index
    %200 = vector.load %arg8[%c15_169, %c0_170, %c0_171] : memref<31x1x32xf32, #tpu.memory_space<vmem>>, vector<1x1x32xf32>
    %201 = vector.shape_cast %200 : vector<1x1x32xf32> to vector<1x32xf32>
    %202 = vector.broadcast %201 : vector<1x32xf32> to vector<32x32xf32>
    %203 = arith.mulf %199, %202 : vector<32x32xf32>
    %204 = arith.addf %196, %203 : vector<32x32xf32>
    %c16_172 = arith.constant 16 : index
    %c0_173 = arith.constant 0 : index
    %c0_174 = arith.constant 0 : index
    %205 = vector.load %arg4[%c16_172, %c0_173, %c0_174] : memref<31x32x32xf32, #tpu.memory_space<vmem>>, vector<1x32x32xf32>
    %206 = vector.shape_cast %205 : vector<1x32x32xf32> to vector<32x32xf32>
    %cst_175 = arith.constant dense<0.000000e+00> : vector<32x32xf32>
    %207 = tpu.matmul %206, %75, %cst_175 {dimension_numbers = #tpu.dot_dimension_numbers<[1], [0], [0], [1], [0, 0, 1, 1], [], []>} : vector<32x32xf32>, vector<32x32xf32>, vector<32x32xf32> -> vector<32x32xf32>
    %c16_176 = arith.constant 16 : index
    %c0_177 = arith.constant 0 : index
    %c0_178 = arith.constant 0 : index
    %208 = vector.load %arg8[%c16_176, %c0_177, %c0_178] : memref<31x1x32xf32, #tpu.memory_space<vmem>>, vector<1x1x32xf32>
    %209 = vector.shape_cast %208 : vector<1x1x32xf32> to vector<1x32xf32>
    %210 = vector.broadcast %209 : vector<1x32xf32> to vector<32x32xf32>
    %211 = arith.mulf %207, %210 : vector<32x32xf32>
    %212 = arith.addf %204, %211 : vector<32x32xf32>
    %c17_179 = arith.constant 17 : index
    %c0_180 = arith.constant 0 : index
    %c0_181 = arith.constant 0 : index
    %213 = vector.load %arg4[%c17_179, %c0_180, %c0_181] : memref<31x32x32xf32, #tpu.memory_space<vmem>>, vector<1x32x32xf32>
    %214 = vector.shape_cast %213 : vector<1x32x32xf32> to vector<32x32xf32>
    %cst_182 = arith.constant dense<0.000000e+00> : vector<32x32xf32>
    %215 = tpu.matmul %214, %75, %cst_182 {dimension_numbers = #tpu.dot_dimension_numbers<[1], [0], [0], [1], [0, 0, 1, 1], [], []>} : vector<32x32xf32>, vector<32x32xf32>, vector<32x32xf32> -> vector<32x32xf32>
    %c17_183 = arith.constant 17 : index
    %c0_184 = arith.constant 0 : index
    %c0_185 = arith.constant 0 : index
    %216 = vector.load %arg8[%c17_183, %c0_184, %c0_185] : memref<31x1x32xf32, #tpu.memory_space<vmem>>, vector<1x1x32xf32>
    %217 = vector.shape_cast %216 : vector<1x1x32xf32> to vector<1x32xf32>
    %218 = vector.broadcast %217 : vector<1x32xf32> to vector<32x32xf32>
    %219 = arith.mulf %215, %218 : vector<32x32xf32>
    %220 = arith.addf %212, %219 : vector<32x32xf32>
    %c18_186 = arith.constant 18 : index
    %c0_187 = arith.constant 0 : index
    %c0_188 = arith.constant 0 : index
    %221 = vector.load %arg4[%c18_186, %c0_187, %c0_188] : memref<31x32x32xf32, #tpu.memory_space<vmem>>, vector<1x32x32xf32>
    %222 = vector.shape_cast %221 : vector<1x32x32xf32> to vector<32x32xf32>
    %cst_189 = arith.constant dense<0.000000e+00> : vector<32x32xf32>
    %223 = tpu.matmul %222, %75, %cst_189 {dimension_numbers = #tpu.dot_dimension_numbers<[1], [0], [0], [1], [0, 0, 1, 1], [], []>} : vector<32x32xf32>, vector<32x32xf32>, vector<32x32xf32> -> vector<32x32xf32>
    %c18_190 = arith.constant 18 : index
    %c0_191 = arith.constant 0 : index
    %c0_192 = arith.constant 0 : index
    %224 = vector.load %arg8[%c18_190, %c0_191, %c0_192] : memref<31x1x32xf32, #tpu.memory_space<vmem>>, vector<1x1x32xf32>
    %225 = vector.shape_cast %224 : vector<1x1x32xf32> to vector<1x32xf32>
    %226 = vector.broadcast %225 : vector<1x32xf32> to vector<32x32xf32>
    %227 = arith.mulf %223, %226 : vector<32x32xf32>
    %228 = arith.addf %220, %227 : vector<32x32xf32>
    %c19_193 = arith.constant 19 : index
    %c0_194 = arith.constant 0 : index
    %c0_195 = arith.constant 0 : index
    %229 = vector.load %arg4[%c19_193, %c0_194, %c0_195] : memref<31x32x32xf32, #tpu.memory_space<vmem>>, vector<1x32x32xf32>
    %230 = vector.shape_cast %229 : vector<1x32x32xf32> to vector<32x32xf32>
    %cst_196 = arith.constant dense<0.000000e+00> : vector<32x32xf32>
    %231 = tpu.matmul %230, %75, %cst_196 {dimension_numbers = #tpu.dot_dimension_numbers<[1], [0], [0], [1], [0, 0, 1, 1], [], []>} : vector<32x32xf32>, vector<32x32xf32>, vector<32x32xf32> -> vector<32x32xf32>
    %c19_197 = arith.constant 19 : index
    %c0_198 = arith.constant 0 : index
    %c0_199 = arith.constant 0 : index
    %232 = vector.load %arg8[%c19_197, %c0_198, %c0_199] : memref<31x1x32xf32, #tpu.memory_space<vmem>>, vector<1x1x32xf32>
    %233 = vector.shape_cast %232 : vector<1x1x32xf32> to vector<1x32xf32>
    %234 = vector.broadcast %233 : vector<1x32xf32> to vector<32x32xf32>
    %235 = arith.mulf %231, %234 : vector<32x32xf32>
    %236 = arith.addf %228, %235 : vector<32x32xf32>
    %c20 = arith.constant 20 : index
    %c0_200 = arith.constant 0 : index
    %c0_201 = arith.constant 0 : index
    %237 = vector.load %arg4[%c20, %c0_200, %c0_201] : memref<31x32x32xf32, #tpu.memory_space<vmem>>, vector<1x32x32xf32>
    %238 = vector.shape_cast %237 : vector<1x32x32xf32> to vector<32x32xf32>
    %cst_202 = arith.constant dense<0.000000e+00> : vector<32x32xf32>
    %239 = tpu.matmul %238, %75, %cst_202 {dimension_numbers = #tpu.dot_dimension_numbers<[1], [0], [0], [1], [0, 0, 1, 1], [], []>} : vector<32x32xf32>, vector<32x32xf32>, vector<32x32xf32> -> vector<32x32xf32>
    %c20_203 = arith.constant 20 : index
    %c0_204 = arith.constant 0 : index
    %c0_205 = arith.constant 0 : index
    %240 = vector.load %arg8[%c20_203, %c0_204, %c0_205] : memref<31x1x32xf32, #tpu.memory_space<vmem>>, vector<1x1x32xf32>
    %241 = vector.shape_cast %240 : vector<1x1x32xf32> to vector<1x32xf32>
    %242 = vector.broadcast %241 : vector<1x32xf32> to vector<32x32xf32>
    %243 = arith.mulf %239, %242 : vector<32x32xf32>
    %244 = arith.addf %236, %243 : vector<32x32xf32>
    %c21 = arith.constant 21 : index
    %c0_206 = arith.constant 0 : index
    %c0_207 = arith.constant 0 : index
    %245 = vector.load %arg4[%c21, %c0_206, %c0_207] : memref<31x32x32xf32, #tpu.memory_space<vmem>>, vector<1x32x32xf32>
    %246 = vector.shape_cast %245 : vector<1x32x32xf32> to vector<32x32xf32>
    %cst_208 = arith.constant dense<0.000000e+00> : vector<32x32xf32>
    %247 = tpu.matmul %246, %75, %cst_208 {dimension_numbers = #tpu.dot_dimension_numbers<[1], [0], [0], [1], [0, 0, 1, 1], [], []>} : vector<32x32xf32>, vector<32x32xf32>, vector<32x32xf32> -> vector<32x32xf32>
    %c21_209 = arith.constant 21 : index
    %c0_210 = arith.constant 0 : index
    %c0_211 = arith.constant 0 : index
    %248 = vector.load %arg8[%c21_209, %c0_210, %c0_211] : memref<31x1x32xf32, #tpu.memory_space<vmem>>, vector<1x1x32xf32>
    %249 = vector.shape_cast %248 : vector<1x1x32xf32> to vector<1x32xf32>
    %250 = vector.broadcast %249 : vector<1x32xf32> to vector<32x32xf32>
    %251 = arith.mulf %247, %250 : vector<32x32xf32>
    %252 = arith.addf %244, %251 : vector<32x32xf32>
    %c22 = arith.constant 22 : index
    %c0_212 = arith.constant 0 : index
    %c0_213 = arith.constant 0 : index
    %253 = vector.load %arg4[%c22, %c0_212, %c0_213] : memref<31x32x32xf32, #tpu.memory_space<vmem>>, vector<1x32x32xf32>
    %254 = vector.shape_cast %253 : vector<1x32x32xf32> to vector<32x32xf32>
    %cst_214 = arith.constant dense<0.000000e+00> : vector<32x32xf32>
    %255 = tpu.matmul %254, %75, %cst_214 {dimension_numbers = #tpu.dot_dimension_numbers<[1], [0], [0], [1], [0, 0, 1, 1], [], []>} : vector<32x32xf32>, vector<32x32xf32>, vector<32x32xf32> -> vector<32x32xf32>
    %c22_215 = arith.constant 22 : index
    %c0_216 = arith.constant 0 : index
    %c0_217 = arith.constant 0 : index
    %256 = vector.load %arg8[%c22_215, %c0_216, %c0_217] : memref<31x1x32xf32, #tpu.memory_space<vmem>>, vector<1x1x32xf32>
    %257 = vector.shape_cast %256 : vector<1x1x32xf32> to vector<1x32xf32>
    %258 = vector.broadcast %257 : vector<1x32xf32> to vector<32x32xf32>
    %259 = arith.mulf %255, %258 : vector<32x32xf32>
    %260 = arith.addf %252, %259 : vector<32x32xf32>
    %c23 = arith.constant 23 : index
    %c0_218 = arith.constant 0 : index
    %c0_219 = arith.constant 0 : index
    %261 = vector.load %arg4[%c23, %c0_218, %c0_219] : memref<31x32x32xf32, #tpu.memory_space<vmem>>, vector<1x32x32xf32>
    %262 = vector.shape_cast %261 : vector<1x32x32xf32> to vector<32x32xf32>
    %cst_220 = arith.constant dense<0.000000e+00> : vector<32x32xf32>
    %263 = tpu.matmul %262, %75, %cst_220 {dimension_numbers = #tpu.dot_dimension_numbers<[1], [0], [0], [1], [0, 0, 1, 1], [], []>} : vector<32x32xf32>, vector<32x32xf32>, vector<32x32xf32> -> vector<32x32xf32>
    %c23_221 = arith.constant 23 : index
    %c0_222 = arith.constant 0 : index
    %c0_223 = arith.constant 0 : index
    %264 = vector.load %arg8[%c23_221, %c0_222, %c0_223] : memref<31x1x32xf32, #tpu.memory_space<vmem>>, vector<1x1x32xf32>
    %265 = vector.shape_cast %264 : vector<1x1x32xf32> to vector<1x32xf32>
    %266 = vector.broadcast %265 : vector<1x32xf32> to vector<32x32xf32>
    %267 = arith.mulf %263, %266 : vector<32x32xf32>
    %268 = arith.addf %260, %267 : vector<32x32xf32>
    %c24 = arith.constant 24 : index
    %c0_224 = arith.constant 0 : index
    %c0_225 = arith.constant 0 : index
    %269 = vector.load %arg4[%c24, %c0_224, %c0_225] : memref<31x32x32xf32, #tpu.memory_space<vmem>>, vector<1x32x32xf32>
    %270 = vector.shape_cast %269 : vector<1x32x32xf32> to vector<32x32xf32>
    %cst_226 = arith.constant dense<0.000000e+00> : vector<32x32xf32>
    %271 = tpu.matmul %270, %75, %cst_226 {dimension_numbers = #tpu.dot_dimension_numbers<[1], [0], [0], [1], [0, 0, 1, 1], [], []>} : vector<32x32xf32>, vector<32x32xf32>, vector<32x32xf32> -> vector<32x32xf32>
    %c24_227 = arith.constant 24 : index
    %c0_228 = arith.constant 0 : index
    %c0_229 = arith.constant 0 : index
    %272 = vector.load %arg8[%c24_227, %c0_228, %c0_229] : memref<31x1x32xf32, #tpu.memory_space<vmem>>, vector<1x1x32xf32>
    %273 = vector.shape_cast %272 : vector<1x1x32xf32> to vector<1x32xf32>
    %274 = vector.broadcast %273 : vector<1x32xf32> to vector<32x32xf32>
    %275 = arith.mulf %271, %274 : vector<32x32xf32>
    %276 = arith.addf %268, %275 : vector<32x32xf32>
    %c25 = arith.constant 25 : index
    %c0_230 = arith.constant 0 : index
    %c0_231 = arith.constant 0 : index
    %277 = vector.load %arg4[%c25, %c0_230, %c0_231] : memref<31x32x32xf32, #tpu.memory_space<vmem>>, vector<1x32x32xf32>
    %278 = vector.shape_cast %277 : vector<1x32x32xf32> to vector<32x32xf32>
    %cst_232 = arith.constant dense<0.000000e+00> : vector<32x32xf32>
    %279 = tpu.matmul %278, %75, %cst_232 {dimension_numbers = #tpu.dot_dimension_numbers<[1], [0], [0], [1], [0, 0, 1, 1], [], []>} : vector<32x32xf32>, vector<32x32xf32>, vector<32x32xf32> -> vector<32x32xf32>
    %c25_233 = arith.constant 25 : index
    %c0_234 = arith.constant 0 : index
    %c0_235 = arith.constant 0 : index
    %280 = vector.load %arg8[%c25_233, %c0_234, %c0_235] : memref<31x1x32xf32, #tpu.memory_space<vmem>>, vector<1x1x32xf32>
    %281 = vector.shape_cast %280 : vector<1x1x32xf32> to vector<1x32xf32>
    %282 = vector.broadcast %281 : vector<1x32xf32> to vector<32x32xf32>
    %283 = arith.mulf %279, %282 : vector<32x32xf32>
    %284 = arith.addf %276, %283 : vector<32x32xf32>
    %c26 = arith.constant 26 : index
    %c0_236 = arith.constant 0 : index
    %c0_237 = arith.constant 0 : index
    %285 = vector.load %arg4[%c26, %c0_236, %c0_237] : memref<31x32x32xf32, #tpu.memory_space<vmem>>, vector<1x32x32xf32>
    %286 = vector.shape_cast %285 : vector<1x32x32xf32> to vector<32x32xf32>
    %cst_238 = arith.constant dense<0.000000e+00> : vector<32x32xf32>
    %287 = tpu.matmul %286, %75, %cst_238 {dimension_numbers = #tpu.dot_dimension_numbers<[1], [0], [0], [1], [0, 0, 1, 1], [], []>} : vector<32x32xf32>, vector<32x32xf32>, vector<32x32xf32> -> vector<32x32xf32>
    %c26_239 = arith.constant 26 : index
    %c0_240 = arith.constant 0 : index
    %c0_241 = arith.constant 0 : index
    %288 = vector.load %arg8[%c26_239, %c0_240, %c0_241] : memref<31x1x32xf32, #tpu.memory_space<vmem>>, vector<1x1x32xf32>
    %289 = vector.shape_cast %288 : vector<1x1x32xf32> to vector<1x32xf32>
    %290 = vector.broadcast %289 : vector<1x32xf32> to vector<32x32xf32>
    %291 = arith.mulf %287, %290 : vector<32x32xf32>
    %292 = arith.addf %284, %291 : vector<32x32xf32>
    %c27 = arith.constant 27 : index
    %c0_242 = arith.constant 0 : index
    %c0_243 = arith.constant 0 : index
    %293 = vector.load %arg4[%c27, %c0_242, %c0_243] : memref<31x32x32xf32, #tpu.memory_space<vmem>>, vector<1x32x32xf32>
    %294 = vector.shape_cast %293 : vector<1x32x32xf32> to vector<32x32xf32>
    %cst_244 = arith.constant dense<0.000000e+00> : vector<32x32xf32>
    %295 = tpu.matmul %294, %75, %cst_244 {dimension_numbers = #tpu.dot_dimension_numbers<[1], [0], [0], [1], [0, 0, 1, 1], [], []>} : vector<32x32xf32>, vector<32x32xf32>, vector<32x32xf32> -> vector<32x32xf32>
    %c27_245 = arith.constant 27 : index
    %c0_246 = arith.constant 0 : index
    %c0_247 = arith.constant 0 : index
    %296 = vector.load %arg8[%c27_245, %c0_246, %c0_247] : memref<31x1x32xf32, #tpu.memory_space<vmem>>, vector<1x1x32xf32>
    %297 = vector.shape_cast %296 : vector<1x1x32xf32> to vector<1x32xf32>
    %298 = vector.broadcast %297 : vector<1x32xf32> to vector<32x32xf32>
    %299 = arith.mulf %295, %298 : vector<32x32xf32>
    %300 = arith.addf %292, %299 : vector<32x32xf32>
    %c28 = arith.constant 28 : index
    %c0_248 = arith.constant 0 : index
    %c0_249 = arith.constant 0 : index
    %301 = vector.load %arg4[%c28, %c0_248, %c0_249] : memref<31x32x32xf32, #tpu.memory_space<vmem>>, vector<1x32x32xf32>
    %302 = vector.shape_cast %301 : vector<1x32x32xf32> to vector<32x32xf32>
    %cst_250 = arith.constant dense<0.000000e+00> : vector<32x32xf32>
    %303 = tpu.matmul %302, %75, %cst_250 {dimension_numbers = #tpu.dot_dimension_numbers<[1], [0], [0], [1], [0, 0, 1, 1], [], []>} : vector<32x32xf32>, vector<32x32xf32>, vector<32x32xf32> -> vector<32x32xf32>
    %c28_251 = arith.constant 28 : index
    %c0_252 = arith.constant 0 : index
    %c0_253 = arith.constant 0 : index
    %304 = vector.load %arg8[%c28_251, %c0_252, %c0_253] : memref<31x1x32xf32, #tpu.memory_space<vmem>>, vector<1x1x32xf32>
    %305 = vector.shape_cast %304 : vector<1x1x32xf32> to vector<1x32xf32>
    %306 = vector.broadcast %305 : vector<1x32xf32> to vector<32x32xf32>
    %307 = arith.mulf %303, %306 : vector<32x32xf32>
    %308 = arith.addf %300, %307 : vector<32x32xf32>
    %c29 = arith.constant 29 : index
    %c0_254 = arith.constant 0 : index
    %c0_255 = arith.constant 0 : index
    %309 = vector.load %arg4[%c29, %c0_254, %c0_255] : memref<31x32x32xf32, #tpu.memory_space<vmem>>, vector<1x32x32xf32>
    %310 = vector.shape_cast %309 : vector<1x32x32xf32> to vector<32x32xf32>
    %cst_256 = arith.constant dense<0.000000e+00> : vector<32x32xf32>
    %311 = tpu.matmul %310, %75, %cst_256 {dimension_numbers = #tpu.dot_dimension_numbers<[1], [0], [0], [1], [0, 0, 1, 1], [], []>} : vector<32x32xf32>, vector<32x32xf32>, vector<32x32xf32> -> vector<32x32xf32>
    %c29_257 = arith.constant 29 : index
    %c0_258 = arith.constant 0 : index
    %c0_259 = arith.constant 0 : index
    %312 = vector.load %arg8[%c29_257, %c0_258, %c0_259] : memref<31x1x32xf32, #tpu.memory_space<vmem>>, vector<1x1x32xf32>
    %313 = vector.shape_cast %312 : vector<1x1x32xf32> to vector<1x32xf32>
    %314 = vector.broadcast %313 : vector<1x32xf32> to vector<32x32xf32>
    %315 = arith.mulf %311, %314 : vector<32x32xf32>
    %316 = arith.addf %308, %315 : vector<32x32xf32>
    %c30 = arith.constant 30 : index
    %c0_260 = arith.constant 0 : index
    %c0_261 = arith.constant 0 : index
    %317 = vector.load %arg4[%c30, %c0_260, %c0_261] : memref<31x32x32xf32, #tpu.memory_space<vmem>>, vector<1x32x32xf32>
    %318 = vector.shape_cast %317 : vector<1x32x32xf32> to vector<32x32xf32>
    %cst_262 = arith.constant dense<0.000000e+00> : vector<32x32xf32>
    %319 = tpu.matmul %318, %75, %cst_262 {dimension_numbers = #tpu.dot_dimension_numbers<[1], [0], [0], [1], [0, 0, 1, 1], [], []>} : vector<32x32xf32>, vector<32x32xf32>, vector<32x32xf32> -> vector<32x32xf32>
    %c30_263 = arith.constant 30 : index
    %c0_264 = arith.constant 0 : index
    %c0_265 = arith.constant 0 : index
    %320 = vector.load %arg8[%c30_263, %c0_264, %c0_265] : memref<31x1x32xf32, #tpu.memory_space<vmem>>, vector<1x1x32xf32>
    %321 = vector.shape_cast %320 : vector<1x1x32xf32> to vector<1x32xf32>
    %322 = vector.broadcast %321 : vector<1x32xf32> to vector<32x32xf32>
    %323 = arith.mulf %319, %322 : vector<32x32xf32>
    %324 = arith.addf %316, %323 : vector<32x32xf32>
    %c0_266 = arith.constant 0 : index
    %c0_267 = arith.constant 0 : index
    %325 = vector.load %arg9[%c0_266, %c0_267] : memref<32x16xf32, #tpu.memory_space<vmem>>, vector<32x16xf32>
    %cst_268 = arith.constant dense<0.000000e+00> : vector<32x16xf32>
    %326 = tpu.matmul %324, %325, %cst_268 {dimension_numbers = #tpu.dot_dimension_numbers<[1], [0], [0], [1], [0, 0, 1, 1], [], []>} : vector<32x32xf32>, vector<32x16xf32>, vector<32x16xf32> -> vector<32x16xf32>
    %c0_269 = arith.constant 0 : index
    %c0_270 = arith.constant 0 : index
    %327 = vector.load %arg10[%c0_269, %c0_270] : memref<1x16xf32, #tpu.memory_space<vmem>>, vector<1x16xf32>
    %328 = vector.broadcast %327 : vector<1x16xf32> to vector<32x16xf32>
    %329 = arith.mulf %326, %328 : vector<32x16xf32>
    %c0_271 = arith.constant 0 : index
    %c0_272 = arith.constant 0 : index
    %330 = vector.load %arg11[%c0_271, %c0_272] : memref<1x16xf32, #tpu.memory_space<vmem>>, vector<1x16xf32>
    %331 = vector.broadcast %330 : vector<1x16xf32> to vector<32x16xf32>
    %332 = arith.addf %329, %331 : vector<32x16xf32>
    %cst_273 = arith.constant 0.000000e+00 : f32
    %333 = vector.broadcast %cst_273 : f32 to vector<32x16xf32>
    %334 = arith.maximumf %332, %333 : vector<32x16xf32>
    %c0_274 = arith.constant 0 : index
    %c0_275 = arith.constant 0 : index
    %335 = vector.load %arg12[%c0_274, %c0_275] : memref<32x16xf32, #tpu.memory_space<vmem>>, vector<32x16xf32>
    %c0_276 = arith.constant 0 : index
    %c0_277 = arith.constant 0 : index
    %336 = vector.load %arg13[%c0_276, %c0_277] : memref<32x32xf32, #tpu.memory_space<vmem>>, vector<32x32xf32>
    %c0_278 = arith.constant 0 : index
    %c0_279 = arith.constant 0 : index
    %337 = vector.load %arg14[%c0_278, %c0_279] : memref<32x32xf32, #tpu.memory_space<vmem>>, vector<32x32xf32>
    %c0_280 = arith.constant 0 : index
    %c0_281 = arith.constant 0 : index
    %338 = vector.load %arg18[%c0_280, %c0_281] : memref<1x16xf32, #tpu.memory_space<vmem>>, vector<1x16xf32>
    %c0_282 = arith.constant 0 : index
    %c0_283 = arith.constant 0 : index
    %339 = vector.load %arg19[%c0_282, %c0_283] : memref<1x16xf32, #tpu.memory_space<vmem>>, vector<1x16xf32>
    %c0_284 = arith.constant 0 : index
    %c0_285 = arith.constant 0 : index
    %340 = vector.load %arg20[%c0_284, %c0_285] : memref<1x16xf32, #tpu.memory_space<vmem>>, vector<1x16xf32>
    %c0_286 = arith.constant 0 : index
    %c0_287 = arith.constant 0 : index
    %341 = vector.load %arg21[%c0_286, %c0_287] : memref<1x16xf32, #tpu.memory_space<vmem>>, vector<1x16xf32>
    %342 = arith.addf %334, %335 : vector<32x16xf32>
    %c0_288 = arith.constant 0 : index
    %c0_289 = arith.constant 0 : index
    %343 = vector.load %arg16[%c0_288, %c0_289] : memref<16x16xf32, #tpu.memory_space<vmem>>, vector<16x16xf32>
    %cst_290 = arith.constant dense<0.000000e+00> : vector<32x16xf32>
    %344 = tpu.matmul %342, %343, %cst_290 {dimension_numbers = #tpu.dot_dimension_numbers<[1], [0], [0], [1], [0, 0, 1, 1], [], []>} : vector<32x16xf32>, vector<16x16xf32>, vector<32x16xf32> -> vector<32x16xf32>
    %cst_291 = arith.constant 0.000000e+00 : f32
    %345 = vector.broadcast %cst_291 : f32 to vector<32x16xf32>
    %c0_292 = arith.constant 0 : index
    %c0_293 = arith.constant 0 : index
    %c0_294 = arith.constant 0 : index
    %346 = vector.load %arg15[%c0_292, %c0_293, %c0_294] : memref<4x16x16xf32, #tpu.memory_space<vmem>>, vector<1x16x16xf32>
    %347 = vector.shape_cast %346 : vector<1x16x16xf32> to vector<16x16xf32>
    %cst_295 = arith.constant dense<0.000000e+00> : vector<32x16xf32>
    %348 = tpu.matmul %342, %347, %cst_295 {dimension_numbers = #tpu.dot_dimension_numbers<[1], [0], [0], [1], [0, 0, 1, 1], [], []>} : vector<32x16xf32>, vector<16x16xf32>, vector<32x16xf32> -> vector<32x16xf32>
    %cst_296 = arith.constant dense<0.000000e+00> : vector<32x32xf32>
    %349 = tpu.matmul %348, %342, %cst_296 {dimension_numbers = #tpu.dot_dimension_numbers<[1], [1], [0], [0], [0, 0, 1, 0], [], []>} : vector<32x16xf32>, vector<32x16xf32>, vector<32x32xf32> -> vector<32x32xf32>
    %350 = arith.mulf %349, %336 : vector<32x32xf32>
    %351 = arith.addf %350, %337 : vector<32x32xf32>
    %cst_297 = arith.constant dense<0xFF800000> : vector<32xf32>
    %352 = vector.multi_reduction <maximumf>, %351, %cst_297 [1] : vector<32x32xf32> to vector<32xf32>
    %353 = vector.shape_cast %352 : vector<32xf32> to vector<32x1xf32>
    %354 = vector.broadcast %353 : vector<32x1xf32> to vector<32x32xf32>
    %355 = arith.subf %351, %354 : vector<32x32xf32>
    %356 = math.exp %355 : vector<32x32xf32>
    %cst_298 = arith.constant dense<0.000000e+00> : vector<32xf32>
    %357 = vector.multi_reduction <add>, %356, %cst_298 [1] : vector<32x32xf32> to vector<32xf32>
    %358 = vector.shape_cast %357 : vector<32xf32> to vector<32x1xf32>
    %359 = tpu.reciprocal %358 {approx = true} : vector<32x1xf32> -> vector<32x1xf32>
    %360 = vector.broadcast %359 : vector<32x1xf32> to vector<32x32xf32>
    %361 = arith.mulf %356, %360 : vector<32x32xf32>
    %c0_299 = arith.constant 0 : index
    %c0_300 = arith.constant 0 : index
    %c0_301 = arith.constant 0 : index
    %362 = vector.load %arg17[%c0_299, %c0_300, %c0_301] : memref<4x1x16xf32, #tpu.memory_space<vmem>>, vector<1x1x16xf32>
    %363 = vector.shape_cast %362 : vector<1x1x16xf32> to vector<1x16xf32>
    %364 = vector.broadcast %363 : vector<1x16xf32> to vector<32x16xf32>
    %365 = arith.mulf %344, %364 : vector<32x16xf32>
    %cst_302 = arith.constant dense<0.000000e+00> : vector<32x16xf32>
    %366 = tpu.matmul %361, %365, %cst_302 {dimension_numbers = #tpu.dot_dimension_numbers<[1], [0], [0], [1], [0, 0, 1, 1], [], []>} : vector<32x32xf32>, vector<32x16xf32>, vector<32x16xf32> -> vector<32x16xf32>
    %367 = arith.addf %345, %366 : vector<32x16xf32>
    %c1_303 = arith.constant 1 : index
    %c0_304 = arith.constant 0 : index
    %c0_305 = arith.constant 0 : index
    %368 = vector.load %arg15[%c1_303, %c0_304, %c0_305] : memref<4x16x16xf32, #tpu.memory_space<vmem>>, vector<1x16x16xf32>
    %369 = vector.shape_cast %368 : vector<1x16x16xf32> to vector<16x16xf32>
    %cst_306 = arith.constant dense<0.000000e+00> : vector<32x16xf32>
    %370 = tpu.matmul %342, %369, %cst_306 {dimension_numbers = #tpu.dot_dimension_numbers<[1], [0], [0], [1], [0, 0, 1, 1], [], []>} : vector<32x16xf32>, vector<16x16xf32>, vector<32x16xf32> -> vector<32x16xf32>
    %cst_307 = arith.constant dense<0.000000e+00> : vector<32x32xf32>
    %371 = tpu.matmul %370, %342, %cst_307 {dimension_numbers = #tpu.dot_dimension_numbers<[1], [1], [0], [0], [0, 0, 1, 0], [], []>} : vector<32x16xf32>, vector<32x16xf32>, vector<32x32xf32> -> vector<32x32xf32>
    %372 = arith.mulf %371, %336 : vector<32x32xf32>
    %373 = arith.addf %372, %337 : vector<32x32xf32>
    %cst_308 = arith.constant dense<0xFF800000> : vector<32xf32>
    %374 = vector.multi_reduction <maximumf>, %373, %cst_308 [1] : vector<32x32xf32> to vector<32xf32>
    %375 = vector.shape_cast %374 : vector<32xf32> to vector<32x1xf32>
    %376 = vector.broadcast %375 : vector<32x1xf32> to vector<32x32xf32>
    %377 = arith.subf %373, %376 : vector<32x32xf32>
    %378 = math.exp %377 : vector<32x32xf32>
    %cst_309 = arith.constant dense<0.000000e+00> : vector<32xf32>
    %379 = vector.multi_reduction <add>, %378, %cst_309 [1] : vector<32x32xf32> to vector<32xf32>
    %380 = vector.shape_cast %379 : vector<32xf32> to vector<32x1xf32>
    %381 = tpu.reciprocal %380 {approx = true} : vector<32x1xf32> -> vector<32x1xf32>
    %382 = vector.broadcast %381 : vector<32x1xf32> to vector<32x32xf32>
    %383 = arith.mulf %378, %382 : vector<32x32xf32>
    %c1_310 = arith.constant 1 : index
    %c0_311 = arith.constant 0 : index
    %c0_312 = arith.constant 0 : index
    %384 = vector.load %arg17[%c1_310, %c0_311, %c0_312] : memref<4x1x16xf32, #tpu.memory_space<vmem>>, vector<1x1x16xf32>
    %385 = vector.shape_cast %384 : vector<1x1x16xf32> to vector<1x16xf32>
    %386 = vector.broadcast %385 : vector<1x16xf32> to vector<32x16xf32>
    %387 = arith.mulf %344, %386 : vector<32x16xf32>
    %cst_313 = arith.constant dense<0.000000e+00> : vector<32x16xf32>
    %388 = tpu.matmul %383, %387, %cst_313 {dimension_numbers = #tpu.dot_dimension_numbers<[1], [0], [0], [1], [0, 0, 1, 1], [], []>} : vector<32x32xf32>, vector<32x16xf32>, vector<32x16xf32> -> vector<32x16xf32>
    %389 = arith.addf %367, %388 : vector<32x16xf32>
    %c2_314 = arith.constant 2 : index
    %c0_315 = arith.constant 0 : index
    %c0_316 = arith.constant 0 : index
    %390 = vector.load %arg15[%c2_314, %c0_315, %c0_316] : memref<4x16x16xf32, #tpu.memory_space<vmem>>, vector<1x16x16xf32>
    %391 = vector.shape_cast %390 : vector<1x16x16xf32> to vector<16x16xf32>
    %cst_317 = arith.constant dense<0.000000e+00> : vector<32x16xf32>
    %392 = tpu.matmul %342, %391, %cst_317 {dimension_numbers = #tpu.dot_dimension_numbers<[1], [0], [0], [1], [0, 0, 1, 1], [], []>} : vector<32x16xf32>, vector<16x16xf32>, vector<32x16xf32> -> vector<32x16xf32>
    %cst_318 = arith.constant dense<0.000000e+00> : vector<32x32xf32>
    %393 = tpu.matmul %392, %342, %cst_318 {dimension_numbers = #tpu.dot_dimension_numbers<[1], [1], [0], [0], [0, 0, 1, 0], [], []>} : vector<32x16xf32>, vector<32x16xf32>, vector<32x32xf32> -> vector<32x32xf32>
    %394 = arith.mulf %393, %336 : vector<32x32xf32>
    %395 = arith.addf %394, %337 : vector<32x32xf32>
    %cst_319 = arith.constant dense<0xFF800000> : vector<32xf32>
    %396 = vector.multi_reduction <maximumf>, %395, %cst_319 [1] : vector<32x32xf32> to vector<32xf32>
    %397 = vector.shape_cast %396 : vector<32xf32> to vector<32x1xf32>
    %398 = vector.broadcast %397 : vector<32x1xf32> to vector<32x32xf32>
    %399 = arith.subf %395, %398 : vector<32x32xf32>
    %400 = math.exp %399 : vector<32x32xf32>
    %cst_320 = arith.constant dense<0.000000e+00> : vector<32xf32>
    %401 = vector.multi_reduction <add>, %400, %cst_320 [1] : vector<32x32xf32> to vector<32xf32>
    %402 = vector.shape_cast %401 : vector<32xf32> to vector<32x1xf32>
    %403 = tpu.reciprocal %402 {approx = true} : vector<32x1xf32> -> vector<32x1xf32>
    %404 = vector.broadcast %403 : vector<32x1xf32> to vector<32x32xf32>
    %405 = arith.mulf %400, %404 : vector<32x32xf32>
    %c2_321 = arith.constant 2 : index
    %c0_322 = arith.constant 0 : index
    %c0_323 = arith.constant 0 : index
    %406 = vector.load %arg17[%c2_321, %c0_322, %c0_323] : memref<4x1x16xf32, #tpu.memory_space<vmem>>, vector<1x1x16xf32>
    %407 = vector.shape_cast %406 : vector<1x1x16xf32> to vector<1x16xf32>
    %408 = vector.broadcast %407 : vector<1x16xf32> to vector<32x16xf32>
    %409 = arith.mulf %344, %408 : vector<32x16xf32>
    %cst_324 = arith.constant dense<0.000000e+00> : vector<32x16xf32>
    %410 = tpu.matmul %405, %409, %cst_324 {dimension_numbers = #tpu.dot_dimension_numbers<[1], [0], [0], [1], [0, 0, 1, 1], [], []>} : vector<32x32xf32>, vector<32x16xf32>, vector<32x16xf32> -> vector<32x16xf32>
    %411 = arith.addf %389, %410 : vector<32x16xf32>
    %c3_325 = arith.constant 3 : index
    %c0_326 = arith.constant 0 : index
    %c0_327 = arith.constant 0 : index
    %412 = vector.load %arg15[%c3_325, %c0_326, %c0_327] : memref<4x16x16xf32, #tpu.memory_space<vmem>>, vector<1x16x16xf32>
    %413 = vector.shape_cast %412 : vector<1x16x16xf32> to vector<16x16xf32>
    %cst_328 = arith.constant dense<0.000000e+00> : vector<32x16xf32>
    %414 = tpu.matmul %342, %413, %cst_328 {dimension_numbers = #tpu.dot_dimension_numbers<[1], [0], [0], [1], [0, 0, 1, 1], [], []>} : vector<32x16xf32>, vector<16x16xf32>, vector<32x16xf32> -> vector<32x16xf32>
    %cst_329 = arith.constant dense<0.000000e+00> : vector<32x32xf32>
    %415 = tpu.matmul %414, %342, %cst_329 {dimension_numbers = #tpu.dot_dimension_numbers<[1], [1], [0], [0], [0, 0, 1, 0], [], []>} : vector<32x16xf32>, vector<32x16xf32>, vector<32x32xf32> -> vector<32x32xf32>
    %416 = arith.mulf %415, %336 : vector<32x32xf32>
    %417 = arith.addf %416, %337 : vector<32x32xf32>
    %cst_330 = arith.constant dense<0xFF800000> : vector<32xf32>
    %418 = vector.multi_reduction <maximumf>, %417, %cst_330 [1] : vector<32x32xf32> to vector<32xf32>
    %419 = vector.shape_cast %418 : vector<32xf32> to vector<32x1xf32>
    %420 = vector.broadcast %419 : vector<32x1xf32> to vector<32x32xf32>
    %421 = arith.subf %417, %420 : vector<32x32xf32>
    %422 = math.exp %421 : vector<32x32xf32>
    %cst_331 = arith.constant dense<0.000000e+00> : vector<32xf32>
    %423 = vector.multi_reduction <add>, %422, %cst_331 [1] : vector<32x32xf32> to vector<32xf32>
    %424 = vector.shape_cast %423 : vector<32xf32> to vector<32x1xf32>
    %425 = tpu.reciprocal %424 {approx = true} : vector<32x1xf32> -> vector<32x1xf32>
    %426 = vector.broadcast %425 : vector<32x1xf32> to vector<32x32xf32>
    %427 = arith.mulf %422, %426 : vector<32x32xf32>
    %c3_332 = arith.constant 3 : index
    %c0_333 = arith.constant 0 : index
    %c0_334 = arith.constant 0 : index
    %428 = vector.load %arg17[%c3_332, %c0_333, %c0_334] : memref<4x1x16xf32, #tpu.memory_space<vmem>>, vector<1x1x16xf32>
    %429 = vector.shape_cast %428 : vector<1x1x16xf32> to vector<1x16xf32>
    %430 = vector.broadcast %429 : vector<1x16xf32> to vector<32x16xf32>
    %431 = arith.mulf %344, %430 : vector<32x16xf32>
    %cst_335 = arith.constant dense<0.000000e+00> : vector<32x16xf32>
    %432 = tpu.matmul %427, %431, %cst_335 {dimension_numbers = #tpu.dot_dimension_numbers<[1], [0], [0], [1], [0, 0, 1, 1], [], []>} : vector<32x32xf32>, vector<32x16xf32>, vector<32x16xf32> -> vector<32x16xf32>
    %433 = arith.addf %411, %432 : vector<32x16xf32>
    %cst_336 = arith.constant dense<0.000000e+00> : vector<32xf32>
    %434 = vector.multi_reduction <add>, %433, %cst_336 [1] : vector<32x16xf32> to vector<32xf32>
    %435 = vector.shape_cast %434 : vector<32xf32> to vector<32x1xf32>
    %cst_337 = arith.constant 1.600000e+01 : f32
    %436 = vector.broadcast %cst_337 : f32 to vector<32x1xf32>
    %437 = arith.divf %435, %436 : vector<32x1xf32>
    %438 = vector.broadcast %437 : vector<32x1xf32> to vector<32x16xf32>
    %439 = arith.subf %433, %438 : vector<32x16xf32>
    %440 = arith.mulf %439, %439 : vector<32x16xf32>
    %cst_338 = arith.constant dense<0.000000e+00> : vector<32xf32>
    %441 = vector.multi_reduction <add>, %440, %cst_338 [1] : vector<32x16xf32> to vector<32xf32>
    %442 = vector.shape_cast %441 : vector<32xf32> to vector<32x1xf32>
    %cst_339 = arith.constant 1.600000e+01 : f32
    %443 = vector.broadcast %cst_339 : f32 to vector<32x1xf32>
    %444 = arith.divf %442, %443 : vector<32x1xf32>
    %445 = vector.broadcast %437 : vector<32x1xf32> to vector<32x16xf32>
    %446 = arith.subf %433, %445 : vector<32x16xf32>
    %cst_340 = arith.constant 9.99999974E-6 : f32
    %447 = vector.broadcast %cst_340 : f32 to vector<32x1xf32>
    %448 = arith.addf %444, %447 : vector<32x1xf32>
    %449 = math.rsqrt %448 : vector<32x1xf32>
    %450 = vector.broadcast %449 : vector<32x1xf32> to vector<32x16xf32>
    %451 = arith.mulf %446, %450 : vector<32x16xf32>
    %452 = vector.broadcast %338 : vector<1x16xf32> to vector<32x16xf32>
    %453 = arith.mulf %451, %452 : vector<32x16xf32>
    %454 = vector.broadcast %339 : vector<1x16xf32> to vector<32x16xf32>
    %455 = arith.addf %453, %454 : vector<32x16xf32>
    %456 = arith.addf %455, %334 : vector<32x16xf32>
    %cst_341 = arith.constant dense<0.000000e+00> : vector<32xf32>
    %457 = vector.multi_reduction <add>, %456, %cst_341 [1] : vector<32x16xf32> to vector<32xf32>
    %458 = vector.shape_cast %457 : vector<32xf32> to vector<32x1xf32>
    %cst_342 = arith.constant 1.600000e+01 : f32
    %459 = vector.broadcast %cst_342 : f32 to vector<32x1xf32>
    %460 = arith.divf %458, %459 : vector<32x1xf32>
    %461 = vector.broadcast %460 : vector<32x1xf32> to vector<32x16xf32>
    %462 = arith.subf %456, %461 : vector<32x16xf32>
    %463 = arith.mulf %462, %462 : vector<32x16xf32>
    %cst_343 = arith.constant dense<0.000000e+00> : vector<32xf32>
    %464 = vector.multi_reduction <add>, %463, %cst_343 [1] : vector<32x16xf32> to vector<32xf32>
    %465 = vector.shape_cast %464 : vector<32xf32> to vector<32x1xf32>
    %cst_344 = arith.constant 1.600000e+01 : f32
    %466 = vector.broadcast %cst_344 : f32 to vector<32x1xf32>
    %467 = arith.divf %465, %466 : vector<32x1xf32>
    %468 = vector.broadcast %460 : vector<32x1xf32> to vector<32x16xf32>
    %469 = arith.subf %456, %468 : vector<32x16xf32>
    %cst_345 = arith.constant 9.99999974E-6 : f32
    %470 = vector.broadcast %cst_345 : f32 to vector<32x1xf32>
    %471 = arith.addf %467, %470 : vector<32x1xf32>
    %472 = math.rsqrt %471 : vector<32x1xf32>
    %473 = vector.broadcast %472 : vector<32x1xf32> to vector<32x16xf32>
    %474 = arith.mulf %469, %473 : vector<32x16xf32>
    %475 = vector.broadcast %340 : vector<1x16xf32> to vector<32x16xf32>
    %476 = arith.mulf %474, %475 : vector<32x16xf32>
    %477 = vector.broadcast %341 : vector<1x16xf32> to vector<32x16xf32>
    %478 = arith.addf %476, %477 : vector<32x16xf32>
    %c0_346 = arith.constant 0 : index
    %c0_347 = arith.constant 0 : index
    %479 = vector.load %arg24[%c0_346, %c0_347] : memref<1x16xf32, #tpu.memory_space<vmem>>, vector<1x16xf32>
    %c0_348 = arith.constant 0 : index
    %c0_349 = arith.constant 0 : index
    %480 = vector.load %arg25[%c0_348, %c0_349] : memref<1x16xf32, #tpu.memory_space<vmem>>, vector<1x16xf32>
    %c0_350 = arith.constant 0 : index
    %c0_351 = arith.constant 0 : index
    %481 = vector.load %arg26[%c0_350, %c0_351] : memref<1x16xf32, #tpu.memory_space<vmem>>, vector<1x16xf32>
    %c0_352 = arith.constant 0 : index
    %c0_353 = arith.constant 0 : index
    %482 = vector.load %arg27[%c0_352, %c0_353] : memref<1x16xf32, #tpu.memory_space<vmem>>, vector<1x16xf32>
    %483 = arith.addf %478, %335 : vector<32x16xf32>
    %c0_354 = arith.constant 0 : index
    %c0_355 = arith.constant 0 : index
    %484 = vector.load %arg23[%c0_354, %c0_355] : memref<16x16xf32, #tpu.memory_space<vmem>>, vector<16x16xf32>
    %cst_356 = arith.constant dense<0.000000e+00> : vector<32x16xf32>
    %485 = tpu.matmul %483, %484, %cst_356 {dimension_numbers = #tpu.dot_dimension_numbers<[1], [0], [0], [1], [0, 0, 1, 1], [], []>} : vector<32x16xf32>, vector<16x16xf32>, vector<32x16xf32> -> vector<32x16xf32>
    %cst_357 = arith.constant 0.000000e+00 : f32
    %486 = vector.broadcast %cst_357 : f32 to vector<32x16xf32>
    %c0_358 = arith.constant 0 : index
    %c0_359 = arith.constant 0 : index
    %c0_360 = arith.constant 0 : index
    %487 = vector.load %arg22[%c0_358, %c0_359, %c0_360] : memref<4x16x16xf32, #tpu.memory_space<vmem>>, vector<1x16x16xf32>
    %488 = vector.shape_cast %487 : vector<1x16x16xf32> to vector<16x16xf32>
    %cst_361 = arith.constant dense<0.000000e+00> : vector<32x16xf32>
    %489 = tpu.matmul %483, %488, %cst_361 {dimension_numbers = #tpu.dot_dimension_numbers<[1], [0], [0], [1], [0, 0, 1, 1], [], []>} : vector<32x16xf32>, vector<16x16xf32>, vector<32x16xf32> -> vector<32x16xf32>
    %cst_362 = arith.constant dense<0.000000e+00> : vector<32x32xf32>
    %490 = tpu.matmul %489, %483, %cst_362 {dimension_numbers = #tpu.dot_dimension_numbers<[1], [1], [0], [0], [0, 0, 1, 0], [], []>} : vector<32x16xf32>, vector<32x16xf32>, vector<32x32xf32> -> vector<32x32xf32>
    %491 = arith.mulf %490, %336 : vector<32x32xf32>
    %492 = arith.addf %491, %337 : vector<32x32xf32>
    %cst_363 = arith.constant dense<0xFF800000> : vector<32xf32>
    %493 = vector.multi_reduction <maximumf>, %492, %cst_363 [1] : vector<32x32xf32> to vector<32xf32>
    %494 = vector.shape_cast %493 : vector<32xf32> to vector<32x1xf32>
    %495 = vector.broadcast %494 : vector<32x1xf32> to vector<32x32xf32>
    %496 = arith.subf %492, %495 : vector<32x32xf32>
    %497 = math.exp %496 : vector<32x32xf32>
    %cst_364 = arith.constant dense<0.000000e+00> : vector<32xf32>
    %498 = vector.multi_reduction <add>, %497, %cst_364 [1] : vector<32x32xf32> to vector<32xf32>
    %499 = vector.shape_cast %498 : vector<32xf32> to vector<32x1xf32>
    %500 = tpu.reciprocal %499 {approx = true} : vector<32x1xf32> -> vector<32x1xf32>
    %501 = vector.broadcast %500 : vector<32x1xf32> to vector<32x32xf32>
    %502 = arith.mulf %497, %501 : vector<32x32xf32>
    %c0_365 = arith.constant 0 : index
    %c0_366 = arith.constant 0 : index
    %c0_367 = arith.constant 0 : index
    %503 = vector.load %arg17[%c0_365, %c0_366, %c0_367] : memref<4x1x16xf32, #tpu.memory_space<vmem>>, vector<1x1x16xf32>
    %504 = vector.shape_cast %503 : vector<1x1x16xf32> to vector<1x16xf32>
    %505 = vector.broadcast %504 : vector<1x16xf32> to vector<32x16xf32>
    %506 = arith.mulf %485, %505 : vector<32x16xf32>
    %cst_368 = arith.constant dense<0.000000e+00> : vector<32x16xf32>
    %507 = tpu.matmul %502, %506, %cst_368 {dimension_numbers = #tpu.dot_dimension_numbers<[1], [0], [0], [1], [0, 0, 1, 1], [], []>} : vector<32x32xf32>, vector<32x16xf32>, vector<32x16xf32> -> vector<32x16xf32>
    %508 = arith.addf %486, %507 : vector<32x16xf32>
    %c1_369 = arith.constant 1 : index
    %c0_370 = arith.constant 0 : index
    %c0_371 = arith.constant 0 : index
    %509 = vector.load %arg22[%c1_369, %c0_370, %c0_371] : memref<4x16x16xf32, #tpu.memory_space<vmem>>, vector<1x16x16xf32>
    %510 = vector.shape_cast %509 : vector<1x16x16xf32> to vector<16x16xf32>
    %cst_372 = arith.constant dense<0.000000e+00> : vector<32x16xf32>
    %511 = tpu.matmul %483, %510, %cst_372 {dimension_numbers = #tpu.dot_dimension_numbers<[1], [0], [0], [1], [0, 0, 1, 1], [], []>} : vector<32x16xf32>, vector<16x16xf32>, vector<32x16xf32> -> vector<32x16xf32>
    %cst_373 = arith.constant dense<0.000000e+00> : vector<32x32xf32>
    %512 = tpu.matmul %511, %483, %cst_373 {dimension_numbers = #tpu.dot_dimension_numbers<[1], [1], [0], [0], [0, 0, 1, 0], [], []>} : vector<32x16xf32>, vector<32x16xf32>, vector<32x32xf32> -> vector<32x32xf32>
    %513 = arith.mulf %512, %336 : vector<32x32xf32>
    %514 = arith.addf %513, %337 : vector<32x32xf32>
    %cst_374 = arith.constant dense<0xFF800000> : vector<32xf32>
    %515 = vector.multi_reduction <maximumf>, %514, %cst_374 [1] : vector<32x32xf32> to vector<32xf32>
    %516 = vector.shape_cast %515 : vector<32xf32> to vector<32x1xf32>
    %517 = vector.broadcast %516 : vector<32x1xf32> to vector<32x32xf32>
    %518 = arith.subf %514, %517 : vector<32x32xf32>
    %519 = math.exp %518 : vector<32x32xf32>
    %cst_375 = arith.constant dense<0.000000e+00> : vector<32xf32>
    %520 = vector.multi_reduction <add>, %519, %cst_375 [1] : vector<32x32xf32> to vector<32xf32>
    %521 = vector.shape_cast %520 : vector<32xf32> to vector<32x1xf32>
    %522 = tpu.reciprocal %521 {approx = true} : vector<32x1xf32> -> vector<32x1xf32>
    %523 = vector.broadcast %522 : vector<32x1xf32> to vector<32x32xf32>
    %524 = arith.mulf %519, %523 : vector<32x32xf32>
    %c1_376 = arith.constant 1 : index
    %c0_377 = arith.constant 0 : index
    %c0_378 = arith.constant 0 : index
    %525 = vector.load %arg17[%c1_376, %c0_377, %c0_378] : memref<4x1x16xf32, #tpu.memory_space<vmem>>, vector<1x1x16xf32>
    %526 = vector.shape_cast %525 : vector<1x1x16xf32> to vector<1x16xf32>
    %527 = vector.broadcast %526 : vector<1x16xf32> to vector<32x16xf32>
    %528 = arith.mulf %485, %527 : vector<32x16xf32>
    %cst_379 = arith.constant dense<0.000000e+00> : vector<32x16xf32>
    %529 = tpu.matmul %524, %528, %cst_379 {dimension_numbers = #tpu.dot_dimension_numbers<[1], [0], [0], [1], [0, 0, 1, 1], [], []>} : vector<32x32xf32>, vector<32x16xf32>, vector<32x16xf32> -> vector<32x16xf32>
    %530 = arith.addf %508, %529 : vector<32x16xf32>
    %c2_380 = arith.constant 2 : index
    %c0_381 = arith.constant 0 : index
    %c0_382 = arith.constant 0 : index
    %531 = vector.load %arg22[%c2_380, %c0_381, %c0_382] : memref<4x16x16xf32, #tpu.memory_space<vmem>>, vector<1x16x16xf32>
    %532 = vector.shape_cast %531 : vector<1x16x16xf32> to vector<16x16xf32>
    %cst_383 = arith.constant dense<0.000000e+00> : vector<32x16xf32>
    %533 = tpu.matmul %483, %532, %cst_383 {dimension_numbers = #tpu.dot_dimension_numbers<[1], [0], [0], [1], [0, 0, 1, 1], [], []>} : vector<32x16xf32>, vector<16x16xf32>, vector<32x16xf32> -> vector<32x16xf32>
    %cst_384 = arith.constant dense<0.000000e+00> : vector<32x32xf32>
    %534 = tpu.matmul %533, %483, %cst_384 {dimension_numbers = #tpu.dot_dimension_numbers<[1], [1], [0], [0], [0, 0, 1, 0], [], []>} : vector<32x16xf32>, vector<32x16xf32>, vector<32x32xf32> -> vector<32x32xf32>
    %535 = arith.mulf %534, %336 : vector<32x32xf32>
    %536 = arith.addf %535, %337 : vector<32x32xf32>
    %cst_385 = arith.constant dense<0xFF800000> : vector<32xf32>
    %537 = vector.multi_reduction <maximumf>, %536, %cst_385 [1] : vector<32x32xf32> to vector<32xf32>
    %538 = vector.shape_cast %537 : vector<32xf32> to vector<32x1xf32>
    %539 = vector.broadcast %538 : vector<32x1xf32> to vector<32x32xf32>
    %540 = arith.subf %536, %539 : vector<32x32xf32>
    %541 = math.exp %540 : vector<32x32xf32>
    %cst_386 = arith.constant dense<0.000000e+00> : vector<32xf32>
    %542 = vector.multi_reduction <add>, %541, %cst_386 [1] : vector<32x32xf32> to vector<32xf32>
    %543 = vector.shape_cast %542 : vector<32xf32> to vector<32x1xf32>
    %544 = tpu.reciprocal %543 {approx = true} : vector<32x1xf32> -> vector<32x1xf32>
    %545 = vector.broadcast %544 : vector<32x1xf32> to vector<32x32xf32>
    %546 = arith.mulf %541, %545 : vector<32x32xf32>
    %c2_387 = arith.constant 2 : index
    %c0_388 = arith.constant 0 : index
    %c0_389 = arith.constant 0 : index
    %547 = vector.load %arg17[%c2_387, %c0_388, %c0_389] : memref<4x1x16xf32, #tpu.memory_space<vmem>>, vector<1x1x16xf32>
    %548 = vector.shape_cast %547 : vector<1x1x16xf32> to vector<1x16xf32>
    %549 = vector.broadcast %548 : vector<1x16xf32> to vector<32x16xf32>
    %550 = arith.mulf %485, %549 : vector<32x16xf32>
    %cst_390 = arith.constant dense<0.000000e+00> : vector<32x16xf32>
    %551 = tpu.matmul %546, %550, %cst_390 {dimension_numbers = #tpu.dot_dimension_numbers<[1], [0], [0], [1], [0, 0, 1, 1], [], []>} : vector<32x32xf32>, vector<32x16xf32>, vector<32x16xf32> -> vector<32x16xf32>
    %552 = arith.addf %530, %551 : vector<32x16xf32>
    %c3_391 = arith.constant 3 : index
    %c0_392 = arith.constant 0 : index
    %c0_393 = arith.constant 0 : index
    %553 = vector.load %arg22[%c3_391, %c0_392, %c0_393] : memref<4x16x16xf32, #tpu.memory_space<vmem>>, vector<1x16x16xf32>
    %554 = vector.shape_cast %553 : vector<1x16x16xf32> to vector<16x16xf32>
    %cst_394 = arith.constant dense<0.000000e+00> : vector<32x16xf32>
    %555 = tpu.matmul %483, %554, %cst_394 {dimension_numbers = #tpu.dot_dimension_numbers<[1], [0], [0], [1], [0, 0, 1, 1], [], []>} : vector<32x16xf32>, vector<16x16xf32>, vector<32x16xf32> -> vector<32x16xf32>
    %cst_395 = arith.constant dense<0.000000e+00> : vector<32x32xf32>
    %556 = tpu.matmul %555, %483, %cst_395 {dimension_numbers = #tpu.dot_dimension_numbers<[1], [1], [0], [0], [0, 0, 1, 0], [], []>} : vector<32x16xf32>, vector<32x16xf32>, vector<32x32xf32> -> vector<32x32xf32>
    %557 = arith.mulf %556, %336 : vector<32x32xf32>
    %558 = arith.addf %557, %337 : vector<32x32xf32>
    %cst_396 = arith.constant dense<0xFF800000> : vector<32xf32>
    %559 = vector.multi_reduction <maximumf>, %558, %cst_396 [1] : vector<32x32xf32> to vector<32xf32>
    %560 = vector.shape_cast %559 : vector<32xf32> to vector<32x1xf32>
    %561 = vector.broadcast %560 : vector<32x1xf32> to vector<32x32xf32>
    %562 = arith.subf %558, %561 : vector<32x32xf32>
    %563 = math.exp %562 : vector<32x32xf32>
    %cst_397 = arith.constant dense<0.000000e+00> : vector<32xf32>
    %564 = vector.multi_reduction <add>, %563, %cst_397 [1] : vector<32x32xf32> to vector<32xf32>
    %565 = vector.shape_cast %564 : vector<32xf32> to vector<32x1xf32>
    %566 = tpu.reciprocal %565 {approx = true} : vector<32x1xf32> -> vector<32x1xf32>
    %567 = vector.broadcast %566 : vector<32x1xf32> to vector<32x32xf32>
    %568 = arith.mulf %563, %567 : vector<32x32xf32>
    %c3_398 = arith.constant 3 : index
    %c0_399 = arith.constant 0 : index
    %c0_400 = arith.constant 0 : index
    %569 = vector.load %arg17[%c3_398, %c0_399, %c0_400] : memref<4x1x16xf32, #tpu.memory_space<vmem>>, vector<1x1x16xf32>
    %570 = vector.shape_cast %569 : vector<1x1x16xf32> to vector<1x16xf32>
    %571 = vector.broadcast %570 : vector<1x16xf32> to vector<32x16xf32>
    %572 = arith.mulf %485, %571 : vector<32x16xf32>
    %cst_401 = arith.constant dense<0.000000e+00> : vector<32x16xf32>
    %573 = tpu.matmul %568, %572, %cst_401 {dimension_numbers = #tpu.dot_dimension_numbers<[1], [0], [0], [1], [0, 0, 1, 1], [], []>} : vector<32x32xf32>, vector<32x16xf32>, vector<32x16xf32> -> vector<32x16xf32>
    %574 = arith.addf %552, %573 : vector<32x16xf32>
    %cst_402 = arith.constant dense<0.000000e+00> : vector<32xf32>
    %575 = vector.multi_reduction <add>, %574, %cst_402 [1] : vector<32x16xf32> to vector<32xf32>
    %576 = vector.shape_cast %575 : vector<32xf32> to vector<32x1xf32>
    %cst_403 = arith.constant 1.600000e+01 : f32
    %577 = vector.broadcast %cst_403 : f32 to vector<32x1xf32>
    %578 = arith.divf %576, %577 : vector<32x1xf32>
    %579 = vector.broadcast %578 : vector<32x1xf32> to vector<32x16xf32>
    %580 = arith.subf %574, %579 : vector<32x16xf32>
    %581 = arith.mulf %580, %580 : vector<32x16xf32>
    %cst_404 = arith.constant dense<0.000000e+00> : vector<32xf32>
    %582 = vector.multi_reduction <add>, %581, %cst_404 [1] : vector<32x16xf32> to vector<32xf32>
    %583 = vector.shape_cast %582 : vector<32xf32> to vector<32x1xf32>
    %cst_405 = arith.constant 1.600000e+01 : f32
    %584 = vector.broadcast %cst_405 : f32 to vector<32x1xf32>
    %585 = arith.divf %583, %584 : vector<32x1xf32>
    %586 = vector.broadcast %578 : vector<32x1xf32> to vector<32x16xf32>
    %587 = arith.subf %574, %586 : vector<32x16xf32>
    %cst_406 = arith.constant 9.99999974E-6 : f32
    %588 = vector.broadcast %cst_406 : f32 to vector<32x1xf32>
    %589 = arith.addf %585, %588 : vector<32x1xf32>
    %590 = math.rsqrt %589 : vector<32x1xf32>
    %591 = vector.broadcast %590 : vector<32x1xf32> to vector<32x16xf32>
    %592 = arith.mulf %587, %591 : vector<32x16xf32>
    %593 = vector.broadcast %479 : vector<1x16xf32> to vector<32x16xf32>
    %594 = arith.mulf %592, %593 : vector<32x16xf32>
    %595 = vector.broadcast %480 : vector<1x16xf32> to vector<32x16xf32>
    %596 = arith.addf %594, %595 : vector<32x16xf32>
    %cst_407 = arith.constant dense<0.000000e+00> : vector<32xf32>
    %597 = vector.multi_reduction <add>, %596, %cst_407 [1] : vector<32x16xf32> to vector<32xf32>
    %598 = vector.shape_cast %597 : vector<32xf32> to vector<32x1xf32>
    %cst_408 = arith.constant 1.600000e+01 : f32
    %599 = vector.broadcast %cst_408 : f32 to vector<32x1xf32>
    %600 = arith.divf %598, %599 : vector<32x1xf32>
    %601 = vector.broadcast %600 : vector<32x1xf32> to vector<32x16xf32>
    %602 = arith.subf %596, %601 : vector<32x16xf32>
    %603 = arith.mulf %602, %602 : vector<32x16xf32>
    %cst_409 = arith.constant dense<0.000000e+00> : vector<32xf32>
    %604 = vector.multi_reduction <add>, %603, %cst_409 [1] : vector<32x16xf32> to vector<32xf32>
    %605 = vector.shape_cast %604 : vector<32xf32> to vector<32x1xf32>
    %cst_410 = arith.constant 1.600000e+01 : f32
    %606 = vector.broadcast %cst_410 : f32 to vector<32x1xf32>
    %607 = arith.divf %605, %606 : vector<32x1xf32>
    %608 = vector.broadcast %600 : vector<32x1xf32> to vector<32x16xf32>
    %609 = arith.subf %596, %608 : vector<32x16xf32>
    %cst_411 = arith.constant 9.99999974E-6 : f32
    %610 = vector.broadcast %cst_411 : f32 to vector<32x1xf32>
    %611 = arith.addf %607, %610 : vector<32x1xf32>
    %612 = math.rsqrt %611 : vector<32x1xf32>
    %613 = vector.broadcast %612 : vector<32x1xf32> to vector<32x16xf32>
    %614 = arith.mulf %609, %613 : vector<32x16xf32>
    %615 = vector.broadcast %481 : vector<1x16xf32> to vector<32x16xf32>
    %616 = arith.mulf %614, %615 : vector<32x16xf32>
    %617 = vector.broadcast %482 : vector<1x16xf32> to vector<32x16xf32>
    %618 = arith.addf %616, %617 : vector<32x16xf32>
    %c0_412 = arith.constant 0 : index
    %c0_413 = arith.constant 0 : index
    %619 = vector.load %arg28[%c0_412, %c0_413] : memref<2x32xf32, #tpu.memory_space<vmem>>, vector<2x32xf32>
    %cst_414 = arith.constant dense<0.000000e+00> : vector<2x16xf32>
    %620 = tpu.matmul %619, %618, %cst_414 {dimension_numbers = #tpu.dot_dimension_numbers<[1], [0], [0], [1], [0, 0, 1, 1], [], []>} : vector<2x32xf32>, vector<32x16xf32>, vector<2x16xf32> -> vector<2x16xf32>
    %c0_415 = arith.constant 0 : index
    %c0_416 = arith.constant 0 : index
    %621 = vector.load %arg29[%c0_415, %c0_416] : memref<16x3xf32, #tpu.memory_space<vmem>>, vector<16x3xf32>
    %cst_417 = arith.constant dense<0.000000e+00> : vector<2x3xf32>
    %622 = tpu.matmul %620, %621, %cst_417 {dimension_numbers = #tpu.dot_dimension_numbers<[1], [0], [0], [1], [0, 0, 1, 1], [], []>} : vector<2x16xf32>, vector<16x3xf32>, vector<2x3xf32> -> vector<2x3xf32>
    %c0_418 = arith.constant 0 : index
    %c0_419 = arith.constant 0 : index
    %623 = vector.load %arg30[%c0_418, %c0_419] : memref<1x3xf32, #tpu.memory_space<vmem>>, vector<1x3xf32>
    %624 = vector.broadcast %623 : vector<1x3xf32> to vector<2x3xf32>
    %625 = arith.addf %622, %624 : vector<2x3xf32>
    %c0_420 = arith.constant 0 : index
    %c0_421 = arith.constant 0 : index
    %626 = vector.load %arg31[%c0_420, %c0_421] : memref<2x3xf32, #tpu.memory_space<vmem>>, vector<2x3xf32>
    tpu.vector_store %arg31[%c0_420, %c0_421], %625 {strides = array<i32>} : memref<2x3xf32, #tpu.memory_space<vmem>>, vector<2x3xf32>,
    return
  }
}

</mosaic_0001>

<llo_original>
// kernel: forward.1
$region0: #{forward.1}
  #allocation0 [shape = 'u32[]', space=smem, size = 0x4, offset = 0x4, fixed_abs, tag = 'smem constant byte address 0x4 - core index']
  #allocation1 [shape = 'u32[144,128]{1,0:T(1,128)}', space=vmem, size = 0x12000, scoped, tag = 'internal scratch']
  %s0 = inlined_call_operand.smem [shape: u32[32], index: -1, kind: input, shape index: {}]
  %s1 = sld [smem:[%s0]]
  %s2 = scalar_lea.smem %s0, 1
  %s3 = sld [smem:[%s2]]
  %s4 = scalar_lea.smem %s0, 2
  %s5 = sld [smem:[%s4]]
  %s6 = scalar_lea.smem %s0, 3
  %s7 = sld [smem:[%s6]]
  %s8 = scalar_lea.smem %s0, 4
  %s9 = sld [smem:[%s8]]
  %s10 = scalar_lea.smem %s0, 5
  %s11 = sld [smem:[%s10]]
  %s12 = scalar_lea.smem %s0, 6
  %s13 = sld [smem:[%s12]]
  %s14 = scalar_lea.smem %s0, 7
  %s15 = sld [smem:[%s14]]
  %s16 = scalar_lea.smem %s0, 8
  %s17 = sld [smem:[%s16]]
  %s18 = scalar_lea.smem %s0, 9
  %s19 = sld [smem:[%s18]]
  %s20 = scalar_lea.smem %s0, 10
  %s21 = sld [smem:[%s20]]
  %s22 = scalar_lea.smem %s0, 11
  %s23 = sld [smem:[%s22]]
  %s24 = scalar_lea.smem %s0, 12
  %s25 = sld [smem:[%s24]]
  %s26 = scalar_lea.smem %s0, 13
  %s27 = sld [smem:[%s26]]
  %s28 = scalar_lea.smem %s0, 14
  %s29 = sld [smem:[%s28]]
  %s30 = scalar_lea.smem %s0, 15
  %s31 = sld [smem:[%s30]]
  %s32 = scalar_lea.smem %s0, 16
  %s33 = sld [smem:[%s32]]
  %s34 = scalar_lea.smem %s0, 17
  %s35 = sld [smem:[%s34]]
  %s36 = scalar_lea.smem %s0, 18
  %s37 = sld [smem:[%s36]]
  %s38 = scalar_lea.smem %s0, 19
  %s39 = sld [smem:[%s38]]
  %s40 = scalar_lea.smem %s0, 20
  %s41 = sld [smem:[%s40]]
  %s42 = scalar_lea.smem %s0, 21
  %s43 = sld [smem:[%s42]]
  %s44 = scalar_lea.smem %s0, 22
  %s45 = sld [smem:[%s44]]
  %s46 = scalar_lea.smem %s0, 23
  %s47 = sld [smem:[%s46]]
  %s48 = scalar_lea.smem %s0, 24
  %s49 = sld [smem:[%s48]]
  %s50 = scalar_lea.smem %s0, 25
  %s51 = sld [smem:[%s50]]
  %s52 = scalar_lea.smem %s0, 26
  %s53 = sld [smem:[%s52]]
  %s54 = scalar_lea.smem %s0, 27
  %s55 = sld [smem:[%s54]]
  %s56 = scalar_lea.smem %s0, 28
  %s57 = sld [smem:[%s56]]
  %s58 = scalar_lea.smem %s0, 29
  %s59 = sld [smem:[%s58]]
  %s60 = scalar_lea.smem %s0, 30
  %s61 = sld [smem:[%s60]]
  %s62 = scalar_lea.smem %s0, 31
  %s63 = sld [smem:[%s62]]
  %s64 = sld [smem:[#allocation0]]
  $region194: #{forward.1} parent=0
    _
  %s66 = ssub.s32 1, %s64
  %s67 = scalar_select 0, %s66, %s64
  $region1: #{forward.1} parent=0
    #allocation2 [shape = 'u8[512]{0}', space=vmem, size = 0x400, scoped, tag = 'input window, operand 2, single buffered']
    #allocation3 [shape = 's32[1]{0}', space=sflag, size = 0x4, scoped, tag = 'scoped memory for forward.1']
    #allocation4 [shape = 's32[1]{0}', space=sflag, size = 0x4, scoped, tag = 'scoped memory for forward.1']
    #allocation5 [shape = 'u8[512]{0}', space=vmem, size = 0x400, scoped, tag = 'input window, operand 3, single buffered']
    #allocation6 [shape = 's32[1]{0}', space=sflag, size = 0x4, scoped, tag = 'scoped memory for forward.1']
    #allocation7 [shape = 'u8[507904]{0}', space=vmem, size = 0x7c000, scoped, tag = 'input window, operand 4, single buffered']
    #allocation8 [shape = 'u8[512]{0}', space=vmem, size = 0x400, scoped, tag = 'input window, operand 7, single buffered']
    #allocation9 [shape = 's32[1]{0}', space=sflag, size = 0x4, scoped, tag = 'scoped memory for forward.1']
    #allocation10 [shape = 'u8[512]{0}', space=vmem, size = 0x400, scoped, tag = 'input window, operand 11, single buffered']
    #allocation11 [shape = 'u8[512]{0}', space=vmem, size = 0x400, scoped, tag = 'input window, operand 18, single buffered']
    #allocation12 [shape = 's32[1]{0}', space=sflag, size = 0x4, scoped, tag = 'scoped memory for forward.1']
    #allocation13 [shape = 'u8[512]{0}', space=vmem, size = 0x400, scoped, tag = 'input window, operand 19, single buffered']
    #allocation14 [shape = 'u8[512]{0}', space=vmem, size = 0x400, scoped, tag = 'input window, operand 20, single buffered']
    #allocation15 [shape = 's32[1]{0}', space=sflag, size = 0x4, scoped, tag = 'scoped memory for forward.1']
    #allocation16 [shape = 'u8[512]{0}', space=vmem, size = 0x400, scoped, tag = 'input window, operand 21, single buffered']
    #allocation17 [shape = 'u8[512]{0}', space=vmem, size = 0x400, scoped, tag = 'input window, operand 24, single buffered']
    #allocation18 [shape = 's32[1]{0}', space=sflag, size = 0x4, scoped, tag = 'scoped memory for forward.1']
    #allocation19 [shape = 'u8[512]{0}', space=vmem, size = 0x400, scoped, tag = 'input window, operand 25, single buffered']
    #allocation20 [shape = 'u8[512]{0}', space=vmem, size = 0x400, scoped, tag = 'input window, operand 26, single buffered']
    #allocation21 [shape = 's32[1]{0}', space=sflag, size = 0x4, scoped, tag = 'scoped memory for forward.1']
    #allocation22 [shape = 'u8[512]{0}', space=vmem, size = 0x400, scoped, tag = 'input window, operand 27, single buffered']
    #allocation23 [shape = 'u8[1024]{0}', space=vmem, size = 0x400, scoped, tag = 'input window, operand 28, single buffered']
    #allocation24 [shape = 's32[1]{0}', space=sflag, size = 0x4, scoped, tag = 'scoped memory for forward.1']
    #allocation25 [shape = 'u8[512]{0}', space=vmem, size = 0x400, scoped, tag = 'input window, operand 30, single buffered']
    #allocation26 [shape = 'u8[1024]{0}', space=vmem, size = 0x400, scoped, tag = 'output window, operand 0, single buffered']
    %68 = vsyncpa [#allocation3], 0
    %69 = vsyncpa [#allocation6], 0
    %70 = vsyncpa [#allocation9], 0
    %71 = vsyncpa [#allocation12], 0
    %72 = vsyncpa [#allocation15], 0
    %73 = vsyncpa [#allocation18], 0
    %74 = vsyncpa [#allocation21], 0
    %75 = vsyncpa [#allocation24], 0
    %76 = vsyncpa [#allocation4], 0
    // Predicated region
    $region2: #{forward.1} parent=1 // pred_check
      _
    $region3: #{forward.1} parent=1 // pred_check_branch
      %78 = sbr.rel (0) target = $region5
    $region4: #{forward.1} parent=1 // pred_region
      _
    $region5: #{forward.1} parent=1 // pred_fallthru
      _
    // Predicated region
    $region6: #{forward.1} parent=1 // pred_check
      _
    $region7: #{forward.1} parent=1 // pred_check_branch
      %80 = sbr.rel (0) target = $region9
    $region8: #{forward.1} parent=1 // pred_region
      _
    $region9: #{forward.1} parent=1 // pred_fallthru
      _
    // Predicated region
    $region10: #{forward.1} parent=1 // pred_check
      _
    $region11: #{forward.1} parent=1 // pred_check_branch
      %82 = sbr.rel (0) target = $region13
    $region12: #{forward.1} parent=1 // pred_region
      %s84 = ssub.s32 16, 16
      %85 = vsyncadd [#allocation3], %s84
      %s87 = sshll.u32 [#allocation2], 4
      %s88 = int_to_ptr.vmem [resolvable:$true] %s87
      %90 = dma.hbm_to_vmem [thread:$0]  %s5, 16, %s88, [#allocation3]
    $region13: #{forward.1} parent=1 // pred_fallthru
      _
    // Predicated region
    $region14: #{forward.1} parent=1 // pred_check
      _
    $region15: #{forward.1} parent=1 // pred_check_branch
      %92 = sbr.rel (0) target = $region17
    $region16: #{forward.1} parent=1 // pred_region
      %s94 = ssub.s32 16, 16
      %95 = vsyncadd [#allocation6], %s94
      %s97 = sshll.u32 [#allocation5], 4
      %s98 = int_to_ptr.vmem [resolvable:$true] %s97
      %100 = dma.hbm_to_vmem [thread:$0]  %s7, 16, %s98, [#allocation6]
    $region17: #{forward.1} parent=1 // pred_fallthru
      _
    // Predicated region
    $region18: #{forward.1} parent=1 // pred_check
      _
    $region19: #{forward.1} parent=1 // pred_check_branch
      %102 = sbr.rel (0) target = $region21
    $region20: #{forward.1} parent=1 // pred_region
      %s104 = ssub.s32 15872, 15872
      %105 = vsyncadd [#allocation6], %s104
      %s106 = sshll.u32 [#allocation7], 4
      %s107 = int_to_ptr.vmem [resolvable:$true] %s106
      %112 = dma.hbm_to_vmem [thread:$0]  %s9, 15872, %s107, [#allocation6], 128, 128, 8
    $region21: #{forward.1} parent=1 // pred_fallthru
      _
    // Predicated region
    $region22: #{forward.1} parent=1 // pred_check
      _
    $region23: #{forward.1} parent=1 // pred_check_branch
      %114 = sbr.rel (0) target = $region25
    $region24: #{forward.1} parent=1 // pred_region
      _
    $region25: #{forward.1} parent=1 // pred_fallthru
      _
    // Predicated region
    $region26: #{forward.1} parent=1 // pred_check
      _
    $region27: #{forward.1} parent=1 // pred_check_branch
      %116 = sbr.rel (0) target = $region29
    $region28: #{forward.1} parent=1 // pred_region
      _
    $region29: #{forward.1} parent=1 // pred_fallthru
      _
    // Predicated region
    $region30: #{forward.1} parent=1 // pred_check
      _
    $region31: #{forward.1} parent=1 // pred_check_branch
      %118 = sbr.rel (0) target = $region33
    $region32: #{forward.1} parent=1 // pred_region
      %s120 = ssub.s32 16, 16
      %121 = vsyncadd [#allocation9], %s120
      %s123 = sshll.u32 [#allocation8], 4
      %s124 = int_to_ptr.vmem [resolvable:$true] %s123
      %126 = dma.hbm_to_vmem [thread:$0]  %s15, 16, %s124, [#allocation9]
    $region33: #{forward.1} parent=1 // pred_fallthru
      _
    // Predicated region
    $region34: #{forward.1} parent=1 // pred_check
      _
    $region35: #{forward.1} parent=1 // pred_check_branch
      %128 = sbr.rel (0) target = $region37
    $region36: #{forward.1} parent=1 // pred_region
      _
    $region37: #{forward.1} parent=1 // pred_fallthru
      _
    // Predicated region
    $region38: #{forward.1} parent=1 // pred_check
      _
    $region39: #{forward.1} parent=1 // pred_check_branch
      %130 = sbr.rel (0) target = $region41
    $region40: #{forward.1} parent=1 // pred_region
      _
    $region41: #{forward.1} parent=1 // pred_fallthru
      _
    // Predicated region
    $region42: #{forward.1} parent=1 // pred_check
      _
    $region43: #{forward.1} parent=1 // pred_check_branch
      %132 = sbr.rel (0) target = $region45
    $region44: #{forward.1} parent=1 // pred_region
      _
    $region45: #{forward.1} parent=1 // pred_fallthru
      _
    // Predicated region
    $region46: #{forward.1} parent=1 // pred_check
      _
    $region47: #{forward.1} parent=1 // pred_check_branch
      %134 = sbr.rel (0) target = $region49
    $region48: #{forward.1} parent=1 // pred_region
      %s136 = ssub.s32 16, 16
      %137 = vsyncadd [#allocation9], %s136
      %s139 = sshll.u32 [#allocation10], 4
      %s140 = int_to_ptr.vmem [resolvable:$true] %s139
      %142 = dma.hbm_to_vmem [thread:$0]  %s23, 16, %s140, [#allocation9]
    $region49: #{forward.1} parent=1 // pred_fallthru
      _
    // Predicated region
    $region50: #{forward.1} parent=1 // pred_check
      _
    $region51: #{forward.1} parent=1 // pred_check_branch
      %144 = sbr.rel (0) target = $region53
    $region52: #{forward.1} parent=1 // pred_region
      _
    $region53: #{forward.1} parent=1 // pred_fallthru
      _
    // Predicated region
    $region54: #{forward.1} parent=1 // pred_check
      _
    $region55: #{forward.1} parent=1 // pred_check_branch
      %146 = sbr.rel (0) target = $region57
    $region56: #{forward.1} parent=1 // pred_region
      _
    $region57: #{forward.1} parent=1 // pred_fallthru
      _
    // Predicated region
    $region58: #{forward.1} parent=1 // pred_check
      _
    $region59: #{forward.1} parent=1 // pred_check_branch
      %148 = sbr.rel (0) target = $region61
    $region60: #{forward.1} parent=1 // pred_region
      _
    $region61: #{forward.1} parent=1 // pred_fallthru
      _
    // Predicated region
    $region62: #{forward.1} parent=1 // pred_check
      _
    $region63: #{forward.1} parent=1 // pred_check_branch
      %150 = sbr.rel (0) target = $region65
    $region64: #{forward.1} parent=1 // pred_region
      _
    $region65: #{forward.1} parent=1 // pred_fallthru
      _
    // Predicated region
    $region66: #{forward.1} parent=1 // pred_check
      _
    $region67: #{forward.1} parent=1 // pred_check_branch
      %152 = sbr.rel (0) target = $region69
    $region68: #{forward.1} parent=1 // pred_region
      _
    $region69: #{forward.1} parent=1 // pred_fallthru
      _
    // Predicated region
    $region70: #{forward.1} parent=1 // pred_check
      _
    $region71: #{forward.1} parent=1 // pred_check_branch
      %154 = sbr.rel (0) target = $region73
    $region72: #{forward.1} parent=1 // pred_region
      _
    $region73: #{forward.1} parent=1 // pred_fallthru
      _
    // Predicated region
    $region74: #{forward.1} parent=1 // pred_check
      _
    $region75: #{forward.1} parent=1 // pred_check_branch
      %156 = sbr.rel (0) target = $region77
    $region76: #{forward.1} parent=1 // pred_region
      %s158 = ssub.s32 16, 16
      %159 = vsyncadd [#allocation12], %s158
      %s161 = sshll.u32 [#allocation11], 4
      %s162 = int_to_ptr.vmem [resolvable:$true] %s161
      %164 = dma.hbm_to_vmem [thread:$0]  %s37, 16, %s162, [#allocation12]
    $region77: #{forward.1} parent=1 // pred_fallthru
      _
    // Predicated region
    $region78: #{forward.1} parent=1 // pred_check
      _
    $region79: #{forward.1} parent=1 // pred_check_branch
      %166 = sbr.rel (0) target = $region81
    $region80: #{forward.1} parent=1 // pred_region
      %s168 = ssub.s32 16, 16
      %169 = vsyncadd [#allocation12], %s168
      %s171 = sshll.u32 [#allocation13], 4
      %s172 = int_to_ptr.vmem [resolvable:$true] %s171
      %174 = dma.hbm_to_vmem [thread:$0]  %s39, 16, %s172, [#allocation12]
    $region81: #{forward.1} parent=1 // pred_fallthru
      _
    // Predicated region
    $region82: #{forward.1} parent=1 // pred_check
      _
    $region83: #{forward.1} parent=1 // pred_check_branch
      %176 = sbr.rel (0) target = $region85
    $region84: #{forward.1} parent=1 // pred_region
      %s178 = ssub.s32 16, 16
      %179 = vsyncadd [#allocation15], %s178
      %s181 = sshll.u32 [#allocation14], 4
      %s182 = int_to_ptr.vmem [resolvable:$true] %s181
      %184 = dma.hbm_to_vmem [thread:$0]  %s41, 16, %s182, [#allocation15]
    $region85: #{forward.1} parent=1 // pred_fallthru
      _
    // Predicated region
    $region86: #{forward.1} parent=1 // pred_check
      _
    $region87: #{forward.1} parent=1 // pred_check_branch
      %186 = sbr.rel (0) target = $region89
    $region88: #{forward.1} parent=1 // pred_region
      %s188 = ssub.s32 16, 16
      %189 = vsyncadd [#allocation15], %s188
      %s191 = sshll.u32 [#allocation16], 4
      %s192 = int_to_ptr.vmem [resolvable:$true] %s191
      %194 = dma.hbm_to_vmem [thread:$0]  %s43, 16, %s192, [#allocation15]
    $region89: #{forward.1} parent=1 // pred_fallthru
      _
    // Predicated region
    $region90: #{forward.1} parent=1 // pred_check
      _
    $region91: #{forward.1} parent=1 // pred_check_branch
      %196 = sbr.rel (0) target = $region93
    $region92: #{forward.1} parent=1 // pred_region
      _
    $region93: #{forward.1} parent=1 // pred_fallthru
      _
    // Predicated region
    $region94: #{forward.1} parent=1 // pred_check
      _
    $region95: #{forward.1} parent=1 // pred_check_branch
      %198 = sbr.rel (0) target = $region97
    $region96: #{forward.1} parent=1 // pred_region
      _
    $region97: #{forward.1} parent=1 // pred_fallthru
      _
    // Predicated region
    $region98: #{forward.1} parent=1 // pred_check
      _
    $region99: #{forward.1} parent=1 // pred_check_branch
      %200 = sbr.rel (0) target = $region101
    $region100: #{forward.1} parent=1 // pred_region
      %s202 = ssub.s32 16, 16
      %203 = vsyncadd [#allocation18], %s202
      %s205 = sshll.u32 [#allocation17], 4
      %s206 = int_to_ptr.vmem [resolvable:$true] %s205
      %208 = dma.hbm_to_vmem [thread:$0]  %s49, 16, %s206, [#allocation18]
    $region101: #{forward.1} parent=1 // pred_fallthru
      _
    // Predicated region
    $region102: #{forward.1} parent=1 // pred_check
      _
    $region103: #{forward.1} parent=1 // pred_check_branch
      %210 = sbr.rel (0) target = $region105
    $region104: #{forward.1} parent=1 // pred_region
      %s212 = ssub.s32 16, 16
      %213 = vsyncadd [#allocation18], %s212
      %s215 = sshll.u32 [#allocation19], 4
      %s216 = int_to_ptr.vmem [resolvable:$true] %s215
      %218 = dma.hbm_to_vmem [thread:$0]  %s51, 16, %s216, [#allocation18]
    $region105: #{forward.1} parent=1 // pred_fallthru
      _
    // Predicated region
    $region106: #{forward.1} parent=1 // pred_check
      _
    $region107: #{forward.1} parent=1 // pred_check_branch
      %220 = sbr.rel (0) target = $region109
    $region108: #{forward.1} parent=1 // pred_region
      %s222 = ssub.s32 16, 16
      %223 = vsyncadd [#allocation21], %s222
      %s225 = sshll.u32 [#allocation20], 4
      %s226 = int_to_ptr.vmem [resolvable:$true] %s225
      %228 = dma.hbm_to_vmem [thread:$0]  %s53, 16, %s226, [#allocation21]
    $region109: #{forward.1} parent=1 // pred_fallthru
      _
    // Predicated region
    $region110: #{forward.1} parent=1 // pred_check
      _
    $region111: #{forward.1} parent=1 // pred_check_branch
      %230 = sbr.rel (0) target = $region113
    $region112: #{forward.1} parent=1 // pred_region
      %s232 = ssub.s32 16, 16
      %233 = vsyncadd [#allocation21], %s232
      %s235 = sshll.u32 [#allocation22], 4
      %s236 = int_to_ptr.vmem [resolvable:$true] %s235
      %238 = dma.hbm_to_vmem [thread:$0]  %s55, 16, %s236, [#allocation21]
    $region113: #{forward.1} parent=1 // pred_fallthru
      _
    // Predicated region
    $region114: #{forward.1} parent=1 // pred_check
      _
    $region115: #{forward.1} parent=1 // pred_check_branch
      %240 = sbr.rel (0) target = $region117
    $region116: #{forward.1} parent=1 // pred_region
      %s242 = ssub.s32 32, 32
      %243 = vsyncadd [#allocation24], %s242
      %s245 = sshll.u32 [#allocation23], 4
      %s246 = int_to_ptr.vmem [resolvable:$true] %s245
      %248 = dma.hbm_to_vmem [thread:$0]  %s57, 32, %s246, [#allocation24]
    $region117: #{forward.1} parent=1 // pred_fallthru
      _
    // Predicated region
    $region118: #{forward.1} parent=1 // pred_check
      _
    $region119: #{forward.1} parent=1 // pred_check_branch
      %250 = sbr.rel (0) target = $region121
    $region120: #{forward.1} parent=1 // pred_region
      _
    $region121: #{forward.1} parent=1 // pred_fallthru
      _
    // Predicated region
    $region122: #{forward.1} parent=1 // pred_check
      _
    $region123: #{forward.1} parent=1 // pred_check_branch
      %252 = sbr.rel (0) target = $region125
    $region124: #{forward.1} parent=1 // pred_region
      %s254 = ssub.s32 16, 16
      %255 = vsyncadd [#allocation24], %s254
      %s257 = sshll.u32 [#allocation25], 4
      %s258 = int_to_ptr.vmem [resolvable:$true] %s257
      %260 = dma.hbm_to_vmem [thread:$0]  %s61, 16, %s258, [#allocation24]
    $region125: #{forward.1} parent=1 // pred_fallthru
      _
    // Predicated region
    $region126: #{forward.1} parent=1 // pred_check
      _
    $region127: #{forward.1} parent=1 // pred_check_branch
      %262 = sbr.rel (0) target = $region129
    $region128: #{forward.1} parent=1 // pred_region
      %263 = dma.done [#allocation3], 16
    $region129: #{forward.1} parent=1 // pred_fallthru
      _
    // Predicated region
    $region130: #{forward.1} parent=1 // pred_check
      _
    $region131: #{forward.1} parent=1 // pred_check_branch
      %265 = sbr.rel (0) target = $region133
    $region132: #{forward.1} parent=1 // pred_region
      %266 = dma.done [#allocation6], 16
    $region133: #{forward.1} parent=1 // pred_fallthru
      _
    // Predicated region
    $region134: #{forward.1} parent=1 // pred_check
      _
    $region135: #{forward.1} parent=1 // pred_check_branch
      %268 = sbr.rel (0) target = $region137
    $region136: #{forward.1} parent=1 // pred_region
      %269 = dma.done [#allocation6], 15872
    $region137: #{forward.1} parent=1 // pred_fallthru
      _
    // Predicated region
    $region138: #{forward.1} parent=1 // pred_check
      _
    $region139: #{forward.1} parent=1 // pred_check_branch
      %271 = sbr.rel (0) target = $region141
    $region140: #{forward.1} parent=1 // pred_region
      %272 = dma.done [#allocation9], 16
    $region141: #{forward.1} parent=1 // pred_fallthru
      _
    // Predicated region
    $region142: #{forward.1} parent=1 // pred_check
      _
    $region143: #{forward.1} parent=1 // pred_check_branch
      %274 = sbr.rel (0) target = $region145
    $region144: #{forward.1} parent=1 // pred_region
      %275 = dma.done [#allocation9], 16
    $region145: #{forward.1} parent=1 // pred_fallthru
      _
    // Predicated region
    $region146: #{forward.1} parent=1 // pred_check
      _
    $region147: #{forward.1} parent=1 // pred_check_branch
      %277 = sbr.rel (0) target = $region149
    $region148: #{forward.1} parent=1 // pred_region
      %278 = dma.done [#allocation12], 16
    $region149: #{forward.1} parent=1 // pred_fallthru
      _
    // Predicated region
    $region150: #{forward.1} parent=1 // pred_check
      _
    $region151: #{forward.1} parent=1 // pred_check_branch
      %280 = sbr.rel (0) target = $region153
    $region152: #{forward.1} parent=1 // pred_region
      %281 = dma.done [#allocation12], 16
    $region153: #{forward.1} parent=1 // pred_fallthru
      _
    // Predicated region
    $region154: #{forward.1} parent=1 // pred_check
      _
    $region155: #{forward.1} parent=1 // pred_check_branch
      %283 = sbr.rel (0) target = $region157
    $region156: #{forward.1} parent=1 // pred_region
      %284 = dma.done [#allocation15], 16
    $region157: #{forward.1} parent=1 // pred_fallthru
      _
    // Predicated region
    $region158: #{forward.1} parent=1 // pred_check
      _
    $region159: #{forward.1} parent=1 // pred_check_branch
      %286 = sbr.rel (0) target = $region161
    $region160: #{forward.1} parent=1 // pred_region
      %287 = dma.done [#allocation15], 16
    $region161: #{forward.1} parent=1 // pred_fallthru
      _
    // Predicated region
    $region162: #{forward.1} parent=1 // pred_check
      _
    $region163: #{forward.1} parent=1 // pred_check_branch
      %289 = sbr.rel (0) target = $region165
    $region164: #{forward.1} parent=1 // pred_region
      %290 = dma.done [#allocation18], 16
    $region165: #{forward.1} parent=1 // pred_fallthru
      _
    // Predicated region
    $region166: #{forward.1} parent=1 // pred_check
      _
    $region167: #{forward.1} parent=1 // pred_check_branch
      %292 = sbr.rel (0) target = $region169
    $region168: #{forward.1} parent=1 // pred_region
      %293 = dma.done [#allocation18], 16
    $region169: #{forward.1} parent=1 // pred_fallthru
      _
    // Predicated region
    $region170: #{forward.1} parent=1 // pred_check
      _
    $region171: #{forward.1} parent=1 // pred_check_branch
      %295 = sbr.rel (0) target = $region173
    $region172: #{forward.1} parent=1 // pred_region
      %296 = dma.done [#allocation21], 16
    $region173: #{forward.1} parent=1 // pred_fallthru
      _
    // Predicated region
    $region174: #{forward.1} parent=1 // pred_check
      _
    $region175: #{forward.1} parent=1 // pred_check_branch
      %298 = sbr.rel (0) target = $region177
    $region176: #{forward.1} parent=1 // pred_region
      %299 = dma.done [#allocation21], 16
    $region177: #{forward.1} parent=1 // pred_fallthru
      _
    // Predicated region
    $region178: #{forward.1} parent=1 // pred_check
      _
    $region179: #{forward.1} parent=1 // pred_check_branch
      %301 = sbr.rel (0) target = $region181
    $region180: #{forward.1} parent=1 // pred_region
      %302 = dma.done [#allocation24], 32
    $region181: #{forward.1} parent=1 // pred_fallthru
      _
    // Predicated region
    $region182: #{forward.1} parent=1 // pred_check
      _
    $region183: #{forward.1} parent=1 // pred_check_branch
      %304 = sbr.rel (0) target = $region185
    $region184: #{forward.1} parent=1 // pred_region
      %305 = dma.done [#allocation24], 16
    $region185: #{forward.1} parent=1 // pred_fallthru
      _
    %v306 = vld [vmem:[%s1] sm:$0xff]
    %v307 = vld [vmem:[%s1 + $0x8] sm:$0xff]
    %v308 = vld [vmem:[%s1 + $0x10] sm:$0xff]
    %v309 = vld [vmem:[%s1 + $0x18] sm:$0xff]
    %v310 = vld [vmem:[%s3] sm:$0xff]
    %vm311 = vcmask 64512
    %v313 = vsel %vm311, %v306, 0
    %v316 = vsel %vm311, %v307, 0
    %v319 = vsel %vm311, %v308, 0
    %v322 = vsel %vm311, %v309, 0
    %324 = vmatprep.subr.mxu0 0.0
    %325 = vmatpush1.msra.mxu0 %v310
    %326 = vmatprep.subr.mxu0 0.0
    %327 = vmatpush1.msra.mxu0 0.0
    %328 = vmatprep.subr.mxu0 0.0
    %329 = vmatpush1.msra.mxu0 0.0
    %330 = vmatprep.subr.mxu0 0.0
    %331 = vmatpush1.msra.mxu0 0.0
    %332 = vmatprep.subr.mxu0 0.0
    %333 = vmatpush1.msra.mxu0 0.0
    %334 = vmatprep.subr.mxu0 0.0
    %335 = vmatpush1.msra.mxu0 0.0
    %336 = vmatprep.subr.mxu0 0.0
    %337 = vmatpush1.msra.mxu0 0.0
    %338 = vmatprep.subr.mxu0 0.0
    %339 = vmatpush1.msra.mxu0 0.0
    %340 = vmatprep.subr.mxu0 0.0
    %341 = vmatpush1.msra.mxu0 0.0
    %342 = vmatprep.subr.mxu0 0.0
    %343 = vmatpush1.msra.mxu0 0.0
    %344 = vmatprep.subr.mxu0 0.0
    %345 = vmatpush1.msra.mxu0 0.0
    %346 = vmatprep.subr.mxu0 0.0
    %347 = vmatpush1.msra.mxu0 0.0
    %348 = vmatprep.subr.mxu0 0.0
    %349 = vmatpush1.msra.mxu0 0.0
    %350 = vmatprep.subr.mxu0 0.0
    %351 = vmatpush1.msra.mxu0 0.0
    %352 = vmatprep.subr.mxu0 0.0
    %353 = vmatpush1.msra.mxu0 0.0
    %354 = vmatprep.subr.mxu0 0.0
    %355 = vmatpush1.msra.mxu0 0.0
    %356 = vmatprep.subr.mxu0 0.0
    %357 = vmatpush1.msra.mxu0 0.0
    %358 = vmatprep.subr.mxu0 0.0
    %359 = vmatpush1.msra.mxu0 0.0
    %360 = vmatprep.subr.mxu0 0.0
    %361 = vmatpush1.msra.mxu0 0.0
    %362 = vmatprep.subr.mxu0 0.0
    %363 = vmatpush1.msra.mxu0 0.0
    %364 = vmatprep.subr.mxu0 0.0
    %365 = vmatpush1.msra.mxu0 0.0
    %366 = vmatprep.subr.mxu0 0.0
    %367 = vmatpush1.msra.mxu0 0.0
    %368 = vmatprep.subr.mxu0 0.0
    %369 = vmatpush1.msra.mxu0 0.0
    %370 = vmatprep.subr.mxu0 0.0
    %371 = vmatpush1.msra.mxu0 0.0
    %372 = vmatprep.subr.mxu0 0.0
    %373 = vmatpush1.msra.mxu0 0.0
    %374 = vmatprep.subr.mxu0 0.0
    %375 = vmatpush1.msra.mxu0 0.0
    %376 = vmatprep.subr.mxu0 0.0
    %377 = vmatpush1.msra.mxu0 0.0
    %378 = vmatprep.subr.mxu0 0.0
    %379 = vmatpush1.msra.mxu0 0.0
    %380 = vmatprep.subr.mxu0 0.0
    %381 = vmatpush1.msra.mxu0 0.0
    %382 = vmatprep.subr.mxu0 0.0
    %383 = vmatpush1.msra.mxu0 0.0
    %384 = vmatprep.subr.mxu0 0.0
    %385 = vmatpush1.msra.mxu0 0.0
    %386 = vmatprep.subr.mxu0 0.0
    %387 = vmatpush1.msra.mxu0 0.0
    %388 = vmatprep.mubr.f32.mxu0 0.0
    %389 = vmatmul.mubr.f32.gmra.mrb[0].mxu0 %v313
    %v390 = vpop.f32.mrb[0].mxu0
    %v391 = vadd.f32 0.0, %v390
    %v392 = vpop.f32.mrb[0].mxu0
    %393 = vmatprep.mubr.f32.mxu0 0.0
    %394 = vmatmul.mubr.f32.gmra.mrb[0].mxu0 %v316
    %v395 = vpop.f32.mrb[0].mxu0
    %v396 = vadd.f32 0.0, %v395
    %v397 = vpop.f32.mrb[0].mxu0
    %398 = vmatprep.mubr.f32.mxu0 0.0
    %399 = vmatmul.mubr.f32.gmra.mrb[0].mxu0 %v319
    %v400 = vpop.f32.mrb[0].mxu0
    %v401 = vadd.f32 0.0, %v400
    %v402 = vpop.f32.mrb[0].mxu0
    %403 = vmatprep.mubr.f32.mxu0 0.0
    %404 = vmatmul.mubr.f32.gmra.mrb[0].mxu0 %v322
    %v405 = vpop.f32.mrb[0].mxu0
    %v406 = vadd.f32 0.0, %v405
    %v407 = vpop.f32.mrb[0].mxu0
    %408 = vdwg.mxu0
    %v409 = vld [vmem:[#allocation2] sm:$0x1]
    %v411 = vlaneseq
    %v412 = vshrl.u32 %v411, 7
    %v413 = vsub.s32 0, %v412
    %v414 = vrot.slane %v409, %v413
    %v416 = vmul.f32 %v391, %v414
    %v417 = vmul.f32 %v396, %v414
    %v418 = vmul.f32 %v401, %v414
    %v419 = vmul.f32 %v406, %v414
    %v420 = vld [vmem:[#allocation5] sm:$0x1]
    %v422 = vlaneseq
    %v423 = vshrl.u32 %v422, 7
    %v424 = vsub.s32 0, %v423
    %v425 = vrot.slane %v420, %v424
    %v427 = vadd.f32 %v416, %v425
    %v428 = vadd.f32 %v417, %v425
    %v429 = vadd.f32 %v418, %v425
    %v430 = vadd.f32 %v419, %v425
    %v431 = vmax.f32 %v427, 0.0
    %v432 = vmax.f32 %v428, 0.0
    %v433 = vmax.f32 %v429, 0.0
    %v434 = vmax.f32 %v430, 0.0
    %s435 = scalar_lea.vmem [#allocation7], 384
    %v436 = vld [vmem:[%s435] sm:$0xff]
    %v437 = vld [vmem:[%s435 + $0x8] sm:$0xff]
    %v438 = vld [vmem:[%s435 + $0x10] sm:$0xff]
    %v439 = vld [vmem:[%s435 + $0x18] sm:$0xff]
    %vm440 = vcmask 261120
    %v442 = vsel %vm440, %v436, 0
    %v445 = vsel %vm440, %v437, 0
    %v448 = vsel %vm440, %v438, 0
    %v451 = vsel %vm440, %v439, 0
    %453 = vmatprep.subr.mxu0 0.0
    %454 = vmatpush1.msra.mxu0 %v431
    %455 = vmatprep.subr.mxu0 0.0
    %456 = vmatpush1.msra.mxu0 %v432
    %457 = vmatprep.subr.mxu0 0.0
    %458 = vmatpush1.msra.mxu0 %v433
    %459 = vmatprep.subr.mxu0 0.0
    %460 = vmatpush1.msra.mxu0 %v434
    %461 = vmatprep.subr.mxu0 0.0
    %462 = vmatpush1.msra.mxu0 0.0
    %463 = vmatprep.subr.mxu0 0.0
    %464 = vmatpush1.msra.mxu0 0.0
    %465 = vmatprep.subr.mxu0 0.0
    %466 = vmatpush1.msra.mxu0 0.0
    %467 = vmatprep.subr.mxu0 0.0
    %468 = vmatpush1.msra.mxu0 0.0
    %469 = vmatprep.subr.mxu0 0.0
    %470 = vmatpush1.msra.mxu0 0.0
    %471 = vmatprep.subr.mxu0 0.0
    %472 = vmatpush1.msra.mxu0 0.0
    %473 = vmatprep.subr.mxu0 0.0
    %474 = vmatpush1.msra.mxu0 0.0
    %475 = vmatprep.subr.mxu0 0.0
    %476 = vmatpush1.msra.mxu0 0.0
    %477 = vmatprep.subr.mxu0 0.0
    %478 = vmatpush1.msra.mxu0 0.0
    %479 = vmatprep.subr.mxu0 0.0
    %480 = vmatpush1.msra.mxu0 0.0
    %481 = vmatprep.subr.mxu0 0.0
    %482 = vmatpush1.msra.mxu0 0.0
    %483 = vmatprep.subr.mxu0 0.0
    %484 = vmatpush1.msra.mxu0 0.0
    %485 = vmatprep.subr.mxu0 0.0
    %486 = vmatpush1.msra.mxu0 0.0
    %487 = vmatprep.subr.mxu0 0.0
    %488 = vmatpush1.msra.mxu0 0.0
    %489 = vmatprep.subr.mxu0 0.0
    %490 = vmatpush1.msra.mxu0 0.0
    %491 = vmatprep.subr.mxu0 0.0
    %492 = vmatpush1.msra.mxu0 0.0
    %493 = vmatprep.subr.mxu0 0.0
    %494 = vmatpush1.msra.mxu0 0.0
    %495 = vmatprep.subr.mxu0 0.0
    %496 = vmatpush1.msra.mxu0 0.0
    %497 = vmatprep.subr.mxu0 0.0
    %498 = vmatpush1.msra.mxu0 0.0
    %499 = vmatprep.subr.mxu0 0.0
    %500 = vmatpush1.msra.mxu0 0.0
    %501 = vmatprep.subr.mxu0 0.0
    %502 = vmatpush1.msra.mxu0 0.0
    %503 = vmatprep.subr.mxu0 0.0
    %504 = vmatpush1.msra.mxu0 0.0
    %505 = vmatprep.subr.mxu0 0.0
    %506 = vmatpush1.msra.mxu0 0.0
    %507 = vmatprep.subr.mxu0 0.0
    %508 = vmatpush1.msra.mxu0 0.0
    %509 = vmatprep.subr.mxu0 0.0
    %510 = vmatpush1.msra.mxu0 0.0
    %511 = vmatprep.subr.mxu0 0.0
    %512 = vmatpush1.msra.mxu0 0.0
    %513 = vmatprep.subr.mxu0 0.0
    %514 = vmatpush1.msra.mxu0 0.0
    %515 = vmatprep.subr.mxu0 0.0
    %516 = vmatpush1.msra.mxu0 0.0
    %517 = vmatprep.mubr.f32.mxu0 0.0
    %518 = vmatmul.mubr.f32.gmra.mrb[0].mxu0 %v442
    %v519 = vpop.f32.mrb[0].mxu0
    %v520 = vadd.f32 0.0, %v519
    %v521 = vpop.f32.mrb[0].mxu0
    %522 = vmatprep.mubr.f32.mxu0 0.0
    %523 = vmatmul.mubr.f32.gmra.mrb[0].mxu0 %v445
    %v524 = vpop.f32.mrb[0].mxu0
    %v525 = vadd.f32 0.0, %v524
    %v526 = vpop.f32.mrb[0].mxu0
    %527 = vmatprep.mubr.f32.mxu0 0.0
    %528 = vmatmul.mubr.f32.gmra.mrb[0].mxu0 %v448
    %v529 = vpop.f32.mrb[0].mxu0
    %v530 = vadd.f32 0.0, %v529
    %v531 = vpop.f32.mrb[0].mxu0
    %532 = vmatprep.mubr.f32.mxu0 0.0
    %533 = vmatmul.mubr.f32.gmra.mrb[0].mxu0 %v451
    %v534 = vpop.f32.mrb[0].mxu0
    %v535 = vadd.f32 0.0, %v534
    %v536 = vpop.f32.mrb[0].mxu0
    %537 = vdwg.mxu0
    %v538 = vld [vmem:[%s11] sm:$0xff]
    %s539 = scalar_lea.vmem [#allocation7], 416
    %v540 = vld [vmem:[%s539] sm:$0xff]
    %v541 = vld [vmem:[%s539 + $0x8] sm:$0xff]
    %v542 = vld [vmem:[%s539 + $0x10] sm:$0xff]
    %v543 = vld [vmem:[%s539 + $0x18] sm:$0xff]
    %v545 = vsel %vm440, %v540, 0
    %v548 = vsel %vm440, %v541, 0
    %v551 = vsel %vm440, %v542, 0
    %v554 = vsel %vm440, %v543, 0
    %556 = vmatprep.subr.mxu0 0.0
    %557 = vmatpush1.msra.mxu0 %v431
    %558 = vmatprep.subr.mxu0 0.0
    %559 = vmatpush1.msra.mxu0 %v432
    %560 = vmatprep.subr.mxu0 0.0
    %561 = vmatpush1.msra.mxu0 %v433
    %562 = vmatprep.subr.mxu0 0.0
    %563 = vmatpush1.msra.mxu0 %v434
    %564 = vmatprep.subr.mxu0 0.0
    %565 = vmatpush1.msra.mxu0 0.0
    %566 = vmatprep.subr.mxu0 0.0
    %567 = vmatpush1.msra.mxu0 0.0
    %568 = vmatprep.subr.mxu0 0.0
    %569 = vmatpush1.msra.mxu0 0.0
    %570 = vmatprep.subr.mxu0 0.0
    %571 = vmatpush1.msra.mxu0 0.0
    %572 = vmatprep.subr.mxu0 0.0
    %573 = vmatpush1.msra.mxu0 0.0
    %574 = vmatprep.subr.mxu0 0.0
    %575 = vmatpush1.msra.mxu0 0.0
    %576 = vmatprep.subr.mxu0 0.0
    %577 = vmatpush1.msra.mxu0 0.0
    %578 = vmatprep.subr.mxu0 0.0
    %579 = vmatpush1.msra.mxu0 0.0
    %580 = vmatprep.subr.mxu0 0.0
    %581 = vmatpush1.msra.mxu0 0.0
    %582 = vmatprep.subr.mxu0 0.0
    %583 = vmatpush1.msra.mxu0 0.0
    %584 = vmatprep.subr.mxu0 0.0
    %585 = vmatpush1.msra.mxu0 0.0
    %586 = vmatprep.subr.mxu0 0.0
    %587 = vmatpush1.msra.mxu0 0.0
    %588 = vmatprep.subr.mxu0 0.0
    %589 = vmatpush1.msra.mxu0 0.0
    %590 = vmatprep.subr.mxu0 0.0
    %591 = vmatpush1.msra.mxu0 0.0
    %592 = vmatprep.subr.mxu0 0.0
    %593 = vmatpush1.msra.mxu0 0.0
    %594 = vmatprep.subr.mxu0 0.0
    %595 = vmatpush1.msra.mxu0 0.0
    %596 = vmatprep.subr.mxu0 0.0
    %597 = vmatpush1.msra.mxu0 0.0
    %598 = vmatprep.subr.mxu0 0.0
    %599 = vmatpush1.msra.mxu0 0.0
    %600 = vmatprep.subr.mxu0 0.0
    %601 = vmatpush1.msra.mxu0 0.0
    %602 = vmatprep.subr.mxu0 0.0
    %603 = vmatpush1.msra.mxu0 0.0
    %604 = vmatprep.subr.mxu0 0.0
    %605 = vmatpush1.msra.mxu0 0.0
    %606 = vmatprep.subr.mxu0 0.0
    %607 = vmatpush1.msra.mxu0 0.0
    %608 = vmatprep.subr.mxu0 0.0
    %609 = vmatpush1.msra.mxu0 0.0
    %610 = vmatprep.subr.mxu0 0.0
    %611 = vmatpush1.msra.mxu0 0.0
    %612 = vmatprep.subr.mxu0 0.0
    %613 = vmatpush1.msra.mxu0 0.0
    %614 = vmatprep.subr.mxu0 0.0
    %615 = vmatpush1.msra.mxu0 0.0
    %616 = vmatprep.subr.mxu0 0.0
    %617 = vmatpush1.msra.mxu0 0.0
    %618 = vmatprep.subr.mxu0 0.0
    %619 = vmatpush1.msra.mxu0 0.0
    %620 = vmatprep.mubr.f32.mxu0 0.0
    %621 = vmatmul.mubr.f32.gmra.mrb[0].mxu0 %v545
    %v622 = vpop.f32.mrb[0].mxu0
    %v623 = vadd.f32 0.0, %v622
    %v624 = vpop.f32.mrb[0].mxu0
    %625 = vmatprep.mubr.f32.mxu0 0.0
    %626 = vmatmul.mubr.f32.gmra.mrb[0].mxu0 %v548
    %v627 = vpop.f32.mrb[0].mxu0
    %v628 = vadd.f32 0.0, %v627
    %v629 = vpop.f32.mrb[0].mxu0
    %630 = vmatprep.mubr.f32.mxu0 0.0
    %631 = vmatmul.mubr.f32.gmra.mrb[0].mxu0 %v551
    %v632 = vpop.f32.mrb[0].mxu0
    %v633 = vadd.f32 0.0, %v632
    %v634 = vpop.f32.mrb[0].mxu0
    %635 = vmatprep.mubr.f32.mxu0 0.0
    %636 = vmatmul.mubr.f32.gmra.mrb[0].mxu0 %v554
    %v637 = vpop.f32.mrb[0].mxu0
    %v638 = vadd.f32 0.0, %v637
    %v639 = vpop.f32.mrb[0].mxu0
    %640 = vdwg.mxu0
    %s641 = scalar_lea.vmem %s11, 8
    %v642 = vld [vmem:[%s641] sm:$0xff]
    %v644 = vsel %vm311, %v623, 0
    %v647 = vsel %vm311, %v628, 0
    %v650 = vsel %vm311, %v633, 0
    %v653 = vsel %vm311, %v638, 0
    %655 = vmatprep.subr.mxu0 0.0
    %656 = vmatpush1.msra.mxu0 %v642
    %657 = vmatprep.subr.mxu0 0.0
    %658 = vmatpush1.msra.mxu0 0.0
    %659 = vmatprep.subr.mxu0 0.0
    %660 = vmatpush1.msra.mxu0 0.0
    %661 = vmatprep.subr.mxu0 0.0
    %662 = vmatpush1.msra.mxu0 0.0
    %663 = vmatprep.subr.mxu0 0.0
    %664 = vmatpush1.msra.mxu0 0.0
    %665 = vmatprep.subr.mxu0 0.0
    %666 = vmatpush1.msra.mxu0 0.0
    %667 = vmatprep.subr.mxu0 0.0
    %668 = vmatpush1.msra.mxu0 0.0
    %669 = vmatprep.subr.mxu0 0.0
    %670 = vmatpush1.msra.mxu0 0.0
    %671 = vmatprep.subr.mxu0 0.0
    %672 = vmatpush1.msra.mxu0 0.0
    %673 = vmatprep.subr.mxu0 0.0
    %674 = vmatpush1.msra.mxu0 0.0
    %675 = vmatprep.subr.mxu0 0.0
    %676 = vmatpush1.msra.mxu0 0.0
    %677 = vmatprep.subr.mxu0 0.0
    %678 = vmatpush1.msra.mxu0 0.0
    %679 = vmatprep.subr.mxu0 0.0
    %680 = vmatpush1.msra.mxu0 0.0
    %681 = vmatprep.subr.mxu0 0.0
    %682 = vmatpush1.msra.mxu0 0.0
    %683 = vmatprep.subr.mxu0 0.0
    %684 = vmatpush1.msra.mxu0 0.0
    %685 = vmatprep.subr.mxu0 0.0
    %686 = vmatpush1.msra.mxu0 0.0
    %687 = vmatprep.subr.mxu0 0.0
    %688 = vmatpush1.msra.mxu0 0.0
    %689 = vmatprep.subr.mxu0 0.0
    %690 = vmatpush1.msra.mxu0 0.0
    %691 = vmatprep.subr.mxu0 0.0
    %692 = vmatpush1.msra.mxu0 0.0
    %693 = vmatprep.subr.mxu0 0.0
    %694 = vmatpush1.msra.mxu0 0.0
    %695 = vmatprep.subr.mxu0 0.0
    %696 = vmatpush1.msra.mxu0 0.0
    %697 = vmatprep.subr.mxu0 0.0
    %698 = vmatpush1.msra.mxu0 0.0
    %699 = vmatprep.subr.mxu0 0.0
    %700 = vmatpush1.msra.mxu0 0.0
    %701 = vmatprep.subr.mxu0 0.0
    %702 = vmatpush1.msra.mxu0 0.0
    %703 = vmatprep.subr.mxu0 0.0
    %704 = vmatpush1.msra.mxu0 0.0
    %705 = vmatprep.subr.mxu0 0.0
    %706 = vmatpush1.msra.mxu0 0.0
    %707 = vmatprep.subr.mxu0 0.0
    %708 = vmatpush1.msra.mxu0 0.0
    %709 = vmatprep.subr.mxu0 0.0
    %710 = vmatpush1.msra.mxu0 0.0
    %711 = vmatprep.subr.mxu0 0.0
    %712 = vmatpush1.msra.mxu0 0.0
    %713 = vmatprep.subr.mxu0 0.0
    %714 = vmatpush1.msra.mxu0 0.0
    %715 = vmatprep.subr.mxu0 0.0
    %716 = vmatpush1.msra.mxu0 0.0
    %717 = vmatprep.subr.mxu0 0.0
    %718 = vmatpush1.msra.mxu0 0.0
    %719 = vmatprep.mubr.f32.mxu0 0.0
    %720 = vmatmul.mubr.f32.gmra.mrb[0].mxu0 %v644
    %v721 = vpop.f32.mrb[0].mxu0
    %v722 = vadd.f32 0.0, %v721
    %v723 = vpop.f32.mrb[0].mxu0
    %724 = vmatprep.mubr.f32.mxu0 0.0
    %725 = vmatmul.mubr.f32.gmra.mrb[0].mxu0 %v647
    %v726 = vpop.f32.mrb[0].mxu0
    %v727 = vadd.f32 0.0, %v726
    %v728 = vpop.f32.mrb[0].mxu0
    %729 = vmatprep.mubr.f32.mxu0 0.0
    %730 = vmatmul.mubr.f32.gmra.mrb[0].mxu0 %v650
    %v731 = vpop.f32.mrb[0].mxu0
    %v732 = vadd.f32 0.0, %v731
    %v733 = vpop.f32.mrb[0].mxu0
    %734 = vmatprep.mubr.f32.mxu0 0.0
    %735 = vmatmul.mubr.f32.gmra.mrb[0].mxu0 %v653
    %v736 = vpop.f32.mrb[0].mxu0
    %v737 = vadd.f32 0.0, %v736
    %v738 = vpop.f32.mrb[0].mxu0
    %739 = vdwg.mxu0
    %v741 = vsel %vm311, %v520, 0
    %v744 = vsel %vm311, %v525, 0
    %v747 = vsel %vm311, %v530, 0
    %v750 = vsel %vm311, %v535, 0
    %752 = vmatprep.subr.mxu0 0.0
    %753 = vmatpush1.msra.mxu0 %v538
    %754 = vmatprep.subr.mxu0 0.0
    %755 = vmatpush1.msra.mxu0 0.0
    %756 = vmatprep.subr.mxu0 0.0
    %757 = vmatpush1.msra.mxu0 0.0
    %758 = vmatprep.subr.mxu0 0.0
    %759 = vmatpush1.msra.mxu0 0.0
    %760 = vmatprep.subr.mxu0 0.0
    %761 = vmatpush1.msra.mxu0 0.0
    %762 = vmatprep.subr.mxu0 0.0
    %763 = vmatpush1.msra.mxu0 0.0
    %764 = vmatprep.subr.mxu0 0.0
    %765 = vmatpush1.msra.mxu0 0.0
    %766 = vmatprep.subr.mxu0 0.0
    %767 = vmatpush1.msra.mxu0 0.0
    %768 = vmatprep.subr.mxu0 0.0
    %769 = vmatpush1.msra.mxu0 0.0
    %770 = vmatprep.subr.mxu0 0.0
    %771 = vmatpush1.msra.mxu0 0.0
    %772 = vmatprep.subr.mxu0 0.0
    %773 = vmatpush1.msra.mxu0 0.0
    %774 = vmatprep.subr.mxu0 0.0
    %775 = vmatpush1.msra.mxu0 0.0
    %776 = vmatprep.subr.mxu0 0.0
    %777 = vmatpush1.msra.mxu0 0.0
    %778 = vmatprep.subr.mxu0 0.0
    %779 = vmatpush1.msra.mxu0 0.0
    %780 = vmatprep.subr.mxu0 0.0
    %781 = vmatpush1.msra.mxu0 0.0
    %782 = vmatprep.subr.mxu0 0.0
    %783 = vmatpush1.msra.mxu0 0.0
    %784 = vmatprep.subr.mxu0 0.0
    %785 = vmatpush1.msra.mxu0 0.0
    %786 = vmatprep.subr.mxu0 0.0
    %787 = vmatpush1.msra.mxu0 0.0
    %788 = vmatprep.subr.mxu0 0.0
    %789 = vmatpush1.msra.mxu0 0.0
    %790 = vmatprep.subr.mxu0 0.0
    %791 = vmatpush1.msra.mxu0 0.0
    %792 = vmatprep.subr.mxu0 0.0
    %793 = vmatpush1.msra.mxu0 0.0
    %794 = vmatprep.subr.mxu0 0.0
    %795 = vmatpush1.msra.mxu0 0.0
    %796 = vmatprep.subr.mxu0 0.0
    %797 = vmatpush1.msra.mxu0 0.0
    %798 = vmatprep.subr.mxu0 0.0
    %799 = vmatpush1.msra.mxu0 0.0
    %800 = vmatprep.subr.mxu0 0.0
    %801 = vmatpush1.msra.mxu0 0.0
    %802 = vmatprep.subr.mxu0 0.0
    %803 = vmatpush1.msra.mxu0 0.0
    %804 = vmatprep.subr.mxu0 0.0
    %805 = vmatpush1.msra.mxu0 0.0
    %806 = vmatprep.subr.mxu0 0.0
    %807 = vmatpush1.msra.mxu0 0.0
    %808 = vmatprep.subr.mxu0 0.0
    %809 = vmatpush1.msra.mxu0 0.0
    %810 = vmatprep.subr.mxu0 0.0
    %811 = vmatpush1.msra.mxu0 0.0
    %812 = vmatprep.subr.mxu0 0.0
    %813 = vmatpush1.msra.mxu0 0.0
    %814 = vmatprep.subr.mxu0 0.0
    %815 = vmatpush1.msra.mxu0 0.0
    %816 = vmatprep.mubr.f32.mxu0 0.0
    %817 = vmatmul.mubr.f32.gmra.mrb[0].mxu0 %v741
    %v818 = vpop.f32.mrb[0].mxu0
    %v819 = vadd.f32 %v722, %v818
    %v820 = vpop.f32.mrb[0].mxu0
    %821 = vmatprep.mubr.f32.mxu0 0.0
    %822 = vmatmul.mubr.f32.gmra.mrb[0].mxu0 %v744
    %v823 = vpop.f32.mrb[0].mxu0
    %v824 = vadd.f32 %v727, %v823
    %v825 = vpop.f32.mrb[0].mxu0
    %826 = vmatprep.mubr.f32.mxu0 0.0
    %827 = vmatmul.mubr.f32.gmra.mrb[0].mxu0 %v747
    %v828 = vpop.f32.mrb[0].mxu0
    %v829 = vadd.f32 %v732, %v828
    %v830 = vpop.f32.mrb[0].mxu0
    %831 = vmatprep.mubr.f32.mxu0 0.0
    %832 = vmatmul.mubr.f32.gmra.mrb[0].mxu0 %v750
    %v833 = vpop.f32.mrb[0].mxu0
    %v834 = vadd.f32 %v737, %v833
    %v835 = vpop.f32.mrb[0].mxu0
    %836 = vdwg.mxu0
    %s837 = scalar_lea.vmem [#allocation7], 448
    %v838 = vld [vmem:[%s837] sm:$0xff]
    %v839 = vld [vmem:[%s837 + $0x8] sm:$0xff]
    %v840 = vld [vmem:[%s837 + $0x10] sm:$0xff]
    %v841 = vld [vmem:[%s837 + $0x18] sm:$0xff]
    %v843 = vsel %vm440, %v838, 0
    %v846 = vsel %vm440, %v839, 0
    %v849 = vsel %vm440, %v840, 0
    %v852 = vsel %vm440, %v841, 0
    %854 = vmatprep.subr.mxu0 0.0
    %855 = vmatpush1.msra.mxu0 %v431
    %856 = vmatprep.subr.mxu0 0.0
    %857 = vmatpush1.msra.mxu0 %v432
    %858 = vmatprep.subr.mxu0 0.0
    %859 = vmatpush1.msra.mxu0 %v433
    %860 = vmatprep.subr.mxu0 0.0
    %861 = vmatpush1.msra.mxu0 %v434
    %862 = vmatprep.subr.mxu0 0.0
    %863 = vmatpush1.msra.mxu0 0.0
    %864 = vmatprep.subr.mxu0 0.0
    %865 = vmatpush1.msra.mxu0 0.0
    %866 = vmatprep.subr.mxu0 0.0
    %867 = vmatpush1.msra.mxu0 0.0
    %868 = vmatprep.subr.mxu0 0.0
    %869 = vmatpush1.msra.mxu0 0.0
    %870 = vmatprep.subr.mxu0 0.0
    %871 = vmatpush1.msra.mxu0 0.0
    %872 = vmatprep.subr.mxu0 0.0
    %873 = vmatpush1.msra.mxu0 0.0
    %874 = vmatprep.subr.mxu0 0.0
    %875 = vmatpush1.msra.mxu0 0.0
    %876 = vmatprep.subr.mxu0 0.0
    %877 = vmatpush1.msra.mxu0 0.0
    %878 = vmatprep.subr.mxu0 0.0
    %879 = vmatpush1.msra.mxu0 0.0
    %880 = vmatprep.subr.mxu0 0.0
    %881 = vmatpush1.msra.mxu0 0.0
    %882 = vmatprep.subr.mxu0 0.0
    %883 = vmatpush1.msra.mxu0 0.0
    %884 = vmatprep.subr.mxu0 0.0
    %885 = vmatpush1.msra.mxu0 0.0
    %886 = vmatprep.subr.mxu0 0.0
    %887 = vmatpush1.msra.mxu0 0.0
    %888 = vmatprep.subr.mxu0 0.0
    %889 = vmatpush1.msra.mxu0 0.0
    %890 = vmatprep.subr.mxu0 0.0
    %891 = vmatpush1.msra.mxu0 0.0
    %892 = vmatprep.subr.mxu0 0.0
    %893 = vmatpush1.msra.mxu0 0.0
    %894 = vmatprep.subr.mxu0 0.0
    %895 = vmatpush1.msra.mxu0 0.0
    %896 = vmatprep.subr.mxu0 0.0
    %897 = vmatpush1.msra.mxu0 0.0
    %898 = vmatprep.subr.mxu0 0.0
    %899 = vmatpush1.msra.mxu0 0.0
    %900 = vmatprep.subr.mxu0 0.0
    %901 = vmatpush1.msra.mxu0 0.0
    %902 = vmatprep.subr.mxu0 0.0
    %903 = vmatpush1.msra.mxu0 0.0
    %904 = vmatprep.subr.mxu0 0.0
    %905 = vmatpush1.msra.mxu0 0.0
    %906 = vmatprep.subr.mxu0 0.0
    %907 = vmatpush1.msra.mxu0 0.0
    %908 = vmatprep.subr.mxu0 0.0
    %909 = vmatpush1.msra.mxu0 0.0
    %910 = vmatprep.subr.mxu0 0.0
    %911 = vmatpush1.msra.mxu0 0.0
    %912 = vmatprep.subr.mxu0 0.0
    %913 = vmatpush1.msra.mxu0 0.0
    %914 = vmatprep.subr.mxu0 0.0
    %915 = vmatpush1.msra.mxu0 0.0
    %916 = vmatprep.subr.mxu0 0.0
    %917 = vmatpush1.msra.mxu0 0.0
    %918 = vmatprep.mubr.f32.mxu0 0.0
    %919 = vmatmul.mubr.f32.gmra.mrb[0].mxu0 %v843
    %v920 = vpop.f32.mrb[0].mxu0
    %v921 = vadd.f32 0.0, %v920
    %v922 = vpop.f32.mrb[0].mxu0
    %923 = vmatprep.mubr.f32.mxu0 0.0
    %924 = vmatmul.mubr.f32.gmra.mrb[0].mxu0 %v846
    %v925 = vpop.f32.mrb[0].mxu0
    %v926 = vadd.f32 0.0, %v925
    %v927 = vpop.f32.mrb[0].mxu0
    %928 = vmatprep.mubr.f32.mxu0 0.0
    %929 = vmatmul.mubr.f32.gmra.mrb[0].mxu0 %v849
    %v930 = vpop.f32.mrb[0].mxu0
    %v931 = vadd.f32 0.0, %v930
    %v932 = vpop.f32.mrb[0].mxu0
    %933 = vmatprep.mubr.f32.mxu0 0.0
    %934 = vmatmul.mubr.f32.gmra.mrb[0].mxu0 %v852
    %v935 = vpop.f32.mrb[0].mxu0
    %v936 = vadd.f32 0.0, %v935
    %v937 = vpop.f32.mrb[0].mxu0
    %938 = vdwg.mxu0
    %s939 = scalar_lea.vmem %s11, 16
    %v940 = vld [vmem:[%s939] sm:$0xff]
    %v942 = vsel %vm311, %v921, 0
    %v945 = vsel %vm311, %v926, 0
    %v948 = vsel %vm311, %v931, 0
    %v951 = vsel %vm311, %v936, 0
    %953 = vmatprep.subr.mxu0 0.0
    %954 = vmatpush1.msra.mxu0 %v940
    %955 = vmatprep.subr.mxu0 0.0
    %956 = vmatpush1.msra.mxu0 0.0
    %957 = vmatprep.subr.mxu0 0.0
    %958 = vmatpush1.msra.mxu0 0.0
    %959 = vmatprep.subr.mxu0 0.0
    %960 = vmatpush1.msra.mxu0 0.0
    %961 = vmatprep.subr.mxu0 0.0
    %962 = vmatpush1.msra.mxu0 0.0
    %963 = vmatprep.subr.mxu0 0.0
    %964 = vmatpush1.msra.mxu0 0.0
    %965 = vmatprep.subr.mxu0 0.0
    %966 = vmatpush1.msra.mxu0 0.0
    %967 = vmatprep.subr.mxu0 0.0
    %968 = vmatpush1.msra.mxu0 0.0
    %969 = vmatprep.subr.mxu0 0.0
    %970 = vmatpush1.msra.mxu0 0.0
    %971 = vmatprep.subr.mxu0 0.0
    %972 = vmatpush1.msra.mxu0 0.0
    %973 = vmatprep.subr.mxu0 0.0
    %974 = vmatpush1.msra.mxu0 0.0
    %975 = vmatprep.subr.mxu0 0.0
    %976 = vmatpush1.msra.mxu0 0.0
    %977 = vmatprep.subr.mxu0 0.0
    %978 = vmatpush1.msra.mxu0 0.0
    %979 = vmatprep.subr.mxu0 0.0
    %980 = vmatpush1.msra.mxu0 0.0
    %981 = vmatprep.subr.mxu0 0.0
    %982 = vmatpush1.msra.mxu0 0.0
    %983 = vmatprep.subr.mxu0 0.0
    %984 = vmatpush1.msra.mxu0 0.0
    %985 = vmatprep.subr.mxu0 0.0
    %986 = vmatpush1.msra.mxu0 0.0
    %987 = vmatprep.subr.mxu0 0.0
    %988 = vmatpush1.msra.mxu0 0.0
    %989 = vmatprep.subr.mxu0 0.0
    %990 = vmatpush1.msra.mxu0 0.0
    %991 = vmatprep.subr.mxu0 0.0
    %992 = vmatpush1.msra.mxu0 0.0
    %993 = vmatprep.subr.mxu0 0.0
    %994 = vmatpush1.msra.mxu0 0.0
    %995 = vmatprep.subr.mxu0 0.0
    %996 = vmatpush1.msra.mxu0 0.0
    %997 = vmatprep.subr.mxu0 0.0
    %998 = vmatpush1.msra.mxu0 0.0
    %999 = vmatprep.subr.mxu0 0.0
    %1000 = vmatpush1.msra.mxu0 0.0
    %1001 = vmatprep.subr.mxu0 0.0
    %1002 = vmatpush1.msra.mxu0 0.0
    %1003 = vmatprep.subr.mxu0 0.0
    %1004 = vmatpush1.msra.mxu0 0.0
    %1005 = vmatprep.subr.mxu0 0.0
    %1006 = vmatpush1.msra.mxu0 0.0
    %1007 = vmatprep.subr.mxu0 0.0
    %1008 = vmatpush1.msra.mxu0 0.0
    %1009 = vmatprep.subr.mxu0 0.0
    %1010 = vmatpush1.msra.mxu0 0.0
    %1011 = vmatprep.subr.mxu0 0.0
    %1012 = vmatpush1.msra.mxu0 0.0
    %1013 = vmatprep.subr.mxu0 0.0
    %1014 = vmatpush1.msra.mxu0 0.0
    %1015 = vmatprep.subr.mxu0 0.0
    %1016 = vmatpush1.msra.mxu0 0.0
    %1017 = vmatprep.mubr.f32.mxu0 0.0
    %1018 = vmatmul.mubr.f32.gmra.mrb[0].mxu0 %v942
    %v1019 = vpop.f32.mrb[0].mxu0
    %v1020 = vadd.f32 0.0, %v1019
    %v1021 = vpop.f32.mrb[0].mxu0
    %1022 = vmatprep.mubr.f32.mxu0 0.0
    %1023 = vmatmul.mubr.f32.gmra.mrb[0].mxu0 %v945
    %v1024 = vpop.f32.mrb[0].mxu0
    %v1025 = vadd.f32 0.0, %v1024
    %v1026 = vpop.f32.mrb[0].mxu0
    %1027 = vmatprep.mubr.f32.mxu0 0.0
    %1028 = vmatmul.mubr.f32.gmra.mrb[0].mxu0 %v948
    %v1029 = vpop.f32.mrb[0].mxu0
    %v1030 = vadd.f32 0.0, %v1029
    %v1031 = vpop.f32.mrb[0].mxu0
    %1032 = vmatprep.mubr.f32.mxu0 0.0
    %1033 = vmatmul.mubr.f32.gmra.mrb[0].mxu0 %v951
    %v1034 = vpop.f32.mrb[0].mxu0
    %v1035 = vadd.f32 0.0, %v1034
    %v1036 = vpop.f32.mrb[0].mxu0
    %1037 = vdwg.mxu0
    %v1038 = vadd.f32 %v819, %v1020
    %v1039 = vadd.f32 %v824, %v1025
    %v1040 = vadd.f32 %v829, %v1030
    %v1041 = vadd.f32 %v834, %v1035
    %s1042 = scalar_lea.vmem [#allocation7], 480
    %v1043 = vld [vmem:[%s1042] sm:$0xff]
    %v1044 = vld [vmem:[%s1042 + $0x8] sm:$0xff]
    %v1045 = vld [vmem:[%s1042 + $0x10] sm:$0xff]
    %v1046 = vld [vmem:[%s1042 + $0x18] sm:$0xff]
    %v1048 = vsel %vm440, %v1043, 0
    %v1051 = vsel %vm440, %v1044, 0
    %v1054 = vsel %vm440, %v1045, 0
    %v1057 = vsel %vm440, %v1046, 0
    %1059 = vmatprep.subr.mxu0 0.0
    %1060 = vmatpush1.msra.mxu0 %v431
    %1061 = vmatprep.subr.mxu0 0.0
    %1062 = vmatpush1.msra.mxu0 %v432
    %1063 = vmatprep.subr.mxu0 0.0
    %1064 = vmatpush1.msra.mxu0 %v433
    %1065 = vmatprep.subr.mxu0 0.0
    %1066 = vmatpush1.msra.mxu0 %v434
    %1067 = vmatprep.subr.mxu0 0.0
    %1068 = vmatpush1.msra.mxu0 0.0
    %1069 = vmatprep.subr.mxu0 0.0
    %1070 = vmatpush1.msra.mxu0 0.0
    %1071 = vmatprep.subr.mxu0 0.0
    %1072 = vmatpush1.msra.mxu0 0.0
    %1073 = vmatprep.subr.mxu0 0.0
    %1074 = vmatpush1.msra.mxu0 0.0
    %1075 = vmatprep.subr.mxu0 0.0
    %1076 = vmatpush1.msra.mxu0 0.0
    %1077 = vmatprep.subr.mxu0 0.0
    %1078 = vmatpush1.msra.mxu0 0.0
    %1079 = vmatprep.subr.mxu0 0.0
    %1080 = vmatpush1.msra.mxu0 0.0
    %1081 = vmatprep.subr.mxu0 0.0
    %1082 = vmatpush1.msra.mxu0 0.0
    %1083 = vmatprep.subr.mxu0 0.0
    %1084 = vmatpush1.msra.mxu0 0.0
    %1085 = vmatprep.subr.mxu0 0.0
    %1086 = vmatpush1.msra.mxu0 0.0
    %1087 = vmatprep.subr.mxu0 0.0
    %1088 = vmatpush1.msra.mxu0 0.0
    %1089 = vmatprep.subr.mxu0 0.0
    %1090 = vmatpush1.msra.mxu0 0.0
    %1091 = vmatprep.subr.mxu0 0.0
    %1092 = vmatpush1.msra.mxu0 0.0
    %1093 = vmatprep.subr.mxu0 0.0
    %1094 = vmatpush1.msra.mxu0 0.0
    %1095 = vmatprep.subr.mxu0 0.0
    %1096 = vmatpush1.msra.mxu0 0.0
    %1097 = vmatprep.subr.mxu0 0.0
    %1098 = vmatpush1.msra.mxu0 0.0
    %1099 = vmatprep.subr.mxu0 0.0
    %1100 = vmatpush1.msra.mxu0 0.0
    %1101 = vmatprep.subr.mxu0 0.0
    %1102 = vmatpush1.msra.mxu0 0.0
    %1103 = vmatprep.subr.mxu0 0.0
    %1104 = vmatpush1.msra.mxu0 0.0
    %1105 = vmatprep.subr.mxu0 0.0
    %1106 = vmatpush1.msra.mxu0 0.0
    %1107 = vmatprep.subr.mxu0 0.0
    %1108 = vmatpush1.msra.mxu0 0.0
    %1109 = vmatprep.subr.mxu0 0.0
    %1110 = vmatpush1.msra.mxu0 0.0
    %1111 = vmatprep.subr.mxu0 0.0
    %1112 = vmatpush1.msra.mxu0 0.0
    %1113 = vmatprep.subr.mxu0 0.0
    %1114 = vmatpush1.msra.mxu0 0.0
    %1115 = vmatprep.subr.mxu0 0.0
    %1116 = vmatpush1.msra.mxu0 0.0
    %1117 = vmatprep.subr.mxu0 0.0
    %1118 = vmatpush1.msra.mxu0 0.0
    %1119 = vmatprep.subr.mxu0 0.0
    %1120 = vmatpush1.msra.mxu0 0.0
    %1121 = vmatprep.subr.mxu0 0.0
    %1122 = vmatpush1.msra.mxu0 0.0
    %1123 = vmatprep.mubr.f32.mxu0 0.0
    %1124 = vmatmul.mubr.f32.gmra.mrb[0].mxu0 %v1048
    %v1125 = vpop.f32.mrb[0].mxu0
    %v1126 = vadd.f32 0.0, %v1125
    %v1127 = vpop.f32.mrb[0].mxu0
    %1128 = vmatprep.mubr.f32.mxu0 0.0
    %1129 = vmatmul.mubr.f32.gmra.mrb[0].mxu0 %v1051
    %v1130 = vpop.f32.mrb[0].mxu0
    %v1131 = vadd.f32 0.0, %v1130
    %v1132 = vpop.f32.mrb[0].mxu0
    %1133 = vmatprep.mubr.f32.mxu0 0.0
    %1134 = vmatmul.mubr.f32.gmra.mrb[0].mxu0 %v1054
    %v1135 = vpop.f32.mrb[0].mxu0
    %v1136 = vadd.f32 0.0, %v1135
    %v1137 = vpop.f32.mrb[0].mxu0
    %1138 = vmatprep.mubr.f32.mxu0 0.0
    %1139 = vmatmul.mubr.f32.gmra.mrb[0].mxu0 %v1057
    %v1140 = vpop.f32.mrb[0].mxu0
    %v1141 = vadd.f32 0.0, %v1140
    %v1142 = vpop.f32.mrb[0].mxu0
    %1143 = vdwg.mxu0
    %s1144 = scalar_lea.vmem %s11, 24
    %v1145 = vld [vmem:[%s1144] sm:$0xff]
    %v1147 = vsel %vm311, %v1126, 0
    %v1150 = vsel %vm311, %v1131, 0
    %v1153 = vsel %vm311, %v1136, 0
    %v1156 = vsel %vm311, %v1141, 0
    %1158 = vmatprep.subr.mxu0 0.0
    %1159 = vmatpush1.msra.mxu0 %v1145
    %1160 = vmatprep.subr.mxu0 0.0
    %1161 = vmatpush1.msra.mxu0 0.0
    %1162 = vmatprep.subr.mxu0 0.0
    %1163 = vmatpush1.msra.mxu0 0.0
    %1164 = vmatprep.subr.mxu0 0.0
    %1165 = vmatpush1.msra.mxu0 0.0
    %1166 = vmatprep.subr.mxu0 0.0
    %1167 = vmatpush1.msra.mxu0 0.0
    %1168 = vmatprep.subr.mxu0 0.0
    %1169 = vmatpush1.msra.mxu0 0.0
    %1170 = vmatprep.subr.mxu0 0.0
    %1171 = vmatpush1.msra.mxu0 0.0
    %1172 = vmatprep.subr.mxu0 0.0
    %1173 = vmatpush1.msra.mxu0 0.0
    %1174 = vmatprep.subr.mxu0 0.0
    %1175 = vmatpush1.msra.mxu0 0.0
    %1176 = vmatprep.subr.mxu0 0.0
    %1177 = vmatpush1.msra.mxu0 0.0
    %1178 = vmatprep.subr.mxu0 0.0
    %1179 = vmatpush1.msra.mxu0 0.0
    %1180 = vmatprep.subr.mxu0 0.0
    %1181 = vmatpush1.msra.mxu0 0.0
    %1182 = vmatprep.subr.mxu0 0.0
    %1183 = vmatpush1.msra.mxu0 0.0
    %1184 = vmatprep.subr.mxu0 0.0
    %1185 = vmatpush1.msra.mxu0 0.0
    %1186 = vmatprep.subr.mxu0 0.0
    %1187 = vmatpush1.msra.mxu0 0.0
    %1188 = vmatprep.subr.mxu0 0.0
    %1189 = vmatpush1.msra.mxu0 0.0
    %1190 = vmatprep.subr.mxu0 0.0
    %1191 = vmatpush1.msra.mxu0 0.0
    %1192 = vmatprep.subr.mxu0 0.0
    %1193 = vmatpush1.msra.mxu0 0.0
    %1194 = vmatprep.subr.mxu0 0.0
    %1195 = vmatpush1.msra.mxu0 0.0
    %1196 = vmatprep.subr.mxu0 0.0
    %1197 = vmatpush1.msra.mxu0 0.0
    %1198 = vmatprep.subr.mxu0 0.0
    %1199 = vmatpush1.msra.mxu0 0.0
    %1200 = vmatprep.subr.mxu0 0.0
    %1201 = vmatpush1.msra.mxu0 0.0
    %1202 = vmatprep.subr.mxu0 0.0
    %1203 = vmatpush1.msra.mxu0 0.0
    %1204 = vmatprep.subr.mxu0 0.0
    %1205 = vmatpush1.msra.mxu0 0.0
    %1206 = vmatprep.subr.mxu0 0.0
    %1207 = vmatpush1.msra.mxu0 0.0
    %1208 = vmatprep.subr.mxu0 0.0
    %1209 = vmatpush1.msra.mxu0 0.0
    %1210 = vmatprep.subr.mxu0 0.0
    %1211 = vmatpush1.msra.mxu0 0.0
    %1212 = vmatprep.subr.mxu0 0.0
    %1213 = vmatpush1.msra.mxu0 0.0
    %1214 = vmatprep.subr.mxu0 0.0
    %1215 = vmatpush1.msra.mxu0 0.0
    %1216 = vmatprep.subr.mxu0 0.0
    %1217 = vmatpush1.msra.mxu0 0.0
    %1218 = vmatprep.subr.mxu0 0.0
    %1219 = vmatpush1.msra.mxu0 0.0
    %1220 = vmatprep.subr.mxu0 0.0
    %1221 = vmatpush1.msra.mxu0 0.0
    %1222 = vmatprep.mubr.f32.mxu0 0.0
    %1223 = vmatmul.mubr.f32.gmra.mrb[0].mxu0 %v1147
    %v1224 = vpop.f32.mrb[0].mxu0
    %v1225 = vadd.f32 0.0, %v1224
    %v1226 = vpop.f32.mrb[0].mxu0
    %1227 = vmatprep.mubr.f32.mxu0 0.0
    %1228 = vmatmul.mubr.f32.gmra.mrb[0].mxu0 %v1150
    %v1229 = vpop.f32.mrb[0].mxu0
    %v1230 = vadd.f32 0.0, %v1229
    %v1231 = vpop.f32.mrb[0].mxu0
    %1232 = vmatprep.mubr.f32.mxu0 0.0
    %1233 = vmatmul.mubr.f32.gmra.mrb[0].mxu0 %v1153
    %v1234 = vpop.f32.mrb[0].mxu0
    %v1235 = vadd.f32 0.0, %v1234
    %v1236 = vpop.f32.mrb[0].mxu0
    %1237 = vmatprep.mubr.f32.mxu0 0.0
    %1238 = vmatmul.mubr.f32.gmra.mrb[0].mxu0 %v1156
    %v1239 = vpop.f32.mrb[0].mxu0
    %v1240 = vadd.f32 0.0, %v1239
    %v1241 = vpop.f32.mrb[0].mxu0
    %1242 = vdwg.mxu0
    %v1243 = vadd.f32 %v1038, %v1225
    %v1244 = vadd.f32 %v1039, %v1230
    %v1245 = vadd.f32 %v1040, %v1235
    %v1246 = vadd.f32 %v1041, %v1240
    %s1247 = scalar_lea.vmem [#allocation7], 512
    %v1248 = vld [vmem:[%s1247] sm:$0xff]
    %v1249 = vld [vmem:[%s1247 + $0x8] sm:$0xff]
    %v1250 = vld [vmem:[%s1247 + $0x10] sm:$0xff]
    %v1251 = vld [vmem:[%s1247 + $0x18] sm:$0xff]
    %v1253 = vsel %vm440, %v1248, 0
    %v1256 = vsel %vm440, %v1249, 0
    %v1259 = vsel %vm440, %v1250, 0
    %v1262 = vsel %vm440, %v1251, 0
    %1264 = vmatprep.subr.mxu0 0.0
    %1265 = vmatpush1.msra.mxu0 %v431
    %1266 = vmatprep.subr.mxu0 0.0
    %1267 = vmatpush1.msra.mxu0 %v432
    %1268 = vmatprep.subr.mxu0 0.0
    %1269 = vmatpush1.msra.mxu0 %v433
    %1270 = vmatprep.subr.mxu0 0.0
    %1271 = vmatpush1.msra.mxu0 %v434
    %1272 = vmatprep.subr.mxu0 0.0
    %1273 = vmatpush1.msra.mxu0 0.0
    %1274 = vmatprep.subr.mxu0 0.0
    %1275 = vmatpush1.msra.mxu0 0.0
    %1276 = vmatprep.subr.mxu0 0.0
    %1277 = vmatpush1.msra.mxu0 0.0
    %1278 = vmatprep.subr.mxu0 0.0
    %1279 = vmatpush1.msra.mxu0 0.0
    %1280 = vmatprep.subr.mxu0 0.0
    %1281 = vmatpush1.msra.mxu0 0.0
    %1282 = vmatprep.subr.mxu0 0.0
    %1283 = vmatpush1.msra.mxu0 0.0
    %1284 = vmatprep.subr.mxu0 0.0
    %1285 = vmatpush1.msra.mxu0 0.0
    %1286 = vmatprep.subr.mxu0 0.0
    %1287 = vmatpush1.msra.mxu0 0.0
    %1288 = vmatprep.subr.mxu0 0.0
    %1289 = vmatpush1.msra.mxu0 0.0
    %1290 = vmatprep.subr.mxu0 0.0
    %1291 = vmatpush1.msra.mxu0 0.0
    %1292 = vmatprep.subr.mxu0 0.0
    %1293 = vmatpush1.msra.mxu0 0.0
    %1294 = vmatprep.subr.mxu0 0.0
    %1295 = vmatpush1.msra.mxu0 0.0
    %1296 = vmatprep.subr.mxu0 0.0
    %1297 = vmatpush1.msra.mxu0 0.0
    %1298 = vmatprep.subr.mxu0 0.0
    %1299 = vmatpush1.msra.mxu0 0.0
    %1300 = vmatprep.subr.mxu0 0.0
    %1301 = vmatpush1.msra.mxu0 0.0
    %1302 = vmatprep.subr.mxu0 0.0
    %1303 = vmatpush1.msra.mxu0 0.0
    %1304 = vmatprep.subr.mxu0 0.0
    %1305 = vmatpush1.msra.mxu0 0.0
    %1306 = vmatprep.subr.mxu0 0.0
    %1307 = vmatpush1.msra.mxu0 0.0
    %1308 = vmatprep.subr.mxu0 0.0
    %1309 = vmatpush1.msra.mxu0 0.0
    %1310 = vmatprep.subr.mxu0 0.0
    %1311 = vmatpush1.msra.mxu0 0.0
    %1312 = vmatprep.subr.mxu0 0.0
    %1313 = vmatpush1.msra.mxu0 0.0
    %1314 = vmatprep.subr.mxu0 0.0
    %1315 = vmatpush1.msra.mxu0 0.0
    %1316 = vmatprep.subr.mxu0 0.0
    %1317 = vmatpush1.msra.mxu0 0.0
    %1318 = vmatprep.subr.mxu0 0.0
    %1319 = vmatpush1.msra.mxu0 0.0
    %1320 = vmatprep.subr.mxu0 0.0
    %1321 = vmatpush1.msra.mxu0 0.0
    %1322 = vmatprep.subr.mxu0 0.0
    %1323 = vmatpush1.msra.mxu0 0.0
    %1324 = vmatprep.subr.mxu0 0.0
    %1325 = vmatpush1.msra.mxu0 0.0
    %1326 = vmatprep.subr.mxu0 0.0
    %1327 = vmatpush1.msra.mxu0 0.0
    %1328 = vmatprep.mubr.f32.mxu0 0.0
    %1329 = vmatmul.mubr.f32.gmra.mrb[0].mxu0 %v1253
    %v1330 = vpop.f32.mrb[0].mxu0
    %v1331 = vadd.f32 0.0, %v1330
    %v1332 = vpop.f32.mrb[0].mxu0
    %1333 = vmatprep.mubr.f32.mxu0 0.0
    %1334 = vmatmul.mubr.f32.gmra.mrb[0].mxu0 %v1256
    %v1335 = vpop.f32.mrb[0].mxu0
    %v1336 = vadd.f32 0.0, %v1335
    %v1337 = vpop.f32.mrb[0].mxu0
    %1338 = vmatprep.mubr.f32.mxu0 0.0
    %1339 = vmatmul.mubr.f32.gmra.mrb[0].mxu0 %v1259
    %v1340 = vpop.f32.mrb[0].mxu0
    %v1341 = vadd.f32 0.0, %v1340
    %v1342 = vpop.f32.mrb[0].mxu0
    %1343 = vmatprep.mubr.f32.mxu0 0.0
    %1344 = vmatmul.mubr.f32.gmra.mrb[0].mxu0 %v1262
    %v1345 = vpop.f32.mrb[0].mxu0
    %v1346 = vadd.f32 0.0, %v1345
    %v1347 = vpop.f32.mrb[0].mxu0
    %1348 = vdwg.mxu0
    %s1349 = scalar_lea.vmem %s11, 32
    %v1350 = vld [vmem:[%s1349] sm:$0xff]
    %v1352 = vsel %vm311, %v1331, 0
    %v1355 = vsel %vm311, %v1336, 0
    %v1358 = vsel %vm311, %v1341, 0
    %v1361 = vsel %vm311, %v1346, 0
    %1363 = vmatprep.subr.mxu0 0.0
    %1364 = vmatpush1.msra.mxu0 %v1350
    %1365 = vmatprep.subr.mxu0 0.0
    %1366 = vmatpush1.msra.mxu0 0.0
    %1367 = vmatprep.subr.mxu0 0.0
    %1368 = vmatpush1.msra.mxu0 0.0
    %1369 = vmatprep.subr.mxu0 0.0
    %1370 = vmatpush1.msra.mxu0 0.0
    %1371 = vmatprep.subr.mxu0 0.0
    %1372 = vmatpush1.msra.mxu0 0.0
    %1373 = vmatprep.subr.mxu0 0.0
    %1374 = vmatpush1.msra.mxu0 0.0
    %1375 = vmatprep.subr.mxu0 0.0
    %1376 = vmatpush1.msra.mxu0 0.0
    %1377 = vmatprep.subr.mxu0 0.0
    %1378 = vmatpush1.msra.mxu0 0.0
    %1379 = vmatprep.subr.mxu0 0.0
    %1380 = vmatpush1.msra.mxu0 0.0
    %1381 = vmatprep.subr.mxu0 0.0
    %1382 = vmatpush1.msra.mxu0 0.0
    %1383 = vmatprep.subr.mxu0 0.0
    %1384 = vmatpush1.msra.mxu0 0.0
    %1385 = vmatprep.subr.mxu0 0.0
    %1386 = vmatpush1.msra.mxu0 0.0
    %1387 = vmatprep.subr.mxu0 0.0
    %1388 = vmatpush1.msra.mxu0 0.0
    %1389 = vmatprep.subr.mxu0 0.0
    %1390 = vmatpush1.msra.mxu0 0.0
    %1391 = vmatprep.subr.mxu0 0.0
    %1392 = vmatpush1.msra.mxu0 0.0
    %1393 = vmatprep.subr.mxu0 0.0
    %1394 = vmatpush1.msra.mxu0 0.0
    %1395 = vmatprep.subr.mxu0 0.0
    %1396 = vmatpush1.msra.mxu0 0.0
    %1397 = vmatprep.subr.mxu0 0.0
    %1398 = vmatpush1.msra.mxu0 0.0
    %1399 = vmatprep.subr.mxu0 0.0
    %1400 = vmatpush1.msra.mxu0 0.0
    %1401 = vmatprep.subr.mxu0 0.0
    %1402 = vmatpush1.msra.mxu0 0.0
    %1403 = vmatprep.subr.mxu0 0.0
    %1404 = vmatpush1.msra.mxu0 0.0
    %1405 = vmatprep.subr.mxu0 0.0
    %1406 = vmatpush1.msra.mxu0 0.0
    %1407 = vmatprep.subr.mxu0 0.0
    %1408 = vmatpush1.msra.mxu0 0.0
    %1409 = vmatprep.subr.mxu0 0.0
    %1410 = vmatpush1.msra.mxu0 0.0
    %1411 = vmatprep.subr.mxu0 0.0
    %1412 = vmatpush1.msra.mxu0 0.0
    %1413 = vmatprep.subr.mxu0 0.0
    %1414 = vmatpush1.msra.mxu0 0.0
    %1415 = vmatprep.subr.mxu0 0.0
    %1416 = vmatpush1.msra.mxu0 0.0
    %1417 = vmatprep.subr.mxu0 0.0
    %1418 = vmatpush1.msra.mxu0 0.0
    %1419 = vmatprep.subr.mxu0 0.0
    %1420 = vmatpush1.msra.mxu0 0.0
    %1421 = vmatprep.subr.mxu0 0.0
    %1422 = vmatpush1.msra.mxu0 0.0
    %1423 = vmatprep.subr.mxu0 0.0
    %1424 = vmatpush1.msra.mxu0 0.0
    %1425 = vmatprep.subr.mxu0 0.0
    %1426 = vmatpush1.msra.mxu0 0.0
    %1427 = vmatprep.mubr.f32.mxu0 0.0
    %1428 = vmatmul.mubr.f32.gmra.mrb[0].mxu0 %v1352
    %v1429 = vpop.f32.mrb[0].mxu0
    %v1430 = vadd.f32 0.0, %v1429
    %v1431 = vpop.f32.mrb[0].mxu0
    %1432 = vmatprep.mubr.f32.mxu0 0.0
    %1433 = vmatmul.mubr.f32.gmra.mrb[0].mxu0 %v1355
    %v1434 = vpop.f32.mrb[0].mxu0
    %v1435 = vadd.f32 0.0, %v1434
    %v1436 = vpop.f32.mrb[0].mxu0
    %1437 = vmatprep.mubr.f32.mxu0 0.0
    %1438 = vmatmul.mubr.f32.gmra.mrb[0].mxu0 %v1358
    %v1439 = vpop.f32.mrb[0].mxu0
    %v1440 = vadd.f32 0.0, %v1439
    %v1441 = vpop.f32.mrb[0].mxu0
    %1442 = vmatprep.mubr.f32.mxu0 0.0
    %1443 = vmatmul.mubr.f32.gmra.mrb[0].mxu0 %v1361
    %v1444 = vpop.f32.mrb[0].mxu0
    %v1445 = vadd.f32 0.0, %v1444
    %v1446 = vpop.f32.mrb[0].mxu0
    %1447 = vdwg.mxu0
    %v1448 = vadd.f32 %v1243, %v1430
    %v1449 = vadd.f32 %v1244, %v1435
    %v1450 = vadd.f32 %v1245, %v1440
    %v1451 = vadd.f32 %v1246, %v1445
    %s1452 = scalar_lea.vmem [#allocation7], 544
    %v1453 = vld [vmem:[%s1452] sm:$0xff]
    %v1454 = vld [vmem:[%s1452 + $0x8] sm:$0xff]
    %v1455 = vld [vmem:[%s1452 + $0x10] sm:$0xff]
    %v1456 = vld [vmem:[%s1452 + $0x18] sm:$0xff]
    %v1458 = vsel %vm440, %v1453, 0
    %v1461 = vsel %vm440, %v1454, 0
    %v1464 = vsel %vm440, %v1455, 0
    %v1467 = vsel %vm440, %v1456, 0
    %1469 = vmatprep.subr.mxu0 0.0
    %1470 = vmatpush1.msra.mxu0 %v431
    %1471 = vmatprep.subr.mxu0 0.0
    %1472 = vmatpush1.msra.mxu0 %v432
    %1473 = vmatprep.subr.mxu0 0.0
    %1474 = vmatpush1.msra.mxu0 %v433
    %1475 = vmatprep.subr.mxu0 0.0
    %1476 = vmatpush1.msra.mxu0 %v434
    %1477 = vmatprep.subr.mxu0 0.0
    %1478 = vmatpush1.msra.mxu0 0.0
    %1479 = vmatprep.subr.mxu0 0.0
    %1480 = vmatpush1.msra.mxu0 0.0
    %1481 = vmatprep.subr.mxu0 0.0
    %1482 = vmatpush1.msra.mxu0 0.0
    %1483 = vmatprep.subr.mxu0 0.0
    %1484 = vmatpush1.msra.mxu0 0.0
    %1485 = vmatprep.subr.mxu0 0.0
    %1486 = vmatpush1.msra.mxu0 0.0
    %1487 = vmatprep.subr.mxu0 0.0
    %1488 = vmatpush1.msra.mxu0 0.0
    %1489 = vmatprep.subr.mxu0 0.0
    %1490 = vmatpush1.msra.mxu0 0.0
    %1491 = vmatprep.subr.mxu0 0.0
    %1492 = vmatpush1.msra.mxu0 0.0
    %1493 = vmatprep.subr.mxu0 0.0
    %1494 = vmatpush1.msra.mxu0 0.0
    %1495 = vmatprep.subr.mxu0 0.0
    %1496 = vmatpush1.msra.mxu0 0.0
    %1497 = vmatprep.subr.mxu0 0.0
    %1498 = vmatpush1.msra.mxu0 0.0
    %1499 = vmatprep.subr.mxu0 0.0
    %1500 = vmatpush1.msra.mxu0 0.0
    %1501 = vmatprep.subr.mxu0 0.0
    %1502 = vmatpush1.msra.mxu0 0.0
    %1503 = vmatprep.subr.mxu0 0.0
    %1504 = vmatpush1.msra.mxu0 0.0
    %1505 = vmatprep.subr.mxu0 0.0
    %1506 = vmatpush1.msra.mxu0 0.0
    %1507 = vmatprep.subr.mxu0 0.0
    %1508 = vmatpush1.msra.mxu0 0.0
    %1509 = vmatprep.subr.mxu0 0.0
    %1510 = vmatpush1.msra.mxu0 0.0
    %1511 = vmatprep.subr.mxu0 0.0
    %1512 = vmatpush1.msra.mxu0 0.0
    %1513 = vmatprep.subr.mxu0 0.0
    %1514 = vmatpush1.msra.mxu0 0.0
    %1515 = vmatprep.subr.mxu0 0.0
    %1516 = vmatpush1.msra.mxu0 0.0
    %1517 = vmatprep.subr.mxu0 0.0
    %1518 = vmatpush1.msra.mxu0 0.0
    %1519 = vmatprep.subr.mxu0 0.0
    %1520 = vmatpush1.msra.mxu0 0.0
    %1521 = vmatprep.subr.mxu0 0.0
    %1522 = vmatpush1.msra.mxu0 0.0
    %1523 = vmatprep.subr.mxu0 0.0
    %1524 = vmatpush1.msra.mxu0 0.0
    %1525 = vmatprep.subr.mxu0 0.0
    %1526 = vmatpush1.msra.mxu0 0.0
    %1527 = vmatprep.subr.mxu0 0.0
    %1528 = vmatpush1.msra.mxu0 0.0
    %1529 = vmatprep.subr.mxu0 0.0
    %1530 = vmatpush1.msra.mxu0 0.0
    %1531 = vmatprep.subr.mxu0 0.0
    %1532 = vmatpush1.msra.mxu0 0.0
    %1533 = vmatprep.mubr.f32.mxu0 0.0
    %1534 = vmatmul.mubr.f32.gmra.mrb[0].mxu0 %v1458
    %v1535 = vpop.f32.mrb[0].mxu0
    %v1536 = vadd.f32 0.0, %v1535
    %v1537 = vpop.f32.mrb[0].mxu0
    %1538 = vmatprep.mubr.f32.mxu0 0.0
    %1539 = vmatmul.mubr.f32.gmra.mrb[0].mxu0 %v1461
    %v1540 = vpop.f32.mrb[0].mxu0
    %v1541 = vadd.f32 0.0, %v1540
    %v1542 = vpop.f32.mrb[0].mxu0
    %1543 = vmatprep.mubr.f32.mxu0 0.0
    %1544 = vmatmul.mubr.f32.gmra.mrb[0].mxu0 %v1464
    %v1545 = vpop.f32.mrb[0].mxu0
    %v1546 = vadd.f32 0.0, %v1545
    %v1547 = vpop.f32.mrb[0].mxu0
    %1548 = vmatprep.mubr.f32.mxu0 0.0
    %1549 = vmatmul.mubr.f32.gmra.mrb[0].mxu0 %v1467
    %v1550 = vpop.f32.mrb[0].mxu0
    %v1551 = vadd.f32 0.0, %v1550
    %v1552 = vpop.f32.mrb[0].mxu0
    %1553 = vdwg.mxu0
    %s1554 = scalar_lea.vmem %s11, 40
    %v1555 = vld [vmem:[%s1554] sm:$0xff]
    %v1557 = vsel %vm311, %v1536, 0
    %v1560 = vsel %vm311, %v1541, 0
    %v1563 = vsel %vm311, %v1546, 0
    %v1566 = vsel %vm311, %v1551, 0
    %1568 = vmatprep.subr.mxu0 0.0
    %1569 = vmatpush1.msra.mxu0 %v1555
    %1570 = vmatprep.subr.mxu0 0.0
    %1571 = vmatpush1.msra.mxu0 0.0
    %1572 = vmatprep.subr.mxu0 0.0
    %1573 = vmatpush1.msra.mxu0 0.0
    %1574 = vmatprep.subr.mxu0 0.0
    %1575 = vmatpush1.msra.mxu0 0.0
    %1576 = vmatprep.subr.mxu0 0.0
    %1577 = vmatpush1.msra.mxu0 0.0
    %1578 = vmatprep.subr.mxu0 0.0
    %1579 = vmatpush1.msra.mxu0 0.0
    %1580 = vmatprep.subr.mxu0 0.0
    %1581 = vmatpush1.msra.mxu0 0.0
    %1582 = vmatprep.subr.mxu0 0.0
    %1583 = vmatpush1.msra.mxu0 0.0
    %1584 = vmatprep.subr.mxu0 0.0
    %1585 = vmatpush1.msra.mxu0 0.0
    %1586 = vmatprep.subr.mxu0 0.0
    %1587 = vmatpush1.msra.mxu0 0.0
    %1588 = vmatprep.subr.mxu0 0.0
    %1589 = vmatpush1.msra.mxu0 0.0
    %1590 = vmatprep.subr.mxu0 0.0
    %1591 = vmatpush1.msra.mxu0 0.0
    %1592 = vmatprep.subr.mxu0 0.0
    %1593 = vmatpush1.msra.mxu0 0.0
    %1594 = vmatprep.subr.mxu0 0.0
    %1595 = vmatpush1.msra.mxu0 0.0
    %1596 = vmatprep.subr.mxu0 0.0
    %1597 = vmatpush1.msra.mxu0 0.0
    %1598 = vmatprep.subr.mxu0 0.0
    %1599 = vmatpush1.msra.mxu0 0.0
    %1600 = vmatprep.subr.mxu0 0.0
    %1601 = vmatpush1.msra.mxu0 0.0
    %1602 = vmatprep.subr.mxu0 0.0
    %1603 = vmatpush1.msra.mxu0 0.0
    %1604 = vmatprep.subr.mxu0 0.0
    %1605 = vmatpush1.msra.mxu0 0.0
    %1606 = vmatprep.subr.mxu0 0.0
    %1607 = vmatpush1.msra.mxu0 0.0
    %1608 = vmatprep.subr.mxu0 0.0
    %1609 = vmatpush1.msra.mxu0 0.0
    %1610 = vmatprep.subr.mxu0 0.0
    %1611 = vmatpush1.msra.mxu0 0.0
    %1612 = vmatprep.subr.mxu0 0.0
    %1613 = vmatpush1.msra.mxu0 0.0
    %1614 = vmatprep.subr.mxu0 0.0
    %1615 = vmatpush1.msra.mxu0 0.0
    %1616 = vmatprep.subr.mxu0 0.0
    %1617 = vmatpush1.msra.mxu0 0.0
    %1618 = vmatprep.subr.mxu0 0.0
    %1619 = vmatpush1.msra.mxu0 0.0
    %1620 = vmatprep.subr.mxu0 0.0
    %1621 = vmatpush1.msra.mxu0 0.0
    %1622 = vmatprep.subr.mxu0 0.0
    %1623 = vmatpush1.msra.mxu0 0.0
    %1624 = vmatprep.subr.mxu0 0.0
    %1625 = vmatpush1.msra.mxu0 0.0
    %1626 = vmatprep.subr.mxu0 0.0
    %1627 = vmatpush1.msra.mxu0 0.0
    %1628 = vmatprep.subr.mxu0 0.0
    %1629 = vmatpush1.msra.mxu0 0.0
    %1630 = vmatprep.subr.mxu0 0.0
    %1631 = vmatpush1.msra.mxu0 0.0
    %1632 = vmatprep.mubr.f32.mxu0 0.0
    %1633 = vmatmul.mubr.f32.gmra.mrb[0].mxu0 %v1557
    %v1634 = vpop.f32.mrb[0].mxu0
    %v1635 = vadd.f32 0.0, %v1634
    %v1636 = vpop.f32.mrb[0].mxu0
    %1637 = vmatprep.mubr.f32.mxu0 0.0
    %1638 = vmatmul.mubr.f32.gmra.mrb[0].mxu0 %v1560
    %v1639 = vpop.f32.mrb[0].mxu0
    %v1640 = vadd.f32 0.0, %v1639
    %v1641 = vpop.f32.mrb[0].mxu0
    %1642 = vmatprep.mubr.f32.mxu0 0.0
    %1643 = vmatmul.mubr.f32.gmra.mrb[0].mxu0 %v1563
    %v1644 = vpop.f32.mrb[0].mxu0
    %v1645 = vadd.f32 0.0, %v1644
    %v1646 = vpop.f32.mrb[0].mxu0
    %1647 = vmatprep.mubr.f32.mxu0 0.0
    %1648 = vmatmul.mubr.f32.gmra.mrb[0].mxu0 %v1566
    %v1649 = vpop.f32.mrb[0].mxu0
    %v1650 = vadd.f32 0.0, %v1649
    %v1651 = vpop.f32.mrb[0].mxu0
    %1652 = vdwg.mxu0
    %v1653 = vadd.f32 %v1448, %v1635
    %v1654 = vadd.f32 %v1449, %v1640
    %v1655 = vadd.f32 %v1450, %v1645
    %v1656 = vadd.f32 %v1451, %v1650
    %s1657 = scalar_lea.vmem [#allocation7], 576
    %v1658 = vld [vmem:[%s1657] sm:$0xff]
    %v1659 = vld [vmem:[%s1657 + $0x8] sm:$0xff]
    %v1660 = vld [vmem:[%s1657 + $0x10] sm:$0xff]
    %v1661 = vld [vmem:[%s1657 + $0x18] sm:$0xff]
    %v1663 = vsel %vm440, %v1658, 0
    %v1666 = vsel %vm440, %v1659, 0
    %v1669 = vsel %vm440, %v1660, 0
    %v1672 = vsel %vm440, %v1661, 0
    %1674 = vmatprep.subr.mxu0 0.0
    %1675 = vmatpush1.msra.mxu0 %v431
    %1676 = vmatprep.subr.mxu0 0.0
    %1677 = vmatpush1.msra.mxu0 %v432
    %1678 = vmatprep.subr.mxu0 0.0
    %1679 = vmatpush1.msra.mxu0 %v433
    %1680 = vmatprep.subr.mxu0 0.0
    %1681 = vmatpush1.msra.mxu0 %v434
    %1682 = vmatprep.subr.mxu0 0.0
    %1683 = vmatpush1.msra.mxu0 0.0
    %1684 = vmatprep.subr.mxu0 0.0
    %1685 = vmatpush1.msra.mxu0 0.0
    %1686 = vmatprep.subr.mxu0 0.0
    %1687 = vmatpush1.msra.mxu0 0.0
    %1688 = vmatprep.subr.mxu0 0.0
    %1689 = vmatpush1.msra.mxu0 0.0
    %1690 = vmatprep.subr.mxu0 0.0
    %1691 = vmatpush1.msra.mxu0 0.0
    %1692 = vmatprep.subr.mxu0 0.0
    %1693 = vmatpush1.msra.mxu0 0.0
    %1694 = vmatprep.subr.mxu0 0.0
    %1695 = vmatpush1.msra.mxu0 0.0
    %1696 = vmatprep.subr.mxu0 0.0
    %1697 = vmatpush1.msra.mxu0 0.0
    %1698 = vmatprep.subr.mxu0 0.0
    %1699 = vmatpush1.msra.mxu0 0.0
    %1700 = vmatprep.subr.mxu0 0.0
    %1701 = vmatpush1.msra.mxu0 0.0
    %1702 = vmatprep.subr.mxu0 0.0
    %1703 = vmatpush1.msra.mxu0 0.0
    %1704 = vmatprep.subr.mxu0 0.0
    %1705 = vmatpush1.msra.mxu0 0.0
    %1706 = vmatprep.subr.mxu0 0.0
    %1707 = vmatpush1.msra.mxu0 0.0
    %1708 = vmatprep.subr.mxu0 0.0
    %1709 = vmatpush1.msra.mxu0 0.0
    %1710 = vmatprep.subr.mxu0 0.0
    %1711 = vmatpush1.msra.mxu0 0.0
    %1712 = vmatprep.subr.mxu0 0.0
    %1713 = vmatpush1.msra.mxu0 0.0
    %1714 = vmatprep.subr.mxu0 0.0
    %1715 = vmatpush1.msra.mxu0 0.0
    %1716 = vmatprep.subr.mxu0 0.0
    %1717 = vmatpush1.msra.mxu0 0.0
    %1718 = vmatprep.subr.mxu0 0.0
    %1719 = vmatpush1.msra.mxu0 0.0
    %1720 = vmatprep.subr.mxu0 0.0
    %1721 = vmatpush1.msra.mxu0 0.0
    %1722 = vmatprep.subr.mxu0 0.0
    %1723 = vmatpush1.msra.mxu0 0.0
    %1724 = vmatprep.subr.mxu0 0.0
    %1725 = vmatpush1.msra.mxu0 0.0
    %1726 = vmatprep.subr.mxu0 0.0
    %1727 = vmatpush1.msra.mxu0 0.0
    %1728 = vmatprep.subr.mxu0 0.0
    %1729 = vmatpush1.msra.mxu0 0.0
    %1730 = vmatprep.subr.mxu0 0.0
    %1731 = vmatpush1.msra.mxu0 0.0
    %1732 = vmatprep.subr.mxu0 0.0
    %1733 = vmatpush1.msra.mxu0 0.0
    %1734 = vmatprep.subr.mxu0 0.0
    %1735 = vmatpush1.msra.mxu0 0.0
    %1736 = vmatprep.subr.mxu0 0.0
    %1737 = vmatpush1.msra.mxu0 0.0
    %1738 = vmatprep.mubr.f32.mxu0 0.0
    %1739 = vmatmul.mubr.f32.gmra.mrb[0].mxu0 %v1663
    %v1740 = vpop.f32.mrb[0].mxu0
    %v1741 = vadd.f32 0.0, %v1740
    %v1742 = vpop.f32.mrb[0].mxu0
    %1743 = vmatprep.mubr.f32.mxu0 0.0
    %1744 = vmatmul.mubr.f32.gmra.mrb[0].mxu0 %v1666
    %v1745 = vpop.f32.mrb[0].mxu0
    %v1746 = vadd.f32 0.0, %v1745
    %v1747 = vpop.f32.mrb[0].mxu0
    %1748 = vmatprep.mubr.f32.mxu0 0.0
    %1749 = vmatmul.mubr.f32.gmra.mrb[0].mxu0 %v1669
    %v1750 = vpop.f32.mrb[0].mxu0
    %v1751 = vadd.f32 0.0, %v1750
    %v1752 = vpop.f32.mrb[0].mxu0
    %1753 = vmatprep.mubr.f32.mxu0 0.0
    %1754 = vmatmul.mubr.f32.gmra.mrb[0].mxu0 %v1672
    %v1755 = vpop.f32.mrb[0].mxu0
    %v1756 = vadd.f32 0.0, %v1755
    %v1757 = vpop.f32.mrb[0].mxu0
    %1758 = vdwg.mxu0
    %s1759 = scalar_lea.vmem %s11, 48
    %v1760 = vld [vmem:[%s1759] sm:$0xff]
    %v1762 = vsel %vm311, %v1741, 0
    %v1765 = vsel %vm311, %v1746, 0
    %v1768 = vsel %vm311, %v1751, 0
    %v1771 = vsel %vm311, %v1756, 0
    %1773 = vmatprep.subr.mxu0 0.0
    %1774 = vmatpush1.msra.mxu0 %v1760
    %1775 = vmatprep.subr.mxu0 0.0
    %1776 = vmatpush1.msra.mxu0 0.0
    %1777 = vmatprep.subr.mxu0 0.0
    %1778 = vmatpush1.msra.mxu0 0.0
    %1779 = vmatprep.subr.mxu0 0.0
    %1780 = vmatpush1.msra.mxu0 0.0
    %1781 = vmatprep.subr.mxu0 0.0
    %1782 = vmatpush1.msra.mxu0 0.0
    %1783 = vmatprep.subr.mxu0 0.0
    %1784 = vmatpush1.msra.mxu0 0.0
    %1785 = vmatprep.subr.mxu0 0.0
    %1786 = vmatpush1.msra.mxu0 0.0
    %1787 = vmatprep.subr.mxu0 0.0
    %1788 = vmatpush1.msra.mxu0 0.0
    %1789 = vmatprep.subr.mxu0 0.0
    %1790 = vmatpush1.msra.mxu0 0.0
    %1791 = vmatprep.subr.mxu0 0.0
    %1792 = vmatpush1.msra.mxu0 0.0
    %1793 = vmatprep.subr.mxu0 0.0
    %1794 = vmatpush1.msra.mxu0 0.0
    %1795 = vmatprep.subr.mxu0 0.0
    %1796 = vmatpush1.msra.mxu0 0.0
    %1797 = vmatprep.subr.mxu0 0.0
    %1798 = vmatpush1.msra.mxu0 0.0
    %1799 = vmatprep.subr.mxu0 0.0
    %1800 = vmatpush1.msra.mxu0 0.0
    %1801 = vmatprep.subr.mxu0 0.0
    %1802 = vmatpush1.msra.mxu0 0.0
    %1803 = vmatprep.subr.mxu0 0.0
    %1804 = vmatpush1.msra.mxu0 0.0
    %1805 = vmatprep.subr.mxu0 0.0
    %1806 = vmatpush1.msra.mxu0 0.0
    %1807 = vmatprep.subr.mxu0 0.0
    %1808 = vmatpush1.msra.mxu0 0.0
    %1809 = vmatprep.subr.mxu0 0.0
    %1810 = vmatpush1.msra.mxu0 0.0
    %1811 = vmatprep.subr.mxu0 0.0
    %1812 = vmatpush1.msra.mxu0 0.0
    %1813 = vmatprep.subr.mxu0 0.0
    %1814 = vmatpush1.msra.mxu0 0.0
    %1815 = vmatprep.subr.mxu0 0.0
    %1816 = vmatpush1.msra.mxu0 0.0
    %1817 = vmatprep.subr.mxu0 0.0
    %1818 = vmatpush1.msra.mxu0 0.0
    %1819 = vmatprep.subr.mxu0 0.0
    %1820 = vmatpush1.msra.mxu0 0.0
    %1821 = vmatprep.subr.mxu0 0.0
    %1822 = vmatpush1.msra.mxu0 0.0
    %1823 = vmatprep.subr.mxu0 0.0
    %1824 = vmatpush1.msra.mxu0 0.0
    %1825 = vmatprep.subr.mxu0 0.0
    %1826 = vmatpush1.msra.mxu0 0.0
    %1827 = vmatprep.subr.mxu0 0.0
    %1828 = vmatpush1.msra.mxu0 0.0
    %1829 = vmatprep.subr.mxu0 0.0
    %1830 = vmatpush1.msra.mxu0 0.0
    %1831 = vmatprep.subr.mxu0 0.0
    %1832 = vmatpush1.msra.mxu0 0.0
    %1833 = vmatprep.subr.mxu0 0.0
    %1834 = vmatpush1.msra.mxu0 0.0
    %1835 = vmatprep.subr.mxu0 0.0
    %1836 = vmatpush1.msra.mxu0 0.0
    %1837 = vmatprep.mubr.f32.mxu0 0.0
    %1838 = vmatmul.mubr.f32.gmra.mrb[0].mxu0 %v1762
    %v1839 = vpop.f32.mrb[0].mxu0
    %v1840 = vadd.f32 0.0, %v1839
    %v1841 = vpop.f32.mrb[0].mxu0
    %1842 = vmatprep.mubr.f32.mxu0 0.0
    %1843 = vmatmul.mubr.f32.gmra.mrb[0].mxu0 %v1765
    %v1844 = vpop.f32.mrb[0].mxu0
    %v1845 = vadd.f32 0.0, %v1844
    %v1846 = vpop.f32.mrb[0].mxu0
    %1847 = vmatprep.mubr.f32.mxu0 0.0
    %1848 = vmatmul.mubr.f32.gmra.mrb[0].mxu0 %v1768
    %v1849 = vpop.f32.mrb[0].mxu0
    %v1850 = vadd.f32 0.0, %v1849
    %v1851 = vpop.f32.mrb[0].mxu0
    %1852 = vmatprep.mubr.f32.mxu0 0.0
    %1853 = vmatmul.mubr.f32.gmra.mrb[0].mxu0 %v1771
    %v1854 = vpop.f32.mrb[0].mxu0
    %v1855 = vadd.f32 0.0, %v1854
    %v1856 = vpop.f32.mrb[0].mxu0
    %1857 = vdwg.mxu0
    %v1858 = vadd.f32 %v1653, %v1840
    %v1859 = vadd.f32 %v1654, %v1845
    %v1860 = vadd.f32 %v1655, %v1850
    %v1861 = vadd.f32 %v1656, %v1855
    %s1862 = scalar_lea.vmem [#allocation7], 608
    %v1863 = vld [vmem:[%s1862] sm:$0xff]
    %v1864 = vld [vmem:[%s1862 + $0x8] sm:$0xff]
    %v1865 = vld [vmem:[%s1862 + $0x10] sm:$0xff]
    %v1866 = vld [vmem:[%s1862 + $0x18] sm:$0xff]
    %v1868 = vsel %vm440, %v1863, 0
    %v1871 = vsel %vm440, %v1864, 0
    %v1874 = vsel %vm440, %v1865, 0
    %v1877 = vsel %vm440, %v1866, 0
    %1879 = vmatprep.subr.mxu0 0.0
    %1880 = vmatpush1.msra.mxu0 %v431
    %1881 = vmatprep.subr.mxu0 0.0
    %1882 = vmatpush1.msra.mxu0 %v432
    %1883 = vmatprep.subr.mxu0 0.0
    %1884 = vmatpush1.msra.mxu0 %v433
    %1885 = vmatprep.subr.mxu0 0.0
    %1886 = vmatpush1.msra.mxu0 %v434
    %1887 = vmatprep.subr.mxu0 0.0
    %1888 = vmatpush1.msra.mxu0 0.0
    %1889 = vmatprep.subr.mxu0 0.0
    %1890 = vmatpush1.msra.mxu0 0.0
    %1891 = vmatprep.subr.mxu0 0.0
    %1892 = vmatpush1.msra.mxu0 0.0
    %1893 = vmatprep.subr.mxu0 0.0
    %1894 = vmatpush1.msra.mxu0 0.0
    %1895 = vmatprep.subr.mxu0 0.0
    %1896 = vmatpush1.msra.mxu0 0.0
    %1897 = vmatprep.subr.mxu0 0.0
    %1898 = vmatpush1.msra.mxu0 0.0
    %1899 = vmatprep.subr.mxu0 0.0
    %1900 = vmatpush1.msra.mxu0 0.0
    %1901 = vmatprep.subr.mxu0 0.0
    %1902 = vmatpush1.msra.mxu0 0.0
    %1903 = vmatprep.subr.mxu0 0.0
    %1904 = vmatpush1.msra.mxu0 0.0
    %1905 = vmatprep.subr.mxu0 0.0
    %1906 = vmatpush1.msra.mxu0 0.0
    %1907 = vmatprep.subr.mxu0 0.0
    %1908 = vmatpush1.msra.mxu0 0.0
    %1909 = vmatprep.subr.mxu0 0.0
    %1910 = vmatpush1.msra.mxu0 0.0
    %1911 = vmatprep.subr.mxu0 0.0
    %1912 = vmatpush1.msra.mxu0 0.0
    %1913 = vmatprep.subr.mxu0 0.0
    %1914 = vmatpush1.msra.mxu0 0.0
    %1915 = vmatprep.subr.mxu0 0.0
    %1916 = vmatpush1.msra.mxu0 0.0
    %1917 = vmatprep.subr.mxu0 0.0
    %1918 = vmatpush1.msra.mxu0 0.0
    %1919 = vmatprep.subr.mxu0 0.0
    %1920 = vmatpush1.msra.mxu0 0.0
    %1921 = vmatprep.subr.mxu0 0.0
    %1922 = vmatpush1.msra.mxu0 0.0
    %1923 = vmatprep.subr.mxu0 0.0
    %1924 = vmatpush1.msra.mxu0 0.0
    %1925 = vmatprep.subr.mxu0 0.0
    %1926 = vmatpush1.msra.mxu0 0.0
    %1927 = vmatprep.subr.mxu0 0.0
    %1928 = vmatpush1.msra.mxu0 0.0
    %1929 = vmatprep.subr.mxu0 0.0
    %1930 = vmatpush1.msra.mxu0 0.0
    %1931 = vmatprep.subr.mxu0 0.0
    %1932 = vmatpush1.msra.mxu0 0.0
    %1933 = vmatprep.subr.mxu0 0.0
    %1934 = vmatpush1.msra.mxu0 0.0
    %1935 = vmatprep.subr.mxu0 0.0
    %1936 = vmatpush1.msra.mxu0 0.0
    %1937 = vmatprep.subr.mxu0 0.0
    %1938 = vmatpush1.msra.mxu0 0.0
    %1939 = vmatprep.subr.mxu0 0.0
    %1940 = vmatpush1.msra.mxu0 0.0
    %1941 = vmatprep.subr.mxu0 0.0
    %1942 = vmatpush1.msra.mxu0 0.0
    %1943 = vmatprep.mubr.f32.mxu0 0.0
    %1944 = vmatmul.mubr.f32.gmra.mrb[0].mxu0 %v1868
    %v1945 = vpop.f32.mrb[0].mxu0
    %v1946 = vadd.f32 0.0, %v1945
    %v1947 = vpop.f32.mrb[0].mxu0
    %1948 = vmatprep.mubr.f32.mxu0 0.0
    %1949 = vmatmul.mubr.f32.gmra.mrb[0].mxu0 %v1871
    %v1950 = vpop.f32.mrb[0].mxu0
    %v1951 = vadd.f32 0.0, %v1950
    %v1952 = vpop.f32.mrb[0].mxu0
    %1953 = vmatprep.mubr.f32.mxu0 0.0
    %1954 = vmatmul.mubr.f32.gmra.mrb[0].mxu0 %v1874
    %v1955 = vpop.f32.mrb[0].mxu0
    %v1956 = vadd.f32 0.0, %v1955
    %v1957 = vpop.f32.mrb[0].mxu0
    %1958 = vmatprep.mubr.f32.mxu0 0.0
    %1959 = vmatmul.mubr.f32.gmra.mrb[0].mxu0 %v1877
    %v1960 = vpop.f32.mrb[0].mxu0
    %v1961 = vadd.f32 0.0, %v1960
    %v1962 = vpop.f32.mrb[0].mxu0
    %1963 = vdwg.mxu0
    %s1964 = scalar_lea.vmem %s11, 56
    %v1965 = vld [vmem:[%s1964] sm:$0xff]
    %v1967 = vsel %vm311, %v1946, 0
    %v1970 = vsel %vm311, %v1951, 0
    %v1973 = vsel %vm311, %v1956, 0
    %v1976 = vsel %vm311, %v1961, 0
    %1978 = vmatprep.subr.mxu0 0.0
    %1979 = vmatpush1.msra.mxu0 %v1965
    %1980 = vmatprep.subr.mxu0 0.0
    %1981 = vmatpush1.msra.mxu0 0.0
    %1982 = vmatprep.subr.mxu0 0.0
    %1983 = vmatpush1.msra.mxu0 0.0
    %1984 = vmatprep.subr.mxu0 0.0
    %1985 = vmatpush1.msra.mxu0 0.0
    %1986 = vmatprep.subr.mxu0 0.0
    %1987 = vmatpush1.msra.mxu0 0.0
    %1988 = vmatprep.subr.mxu0 0.0
    %1989 = vmatpush1.msra.mxu0 0.0
    %1990 = vmatprep.subr.mxu0 0.0
    %1991 = vmatpush1.msra.mxu0 0.0
    %1992 = vmatprep.subr.mxu0 0.0
    %1993 = vmatpush1.msra.mxu0 0.0
    %1994 = vmatprep.subr.mxu0 0.0
    %1995 = vmatpush1.msra.mxu0 0.0
    %1996 = vmatprep.subr.mxu0 0.0
    %1997 = vmatpush1.msra.mxu0 0.0
    %1998 = vmatprep.subr.mxu0 0.0
    %1999 = vmatpush1.msra.mxu0 0.0
    %2000 = vmatprep.subr.mxu0 0.0
    %2001 = vmatpush1.msra.mxu0 0.0
    %2002 = vmatprep.subr.mxu0 0.0
    %2003 = vmatpush1.msra.mxu0 0.0
    %2004 = vmatprep.subr.mxu0 0.0
    %2005 = vmatpush1.msra.mxu0 0.0
    %2006 = vmatprep.subr.mxu0 0.0
    %2007 = vmatpush1.msra.mxu0 0.0
    %2008 = vmatprep.subr.mxu0 0.0
    %2009 = vmatpush1.msra.mxu0 0.0
    %2010 = vmatprep.subr.mxu0 0.0
    %2011 = vmatpush1.msra.mxu0 0.0
    %2012 = vmatprep.subr.mxu0 0.0
    %2013 = vmatpush1.msra.mxu0 0.0
    %2014 = vmatprep.subr.mxu0 0.0
    %2015 = vmatpush1.msra.mxu0 0.0
    %2016 = vmatprep.subr.mxu0 0.0
    %2017 = vmatpush1.msra.mxu0 0.0
    %2018 = vmatprep.subr.mxu0 0.0
    %2019 = vmatpush1.msra.mxu0 0.0
    %2020 = vmatprep.subr.mxu0 0.0
    %2021 = vmatpush1.msra.mxu0 0.0
    %2022 = vmatprep.subr.mxu0 0.0
    %2023 = vmatpush1.msra.mxu0 0.0
    %2024 = vmatprep.subr.mxu0 0.0
    %2025 = vmatpush1.msra.mxu0 0.0
    %2026 = vmatprep.subr.mxu0 0.0
    %2027 = vmatpush1.msra.mxu0 0.0
    %2028 = vmatprep.subr.mxu0 0.0
    %2029 = vmatpush1.msra.mxu0 0.0
    %2030 = vmatprep.subr.mxu0 0.0
    %2031 = vmatpush1.msra.mxu0 0.0
    %2032 = vmatprep.subr.mxu0 0.0
    %2033 = vmatpush1.msra.mxu0 0.0
    %2034 = vmatprep.subr.mxu0 0.0
    %2035 = vmatpush1.msra.mxu0 0.0
    %2036 = vmatprep.subr.mxu0 0.0
    %2037 = vmatpush1.msra.mxu0 0.0
    %2038 = vmatprep.subr.mxu0 0.0
    %2039 = vmatpush1.msra.mxu0 0.0
    %2040 = vmatprep.subr.mxu0 0.0
    %2041 = vmatpush1.msra.mxu0 0.0
    %2042 = vmatprep.mubr.f32.mxu0 0.0
    %2043 = vmatmul.mubr.f32.gmra.mrb[0].mxu0 %v1967
    %v2044 = vpop.f32.mrb[0].mxu0
    %v2045 = vadd.f32 0.0, %v2044
    %v2046 = vpop.f32.mrb[0].mxu0
    %2047 = vmatprep.mubr.f32.mxu0 0.0
    %2048 = vmatmul.mubr.f32.gmra.mrb[0].mxu0 %v1970
    %v2049 = vpop.f32.mrb[0].mxu0
    %v2050 = vadd.f32 0.0, %v2049
    %v2051 = vpop.f32.mrb[0].mxu0
    %2052 = vmatprep.mubr.f32.mxu0 0.0
    %2053 = vmatmul.mubr.f32.gmra.mrb[0].mxu0 %v1973
    %v2054 = vpop.f32.mrb[0].mxu0
    %v2055 = vadd.f32 0.0, %v2054
    %v2056 = vpop.f32.mrb[0].mxu0
    %2057 = vmatprep.mubr.f32.mxu0 0.0
    %2058 = vmatmul.mubr.f32.gmra.mrb[0].mxu0 %v1976
    %v2059 = vpop.f32.mrb[0].mxu0
    %v2060 = vadd.f32 0.0, %v2059
    %v2061 = vpop.f32.mrb[0].mxu0
    %2062 = vdwg.mxu0
    %v2063 = vadd.f32 %v1858, %v2045
    %v2064 = vadd.f32 %v1859, %v2050
    %v2065 = vadd.f32 %v1860, %v2055
    %v2066 = vadd.f32 %v1861, %v2060
    %v2067 = vld [vmem:[%s13] sm:$0x1]
    %v2069 = vlaneseq
    %v2070 = vshrl.u32 %v2069, 7
    %v2071 = vsub.s32 0, %v2070
    %v2072 = vrot.slane %v2067, %v2071
    %v2074 = vmul.f32 %v2063, %v2072
    %v2075 = vmul.f32 %v2064, %v2072
    %v2076 = vmul.f32 %v2065, %v2072
    %v2077 = vmul.f32 %v2066, %v2072
    %v2078 = vld [vmem:[#allocation8] sm:$0x1]
    %v2080 = vlaneseq
    %v2081 = vshrl.u32 %v2080, 7
    %v2082 = vsub.s32 0, %v2081
    %v2083 = vrot.slane %v2078, %v2082
    %v2085 = vadd.f32 %v2074, %v2083
    %v2086 = vadd.f32 %v2075, %v2083
    %v2087 = vadd.f32 %v2076, %v2083
    %v2088 = vadd.f32 %v2077, %v2083
    %v2089 = vmax.f32 %v2085, 0.0
    %v2090 = vmax.f32 %v2086, 0.0
    %v2091 = vmax.f32 %v2087, 0.0
    %v2092 = vmax.f32 %v2088, 0.0
    %v2093 = vld [vmem:[#allocation7] sm:$0xff]
    %v2094 = vld [vmem:[#allocation7 + $0x8] sm:$0xff]
    %v2095 = vld [vmem:[#allocation7 + $0x10] sm:$0xff]
    %v2096 = vld [vmem:[#allocation7 + $0x18] sm:$0xff]
    %v2098 = vsel %vm440, %v2093, 0
    %v2101 = vsel %vm440, %v2094, 0
    %v2104 = vsel %vm440, %v2095, 0
    %v2107 = vsel %vm440, %v2096, 0
    %2109 = vmatprep.subr.mxu0 0.0
    %2110 = vmatpush1.msra.mxu0 %v2089
    %2111 = vmatprep.subr.mxu0 0.0
    %2112 = vmatpush1.msra.mxu0 %v2090
    %2113 = vmatprep.subr.mxu0 0.0
    %2114 = vmatpush1.msra.mxu0 %v2091
    %2115 = vmatprep.subr.mxu0 0.0
    %2116 = vmatpush1.msra.mxu0 %v2092
    %2117 = vmatprep.subr.mxu0 0.0
    %2118 = vmatpush1.msra.mxu0 0.0
    %2119 = vmatprep.subr.mxu0 0.0
    %2120 = vmatpush1.msra.mxu0 0.0
    %2121 = vmatprep.subr.mxu0 0.0
    %2122 = vmatpush1.msra.mxu0 0.0
    %2123 = vmatprep.subr.mxu0 0.0
    %2124 = vmatpush1.msra.mxu0 0.0
    %2125 = vmatprep.subr.mxu0 0.0
    %2126 = vmatpush1.msra.mxu0 0.0
    %2127 = vmatprep.subr.mxu0 0.0
    %2128 = vmatpush1.msra.mxu0 0.0
    %2129 = vmatprep.subr.mxu0 0.0
    %2130 = vmatpush1.msra.mxu0 0.0
    %2131 = vmatprep.subr.mxu0 0.0
    %2132 = vmatpush1.msra.mxu0 0.0
    %2133 = vmatprep.subr.mxu0 0.0
    %2134 = vmatpush1.msra.mxu0 0.0
    %2135 = vmatprep.subr.mxu0 0.0
    %2136 = vmatpush1.msra.mxu0 0.0
    %2137 = vmatprep.subr.mxu0 0.0
    %2138 = vmatpush1.msra.mxu0 0.0
    %2139 = vmatprep.subr.mxu0 0.0
    %2140 = vmatpush1.msra.mxu0 0.0
    %2141 = vmatprep.subr.mxu0 0.0
    %2142 = vmatpush1.msra.mxu0 0.0
    %2143 = vmatprep.subr.mxu0 0.0
    %2144 = vmatpush1.msra.mxu0 0.0
    %2145 = vmatprep.subr.mxu0 0.0
    %2146 = vmatpush1.msra.mxu0 0.0
    %2147 = vmatprep.subr.mxu0 0.0
    %2148 = vmatpush1.msra.mxu0 0.0
    %2149 = vmatprep.subr.mxu0 0.0
    %2150 = vmatpush1.msra.mxu0 0.0
    %2151 = vmatprep.subr.mxu0 0.0
    %2152 = vmatpush1.msra.mxu0 0.0
    %2153 = vmatprep.subr.mxu0 0.0
    %2154 = vmatpush1.msra.mxu0 0.0
    %2155 = vmatprep.subr.mxu0 0.0
    %2156 = vmatpush1.msra.mxu0 0.0
    %2157 = vmatprep.subr.mxu0 0.0
    %2158 = vmatpush1.msra.mxu0 0.0
    %2159 = vmatprep.subr.mxu0 0.0
    %2160 = vmatpush1.msra.mxu0 0.0
    %2161 = vmatprep.subr.mxu0 0.0
    %2162 = vmatpush1.msra.mxu0 0.0
    %2163 = vmatprep.subr.mxu0 0.0
    %2164 = vmatpush1.msra.mxu0 0.0
    %2165 = vmatprep.subr.mxu0 0.0
    %2166 = vmatpush1.msra.mxu0 0.0
    %2167 = vmatprep.subr.mxu0 0.0
    %2168 = vmatpush1.msra.mxu0 0.0
    %2169 = vmatprep.subr.mxu0 0.0
    %2170 = vmatpush1.msra.mxu0 0.0
    %2171 = vmatprep.subr.mxu0 0.0
    %2172 = vmatpush1.msra.mxu0 0.0
    %2173 = vmatprep.mubr.f32.mxu0 0.0
    %2174 = vmatmul.mubr.f32.gmra.mrb[0].mxu0 %v2098
    %v2175 = vpop.f32.mrb[0].mxu0
    %v2176 = vadd.f32 0.0, %v2175
    %v2177 = vpop.f32.mrb[0].mxu0
    %2178 = vmatprep.mubr.f32.mxu0 0.0
    %2179 = vmatmul.mubr.f32.gmra.mrb[0].mxu0 %v2101
    %v2180 = vpop.f32.mrb[0].mxu0
    %v2181 = vadd.f32 0.0, %v2180
    %v2182 = vpop.f32.mrb[0].mxu0
    %2183 = vmatprep.mubr.f32.mxu0 0.0
    %2184 = vmatmul.mubr.f32.gmra.mrb[0].mxu0 %v2104
    %v2185 = vpop.f32.mrb[0].mxu0
    %v2186 = vadd.f32 0.0, %v2185
    %v2187 = vpop.f32.mrb[0].mxu0
    %2188 = vmatprep.mubr.f32.mxu0 0.0
    %2189 = vmatmul.mubr.f32.gmra.mrb[0].mxu0 %v2107
    %v2190 = vpop.f32.mrb[0].mxu0
    %v2191 = vadd.f32 0.0, %v2190
    %v2192 = vpop.f32.mrb[0].mxu0
    %2193 = vdwg.mxu0
    %v2194 = vld [vmem:[%s17] sm:$0x1]
    %v2196 = vlaneseq
    %v2197 = vshrl.u32 %v2196, 7
    %v2198 = vsub.s32 0, %v2197
    %v2199 = vrot.slane %v2194, %v2198
    %v2201 = vmul.f32 %v2176, %v2199
    %v2202 = vmul.f32 %v2181, %v2199
    %v2203 = vmul.f32 %v2186, %v2199
    %v2204 = vmul.f32 %v2191, %v2199
    %v2205 = vadd.f32 %v2201, 0.0
    %v2206 = vadd.f32 %v2202, 0.0
    %v2207 = vadd.f32 %v2203, 0.0
    %v2208 = vadd.f32 %v2204, 0.0
    %s2209 = scalar_lea.vmem [#allocation7], 32
    %v2210 = vld [vmem:[%s2209] sm:$0xff]
    %v2211 = vld [vmem:[%s2209 + $0x8] sm:$0xff]
    %v2212 = vld [vmem:[%s2209 + $0x10] sm:$0xff]
    %v2213 = vld [vmem:[%s2209 + $0x18] sm:$0xff]
    %v2215 = vsel %vm440, %v2210, 0
    %v2218 = vsel %vm440, %v2211, 0
    %v2221 = vsel %vm440, %v2212, 0
    %v2224 = vsel %vm440, %v2213, 0
    %2226 = vmatprep.subr.mxu0 0.0
    %2227 = vmatpush1.msra.mxu0 %v2089
    %2228 = vmatprep.subr.mxu0 0.0
    %2229 = vmatpush1.msra.mxu0 %v2090
    %2230 = vmatprep.subr.mxu0 0.0
    %2231 = vmatpush1.msra.mxu0 %v2091
    %2232 = vmatprep.subr.mxu0 0.0
    %2233 = vmatpush1.msra.mxu0 %v2092
    %2234 = vmatprep.subr.mxu0 0.0
    %2235 = vmatpush1.msra.mxu0 0.0
    %2236 = vmatprep.subr.mxu0 0.0
    %2237 = vmatpush1.msra.mxu0 0.0
    %2238 = vmatprep.subr.mxu0 0.0
    %2239 = vmatpush1.msra.mxu0 0.0
    %2240 = vmatprep.subr.mxu0 0.0
    %2241 = vmatpush1.msra.mxu0 0.0
    %2242 = vmatprep.subr.mxu0 0.0
    %2243 = vmatpush1.msra.mxu0 0.0
    %2244 = vmatprep.subr.mxu0 0.0
    %2245 = vmatpush1.msra.mxu0 0.0
    %2246 = vmatprep.subr.mxu0 0.0
    %2247 = vmatpush1.msra.mxu0 0.0
    %2248 = vmatprep.subr.mxu0 0.0
    %2249 = vmatpush1.msra.mxu0 0.0
    %2250 = vmatprep.subr.mxu0 0.0
    %2251 = vmatpush1.msra.mxu0 0.0
    %2252 = vmatprep.subr.mxu0 0.0
    %2253 = vmatpush1.msra.mxu0 0.0
    %2254 = vmatprep.subr.mxu0 0.0
    %2255 = vmatpush1.msra.mxu0 0.0
    %2256 = vmatprep.subr.mxu0 0.0
    %2257 = vmatpush1.msra.mxu0 0.0
    %2258 = vmatprep.subr.mxu0 0.0
    %2259 = vmatpush1.msra.mxu0 0.0
    %2260 = vmatprep.subr.mxu0 0.0
    %2261 = vmatpush1.msra.mxu0 0.0
    %2262 = vmatprep.subr.mxu0 0.0
    %2263 = vmatpush1.msra.mxu0 0.0
    %2264 = vmatprep.subr.mxu0 0.0
    %2265 = vmatpush1.msra.mxu0 0.0
    %2266 = vmatprep.subr.mxu0 0.0
    %2267 = vmatpush1.msra.mxu0 0.0
    %2268 = vmatprep.subr.mxu0 0.0
    %2269 = vmatpush1.msra.mxu0 0.0
    %2270 = vmatprep.subr.mxu0 0.0
    %2271 = vmatpush1.msra.mxu0 0.0
    %2272 = vmatprep.subr.mxu0 0.0
    %2273 = vmatpush1.msra.mxu0 0.0
    %2274 = vmatprep.subr.mxu0 0.0
    %2275 = vmatpush1.msra.mxu0 0.0
    %2276 = vmatprep.subr.mxu0 0.0
    %2277 = vmatpush1.msra.mxu0 0.0
    %2278 = vmatprep.subr.mxu0 0.0
    %2279 = vmatpush1.msra.mxu0 0.0
    %2280 = vmatprep.subr.mxu0 0.0
    %2281 = vmatpush1.msra.mxu0 0.0
    %2282 = vmatprep.subr.mxu0 0.0
    %2283 = vmatpush1.msra.mxu0 0.0
    %2284 = vmatprep.subr.mxu0 0.0
    %2285 = vmatpush1.msra.mxu0 0.0
    %2286 = vmatprep.subr.mxu0 0.0
    %2287 = vmatpush1.msra.mxu0 0.0
    %2288 = vmatprep.subr.mxu0 0.0
    %2289 = vmatpush1.msra.mxu0 0.0
    %2290 = vmatprep.mubr.f32.mxu0 0.0
    %2291 = vmatmul.mubr.f32.gmra.mrb[0].mxu0 %v2215
    %v2292 = vpop.f32.mrb[0].mxu0
    %v2293 = vadd.f32 0.0, %v2292
    %v2294 = vpop.f32.mrb[0].mxu0
    %2295 = vmatprep.mubr.f32.mxu0 0.0
    %2296 = vmatmul.mubr.f32.gmra.mrb[0].mxu0 %v2218
    %v2297 = vpop.f32.mrb[0].mxu0
    %v2298 = vadd.f32 0.0, %v2297
    %v2299 = vpop.f32.mrb[0].mxu0
    %2300 = vmatprep.mubr.f32.mxu0 0.0
    %2301 = vmatmul.mubr.f32.gmra.mrb[0].mxu0 %v2221
    %v2302 = vpop.f32.mrb[0].mxu0
    %v2303 = vadd.f32 0.0, %v2302
    %v2304 = vpop.f32.mrb[0].mxu0
    %2305 = vmatprep.mubr.f32.mxu0 0.0
    %2306 = vmatmul.mubr.f32.gmra.mrb[0].mxu0 %v2224
    %v2307 = vpop.f32.mrb[0].mxu0
    %v2308 = vadd.f32 0.0, %v2307
    %v2309 = vpop.f32.mrb[0].mxu0
    %2310 = vdwg.mxu0
    %s2311 = scalar_lea.vmem %s17, 1
    %v2312 = vld [vmem:[%s2311] sm:$0x1]
    %v2314 = vlaneseq
    %v2315 = vshrl.u32 %v2314, 7
    %v2316 = vsub.s32 0, %v2315
    %v2317 = vrot.slane %v2312, %v2316
    %v2319 = vmul.f32 %v2293, %v2317
    %v2320 = vmul.f32 %v2298, %v2317
    %v2321 = vmul.f32 %v2303, %v2317
    %v2322 = vmul.f32 %v2308, %v2317
    %v2323 = vadd.f32 %v2205, %v2319
    %v2324 = vadd.f32 %v2206, %v2320
    %v2325 = vadd.f32 %v2207, %v2321
    %v2326 = vadd.f32 %v2208, %v2322
    %s2327 = scalar_lea.vmem [#allocation7], 64
    %v2328 = vld [vmem:[%s2327] sm:$0xff]
    %v2329 = vld [vmem:[%s2327 + $0x8] sm:$0xff]
    %v2330 = vld [vmem:[%s2327 + $0x10] sm:$0xff]
    %v2331 = vld [vmem:[%s2327 + $0x18] sm:$0xff]
    %v2333 = vsel %vm440, %v2328, 0
    %v2336 = vsel %vm440, %v2329, 0
    %v2339 = vsel %vm440, %v2330, 0
    %v2342 = vsel %vm440, %v2331, 0
    %2344 = vmatprep.subr.mxu0 0.0
    %2345 = vmatpush1.msra.mxu0 %v2089
    %2346 = vmatprep.subr.mxu0 0.0
    %2347 = vmatpush1.msra.mxu0 %v2090
    %2348 = vmatprep.subr.mxu0 0.0
    %2349 = vmatpush1.msra.mxu0 %v2091
    %2350 = vmatprep.subr.mxu0 0.0
    %2351 = vmatpush1.msra.mxu0 %v2092
    %2352 = vmatprep.subr.mxu0 0.0
    %2353 = vmatpush1.msra.mxu0 0.0
    %2354 = vmatprep.subr.mxu0 0.0
    %2355 = vmatpush1.msra.mxu0 0.0
    %2356 = vmatprep.subr.mxu0 0.0
    %2357 = vmatpush1.msra.mxu0 0.0
    %2358 = vmatprep.subr.mxu0 0.0
    %2359 = vmatpush1.msra.mxu0 0.0
    %2360 = vmatprep.subr.mxu0 0.0
    %2361 = vmatpush1.msra.mxu0 0.0
    %2362 = vmatprep.subr.mxu0 0.0
    %2363 = vmatpush1.msra.mxu0 0.0
    %2364 = vmatprep.subr.mxu0 0.0
    %2365 = vmatpush1.msra.mxu0 0.0
    %2366 = vmatprep.subr.mxu0 0.0
    %2367 = vmatpush1.msra.mxu0 0.0
    %2368 = vmatprep.subr.mxu0 0.0
    %2369 = vmatpush1.msra.mxu0 0.0
    %2370 = vmatprep.subr.mxu0 0.0
    %2371 = vmatpush1.msra.mxu0 0.0
    %2372 = vmatprep.subr.mxu0 0.0
    %2373 = vmatpush1.msra.mxu0 0.0
    %2374 = vmatprep.subr.mxu0 0.0
    %2375 = vmatpush1.msra.mxu0 0.0
    %2376 = vmatprep.subr.mxu0 0.0
    %2377 = vmatpush1.msra.mxu0 0.0
    %2378 = vmatprep.subr.mxu0 0.0
    %2379 = vmatpush1.msra.mxu0 0.0
    %2380 = vmatprep.subr.mxu0 0.0
    %2381 = vmatpush1.msra.mxu0 0.0
    %2382 = vmatprep.subr.mxu0 0.0
    %2383 = vmatpush1.msra.mxu0 0.0
    %2384 = vmatprep.subr.mxu0 0.0
    %2385 = vmatpush1.msra.mxu0 0.0
    %2386 = vmatprep.subr.mxu0 0.0
    %2387 = vmatpush1.msra.mxu0 0.0
    %2388 = vmatprep.subr.mxu0 0.0
    %2389 = vmatpush1.msra.mxu0 0.0
    %2390 = vmatprep.subr.mxu0 0.0
    %2391 = vmatpush1.msra.mxu0 0.0
    %2392 = vmatprep.subr.mxu0 0.0
    %2393 = vmatpush1.msra.mxu0 0.0
    %2394 = vmatprep.subr.mxu0 0.0
    %2395 = vmatpush1.msra.mxu0 0.0
    %2396 = vmatprep.subr.mxu0 0.0
    %2397 = vmatpush1.msra.mxu0 0.0
    %2398 = vmatprep.subr.mxu0 0.0
    %2399 = vmatpush1.msra.mxu0 0.0
    %2400 = vmatprep.subr.mxu0 0.0
    %2401 = vmatpush1.msra.mxu0 0.0
    %2402 = vmatprep.subr.mxu0 0.0
    %2403 = vmatpush1.msra.mxu0 0.0
    %2404 = vmatprep.subr.mxu0 0.0
    %2405 = vmatpush1.msra.mxu0 0.0
    %2406 = vmatprep.subr.mxu0 0.0
    %2407 = vmatpush1.msra.mxu0 0.0
    %2408 = vmatprep.mubr.f32.mxu0 0.0
    %2409 = vmatmul.mubr.f32.gmra.mrb[0].mxu0 %v2333
    %v2410 = vpop.f32.mrb[0].mxu0
    %v2411 = vadd.f32 0.0, %v2410
    %v2412 = vpop.f32.mrb[0].mxu0
    %2413 = vmatprep.mubr.f32.mxu0 0.0
    %2414 = vmatmul.mubr.f32.gmra.mrb[0].mxu0 %v2336
    %v2415 = vpop.f32.mrb[0].mxu0
    %v2416 = vadd.f32 0.0, %v2415
    %v2417 = vpop.f32.mrb[0].mxu0
    %2418 = vmatprep.mubr.f32.mxu0 0.0
    %2419 = vmatmul.mubr.f32.gmra.mrb[0].mxu0 %v2339
    %v2420 = vpop.f32.mrb[0].mxu0
    %v2421 = vadd.f32 0.0, %v2420
    %v2422 = vpop.f32.mrb[0].mxu0
    %2423 = vmatprep.mubr.f32.mxu0 0.0
    %2424 = vmatmul.mubr.f32.gmra.mrb[0].mxu0 %v2342
    %v2425 = vpop.f32.mrb[0].mxu0
    %v2426 = vadd.f32 0.0, %v2425
    %v2427 = vpop.f32.mrb[0].mxu0
    %2428 = vdwg.mxu0
    %s2429 = scalar_lea.vmem %s17, 2
    %v2430 = vld [vmem:[%s2429] sm:$0x1]
    %v2432 = vlaneseq
    %v2433 = vshrl.u32 %v2432, 7
    %v2434 = vsub.s32 0, %v2433
    %v2435 = vrot.slane %v2430, %v2434
    %v2437 = vmul.f32 %v2411, %v2435
    %v2438 = vmul.f32 %v2416, %v2435
    %v2439 = vmul.f32 %v2421, %v2435
    %v2440 = vmul.f32 %v2426, %v2435
    %v2441 = vadd.f32 %v2323, %v2437
    %v2442 = vadd.f32 %v2324, %v2438
    %v2443 = vadd.f32 %v2325, %v2439
    %v2444 = vadd.f32 %v2326, %v2440
    %s2445 = scalar_lea.vmem [#allocation7], 96
    %v2446 = vld [vmem:[%s2445] sm:$0xff]
    %v2447 = vld [vmem:[%s2445 + $0x8] sm:$0xff]
    %v2448 = vld [vmem:[%s2445 + $0x10] sm:$0xff]
    %v2449 = vld [vmem:[%s2445 + $0x18] sm:$0xff]
    %v2451 = vsel %vm440, %v2446, 0
    %v2454 = vsel %vm440, %v2447, 0
    %v2457 = vsel %vm440, %v2448, 0
    %v2460 = vsel %vm440, %v2449, 0
    %2462 = vmatprep.subr.mxu0 0.0
    %2463 = vmatpush1.msra.mxu0 %v2089
    %2464 = vmatprep.subr.mxu0 0.0
    %2465 = vmatpush1.msra.mxu0 %v2090
    %2466 = vmatprep.subr.mxu0 0.0
    %2467 = vmatpush1.msra.mxu0 %v2091
    %2468 = vmatprep.subr.mxu0 0.0
    %2469 = vmatpush1.msra.mxu0 %v2092
    %2470 = vmatprep.subr.mxu0 0.0
    %2471 = vmatpush1.msra.mxu0 0.0
    %2472 = vmatprep.subr.mxu0 0.0
    %2473 = vmatpush1.msra.mxu0 0.0
    %2474 = vmatprep.subr.mxu0 0.0
    %2475 = vmatpush1.msra.mxu0 0.0
    %2476 = vmatprep.subr.mxu0 0.0
    %2477 = vmatpush1.msra.mxu0 0.0
    %2478 = vmatprep.subr.mxu0 0.0
    %2479 = vmatpush1.msra.mxu0 0.0
    %2480 = vmatprep.subr.mxu0 0.0
    %2481 = vmatpush1.msra.mxu0 0.0
    %2482 = vmatprep.subr.mxu0 0.0
    %2483 = vmatpush1.msra.mxu0 0.0
    %2484 = vmatprep.subr.mxu0 0.0
    %2485 = vmatpush1.msra.mxu0 0.0
    %2486 = vmatprep.subr.mxu0 0.0
    %2487 = vmatpush1.msra.mxu0 0.0
    %2488 = vmatprep.subr.mxu0 0.0
    %2489 = vmatpush1.msra.mxu0 0.0
    %2490 = vmatprep.subr.mxu0 0.0
    %2491 = vmatpush1.msra.mxu0 0.0
    %2492 = vmatprep.subr.mxu0 0.0
    %2493 = vmatpush1.msra.mxu0 0.0
    %2494 = vmatprep.subr.mxu0 0.0
    %2495 = vmatpush1.msra.mxu0 0.0
    %2496 = vmatprep.subr.mxu0 0.0
    %2497 = vmatpush1.msra.mxu0 0.0
    %2498 = vmatprep.subr.mxu0 0.0
    %2499 = vmatpush1.msra.mxu0 0.0
    %2500 = vmatprep.subr.mxu0 0.0
    %2501 = vmatpush1.msra.mxu0 0.0
    %2502 = vmatprep.subr.mxu0 0.0
    %2503 = vmatpush1.msra.mxu0 0.0
    %2504 = vmatprep.subr.mxu0 0.0
    %2505 = vmatpush1.msra.mxu0 0.0
    %2506 = vmatprep.subr.mxu0 0.0
    %2507 = vmatpush1.msra.mxu0 0.0
    %2508 = vmatprep.subr.mxu0 0.0
    %2509 = vmatpush1.msra.mxu0 0.0
    %2510 = vmatprep.subr.mxu0 0.0
    %2511 = vmatpush1.msra.mxu0 0.0
    %2512 = vmatprep.subr.mxu0 0.0
    %2513 = vmatpush1.msra.mxu0 0.0
    %2514 = vmatprep.subr.mxu0 0.0
    %2515 = vmatpush1.msra.mxu0 0.0
    %2516 = vmatprep.subr.mxu0 0.0
    %2517 = vmatpush1.msra.mxu0 0.0
    %2518 = vmatprep.subr.mxu0 0.0
    %2519 = vmatpush1.msra.mxu0 0.0
    %2520 = vmatprep.subr.mxu0 0.0
    %2521 = vmatpush1.msra.mxu0 0.0
    %2522 = vmatprep.subr.mxu0 0.0
    %2523 = vmatpush1.msra.mxu0 0.0
    %2524 = vmatprep.subr.mxu0 0.0
    %2525 = vmatpush1.msra.mxu0 0.0
    %2526 = vmatprep.mubr.f32.mxu0 0.0
    %2527 = vmatmul.mubr.f32.gmra.mrb[0].mxu0 %v2451
    %v2528 = vpop.f32.mrb[0].mxu0
    %v2529 = vadd.f32 0.0, %v2528
    %v2530 = vpop.f32.mrb[0].mxu0
    %2531 = vmatprep.mubr.f32.mxu0 0.0
    %2532 = vmatmul.mubr.f32.gmra.mrb[0].mxu0 %v2454
    %v2533 = vpop.f32.mrb[0].mxu0
    %v2534 = vadd.f32 0.0, %v2533
    %v2535 = vpop.f32.mrb[0].mxu0
    %2536 = vmatprep.mubr.f32.mxu0 0.0
    %2537 = vmatmul.mubr.f32.gmra.mrb[0].mxu0 %v2457
    %v2538 = vpop.f32.mrb[0].mxu0
    %v2539 = vadd.f32 0.0, %v2538
    %v2540 = vpop.f32.mrb[0].mxu0
    %2541 = vmatprep.mubr.f32.mxu0 0.0
    %2542 = vmatmul.mubr.f32.gmra.mrb[0].mxu0 %v2460
    %v2543 = vpop.f32.mrb[0].mxu0
    %v2544 = vadd.f32 0.0, %v2543
    %v2545 = vpop.f32.mrb[0].mxu0
    %2546 = vdwg.mxu0
    %s2547 = scalar_lea.vmem %s17, 3
    %v2548 = vld [vmem:[%s2547] sm:$0x1]
    %v2550 = vlaneseq
    %v2551 = vshrl.u32 %v2550, 7
    %v2552 = vsub.s32 0, %v2551
    %v2553 = vrot.slane %v2548, %v2552
    %v2555 = vmul.f32 %v2529, %v2553
    %v2556 = vmul.f32 %v2534, %v2553
    %v2557 = vmul.f32 %v2539, %v2553
    %v2558 = vmul.f32 %v2544, %v2553
    %v2559 = vadd.f32 %v2441, %v2555
    %v2560 = vadd.f32 %v2442, %v2556
    %v2561 = vadd.f32 %v2443, %v2557
    %v2562 = vadd.f32 %v2444, %v2558
    %s2563 = scalar_lea.vmem [#allocation7], 128
    %v2564 = vld [vmem:[%s2563] sm:$0xff]
    %v2565 = vld [vmem:[%s2563 + $0x8] sm:$0xff]
    %v2566 = vld [vmem:[%s2563 + $0x10] sm:$0xff]
    %v2567 = vld [vmem:[%s2563 + $0x18] sm:$0xff]
    %v2569 = vsel %vm440, %v2564, 0
    %v2572 = vsel %vm440, %v2565, 0
    %v2575 = vsel %vm440, %v2566, 0
    %v2578 = vsel %vm440, %v2567, 0
    %2580 = vmatprep.subr.mxu0 0.0
    %2581 = vmatpush1.msra.mxu0 %v2089
    %2582 = vmatprep.subr.mxu0 0.0
    %2583 = vmatpush1.msra.mxu0 %v2090
    %2584 = vmatprep.subr.mxu0 0.0
    %2585 = vmatpush1.msra.mxu0 %v2091
    %2586 = vmatprep.subr.mxu0 0.0
    %2587 = vmatpush1.msra.mxu0 %v2092
    %2588 = vmatprep.subr.mxu0 0.0
    %2589 = vmatpush1.msra.mxu0 0.0
    %2590 = vmatprep.subr.mxu0 0.0
    %2591 = vmatpush1.msra.mxu0 0.0
    %2592 = vmatprep.subr.mxu0 0.0
    %2593 = vmatpush1.msra.mxu0 0.0
    %2594 = vmatprep.subr.mxu0 0.0
    %2595 = vmatpush1.msra.mxu0 0.0
    %2596 = vmatprep.subr.mxu0 0.0
    %2597 = vmatpush1.msra.mxu0 0.0
    %2598 = vmatprep.subr.mxu0 0.0
    %2599 = vmatpush1.msra.mxu0 0.0
    %2600 = vmatprep.subr.mxu0 0.0
    %2601 = vmatpush1.msra.mxu0 0.0
    %2602 = vmatprep.subr.mxu0 0.0
    %2603 = vmatpush1.msra.mxu0 0.0
    %2604 = vmatprep.subr.mxu0 0.0
    %2605 = vmatpush1.msra.mxu0 0.0
    %2606 = vmatprep.subr.mxu0 0.0
    %2607 = vmatpush1.msra.mxu0 0.0
    %2608 = vmatprep.subr.mxu0 0.0
    %2609 = vmatpush1.msra.mxu0 0.0
    %2610 = vmatprep.subr.mxu0 0.0
    %2611 = vmatpush1.msra.mxu0 0.0
    %2612 = vmatprep.subr.mxu0 0.0
    %2613 = vmatpush1.msra.mxu0 0.0
    %2614 = vmatprep.subr.mxu0 0.0
    %2615 = vmatpush1.msra.mxu0 0.0
    %2616 = vmatprep.subr.mxu0 0.0
    %2617 = vmatpush1.msra.mxu0 0.0
    %2618 = vmatprep.subr.mxu0 0.0
    %2619 = vmatpush1.msra.mxu0 0.0
    %2620 = vmatprep.subr.mxu0 0.0
    %2621 = vmatpush1.msra.mxu0 0.0
    %2622 = vmatprep.subr.mxu0 0.0
    %2623 = vmatpush1.msra.mxu0 0.0
    %2624 = vmatprep.subr.mxu0 0.0
    %2625 = vmatpush1.msra.mxu0 0.0
    %2626 = vmatprep.subr.mxu0 0.0
    %2627 = vmatpush1.msra.mxu0 0.0
    %2628 = vmatprep.subr.mxu0 0.0
    %2629 = vmatpush1.msra.mxu0 0.0
    %2630 = vmatprep.subr.mxu0 0.0
    %2631 = vmatpush1.msra.mxu0 0.0
    %2632 = vmatprep.subr.mxu0 0.0
    %2633 = vmatpush1.msra.mxu0 0.0
    %2634 = vmatprep.subr.mxu0 0.0
    %2635 = vmatpush1.msra.mxu0 0.0
    %2636 = vmatprep.subr.mxu0 0.0
    %2637 = vmatpush1.msra.mxu0 0.0
    %2638 = vmatprep.subr.mxu0 0.0
    %2639 = vmatpush1.msra.mxu0 0.0
    %2640 = vmatprep.subr.mxu0 0.0
    %2641 = vmatpush1.msra.mxu0 0.0
    %2642 = vmatprep.subr.mxu0 0.0
    %2643 = vmatpush1.msra.mxu0 0.0
    %2644 = vmatprep.mubr.f32.mxu0 0.0
    %2645 = vmatmul.mubr.f32.gmra.mrb[0].mxu0 %v2569
    %v2646 = vpop.f32.mrb[0].mxu0
    %v2647 = vadd.f32 0.0, %v2646
    %v2648 = vpop.f32.mrb[0].mxu0
    %2649 = vmatprep.mubr.f32.mxu0 0.0
    %2650 = vmatmul.mubr.f32.gmra.mrb[0].mxu0 %v2572
    %v2651 = vpop.f32.mrb[0].mxu0
    %v2652 = vadd.f32 0.0, %v2651
    %v2653 = vpop.f32.mrb[0].mxu0
    %2654 = vmatprep.mubr.f32.mxu0 0.0
    %2655 = vmatmul.mubr.f32.gmra.mrb[0].mxu0 %v2575
    %v2656 = vpop.f32.mrb[0].mxu0
    %v2657 = vadd.f32 0.0, %v2656
    %v2658 = vpop.f32.mrb[0].mxu0
    %2659 = vmatprep.mubr.f32.mxu0 0.0
    %2660 = vmatmul.mubr.f32.gmra.mrb[0].mxu0 %v2578
    %v2661 = vpop.f32.mrb[0].mxu0
    %v2662 = vadd.f32 0.0, %v2661
    %v2663 = vpop.f32.mrb[0].mxu0
    %2664 = vdwg.mxu0
    %s2665 = scalar_lea.vmem %s17, 4
    %v2666 = vld [vmem:[%s2665] sm:$0x1]
    %v2668 = vlaneseq
    %v2669 = vshrl.u32 %v2668, 7
    %v2670 = vsub.s32 0, %v2669
    %v2671 = vrot.slane %v2666, %v2670
    %v2673 = vmul.f32 %v2647, %v2671
    %v2674 = vmul.f32 %v2652, %v2671
    %v2675 = vmul.f32 %v2657, %v2671
    %v2676 = vmul.f32 %v2662, %v2671
    %v2677 = vadd.f32 %v2559, %v2673
    %v2678 = vadd.f32 %v2560, %v2674
    %v2679 = vadd.f32 %v2561, %v2675
    %v2680 = vadd.f32 %v2562, %v2676
    %s2681 = scalar_lea.vmem [#allocation7], 160
    %v2682 = vld [vmem:[%s2681] sm:$0xff]
    %v2683 = vld [vmem:[%s2681 + $0x8] sm:$0xff]
    %v2684 = vld [vmem:[%s2681 + $0x10] sm:$0xff]
    %v2685 = vld [vmem:[%s2681 + $0x18] sm:$0xff]
    %v2687 = vsel %vm440, %v2682, 0
    %v2690 = vsel %vm440, %v2683, 0
    %v2693 = vsel %vm440, %v2684, 0
    %v2696 = vsel %vm440, %v2685, 0
    %2698 = vmatprep.subr.mxu0 0.0
    %2699 = vmatpush1.msra.mxu0 %v2089
    %2700 = vmatprep.subr.mxu0 0.0
    %2701 = vmatpush1.msra.mxu0 %v2090
    %2702 = vmatprep.subr.mxu0 0.0
    %2703 = vmatpush1.msra.mxu0 %v2091
    %2704 = vmatprep.subr.mxu0 0.0
    %2705 = vmatpush1.msra.mxu0 %v2092
    %2706 = vmatprep.subr.mxu0 0.0
    %2707 = vmatpush1.msra.mxu0 0.0
    %2708 = vmatprep.subr.mxu0 0.0
    %2709 = vmatpush1.msra.mxu0 0.0
    %2710 = vmatprep.subr.mxu0 0.0
    %2711 = vmatpush1.msra.mxu0 0.0
    %2712 = vmatprep.subr.mxu0 0.0
    %2713 = vmatpush1.msra.mxu0 0.0
    %2714 = vmatprep.subr.mxu0 0.0
    %2715 = vmatpush1.msra.mxu0 0.0
    %2716 = vmatprep.subr.mxu0 0.0
    %2717 = vmatpush1.msra.mxu0 0.0
    %2718 = vmatprep.subr.mxu0 0.0
    %2719 = vmatpush1.msra.mxu0 0.0
    %2720 = vmatprep.subr.mxu0 0.0
    %2721 = vmatpush1.msra.mxu0 0.0
    %2722 = vmatprep.subr.mxu0 0.0
    %2723 = vmatpush1.msra.mxu0 0.0
    %2724 = vmatprep.subr.mxu0 0.0
    %2725 = vmatpush1.msra.mxu0 0.0
    %2726 = vmatprep.subr.mxu0 0.0
    %2727 = vmatpush1.msra.mxu0 0.0
    %2728 = vmatprep.subr.mxu0 0.0
    %2729 = vmatpush1.msra.mxu0 0.0
    %2730 = vmatprep.subr.mxu0 0.0
    %2731 = vmatpush1.msra.mxu0 0.0
    %2732 = vmatprep.subr.mxu0 0.0
    %2733 = vmatpush1.msra.mxu0 0.0
    %2734 = vmatprep.subr.mxu0 0.0
    %2735 = vmatpush1.msra.mxu0 0.0
    %2736 = vmatprep.subr.mxu0 0.0
    %2737 = vmatpush1.msra.mxu0 0.0
    %2738 = vmatprep.subr.mxu0 0.0
    %2739 = vmatpush1.msra.mxu0 0.0
    %2740 = vmatprep.subr.mxu0 0.0
    %2741 = vmatpush1.msra.mxu0 0.0
    %2742 = vmatprep.subr.mxu0 0.0
    %2743 = vmatpush1.msra.mxu0 0.0
    %2744 = vmatprep.subr.mxu0 0.0
    %2745 = vmatpush1.msra.mxu0 0.0
    %2746 = vmatprep.subr.mxu0 0.0
    %2747 = vmatpush1.msra.mxu0 0.0
    %2748 = vmatprep.subr.mxu0 0.0
    %2749 = vmatpush1.msra.mxu0 0.0
    %2750 = vmatprep.subr.mxu0 0.0
    %2751 = vmatpush1.msra.mxu0 0.0
    %2752 = vmatprep.subr.mxu0 0.0
    %2753 = vmatpush1.msra.mxu0 0.0
    %2754 = vmatprep.subr.mxu0 0.0
    %2755 = vmatpush1.msra.mxu0 0.0
    %2756 = vmatprep.subr.mxu0 0.0
    %2757 = vmatpush1.msra.mxu0 0.0
    %2758 = vmatprep.subr.mxu0 0.0
    %2759 = vmatpush1.msra.mxu0 0.0
    %2760 = vmatprep.subr.mxu0 0.0
    %2761 = vmatpush1.msra.mxu0 0.0
    %2762 = vmatprep.mubr.f32.mxu0 0.0
    %2763 = vmatmul.mubr.f32.gmra.mrb[0].mxu0 %v2687
    %v2764 = vpop.f32.mrb[0].mxu0
    %v2765 = vadd.f32 0.0, %v2764
    %v2766 = vpop.f32.mrb[0].mxu0
    %2767 = vmatprep.mubr.f32.mxu0 0.0
    %2768 = vmatmul.mubr.f32.gmra.mrb[0].mxu0 %v2690
    %v2769 = vpop.f32.mrb[0].mxu0
    %v2770 = vadd.f32 0.0, %v2769
    %v2771 = vpop.f32.mrb[0].mxu0
    %2772 = vmatprep.mubr.f32.mxu0 0.0
    %2773 = vmatmul.mubr.f32.gmra.mrb[0].mxu0 %v2693
    %v2774 = vpop.f32.mrb[0].mxu0
    %v2775 = vadd.f32 0.0, %v2774
    %v2776 = vpop.f32.mrb[0].mxu0
    %2777 = vmatprep.mubr.f32.mxu0 0.0
    %2778 = vmatmul.mubr.f32.gmra.mrb[0].mxu0 %v2696
    %v2779 = vpop.f32.mrb[0].mxu0
    %v2780 = vadd.f32 0.0, %v2779
    %v2781 = vpop.f32.mrb[0].mxu0
    %2782 = vdwg.mxu0
    %s2783 = scalar_lea.vmem %s17, 5
    %v2784 = vld [vmem:[%s2783] sm:$0x1]
    %v2786 = vlaneseq
    %v2787 = vshrl.u32 %v2786, 7
    %v2788 = vsub.s32 0, %v2787
    %v2789 = vrot.slane %v2784, %v2788
    %v2791 = vmul.f32 %v2765, %v2789
    %v2792 = vmul.f32 %v2770, %v2789
    %v2793 = vmul.f32 %v2775, %v2789
    %v2794 = vmul.f32 %v2780, %v2789
    %v2795 = vadd.f32 %v2677, %v2791
    %v2796 = vadd.f32 %v2678, %v2792
    %v2797 = vadd.f32 %v2679, %v2793
    %v2798 = vadd.f32 %v2680, %v2794
    %s2799 = scalar_lea.vmem [#allocation7], 192
    %v2800 = vld [vmem:[%s2799] sm:$0xff]
    %v2801 = vld [vmem:[%s2799 + $0x8] sm:$0xff]
    %v2802 = vld [vmem:[%s2799 + $0x10] sm:$0xff]
    %v2803 = vld [vmem:[%s2799 + $0x18] sm:$0xff]
    %v2805 = vsel %vm440, %v2800, 0
    %v2808 = vsel %vm440, %v2801, 0
    %v2811 = vsel %vm440, %v2802, 0
    %v2814 = vsel %vm440, %v2803, 0
    %2816 = vmatprep.subr.mxu0 0.0
    %2817 = vmatpush1.msra.mxu0 %v2089
    %2818 = vmatprep.subr.mxu0 0.0
    %2819 = vmatpush1.msra.mxu0 %v2090
    %2820 = vmatprep.subr.mxu0 0.0
    %2821 = vmatpush1.msra.mxu0 %v2091
    %2822 = vmatprep.subr.mxu0 0.0
    %2823 = vmatpush1.msra.mxu0 %v2092
    %2824 = vmatprep.subr.mxu0 0.0
    %2825 = vmatpush1.msra.mxu0 0.0
    %2826 = vmatprep.subr.mxu0 0.0
    %2827 = vmatpush1.msra.mxu0 0.0
    %2828 = vmatprep.subr.mxu0 0.0
    %2829 = vmatpush1.msra.mxu0 0.0
    %2830 = vmatprep.subr.mxu0 0.0
    %2831 = vmatpush1.msra.mxu0 0.0
    %2832 = vmatprep.subr.mxu0 0.0
    %2833 = vmatpush1.msra.mxu0 0.0
    %2834 = vmatprep.subr.mxu0 0.0
    %2835 = vmatpush1.msra.mxu0 0.0
    %2836 = vmatprep.subr.mxu0 0.0
    %2837 = vmatpush1.msra.mxu0 0.0
    %2838 = vmatprep.subr.mxu0 0.0
    %2839 = vmatpush1.msra.mxu0 0.0
    %2840 = vmatprep.subr.mxu0 0.0
    %2841 = vmatpush1.msra.mxu0 0.0
    %2842 = vmatprep.subr.mxu0 0.0
    %2843 = vmatpush1.msra.mxu0 0.0
    %2844 = vmatprep.subr.mxu0 0.0
    %2845 = vmatpush1.msra.mxu0 0.0
    %2846 = vmatprep.subr.mxu0 0.0
    %2847 = vmatpush1.msra.mxu0 0.0
    %2848 = vmatprep.subr.mxu0 0.0
    %2849 = vmatpush1.msra.mxu0 0.0
    %2850 = vmatprep.subr.mxu0 0.0
    %2851 = vmatpush1.msra.mxu0 0.0
    %2852 = vmatprep.subr.mxu0 0.0
    %2853 = vmatpush1.msra.mxu0 0.0
    %2854 = vmatprep.subr.mxu0 0.0
    %2855 = vmatpush1.msra.mxu0 0.0
    %2856 = vmatprep.subr.mxu0 0.0
    %2857 = vmatpush1.msra.mxu0 0.0
    %2858 = vmatprep.subr.mxu0 0.0
    %2859 = vmatpush1.msra.mxu0 0.0
    %2860 = vmatprep.subr.mxu0 0.0
    %2861 = vmatpush1.msra.mxu0 0.0
    %2862 = vmatprep.subr.mxu0 0.0
    %2863 = vmatpush1.msra.mxu0 0.0
    %2864 = vmatprep.subr.mxu0 0.0
    %2865 = vmatpush1.msra.mxu0 0.0
    %2866 = vmatprep.subr.mxu0 0.0
    %2867 = vmatpush1.msra.mxu0 0.0
    %2868 = vmatprep.subr.mxu0 0.0
    %2869 = vmatpush1.msra.mxu0 0.0
    %2870 = vmatprep.subr.mxu0 0.0
    %2871 = vmatpush1.msra.mxu0 0.0
    %2872 = vmatprep.subr.mxu0 0.0
    %2873 = vmatpush1.msra.mxu0 0.0
    %2874 = vmatprep.subr.mxu0 0.0
    %2875 = vmatpush1.msra.mxu0 0.0
    %2876 = vmatprep.subr.mxu0 0.0
    %2877 = vmatpush1.msra.mxu0 0.0
    %2878 = vmatprep.subr.mxu0 0.0
    %2879 = vmatpush1.msra.mxu0 0.0
    %2880 = vmatprep.mubr.f32.mxu0 0.0
    %2881 = vmatmul.mubr.f32.gmra.mrb[0].mxu0 %v2805
    %v2882 = vpop.f32.mrb[0].mxu0
    %v2883 = vadd.f32 0.0, %v2882
    %v2884 = vpop.f32.mrb[0].mxu0
    %2885 = vmatprep.mubr.f32.mxu0 0.0
    %2886 = vmatmul.mubr.f32.gmra.mrb[0].mxu0 %v2808
    %v2887 = vpop.f32.mrb[0].mxu0
    %v2888 = vadd.f32 0.0, %v2887
    %v2889 = vpop.f32.mrb[0].mxu0
    %2890 = vmatprep.mubr.f32.mxu0 0.0
    %2891 = vmatmul.mubr.f32.gmra.mrb[0].mxu0 %v2811
    %v2892 = vpop.f32.mrb[0].mxu0
    %v2893 = vadd.f32 0.0, %v2892
    %v2894 = vpop.f32.mrb[0].mxu0
    %2895 = vmatprep.mubr.f32.mxu0 0.0
    %2896 = vmatmul.mubr.f32.gmra.mrb[0].mxu0 %v2814
    %v2897 = vpop.f32.mrb[0].mxu0
    %v2898 = vadd.f32 0.0, %v2897
    %v2899 = vpop.f32.mrb[0].mxu0
    %2900 = vdwg.mxu0
    %s2901 = scalar_lea.vmem %s17, 6
    %v2902 = vld [vmem:[%s2901] sm:$0x1]
    %v2904 = vlaneseq
    %v2905 = vshrl.u32 %v2904, 7
    %v2906 = vsub.s32 0, %v2905
    %v2907 = vrot.slane %v2902, %v2906
    %v2909 = vmul.f32 %v2883, %v2907
    %v2910 = vmul.f32 %v2888, %v2907
    %v2911 = vmul.f32 %v2893, %v2907
    %v2912 = vmul.f32 %v2898, %v2907
    %v2913 = vadd.f32 %v2795, %v2909
    %v2914 = vadd.f32 %v2796, %v2910
    %v2915 = vadd.f32 %v2797, %v2911
    %v2916 = vadd.f32 %v2798, %v2912
    %s2917 = scalar_lea.vmem [#allocation7], 224
    %v2918 = vld [vmem:[%s2917] sm:$0xff]
    %v2919 = vld [vmem:[%s2917 + $0x8] sm:$0xff]
    %v2920 = vld [vmem:[%s2917 + $0x10] sm:$0xff]
    %v2921 = vld [vmem:[%s2917 + $0x18] sm:$0xff]
    %v2923 = vsel %vm440, %v2918, 0
    %v2926 = vsel %vm440, %v2919, 0
    %v2929 = vsel %vm440, %v2920, 0
    %v2932 = vsel %vm440, %v2921, 0
    %2934 = vmatprep.subr.mxu0 0.0
    %2935 = vmatpush1.msra.mxu0 %v2089
    %2936 = vmatprep.subr.mxu0 0.0
    %2937 = vmatpush1.msra.mxu0 %v2090
    %2938 = vmatprep.subr.mxu0 0.0
    %2939 = vmatpush1.msra.mxu0 %v2091
    %2940 = vmatprep.subr.mxu0 0.0
    %2941 = vmatpush1.msra.mxu0 %v2092
    %2942 = vmatprep.subr.mxu0 0.0
    %2943 = vmatpush1.msra.mxu0 0.0
    %2944 = vmatprep.subr.mxu0 0.0
    %2945 = vmatpush1.msra.mxu0 0.0
    %2946 = vmatprep.subr.mxu0 0.0
    %2947 = vmatpush1.msra.mxu0 0.0
    %2948 = vmatprep.subr.mxu0 0.0
    %2949 = vmatpush1.msra.mxu0 0.0
    %2950 = vmatprep.subr.mxu0 0.0
    %2951 = vmatpush1.msra.mxu0 0.0
    %2952 = vmatprep.subr.mxu0 0.0
    %2953 = vmatpush1.msra.mxu0 0.0
    %2954 = vmatprep.subr.mxu0 0.0
    %2955 = vmatpush1.msra.mxu0 0.0
    %2956 = vmatprep.subr.mxu0 0.0
    %2957 = vmatpush1.msra.mxu0 0.0
    %2958 = vmatprep.subr.mxu0 0.0
    %2959 = vmatpush1.msra.mxu0 0.0
    %2960 = vmatprep.subr.mxu0 0.0
    %2961 = vmatpush1.msra.mxu0 0.0
    %2962 = vmatprep.subr.mxu0 0.0
    %2963 = vmatpush1.msra.mxu0 0.0
    %2964 = vmatprep.subr.mxu0 0.0
    %2965 = vmatpush1.msra.mxu0 0.0
    %2966 = vmatprep.subr.mxu0 0.0
    %2967 = vmatpush1.msra.mxu0 0.0
    %2968 = vmatprep.subr.mxu0 0.0
    %2969 = vmatpush1.msra.mxu0 0.0
    %2970 = vmatprep.subr.mxu0 0.0
    %2971 = vmatpush1.msra.mxu0 0.0
    %2972 = vmatprep.subr.mxu0 0.0
    %2973 = vmatpush1.msra.mxu0 0.0
    %2974 = vmatprep.subr.mxu0 0.0
    %2975 = vmatpush1.msra.mxu0 0.0
    %2976 = vmatprep.subr.mxu0 0.0
    %2977 = vmatpush1.msra.mxu0 0.0
    %2978 = vmatprep.subr.mxu0 0.0
    %2979 = vmatpush1.msra.mxu0 0.0
    %2980 = vmatprep.subr.mxu0 0.0
    %2981 = vmatpush1.msra.mxu0 0.0
    %2982 = vmatprep.subr.mxu0 0.0
    %2983 = vmatpush1.msra.mxu0 0.0
    %2984 = vmatprep.subr.mxu0 0.0
    %2985 = vmatpush1.msra.mxu0 0.0
    %2986 = vmatprep.subr.mxu0 0.0
    %2987 = vmatpush1.msra.mxu0 0.0
    %2988 = vmatprep.subr.mxu0 0.0
    %2989 = vmatpush1.msra.mxu0 0.0
    %2990 = vmatprep.subr.mxu0 0.0
    %2991 = vmatpush1.msra.mxu0 0.0
    %2992 = vmatprep.subr.mxu0 0.0
    %2993 = vmatpush1.msra.mxu0 0.0
    %2994 = vmatprep.subr.mxu0 0.0
    %2995 = vmatpush1.msra.mxu0 0.0
    %2996 = vmatprep.subr.mxu0 0.0
    %2997 = vmatpush1.msra.mxu0 0.0
    %2998 = vmatprep.mubr.f32.mxu0 0.0
    %2999 = vmatmul.mubr.f32.gmra.mrb[0].mxu0 %v2923
    %v3000 = vpop.f32.mrb[0].mxu0
    %v3001 = vadd.f32 0.0, %v3000
    %v3002 = vpop.f32.mrb[0].mxu0
    %3003 = vmatprep.mubr.f32.mxu0 0.0
    %3004 = vmatmul.mubr.f32.gmra.mrb[0].mxu0 %v2926
    %v3005 = vpop.f32.mrb[0].mxu0
    %v3006 = vadd.f32 0.0, %v3005
    %v3007 = vpop.f32.mrb[0].mxu0
    %3008 = vmatprep.mubr.f32.mxu0 0.0
    %3009 = vmatmul.mubr.f32.gmra.mrb[0].mxu0 %v2929
    %v3010 = vpop.f32.mrb[0].mxu0
    %v3011 = vadd.f32 0.0, %v3010
    %v3012 = vpop.f32.mrb[0].mxu0
    %3013 = vmatprep.mubr.f32.mxu0 0.0
    %3014 = vmatmul.mubr.f32.gmra.mrb[0].mxu0 %v2932
    %v3015 = vpop.f32.mrb[0].mxu0
    %v3016 = vadd.f32 0.0, %v3015
    %v3017 = vpop.f32.mrb[0].mxu0
    %3018 = vdwg.mxu0
    %s3019 = scalar_lea.vmem %s17, 7
    %v3020 = vld [vmem:[%s3019] sm:$0x1]
    %v3022 = vlaneseq
    %v3023 = vshrl.u32 %v3022, 7
    %v3024 = vsub.s32 0, %v3023
    %v3025 = vrot.slane %v3020, %v3024
    %v3027 = vmul.f32 %v3001, %v3025
    %v3028 = vmul.f32 %v3006, %v3025
    %v3029 = vmul.f32 %v3011, %v3025
    %v3030 = vmul.f32 %v3016, %v3025
    %v3031 = vadd.f32 %v2913, %v3027
    %v3032 = vadd.f32 %v2914, %v3028
    %v3033 = vadd.f32 %v2915, %v3029
    %v3034 = vadd.f32 %v2916, %v3030
    %s3035 = scalar_lea.vmem [#allocation7], 256
    %v3036 = vld [vmem:[%s3035] sm:$0xff]
    %v3037 = vld [vmem:[%s3035 + $0x8] sm:$0xff]
    %v3038 = vld [vmem:[%s3035 + $0x10] sm:$0xff]
    %v3039 = vld [vmem:[%s3035 + $0x18] sm:$0xff]
    %v3041 = vsel %vm440, %v3036, 0
    %v3044 = vsel %vm440, %v3037, 0
    %v3047 = vsel %vm440, %v3038, 0
    %v3050 = vsel %vm440, %v3039, 0
    %3052 = vmatprep.subr.mxu0 0.0
    %3053 = vmatpush1.msra.mxu0 %v2089
    %3054 = vmatprep.subr.mxu0 0.0
    %3055 = vmatpush1.msra.mxu0 %v2090
    %3056 = vmatprep.subr.mxu0 0.0
    %3057 = vmatpush1.msra.mxu0 %v2091
    %3058 = vmatprep.subr.mxu0 0.0
    %3059 = vmatpush1.msra.mxu0 %v2092
    %3060 = vmatprep.subr.mxu0 0.0
    %3061 = vmatpush1.msra.mxu0 0.0
    %3062 = vmatprep.subr.mxu0 0.0
    %3063 = vmatpush1.msra.mxu0 0.0
    %3064 = vmatprep.subr.mxu0 0.0
    %3065 = vmatpush1.msra.mxu0 0.0
    %3066 = vmatprep.subr.mxu0 0.0
    %3067 = vmatpush1.msra.mxu0 0.0
    %3068 = vmatprep.subr.mxu0 0.0
    %3069 = vmatpush1.msra.mxu0 0.0
    %3070 = vmatprep.subr.mxu0 0.0
    %3071 = vmatpush1.msra.mxu0 0.0
    %3072 = vmatprep.subr.mxu0 0.0
    %3073 = vmatpush1.msra.mxu0 0.0
    %3074 = vmatprep.subr.mxu0 0.0
    %3075 = vmatpush1.msra.mxu0 0.0
    %3076 = vmatprep.subr.mxu0 0.0
    %3077 = vmatpush1.msra.mxu0 0.0
    %3078 = vmatprep.subr.mxu0 0.0
    %3079 = vmatpush1.msra.mxu0 0.0
    %3080 = vmatprep.subr.mxu0 0.0
    %3081 = vmatpush1.msra.mxu0 0.0
    %3082 = vmatprep.subr.mxu0 0.0
    %3083 = vmatpush1.msra.mxu0 0.0
    %3084 = vmatprep.subr.mxu0 0.0
    %3085 = vmatpush1.msra.mxu0 0.0
    %3086 = vmatprep.subr.mxu0 0.0
    %3087 = vmatpush1.msra.mxu0 0.0
    %3088 = vmatprep.subr.mxu0 0.0
    %3089 = vmatpush1.msra.mxu0 0.0
    %3090 = vmatprep.subr.mxu0 0.0
    %3091 = vmatpush1.msra.mxu0 0.0
    %3092 = vmatprep.subr.mxu0 0.0
    %3093 = vmatpush1.msra.mxu0 0.0
    %3094 = vmatprep.subr.mxu0 0.0
    %3095 = vmatpush1.msra.mxu0 0.0
    %3096 = vmatprep.subr.mxu0 0.0
    %3097 = vmatpush1.msra.mxu0 0.0
    %3098 = vmatprep.subr.mxu0 0.0
    %3099 = vmatpush1.msra.mxu0 0.0
    %3100 = vmatprep.subr.mxu0 0.0
    %3101 = vmatpush1.msra.mxu0 0.0
    %3102 = vmatprep.subr.mxu0 0.0
    %3103 = vmatpush1.msra.mxu0 0.0
    %3104 = vmatprep.subr.mxu0 0.0
    %3105 = vmatpush1.msra.mxu0 0.0
    %3106 = vmatprep.subr.mxu0 0.0
    %3107 = vmatpush1.msra.mxu0 0.0
    %3108 = vmatprep.subr.mxu0 0.0
    %3109 = vmatpush1.msra.mxu0 0.0
    %3110 = vmatprep.subr.mxu0 0.0
    %3111 = vmatpush1.msra.mxu0 0.0
    %3112 = vmatprep.subr.mxu0 0.0
    %3113 = vmatpush1.msra.mxu0 0.0
    %3114 = vmatprep.subr.mxu0 0.0
    %3115 = vmatpush1.msra.mxu0 0.0
    %3116 = vmatprep.mubr.f32.mxu0 0.0
    %3117 = vmatmul.mubr.f32.gmra.mrb[0].mxu0 %v3041
    %v3118 = vpop.f32.mrb[0].mxu0
    %v3119 = vadd.f32 0.0, %v3118
    %v3120 = vpop.f32.mrb[0].mxu0
    %3121 = vmatprep.mubr.f32.mxu0 0.0
    %3122 = vmatmul.mubr.f32.gmra.mrb[0].mxu0 %v3044
    %v3123 = vpop.f32.mrb[0].mxu0
    %v3124 = vadd.f32 0.0, %v3123
    %v3125 = vpop.f32.mrb[0].mxu0
    %3126 = vmatprep.mubr.f32.mxu0 0.0
    %3127 = vmatmul.mubr.f32.gmra.mrb[0].mxu0 %v3047
    %v3128 = vpop.f32.mrb[0].mxu0
    %v3129 = vadd.f32 0.0, %v3128
    %v3130 = vpop.f32.mrb[0].mxu0
    %3131 = vmatprep.mubr.f32.mxu0 0.0
    %3132 = vmatmul.mubr.f32.gmra.mrb[0].mxu0 %v3050
    %v3133 = vpop.f32.mrb[0].mxu0
    %v3134 = vadd.f32 0.0, %v3133
    %v3135 = vpop.f32.mrb[0].mxu0
    %3136 = vdwg.mxu0
    %s3137 = scalar_lea.vmem %s17, 8
    %v3138 = vld [vmem:[%s3137] sm:$0x1]
    %v3140 = vlaneseq
    %v3141 = vshrl.u32 %v3140, 7
    %v3142 = vsub.s32 0, %v3141
    %v3143 = vrot.slane %v3138, %v3142
    %v3145 = vmul.f32 %v3119, %v3143
    %v3146 = vmul.f32 %v3124, %v3143
    %v3147 = vmul.f32 %v3129, %v3143
    %v3148 = vmul.f32 %v3134, %v3143
    %v3149 = vadd.f32 %v3031, %v3145
    %v3150 = vadd.f32 %v3032, %v3146
    %v3151 = vadd.f32 %v3033, %v3147
    %v3152 = vadd.f32 %v3034, %v3148
    %s3153 = scalar_lea.vmem [#allocation7], 288
    %v3154 = vld [vmem:[%s3153] sm:$0xff]
    %v3155 = vld [vmem:[%s3153 + $0x8] sm:$0xff]
    %v3156 = vld [vmem:[%s3153 + $0x10] sm:$0xff]
    %v3157 = vld [vmem:[%s3153 + $0x18] sm:$0xff]
    %v3159 = vsel %vm440, %v3154, 0
    %v3162 = vsel %vm440, %v3155, 0
    %v3165 = vsel %vm440, %v3156, 0
    %v3168 = vsel %vm440, %v3157, 0
    %3170 = vmatprep.subr.mxu0 0.0
    %3171 = vmatpush1.msra.mxu0 %v2089
    %3172 = vmatprep.subr.mxu0 0.0
    %3173 = vmatpush1.msra.mxu0 %v2090
    %3174 = vmatprep.subr.mxu0 0.0
    %3175 = vmatpush1.msra.mxu0 %v2091
    %3176 = vmatprep.subr.mxu0 0.0
    %3177 = vmatpush1.msra.mxu0 %v2092
    %3178 = vmatprep.subr.mxu0 0.0
    %3179 = vmatpush1.msra.mxu0 0.0
    %3180 = vmatprep.subr.mxu0 0.0
    %3181 = vmatpush1.msra.mxu0 0.0
    %3182 = vmatprep.subr.mxu0 0.0
    %3183 = vmatpush1.msra.mxu0 0.0
    %3184 = vmatprep.subr.mxu0 0.0
    %3185 = vmatpush1.msra.mxu0 0.0
    %3186 = vmatprep.subr.mxu0 0.0
    %3187 = vmatpush1.msra.mxu0 0.0
    %3188 = vmatprep.subr.mxu0 0.0
    %3189 = vmatpush1.msra.mxu0 0.0
    %3190 = vmatprep.subr.mxu0 0.0
    %3191 = vmatpush1.msra.mxu0 0.0
    %3192 = vmatprep.subr.mxu0 0.0
    %3193 = vmatpush1.msra.mxu0 0.0
    %3194 = vmatprep.subr.mxu0 0.0
    %3195 = vmatpush1.msra.mxu0 0.0
    %3196 = vmatprep.subr.mxu0 0.0
    %3197 = vmatpush1.msra.mxu0 0.0
    %3198 = vmatprep.subr.mxu0 0.0
    %3199 = vmatpush1.msra.mxu0 0.0
    %3200 = vmatprep.subr.mxu0 0.0
    %3201 = vmatpush1.msra.mxu0 0.0
    %3202 = vmatprep.subr.mxu0 0.0
    %3203 = vmatpush1.msra.mxu0 0.0
    %3204 = vmatprep.subr.mxu0 0.0
    %3205 = vmatpush1.msra.mxu0 0.0
    %3206 = vmatprep.subr.mxu0 0.0
    %3207 = vmatpush1.msra.mxu0 0.0
    %3208 = vmatprep.subr.mxu0 0.0
    %3209 = vmatpush1.msra.mxu0 0.0
    %3210 = vmatprep.subr.mxu0 0.0
    %3211 = vmatpush1.msra.mxu0 0.0
    %3212 = vmatprep.subr.mxu0 0.0
    %3213 = vmatpush1.msra.mxu0 0.0
    %3214 = vmatprep.subr.mxu0 0.0
    %3215 = vmatpush1.msra.mxu0 0.0
    %3216 = vmatprep.subr.mxu0 0.0
    %3217 = vmatpush1.msra.mxu0 0.0
    %3218 = vmatprep.subr.mxu0 0.0
    %3219 = vmatpush1.msra.mxu0 0.0
    %3220 = vmatprep.subr.mxu0 0.0
    %3221 = vmatpush1.msra.mxu0 0.0
    %3222 = vmatprep.subr.mxu0 0.0
    %3223 = vmatpush1.msra.mxu0 0.0
    %3224 = vmatprep.subr.mxu0 0.0
    %3225 = vmatpush1.msra.mxu0 0.0
    %3226 = vmatprep.subr.mxu0 0.0
    %3227 = vmatpush1.msra.mxu0 0.0
    %3228 = vmatprep.subr.mxu0 0.0
    %3229 = vmatpush1.msra.mxu0 0.0
    %3230 = vmatprep.subr.mxu0 0.0
    %3231 = vmatpush1.msra.mxu0 0.0
    %3232 = vmatprep.subr.mxu0 0.0
    %3233 = vmatpush1.msra.mxu0 0.0
    %3234 = vmatprep.mubr.f32.mxu0 0.0
    %3235 = vmatmul.mubr.f32.gmra.mrb[0].mxu0 %v3159
    %v3236 = vpop.f32.mrb[0].mxu0
    %v3237 = vadd.f32 0.0, %v3236
    %v3238 = vpop.f32.mrb[0].mxu0
    %3239 = vmatprep.mubr.f32.mxu0 0.0
    %3240 = vmatmul.mubr.f32.gmra.mrb[0].mxu0 %v3162
    %v3241 = vpop.f32.mrb[0].mxu0
    %v3242 = vadd.f32 0.0, %v3241
    %v3243 = vpop.f32.mrb[0].mxu0
    %3244 = vmatprep.mubr.f32.mxu0 0.0
    %3245 = vmatmul.mubr.f32.gmra.mrb[0].mxu0 %v3165
    %v3246 = vpop.f32.mrb[0].mxu0
    %v3247 = vadd.f32 0.0, %v3246
    %v3248 = vpop.f32.mrb[0].mxu0
    %3249 = vmatprep.mubr.f32.mxu0 0.0
    %3250 = vmatmul.mubr.f32.gmra.mrb[0].mxu0 %v3168
    %v3251 = vpop.f32.mrb[0].mxu0
    %v3252 = vadd.f32 0.0, %v3251
    %v3253 = vpop.f32.mrb[0].mxu0
    %3254 = vdwg.mxu0
    %s3255 = scalar_lea.vmem %s17, 9
    %v3256 = vld [vmem:[%s3255] sm:$0x1]
    %v3258 = vlaneseq
    %v3259 = vshrl.u32 %v3258, 7
    %v3260 = vsub.s32 0, %v3259
    %v3261 = vrot.slane %v3256, %v3260
    %v3263 = vmul.f32 %v3237, %v3261
    %v3264 = vmul.f32 %v3242, %v3261
    %v3265 = vmul.f32 %v3247, %v3261
    %v3266 = vmul.f32 %v3252, %v3261
    %v3267 = vadd.f32 %v3149, %v3263
    %v3268 = vadd.f32 %v3150, %v3264
    %v3269 = vadd.f32 %v3151, %v3265
    %v3270 = vadd.f32 %v3152, %v3266
    %s3271 = scalar_lea.vmem [#allocation7], 320
    %v3272 = vld [vmem:[%s3271] sm:$0xff]
    %v3273 = vld [vmem:[%s3271 + $0x8] sm:$0xff]
    %v3274 = vld [vmem:[%s3271 + $0x10] sm:$0xff]
    %v3275 = vld [vmem:[%s3271 + $0x18] sm:$0xff]
    %v3277 = vsel %vm440, %v3272, 0
    %v3280 = vsel %vm440, %v3273, 0
    %v3283 = vsel %vm440, %v3274, 0
    %v3286 = vsel %vm440, %v3275, 0
    %3288 = vmatprep.subr.mxu0 0.0
    %3289 = vmatpush1.msra.mxu0 %v2089
    %3290 = vmatprep.subr.mxu0 0.0
    %3291 = vmatpush1.msra.mxu0 %v2090
    %3292 = vmatprep.subr.mxu0 0.0
    %3293 = vmatpush1.msra.mxu0 %v2091
    %3294 = vmatprep.subr.mxu0 0.0
    %3295 = vmatpush1.msra.mxu0 %v2092
    %3296 = vmatprep.subr.mxu0 0.0
    %3297 = vmatpush1.msra.mxu0 0.0
    %3298 = vmatprep.subr.mxu0 0.0
    %3299 = vmatpush1.msra.mxu0 0.0
    %3300 = vmatprep.subr.mxu0 0.0
    %3301 = vmatpush1.msra.mxu0 0.0
    %3302 = vmatprep.subr.mxu0 0.0
    %3303 = vmatpush1.msra.mxu0 0.0
    %3304 = vmatprep.subr.mxu0 0.0
    %3305 = vmatpush1.msra.mxu0 0.0
    %3306 = vmatprep.subr.mxu0 0.0
    %3307 = vmatpush1.msra.mxu0 0.0
    %3308 = vmatprep.subr.mxu0 0.0
    %3309 = vmatpush1.msra.mxu0 0.0
    %3310 = vmatprep.subr.mxu0 0.0
    %3311 = vmatpush1.msra.mxu0 0.0
    %3312 = vmatprep.subr.mxu0 0.0
    %3313 = vmatpush1.msra.mxu0 0.0
    %3314 = vmatprep.subr.mxu0 0.0
    %3315 = vmatpush1.msra.mxu0 0.0
    %3316 = vmatprep.subr.mxu0 0.0
    %3317 = vmatpush1.msra.mxu0 0.0
    %3318 = vmatprep.subr.mxu0 0.0
    %3319 = vmatpush1.msra.mxu0 0.0
    %3320 = vmatprep.subr.mxu0 0.0
    %3321 = vmatpush1.msra.mxu0 0.0
    %3322 = vmatprep.subr.mxu0 0.0
    %3323 = vmatpush1.msra.mxu0 0.0
    %3324 = vmatprep.subr.mxu0 0.0
    %3325 = vmatpush1.msra.mxu0 0.0
    %3326 = vmatprep.subr.mxu0 0.0
    %3327 = vmatpush1.msra.mxu0 0.0
    %3328 = vmatprep.subr.mxu0 0.0
    %3329 = vmatpush1.msra.mxu0 0.0
    %3330 = vmatprep.subr.mxu0 0.0
    %3331 = vmatpush1.msra.mxu0 0.0
    %3332 = vmatprep.subr.mxu0 0.0
    %3333 = vmatpush1.msra.mxu0 0.0
    %3334 = vmatprep.subr.mxu0 0.0
    %3335 = vmatpush1.msra.mxu0 0.0
    %3336 = vmatprep.subr.mxu0 0.0
    %3337 = vmatpush1.msra.mxu0 0.0
    %3338 = vmatprep.subr.mxu0 0.0
    %3339 = vmatpush1.msra.mxu0 0.0
    %3340 = vmatprep.subr.mxu0 0.0
    %3341 = vmatpush1.msra.mxu0 0.0
    %3342 = vmatprep.subr.mxu0 0.0
    %3343 = vmatpush1.msra.mxu0 0.0
    %3344 = vmatprep.subr.mxu0 0.0
    %3345 = vmatpush1.msra.mxu0 0.0
    %3346 = vmatprep.subr.mxu0 0.0
    %3347 = vmatpush1.msra.mxu0 0.0
    %3348 = vmatprep.subr.mxu0 0.0
    %3349 = vmatpush1.msra.mxu0 0.0
    %3350 = vmatprep.subr.mxu0 0.0
    %3351 = vmatpush1.msra.mxu0 0.0
    %3352 = vmatprep.mubr.f32.mxu0 0.0
    %3353 = vmatmul.mubr.f32.gmra.mrb[0].mxu0 %v3277
    %v3354 = vpop.f32.mrb[0].mxu0
    %v3355 = vadd.f32 0.0, %v3354
    %v3356 = vpop.f32.mrb[0].mxu0
    %3357 = vmatprep.mubr.f32.mxu0 0.0
    %3358 = vmatmul.mubr.f32.gmra.mrb[0].mxu0 %v3280
    %v3359 = vpop.f32.mrb[0].mxu0
    %v3360 = vadd.f32 0.0, %v3359
    %v3361 = vpop.f32.mrb[0].mxu0
    %3362 = vmatprep.mubr.f32.mxu0 0.0
    %3363 = vmatmul.mubr.f32.gmra.mrb[0].mxu0 %v3283
    %v3364 = vpop.f32.mrb[0].mxu0
    %v3365 = vadd.f32 0.0, %v3364
    %v3366 = vpop.f32.mrb[0].mxu0
    %3367 = vmatprep.mubr.f32.mxu0 0.0
    %3368 = vmatmul.mubr.f32.gmra.mrb[0].mxu0 %v3286
    %v3369 = vpop.f32.mrb[0].mxu0
    %v3370 = vadd.f32 0.0, %v3369
    %v3371 = vpop.f32.mrb[0].mxu0
    %3372 = vdwg.mxu0
    %s3373 = scalar_lea.vmem %s17, 10
    %v3374 = vld [vmem:[%s3373] sm:$0x1]
    %v3376 = vlaneseq
    %v3377 = vshrl.u32 %v3376, 7
    %v3378 = vsub.s32 0, %v3377
    %v3379 = vrot.slane %v3374, %v3378
    %v3381 = vmul.f32 %v3355, %v3379
    %v3382 = vmul.f32 %v3360, %v3379
    %v3383 = vmul.f32 %v3365, %v3379
    %v3384 = vmul.f32 %v3370, %v3379
    %v3385 = vadd.f32 %v3267, %v3381
    %v3386 = vadd.f32 %v3268, %v3382
    %v3387 = vadd.f32 %v3269, %v3383
    %v3388 = vadd.f32 %v3270, %v3384
    %s3389 = scalar_lea.vmem [#allocation7], 352
    %v3390 = vld [vmem:[%s3389] sm:$0xff]
    %v3391 = vld [vmem:[%s3389 + $0x8] sm:$0xff]
    %v3392 = vld [vmem:[%s3389 + $0x10] sm:$0xff]
    %v3393 = vld [vmem:[%s3389 + $0x18] sm:$0xff]
    %v3395 = vsel %vm440, %v3390, 0
    %v3398 = vsel %vm440, %v3391, 0
    %v3401 = vsel %vm440, %v3392, 0
    %v3404 = vsel %vm440, %v3393, 0
    %3406 = vmatprep.subr.mxu0 0.0
    %3407 = vmatpush1.msra.mxu0 %v2089
    %3408 = vmatprep.subr.mxu0 0.0
    %3409 = vmatpush1.msra.mxu0 %v2090
    %3410 = vmatprep.subr.mxu0 0.0
    %3411 = vmatpush1.msra.mxu0 %v2091
    %3412 = vmatprep.subr.mxu0 0.0
    %3413 = vmatpush1.msra.mxu0 %v2092
    %3414 = vmatprep.subr.mxu0 0.0
    %3415 = vmatpush1.msra.mxu0 0.0
    %3416 = vmatprep.subr.mxu0 0.0
    %3417 = vmatpush1.msra.mxu0 0.0
    %3418 = vmatprep.subr.mxu0 0.0
    %3419 = vmatpush1.msra.mxu0 0.0
    %3420 = vmatprep.subr.mxu0 0.0
    %3421 = vmatpush1.msra.mxu0 0.0
    %3422 = vmatprep.subr.mxu0 0.0
    %3423 = vmatpush1.msra.mxu0 0.0
    %3424 = vmatprep.subr.mxu0 0.0
    %3425 = vmatpush1.msra.mxu0 0.0
    %3426 = vmatprep.subr.mxu0 0.0
    %3427 = vmatpush1.msra.mxu0 0.0
    %3428 = vmatprep.subr.mxu0 0.0
    %3429 = vmatpush1.msra.mxu0 0.0
    %3430 = vmatprep.subr.mxu0 0.0
    %3431 = vmatpush1.msra.mxu0 0.0
    %3432 = vmatprep.subr.mxu0 0.0
    %3433 = vmatpush1.msra.mxu0 0.0
    %3434 = vmatprep.subr.mxu0 0.0
    %3435 = vmatpush1.msra.mxu0 0.0
    %3436 = vmatprep.subr.mxu0 0.0
    %3437 = vmatpush1.msra.mxu0 0.0
    %3438 = vmatprep.subr.mxu0 0.0
    %3439 = vmatpush1.msra.mxu0 0.0
    %3440 = vmatprep.subr.mxu0 0.0
    %3441 = vmatpush1.msra.mxu0 0.0
    %3442 = vmatprep.subr.mxu0 0.0
    %3443 = vmatpush1.msra.mxu0 0.0
    %3444 = vmatprep.subr.mxu0 0.0
    %3445 = vmatpush1.msra.mxu0 0.0
    %3446 = vmatprep.subr.mxu0 0.0
    %3447 = vmatpush1.msra.mxu0 0.0
    %3448 = vmatprep.subr.mxu0 0.0
    %3449 = vmatpush1.msra.mxu0 0.0
    %3450 = vmatprep.subr.mxu0 0.0
    %3451 = vmatpush1.msra.mxu0 0.0
    %3452 = vmatprep.subr.mxu0 0.0
    %3453 = vmatpush1.msra.mxu0 0.0
    %3454 = vmatprep.subr.mxu0 0.0
    %3455 = vmatpush1.msra.mxu0 0.0
    %3456 = vmatprep.subr.mxu0 0.0
    %3457 = vmatpush1.msra.mxu0 0.0
    %3458 = vmatprep.subr.mxu0 0.0
    %3459 = vmatpush1.msra.mxu0 0.0
    %3460 = vmatprep.subr.mxu0 0.0
    %3461 = vmatpush1.msra.mxu0 0.0
    %3462 = vmatprep.subr.mxu0 0.0
    %3463 = vmatpush1.msra.mxu0 0.0
    %3464 = vmatprep.subr.mxu0 0.0
    %3465 = vmatpush1.msra.mxu0 0.0
    %3466 = vmatprep.subr.mxu0 0.0
    %3467 = vmatpush1.msra.mxu0 0.0
    %3468 = vmatprep.subr.mxu0 0.0
    %3469 = vmatpush1.msra.mxu0 0.0
    %3470 = vmatprep.mubr.f32.mxu0 0.0
    %3471 = vmatmul.mubr.f32.gmra.mrb[0].mxu0 %v3395
    %v3472 = vpop.f32.mrb[0].mxu0
    %v3473 = vadd.f32 0.0, %v3472
    %v3474 = vpop.f32.mrb[0].mxu0
    %3475 = vmatprep.mubr.f32.mxu0 0.0
    %3476 = vmatmul.mubr.f32.gmra.mrb[0].mxu0 %v3398
    %v3477 = vpop.f32.mrb[0].mxu0
    %v3478 = vadd.f32 0.0, %v3477
    %v3479 = vpop.f32.mrb[0].mxu0
    %3480 = vmatprep.mubr.f32.mxu0 0.0
    %3481 = vmatmul.mubr.f32.gmra.mrb[0].mxu0 %v3401
    %v3482 = vpop.f32.mrb[0].mxu0
    %v3483 = vadd.f32 0.0, %v3482
    %v3484 = vpop.f32.mrb[0].mxu0
    %3485 = vmatprep.mubr.f32.mxu0 0.0
    %3486 = vmatmul.mubr.f32.gmra.mrb[0].mxu0 %v3404
    %v3487 = vpop.f32.mrb[0].mxu0
    %v3488 = vadd.f32 0.0, %v3487
    %v3489 = vpop.f32.mrb[0].mxu0
    %3490 = vdwg.mxu0
    %s3491 = scalar_lea.vmem %s17, 11
    %v3492 = vld [vmem:[%s3491] sm:$0x1]
    %v3494 = vlaneseq
    %v3495 = vshrl.u32 %v3494, 7
    %v3496 = vsub.s32 0, %v3495
    %v3497 = vrot.slane %v3492, %v3496
    %v3499 = vmul.f32 %v3473, %v3497
    %v3500 = vmul.f32 %v3478, %v3497
    %v3501 = vmul.f32 %v3483, %v3497
    %v3502 = vmul.f32 %v3488, %v3497
    %v3503 = vadd.f32 %v3385, %v3499
    %v3504 = vadd.f32 %v3386, %v3500
    %v3505 = vadd.f32 %v3387, %v3501
    %v3506 = vadd.f32 %v3388, %v3502
    %3507 = vmatprep.subr.mxu0 0.0
    %3508 = vmatpush1.msra.mxu0 %v2089
    %3509 = vmatprep.subr.mxu0 0.0
    %3510 = vmatpush1.msra.mxu0 %v2090
    %3511 = vmatprep.subr.mxu0 0.0
    %3512 = vmatpush1.msra.mxu0 %v2091
    %3513 = vmatprep.subr.mxu0 0.0
    %3514 = vmatpush1.msra.mxu0 %v2092
    %3515 = vmatprep.subr.mxu0 0.0
    %3516 = vmatpush1.msra.mxu0 0.0
    %3517 = vmatprep.subr.mxu0 0.0
    %3518 = vmatpush1.msra.mxu0 0.0
    %3519 = vmatprep.subr.mxu0 0.0
    %3520 = vmatpush1.msra.mxu0 0.0
    %3521 = vmatprep.subr.mxu0 0.0
    %3522 = vmatpush1.msra.mxu0 0.0
    %3523 = vmatprep.subr.mxu0 0.0
    %3524 = vmatpush1.msra.mxu0 0.0
    %3525 = vmatprep.subr.mxu0 0.0
    %3526 = vmatpush1.msra.mxu0 0.0
    %3527 = vmatprep.subr.mxu0 0.0
    %3528 = vmatpush1.msra.mxu0 0.0
    %3529 = vmatprep.subr.mxu0 0.0
    %3530 = vmatpush1.msra.mxu0 0.0
    %3531 = vmatprep.subr.mxu0 0.0
    %3532 = vmatpush1.msra.mxu0 0.0
    %3533 = vmatprep.subr.mxu0 0.0
    %3534 = vmatpush1.msra.mxu0 0.0
    %3535 = vmatprep.subr.mxu0 0.0
    %3536 = vmatpush1.msra.mxu0 0.0
    %3537 = vmatprep.subr.mxu0 0.0
    %3538 = vmatpush1.msra.mxu0 0.0
    %3539 = vmatprep.subr.mxu0 0.0
    %3540 = vmatpush1.msra.mxu0 0.0
    %3541 = vmatprep.subr.mxu0 0.0
    %3542 = vmatpush1.msra.mxu0 0.0
    %3543 = vmatprep.subr.mxu0 0.0
    %3544 = vmatpush1.msra.mxu0 0.0
    %3545 = vmatprep.subr.mxu0 0.0
    %3546 = vmatpush1.msra.mxu0 0.0
    %3547 = vmatprep.subr.mxu0 0.0
    %3548 = vmatpush1.msra.mxu0 0.0
    %3549 = vmatprep.subr.mxu0 0.0
    %3550 = vmatpush1.msra.mxu0 0.0
    %3551 = vmatprep.subr.mxu0 0.0
    %3552 = vmatpush1.msra.mxu0 0.0
    %3553 = vmatprep.subr.mxu0 0.0
    %3554 = vmatpush1.msra.mxu0 0.0
    %3555 = vmatprep.subr.mxu0 0.0
    %3556 = vmatpush1.msra.mxu0 0.0
    %3557 = vmatprep.subr.mxu0 0.0
    %3558 = vmatpush1.msra.mxu0 0.0
    %3559 = vmatprep.subr.mxu0 0.0
    %3560 = vmatpush1.msra.mxu0 0.0
    %3561 = vmatprep.subr.mxu0 0.0
    %3562 = vmatpush1.msra.mxu0 0.0
    %3563 = vmatprep.subr.mxu0 0.0
    %3564 = vmatpush1.msra.mxu0 0.0
    %3565 = vmatprep.subr.mxu0 0.0
    %3566 = vmatpush1.msra.mxu0 0.0
    %3567 = vmatprep.subr.mxu0 0.0
    %3568 = vmatpush1.msra.mxu0 0.0
    %3569 = vmatprep.subr.mxu0 0.0
    %3570 = vmatpush1.msra.mxu0 0.0
    %3571 = vmatprep.mubr.f32.mxu0 0.0
    %3572 = vmatmul.mubr.f32.gmra.mrb[0].mxu0 %v442
    %v3573 = vpop.f32.mrb[0].mxu0
    %v3574 = vadd.f32 0.0, %v3573
    %v3575 = vpop.f32.mrb[0].mxu0
    %3576 = vmatprep.mubr.f32.mxu0 0.0
    %3577 = vmatmul.mubr.f32.gmra.mrb[0].mxu0 %v445
    %v3578 = vpop.f32.mrb[0].mxu0
    %v3579 = vadd.f32 0.0, %v3578
    %v3580 = vpop.f32.mrb[0].mxu0
    %3581 = vmatprep.mubr.f32.mxu0 0.0
    %3582 = vmatmul.mubr.f32.gmra.mrb[0].mxu0 %v448
    %v3583 = vpop.f32.mrb[0].mxu0
    %v3584 = vadd.f32 0.0, %v3583
    %v3585 = vpop.f32.mrb[0].mxu0
    %3586 = vmatprep.mubr.f32.mxu0 0.0
    %3587 = vmatmul.mubr.f32.gmra.mrb[0].mxu0 %v451
    %v3588 = vpop.f32.mrb[0].mxu0
    %v3589 = vadd.f32 0.0, %v3588
    %v3590 = vpop.f32.mrb[0].mxu0
    %3591 = vdwg.mxu0
    %s3592 = scalar_lea.vmem %s17, 12
    %v3593 = vld [vmem:[%s3592] sm:$0x1]
    %v3595 = vlaneseq
    %v3596 = vshrl.u32 %v3595, 7
    %v3597 = vsub.s32 0, %v3596
    %v3598 = vrot.slane %v3593, %v3597
    %v3600 = vmul.f32 %v3574, %v3598
    %v3601 = vmul.f32 %v3579, %v3598
    %v3602 = vmul.f32 %v3584, %v3598
    %v3603 = vmul.f32 %v3589, %v3598
    %v3604 = vadd.f32 %v3503, %v3600
    %v3605 = vadd.f32 %v3504, %v3601
    %v3606 = vadd.f32 %v3505, %v3602
    %v3607 = vadd.f32 %v3506, %v3603
    %3608 = vmatprep.subr.mxu0 0.0
    %3609 = vmatpush1.msra.mxu0 %v2089
    %3610 = vmatprep.subr.mxu0 0.0
    %3611 = vmatpush1.msra.mxu0 %v2090
    %3612 = vmatprep.subr.mxu0 0.0
    %3613 = vmatpush1.msra.mxu0 %v2091
    %3614 = vmatprep.subr.mxu0 0.0
    %3615 = vmatpush1.msra.mxu0 %v2092
    %3616 = vmatprep.subr.mxu0 0.0
    %3617 = vmatpush1.msra.mxu0 0.0
    %3618 = vmatprep.subr.mxu0 0.0
    %3619 = vmatpush1.msra.mxu0 0.0
    %3620 = vmatprep.subr.mxu0 0.0
    %3621 = vmatpush1.msra.mxu0 0.0
    %3622 = vmatprep.subr.mxu0 0.0
    %3623 = vmatpush1.msra.mxu0 0.0
    %3624 = vmatprep.subr.mxu0 0.0
    %3625 = vmatpush1.msra.mxu0 0.0
    %3626 = vmatprep.subr.mxu0 0.0
    %3627 = vmatpush1.msra.mxu0 0.0
    %3628 = vmatprep.subr.mxu0 0.0
    %3629 = vmatpush1.msra.mxu0 0.0
    %3630 = vmatprep.subr.mxu0 0.0
    %3631 = vmatpush1.msra.mxu0 0.0
    %3632 = vmatprep.subr.mxu0 0.0
    %3633 = vmatpush1.msra.mxu0 0.0
    %3634 = vmatprep.subr.mxu0 0.0
    %3635 = vmatpush1.msra.mxu0 0.0
    %3636 = vmatprep.subr.mxu0 0.0
    %3637 = vmatpush1.msra.mxu0 0.0
    %3638 = vmatprep.subr.mxu0 0.0
    %3639 = vmatpush1.msra.mxu0 0.0
    %3640 = vmatprep.subr.mxu0 0.0
    %3641 = vmatpush1.msra.mxu0 0.0
    %3642 = vmatprep.subr.mxu0 0.0
    %3643 = vmatpush1.msra.mxu0 0.0
    %3644 = vmatprep.subr.mxu0 0.0
    %3645 = vmatpush1.msra.mxu0 0.0
    %3646 = vmatprep.subr.mxu0 0.0
    %3647 = vmatpush1.msra.mxu0 0.0
    %3648 = vmatprep.subr.mxu0 0.0
    %3649 = vmatpush1.msra.mxu0 0.0
    %3650 = vmatprep.subr.mxu0 0.0
    %3651 = vmatpush1.msra.mxu0 0.0
    %3652 = vmatprep.subr.mxu0 0.0
    %3653 = vmatpush1.msra.mxu0 0.0
    %3654 = vmatprep.subr.mxu0 0.0
    %3655 = vmatpush1.msra.mxu0 0.0
    %3656 = vmatprep.subr.mxu0 0.0
    %3657 = vmatpush1.msra.mxu0 0.0
    %3658 = vmatprep.subr.mxu0 0.0
    %3659 = vmatpush1.msra.mxu0 0.0
    %3660 = vmatprep.subr.mxu0 0.0
    %3661 = vmatpush1.msra.mxu0 0.0
    %3662 = vmatprep.subr.mxu0 0.0
    %3663 = vmatpush1.msra.mxu0 0.0
    %3664 = vmatprep.subr.mxu0 0.0
    %3665 = vmatpush1.msra.mxu0 0.0
    %3666 = vmatprep.subr.mxu0 0.0
    %3667 = vmatpush1.msra.mxu0 0.0
    %3668 = vmatprep.subr.mxu0 0.0
    %3669 = vmatpush1.msra.mxu0 0.0
    %3670 = vmatprep.subr.mxu0 0.0
    %3671 = vmatpush1.msra.mxu0 0.0
    %3672 = vmatprep.mubr.f32.mxu0 0.0
    %3673 = vmatmul.mubr.f32.gmra.mrb[0].mxu0 %v545
    %v3674 = vpop.f32.mrb[0].mxu0
    %v3675 = vadd.f32 0.0, %v3674
    %v3676 = vpop.f32.mrb[0].mxu0
    %3677 = vmatprep.mubr.f32.mxu0 0.0
    %3678 = vmatmul.mubr.f32.gmra.mrb[0].mxu0 %v548
    %v3679 = vpop.f32.mrb[0].mxu0
    %v3680 = vadd.f32 0.0, %v3679
    %v3681 = vpop.f32.mrb[0].mxu0
    %3682 = vmatprep.mubr.f32.mxu0 0.0
    %3683 = vmatmul.mubr.f32.gmra.mrb[0].mxu0 %v551
    %v3684 = vpop.f32.mrb[0].mxu0
    %v3685 = vadd.f32 0.0, %v3684
    %v3686 = vpop.f32.mrb[0].mxu0
    %3687 = vmatprep.mubr.f32.mxu0 0.0
    %3688 = vmatmul.mubr.f32.gmra.mrb[0].mxu0 %v554
    %v3689 = vpop.f32.mrb[0].mxu0
    %v3690 = vadd.f32 0.0, %v3689
    %v3691 = vpop.f32.mrb[0].mxu0
    %3692 = vdwg.mxu0
    %s3693 = scalar_lea.vmem %s17, 13
    %v3694 = vld [vmem:[%s3693] sm:$0x1]
    %v3696 = vlaneseq
    %v3697 = vshrl.u32 %v3696, 7
    %v3698 = vsub.s32 0, %v3697
    %v3699 = vrot.slane %v3694, %v3698
    %v3701 = vmul.f32 %v3675, %v3699
    %v3702 = vmul.f32 %v3680, %v3699
    %v3703 = vmul.f32 %v3685, %v3699
    %v3704 = vmul.f32 %v3690, %v3699
    %v3705 = vadd.f32 %v3604, %v3701
    %v3706 = vadd.f32 %v3605, %v3702
    %v3707 = vadd.f32 %v3606, %v3703
    %v3708 = vadd.f32 %v3607, %v3704
    %3709 = vmatprep.subr.mxu0 0.0
    %3710 = vmatpush1.msra.mxu0 %v2089
    %3711 = vmatprep.subr.mxu0 0.0
    %3712 = vmatpush1.msra.mxu0 %v2090
    %3713 = vmatprep.subr.mxu0 0.0
    %3714 = vmatpush1.msra.mxu0 %v2091
    %3715 = vmatprep.subr.mxu0 0.0
    %3716 = vmatpush1.msra.mxu0 %v2092
    %3717 = vmatprep.subr.mxu0 0.0
    %3718 = vmatpush1.msra.mxu0 0.0
    %3719 = vmatprep.subr.mxu0 0.0
    %3720 = vmatpush1.msra.mxu0 0.0
    %3721 = vmatprep.subr.mxu0 0.0
    %3722 = vmatpush1.msra.mxu0 0.0
    %3723 = vmatprep.subr.mxu0 0.0
    %3724 = vmatpush1.msra.mxu0 0.0
    %3725 = vmatprep.subr.mxu0 0.0
    %3726 = vmatpush1.msra.mxu0 0.0
    %3727 = vmatprep.subr.mxu0 0.0
    %3728 = vmatpush1.msra.mxu0 0.0
    %3729 = vmatprep.subr.mxu0 0.0
    %3730 = vmatpush1.msra.mxu0 0.0
    %3731 = vmatprep.subr.mxu0 0.0
    %3732 = vmatpush1.msra.mxu0 0.0
    %3733 = vmatprep.subr.mxu0 0.0
    %3734 = vmatpush1.msra.mxu0 0.0
    %3735 = vmatprep.subr.mxu0 0.0
    %3736 = vmatpush1.msra.mxu0 0.0
    %3737 = vmatprep.subr.mxu0 0.0
    %3738 = vmatpush1.msra.mxu0 0.0
    %3739 = vmatprep.subr.mxu0 0.0
    %3740 = vmatpush1.msra.mxu0 0.0
    %3741 = vmatprep.subr.mxu0 0.0
    %3742 = vmatpush1.msra.mxu0 0.0
    %3743 = vmatprep.subr.mxu0 0.0
    %3744 = vmatpush1.msra.mxu0 0.0
    %3745 = vmatprep.subr.mxu0 0.0
    %3746 = vmatpush1.msra.mxu0 0.0
    %3747 = vmatprep.subr.mxu0 0.0
    %3748 = vmatpush1.msra.mxu0 0.0
    %3749 = vmatprep.subr.mxu0 0.0
    %3750 = vmatpush1.msra.mxu0 0.0
    %3751 = vmatprep.subr.mxu0 0.0
    %3752 = vmatpush1.msra.mxu0 0.0
    %3753 = vmatprep.subr.mxu0 0.0
    %3754 = vmatpush1.msra.mxu0 0.0
    %3755 = vmatprep.subr.mxu0 0.0
    %3756 = vmatpush1.msra.mxu0 0.0
    %3757 = vmatprep.subr.mxu0 0.0
    %3758 = vmatpush1.msra.mxu0 0.0
    %3759 = vmatprep.subr.mxu0 0.0
    %3760 = vmatpush1.msra.mxu0 0.0
    %3761 = vmatprep.subr.mxu0 0.0
    %3762 = vmatpush1.msra.mxu0 0.0
    %3763 = vmatprep.subr.mxu0 0.0
    %3764 = vmatpush1.msra.mxu0 0.0
    %3765 = vmatprep.subr.mxu0 0.0
    %3766 = vmatpush1.msra.mxu0 0.0
    %3767 = vmatprep.subr.mxu0 0.0
    %3768 = vmatpush1.msra.mxu0 0.0
    %3769 = vmatprep.subr.mxu0 0.0
    %3770 = vmatpush1.msra.mxu0 0.0
    %3771 = vmatprep.subr.mxu0 0.0
    %3772 = vmatpush1.msra.mxu0 0.0
    %3773 = vmatprep.mubr.f32.mxu0 0.0
    %3774 = vmatmul.mubr.f32.gmra.mrb[0].mxu0 %v843
    %v3775 = vpop.f32.mrb[0].mxu0
    %v3776 = vadd.f32 0.0, %v3775
    %v3777 = vpop.f32.mrb[0].mxu0
    %3778 = vmatprep.mubr.f32.mxu0 0.0
    %3779 = vmatmul.mubr.f32.gmra.mrb[0].mxu0 %v846
    %v3780 = vpop.f32.mrb[0].mxu0
    %v3781 = vadd.f32 0.0, %v3780
    %v3782 = vpop.f32.mrb[0].mxu0
    %3783 = vmatprep.mubr.f32.mxu0 0.0
    %3784 = vmatmul.mubr.f32.gmra.mrb[0].mxu0 %v849
    %v3785 = vpop.f32.mrb[0].mxu0
    %v3786 = vadd.f32 0.0, %v3785
    %v3787 = vpop.f32.mrb[0].mxu0
    %3788 = vmatprep.mubr.f32.mxu0 0.0
    %3789 = vmatmul.mubr.f32.gmra.mrb[0].mxu0 %v852
    %v3790 = vpop.f32.mrb[0].mxu0
    %v3791 = vadd.f32 0.0, %v3790
    %v3792 = vpop.f32.mrb[0].mxu0
    %3793 = vdwg.mxu0
    %s3794 = scalar_lea.vmem %s17, 14
    %v3795 = vld [vmem:[%s3794] sm:$0x1]
    %v3797 = vlaneseq
    %v3798 = vshrl.u32 %v3797, 7
    %v3799 = vsub.s32 0, %v3798
    %v3800 = vrot.slane %v3795, %v3799
    %v3802 = vmul.f32 %v3776, %v3800
    %v3803 = vmul.f32 %v3781, %v3800
    %v3804 = vmul.f32 %v3786, %v3800
    %v3805 = vmul.f32 %v3791, %v3800
    %v3806 = vadd.f32 %v3705, %v3802
    %v3807 = vadd.f32 %v3706, %v3803
    %v3808 = vadd.f32 %v3707, %v3804
    %v3809 = vadd.f32 %v3708, %v3805
    %3810 = vmatprep.subr.mxu0 0.0
    %3811 = vmatpush1.msra.mxu0 %v2089
    %3812 = vmatprep.subr.mxu0 0.0
    %3813 = vmatpush1.msra.mxu0 %v2090
    %3814 = vmatprep.subr.mxu0 0.0
    %3815 = vmatpush1.msra.mxu0 %v2091
    %3816 = vmatprep.subr.mxu0 0.0
    %3817 = vmatpush1.msra.mxu0 %v2092
    %3818 = vmatprep.subr.mxu0 0.0
    %3819 = vmatpush1.msra.mxu0 0.0
    %3820 = vmatprep.subr.mxu0 0.0
    %3821 = vmatpush1.msra.mxu0 0.0
    %3822 = vmatprep.subr.mxu0 0.0
    %3823 = vmatpush1.msra.mxu0 0.0
    %3824 = vmatprep.subr.mxu0 0.0
    %3825 = vmatpush1.msra.mxu0 0.0
    %3826 = vmatprep.subr.mxu0 0.0
    %3827 = vmatpush1.msra.mxu0 0.0
    %3828 = vmatprep.subr.mxu0 0.0
    %3829 = vmatpush1.msra.mxu0 0.0
    %3830 = vmatprep.subr.mxu0 0.0
    %3831 = vmatpush1.msra.mxu0 0.0
    %3832 = vmatprep.subr.mxu0 0.0
    %3833 = vmatpush1.msra.mxu0 0.0
    %3834 = vmatprep.subr.mxu0 0.0
    %3835 = vmatpush1.msra.mxu0 0.0
    %3836 = vmatprep.subr.mxu0 0.0
    %3837 = vmatpush1.msra.mxu0 0.0
    %3838 = vmatprep.subr.mxu0 0.0
    %3839 = vmatpush1.msra.mxu0 0.0
    %3840 = vmatprep.subr.mxu0 0.0
    %3841 = vmatpush1.msra.mxu0 0.0
    %3842 = vmatprep.subr.mxu0 0.0
    %3843 = vmatpush1.msra.mxu0 0.0
    %3844 = vmatprep.subr.mxu0 0.0
    %3845 = vmatpush1.msra.mxu0 0.0
    %3846 = vmatprep.subr.mxu0 0.0
    %3847 = vmatpush1.msra.mxu0 0.0
    %3848 = vmatprep.subr.mxu0 0.0
    %3849 = vmatpush1.msra.mxu0 0.0
    %3850 = vmatprep.subr.mxu0 0.0
    %3851 = vmatpush1.msra.mxu0 0.0
    %3852 = vmatprep.subr.mxu0 0.0
    %3853 = vmatpush1.msra.mxu0 0.0
    %3854 = vmatprep.subr.mxu0 0.0
    %3855 = vmatpush1.msra.mxu0 0.0
    %3856 = vmatprep.subr.mxu0 0.0
    %3857 = vmatpush1.msra.mxu0 0.0
    %3858 = vmatprep.subr.mxu0 0.0
    %3859 = vmatpush1.msra.mxu0 0.0
    %3860 = vmatprep.subr.mxu0 0.0
    %3861 = vmatpush1.msra.mxu0 0.0
    %3862 = vmatprep.subr.mxu0 0.0
    %3863 = vmatpush1.msra.mxu0 0.0
    %3864 = vmatprep.subr.mxu0 0.0
    %3865 = vmatpush1.msra.mxu0 0.0
    %3866 = vmatprep.subr.mxu0 0.0
    %3867 = vmatpush1.msra.mxu0 0.0
    %3868 = vmatprep.subr.mxu0 0.0
    %3869 = vmatpush1.msra.mxu0 0.0
    %3870 = vmatprep.subr.mxu0 0.0
    %3871 = vmatpush1.msra.mxu0 0.0
    %3872 = vmatprep.subr.mxu0 0.0
    %3873 = vmatpush1.msra.mxu0 0.0
    %3874 = vmatprep.mubr.f32.mxu0 0.0
    %3875 = vmatmul.mubr.f32.gmra.mrb[0].mxu0 %v1048
    %v3876 = vpop.f32.mrb[0].mxu0
    %v3877 = vadd.f32 0.0, %v3876
    %v3878 = vpop.f32.mrb[0].mxu0
    %3879 = vmatprep.mubr.f32.mxu0 0.0
    %3880 = vmatmul.mubr.f32.gmra.mrb[0].mxu0 %v1051
    %v3881 = vpop.f32.mrb[0].mxu0
    %v3882 = vadd.f32 0.0, %v3881
    %v3883 = vpop.f32.mrb[0].mxu0
    %3884 = vmatprep.mubr.f32.mxu0 0.0
    %3885 = vmatmul.mubr.f32.gmra.mrb[0].mxu0 %v1054
    %v3886 = vpop.f32.mrb[0].mxu0
    %v3887 = vadd.f32 0.0, %v3886
    %v3888 = vpop.f32.mrb[0].mxu0
    %3889 = vmatprep.mubr.f32.mxu0 0.0
    %3890 = vmatmul.mubr.f32.gmra.mrb[0].mxu0 %v1057
    %v3891 = vpop.f32.mrb[0].mxu0
    %v3892 = vadd.f32 0.0, %v3891
    %v3893 = vpop.f32.mrb[0].mxu0
    %3894 = vdwg.mxu0
    %s3895 = scalar_lea.vmem %s17, 15
    %v3896 = vld [vmem:[%s3895] sm:$0x1]
    %v3898 = vlaneseq
    %v3899 = vshrl.u32 %v3898, 7
    %v3900 = vsub.s32 0, %v3899
    %v3901 = vrot.slane %v3896, %v3900
    %v3903 = vmul.f32 %v3877, %v3901
    %v3904 = vmul.f32 %v3882, %v3901
    %v3905 = vmul.f32 %v3887, %v3901
    %v3906 = vmul.f32 %v3892, %v3901
    %v3907 = vadd.f32 %v3806, %v3903
    %v3908 = vadd.f32 %v3807, %v3904
    %v3909 = vadd.f32 %v3808, %v3905
    %v3910 = vadd.f32 %v3809, %v3906
    %3911 = vmatprep.subr.mxu0 0.0
    %3912 = vmatpush1.msra.mxu0 %v2089
    %3913 = vmatprep.subr.mxu0 0.0
    %3914 = vmatpush1.msra.mxu0 %v2090
    %3915 = vmatprep.subr.mxu0 0.0
    %3916 = vmatpush1.msra.mxu0 %v2091
    %3917 = vmatprep.subr.mxu0 0.0
    %3918 = vmatpush1.msra.mxu0 %v2092
    %3919 = vmatprep.subr.mxu0 0.0
    %3920 = vmatpush1.msra.mxu0 0.0
    %3921 = vmatprep.subr.mxu0 0.0
    %3922 = vmatpush1.msra.mxu0 0.0
    %3923 = vmatprep.subr.mxu0 0.0
    %3924 = vmatpush1.msra.mxu0 0.0
    %3925 = vmatprep.subr.mxu0 0.0
    %3926 = vmatpush1.msra.mxu0 0.0
    %3927 = vmatprep.subr.mxu0 0.0
    %3928 = vmatpush1.msra.mxu0 0.0
    %3929 = vmatprep.subr.mxu0 0.0
    %3930 = vmatpush1.msra.mxu0 0.0
    %3931 = vmatprep.subr.mxu0 0.0
    %3932 = vmatpush1.msra.mxu0 0.0
    %3933 = vmatprep.subr.mxu0 0.0
    %3934 = vmatpush1.msra.mxu0 0.0
    %3935 = vmatprep.subr.mxu0 0.0
    %3936 = vmatpush1.msra.mxu0 0.0
    %3937 = vmatprep.subr.mxu0 0.0
    %3938 = vmatpush1.msra.mxu0 0.0
    %3939 = vmatprep.subr.mxu0 0.0
    %3940 = vmatpush1.msra.mxu0 0.0
    %3941 = vmatprep.subr.mxu0 0.0
    %3942 = vmatpush1.msra.mxu0 0.0
    %3943 = vmatprep.subr.mxu0 0.0
    %3944 = vmatpush1.msra.mxu0 0.0
    %3945 = vmatprep.subr.mxu0 0.0
    %3946 = vmatpush1.msra.mxu0 0.0
    %3947 = vmatprep.subr.mxu0 0.0
    %3948 = vmatpush1.msra.mxu0 0.0
    %3949 = vmatprep.subr.mxu0 0.0
    %3950 = vmatpush1.msra.mxu0 0.0
    %3951 = vmatprep.subr.mxu0 0.0
    %3952 = vmatpush1.msra.mxu0 0.0
    %3953 = vmatprep.subr.mxu0 0.0
    %3954 = vmatpush1.msra.mxu0 0.0
    %3955 = vmatprep.subr.mxu0 0.0
    %3956 = vmatpush1.msra.mxu0 0.0
    %3957 = vmatprep.subr.mxu0 0.0
    %3958 = vmatpush1.msra.mxu0 0.0
    %3959 = vmatprep.subr.mxu0 0.0
    %3960 = vmatpush1.msra.mxu0 0.0
    %3961 = vmatprep.subr.mxu0 0.0
    %3962 = vmatpush1.msra.mxu0 0.0
    %3963 = vmatprep.subr.mxu0 0.0
    %3964 = vmatpush1.msra.mxu0 0.0
    %3965 = vmatprep.subr.mxu0 0.0
    %3966 = vmatpush1.msra.mxu0 0.0
    %3967 = vmatprep.subr.mxu0 0.0
    %3968 = vmatpush1.msra.mxu0 0.0
    %3969 = vmatprep.subr.mxu0 0.0
    %3970 = vmatpush1.msra.mxu0 0.0
    %3971 = vmatprep.subr.mxu0 0.0
    %3972 = vmatpush1.msra.mxu0 0.0
    %3973 = vmatprep.subr.mxu0 0.0
    %3974 = vmatpush1.msra.mxu0 0.0
    %3975 = vmatprep.mubr.f32.mxu0 0.0
    %3976 = vmatmul.mubr.f32.gmra.mrb[0].mxu0 %v1253
    %v3977 = vpop.f32.mrb[0].mxu0
    %v3978 = vadd.f32 0.0, %v3977
    %v3979 = vpop.f32.mrb[0].mxu0
    %3980 = vmatprep.mubr.f32.mxu0 0.0
    %3981 = vmatmul.mubr.f32.gmra.mrb[0].mxu0 %v1256
    %v3982 = vpop.f32.mrb[0].mxu0
    %v3983 = vadd.f32 0.0, %v3982
    %v3984 = vpop.f32.mrb[0].mxu0
    %3985 = vmatprep.mubr.f32.mxu0 0.0
    %3986 = vmatmul.mubr.f32.gmra.mrb[0].mxu0 %v1259
    %v3987 = vpop.f32.mrb[0].mxu0
    %v3988 = vadd.f32 0.0, %v3987
    %v3989 = vpop.f32.mrb[0].mxu0
    %3990 = vmatprep.mubr.f32.mxu0 0.0
    %3991 = vmatmul.mubr.f32.gmra.mrb[0].mxu0 %v1262
    %v3992 = vpop.f32.mrb[0].mxu0
    %v3993 = vadd.f32 0.0, %v3992
    %v3994 = vpop.f32.mrb[0].mxu0
    %3995 = vdwg.mxu0
    %s3996 = scalar_lea.vmem %s17, 16
    %v3997 = vld [vmem:[%s3996] sm:$0x1]
    %v3999 = vlaneseq
    %v4000 = vshrl.u32 %v3999, 7
    %v4001 = vsub.s32 0, %v4000
    %v4002 = vrot.slane %v3997, %v4001
    %v4004 = vmul.f32 %v3978, %v4002
    %v4005 = vmul.f32 %v3983, %v4002
    %v4006 = vmul.f32 %v3988, %v4002
    %v4007 = vmul.f32 %v3993, %v4002
    %v4008 = vadd.f32 %v3907, %v4004
    %v4009 = vadd.f32 %v3908, %v4005
    %v4010 = vadd.f32 %v3909, %v4006
    %v4011 = vadd.f32 %v3910, %v4007
    %4012 = vmatprep.subr.mxu0 0.0
    %4013 = vmatpush1.msra.mxu0 %v2089
    %4014 = vmatprep.subr.mxu0 0.0
    %4015 = vmatpush1.msra.mxu0 %v2090
    %4016 = vmatprep.subr.mxu0 0.0
    %4017 = vmatpush1.msra.mxu0 %v2091
    %4018 = vmatprep.subr.mxu0 0.0
    %4019 = vmatpush1.msra.mxu0 %v2092
    %4020 = vmatprep.subr.mxu0 0.0
    %4021 = vmatpush1.msra.mxu0 0.0
    %4022 = vmatprep.subr.mxu0 0.0
    %4023 = vmatpush1.msra.mxu0 0.0
    %4024 = vmatprep.subr.mxu0 0.0
    %4025 = vmatpush1.msra.mxu0 0.0
    %4026 = vmatprep.subr.mxu0 0.0
    %4027 = vmatpush1.msra.mxu0 0.0
    %4028 = vmatprep.subr.mxu0 0.0
    %4029 = vmatpush1.msra.mxu0 0.0
    %4030 = vmatprep.subr.mxu0 0.0
    %4031 = vmatpush1.msra.mxu0 0.0
    %4032 = vmatprep.subr.mxu0 0.0
    %4033 = vmatpush1.msra.mxu0 0.0
    %4034 = vmatprep.subr.mxu0 0.0
    %4035 = vmatpush1.msra.mxu0 0.0
    %4036 = vmatprep.subr.mxu0 0.0
    %4037 = vmatpush1.msra.mxu0 0.0
    %4038 = vmatprep.subr.mxu0 0.0
    %4039 = vmatpush1.msra.mxu0 0.0
    %4040 = vmatprep.subr.mxu0 0.0
    %4041 = vmatpush1.msra.mxu0 0.0
    %4042 = vmatprep.subr.mxu0 0.0
    %4043 = vmatpush1.msra.mxu0 0.0
    %4044 = vmatprep.subr.mxu0 0.0
    %4045 = vmatpush1.msra.mxu0 0.0
    %4046 = vmatprep.subr.mxu0 0.0
    %4047 = vmatpush1.msra.mxu0 0.0
    %4048 = vmatprep.subr.mxu0 0.0
    %4049 = vmatpush1.msra.mxu0 0.0
    %4050 = vmatprep.subr.mxu0 0.0
    %4051 = vmatpush1.msra.mxu0 0.0
    %4052 = vmatprep.subr.mxu0 0.0
    %4053 = vmatpush1.msra.mxu0 0.0
    %4054 = vmatprep.subr.mxu0 0.0
    %4055 = vmatpush1.msra.mxu0 0.0
    %4056 = vmatprep.subr.mxu0 0.0
    %4057 = vmatpush1.msra.mxu0 0.0
    %4058 = vmatprep.subr.mxu0 0.0
    %4059 = vmatpush1.msra.mxu0 0.0
    %4060 = vmatprep.subr.mxu0 0.0
    %4061 = vmatpush1.msra.mxu0 0.0
    %4062 = vmatprep.subr.mxu0 0.0
    %4063 = vmatpush1.msra.mxu0 0.0
    %4064 = vmatprep.subr.mxu0 0.0
    %4065 = vmatpush1.msra.mxu0 0.0
    %4066 = vmatprep.subr.mxu0 0.0
    %4067 = vmatpush1.msra.mxu0 0.0
    %4068 = vmatprep.subr.mxu0 0.0
    %4069 = vmatpush1.msra.mxu0 0.0
    %4070 = vmatprep.subr.mxu0 0.0
    %4071 = vmatpush1.msra.mxu0 0.0
    %4072 = vmatprep.subr.mxu0 0.0
    %4073 = vmatpush1.msra.mxu0 0.0
    %4074 = vmatprep.subr.mxu0 0.0
    %4075 = vmatpush1.msra.mxu0 0.0
    %4076 = vmatprep.mubr.f32.mxu0 0.0
    %4077 = vmatmul.mubr.f32.gmra.mrb[0].mxu0 %v1458
    %v4078 = vpop.f32.mrb[0].mxu0
    %v4079 = vadd.f32 0.0, %v4078
    %v4080 = vpop.f32.mrb[0].mxu0
    %4081 = vmatprep.mubr.f32.mxu0 0.0
    %4082 = vmatmul.mubr.f32.gmra.mrb[0].mxu0 %v1461
    %v4083 = vpop.f32.mrb[0].mxu0
    %v4084 = vadd.f32 0.0, %v4083
    %v4085 = vpop.f32.mrb[0].mxu0
    %4086 = vmatprep.mubr.f32.mxu0 0.0
    %4087 = vmatmul.mubr.f32.gmra.mrb[0].mxu0 %v1464
    %v4088 = vpop.f32.mrb[0].mxu0
    %v4089 = vadd.f32 0.0, %v4088
    %v4090 = vpop.f32.mrb[0].mxu0
    %4091 = vmatprep.mubr.f32.mxu0 0.0
    %4092 = vmatmul.mubr.f32.gmra.mrb[0].mxu0 %v1467
    %v4093 = vpop.f32.mrb[0].mxu0
    %v4094 = vadd.f32 0.0, %v4093
    %v4095 = vpop.f32.mrb[0].mxu0
    %4096 = vdwg.mxu0
    %s4097 = scalar_lea.vmem %s17, 17
    %v4098 = vld [vmem:[%s4097] sm:$0x1]
    %v4100 = vlaneseq
    %v4101 = vshrl.u32 %v4100, 7
    %v4102 = vsub.s32 0, %v4101
    %v4103 = vrot.slane %v4098, %v4102
    %v4105 = vmul.f32 %v4079, %v4103
    %v4106 = vmul.f32 %v4084, %v4103
    %v4107 = vmul.f32 %v4089, %v4103
    %v4108 = vmul.f32 %v4094, %v4103
    %v4109 = vadd.f32 %v4008, %v4105
    %v4110 = vadd.f32 %v4009, %v4106
    %v4111 = vadd.f32 %v4010, %v4107
    %v4112 = vadd.f32 %v4011, %v4108
    %4113 = vmatprep.subr.mxu0 0.0
    %4114 = vmatpush1.msra.mxu0 %v2089
    %4115 = vmatprep.subr.mxu0 0.0
    %4116 = vmatpush1.msra.mxu0 %v2090
    %4117 = vmatprep.subr.mxu0 0.0
    %4118 = vmatpush1.msra.mxu0 %v2091
    %4119 = vmatprep.subr.mxu0 0.0
    %4120 = vmatpush1.msra.mxu0 %v2092
    %4121 = vmatprep.subr.mxu0 0.0
    %4122 = vmatpush1.msra.mxu0 0.0
    %4123 = vmatprep.subr.mxu0 0.0
    %4124 = vmatpush1.msra.mxu0 0.0
    %4125 = vmatprep.subr.mxu0 0.0
    %4126 = vmatpush1.msra.mxu0 0.0
    %4127 = vmatprep.subr.mxu0 0.0
    %4128 = vmatpush1.msra.mxu0 0.0
    %4129 = vmatprep.subr.mxu0 0.0
    %4130 = vmatpush1.msra.mxu0 0.0
    %4131 = vmatprep.subr.mxu0 0.0
    %4132 = vmatpush1.msra.mxu0 0.0
    %4133 = vmatprep.subr.mxu0 0.0
    %4134 = vmatpush1.msra.mxu0 0.0
    %4135 = vmatprep.subr.mxu0 0.0
    %4136 = vmatpush1.msra.mxu0 0.0
    %4137 = vmatprep.subr.mxu0 0.0
    %4138 = vmatpush1.msra.mxu0 0.0
    %4139 = vmatprep.subr.mxu0 0.0
    %4140 = vmatpush1.msra.mxu0 0.0
    %4141 = vmatprep.subr.mxu0 0.0
    %4142 = vmatpush1.msra.mxu0 0.0
    %4143 = vmatprep.subr.mxu0 0.0
    %4144 = vmatpush1.msra.mxu0 0.0
    %4145 = vmatprep.subr.mxu0 0.0
    %4146 = vmatpush1.msra.mxu0 0.0
    %4147 = vmatprep.subr.mxu0 0.0
    %4148 = vmatpush1.msra.mxu0 0.0
    %4149 = vmatprep.subr.mxu0 0.0
    %4150 = vmatpush1.msra.mxu0 0.0
    %4151 = vmatprep.subr.mxu0 0.0
    %4152 = vmatpush1.msra.mxu0 0.0
    %4153 = vmatprep.subr.mxu0 0.0
    %4154 = vmatpush1.msra.mxu0 0.0
    %4155 = vmatprep.subr.mxu0 0.0
    %4156 = vmatpush1.msra.mxu0 0.0
    %4157 = vmatprep.subr.mxu0 0.0
    %4158 = vmatpush1.msra.mxu0 0.0
    %4159 = vmatprep.subr.mxu0 0.0
    %4160 = vmatpush1.msra.mxu0 0.0
    %4161 = vmatprep.subr.mxu0 0.0
    %4162 = vmatpush1.msra.mxu0 0.0
    %4163 = vmatprep.subr.mxu0 0.0
    %4164 = vmatpush1.msra.mxu0 0.0
    %4165 = vmatprep.subr.mxu0 0.0
    %4166 = vmatpush1.msra.mxu0 0.0
    %4167 = vmatprep.subr.mxu0 0.0
    %4168 = vmatpush1.msra.mxu0 0.0
    %4169 = vmatprep.subr.mxu0 0.0
    %4170 = vmatpush1.msra.mxu0 0.0
    %4171 = vmatprep.subr.mxu0 0.0
    %4172 = vmatpush1.msra.mxu0 0.0
    %4173 = vmatprep.subr.mxu0 0.0
    %4174 = vmatpush1.msra.mxu0 0.0
    %4175 = vmatprep.subr.mxu0 0.0
    %4176 = vmatpush1.msra.mxu0 0.0
    %4177 = vmatprep.mubr.f32.mxu0 0.0
    %4178 = vmatmul.mubr.f32.gmra.mrb[0].mxu0 %v1663
    %v4179 = vpop.f32.mrb[0].mxu0
    %v4180 = vadd.f32 0.0, %v4179
    %v4181 = vpop.f32.mrb[0].mxu0
    %4182 = vmatprep.mubr.f32.mxu0 0.0
    %4183 = vmatmul.mubr.f32.gmra.mrb[0].mxu0 %v1666
    %v4184 = vpop.f32.mrb[0].mxu0
    %v4185 = vadd.f32 0.0, %v4184
    %v4186 = vpop.f32.mrb[0].mxu0
    %4187 = vmatprep.mubr.f32.mxu0 0.0
    %4188 = vmatmul.mubr.f32.gmra.mrb[0].mxu0 %v1669
    %v4189 = vpop.f32.mrb[0].mxu0
    %v4190 = vadd.f32 0.0, %v4189
    %v4191 = vpop.f32.mrb[0].mxu0
    %4192 = vmatprep.mubr.f32.mxu0 0.0
    %4193 = vmatmul.mubr.f32.gmra.mrb[0].mxu0 %v1672
    %v4194 = vpop.f32.mrb[0].mxu0
    %v4195 = vadd.f32 0.0, %v4194
    %v4196 = vpop.f32.mrb[0].mxu0
    %4197 = vdwg.mxu0
    %s4198 = scalar_lea.vmem %s17, 18
    %v4199 = vld [vmem:[%s4198] sm:$0x1]
    %v4201 = vlaneseq
    %v4202 = vshrl.u32 %v4201, 7
    %v4203 = vsub.s32 0, %v4202
    %v4204 = vrot.slane %v4199, %v4203
    %v4206 = vmul.f32 %v4180, %v4204
    %v4207 = vmul.f32 %v4185, %v4204
    %v4208 = vmul.f32 %v4190, %v4204
    %v4209 = vmul.f32 %v4195, %v4204
    %v4210 = vadd.f32 %v4109, %v4206
    %v4211 = vadd.f32 %v4110, %v4207
    %v4212 = vadd.f32 %v4111, %v4208
    %v4213 = vadd.f32 %v4112, %v4209
    %4214 = vmatprep.subr.mxu0 0.0
    %4215 = vmatpush1.msra.mxu0 %v2089
    %4216 = vmatprep.subr.mxu0 0.0
    %4217 = vmatpush1.msra.mxu0 %v2090
    %4218 = vmatprep.subr.mxu0 0.0
    %4219 = vmatpush1.msra.mxu0 %v2091
    %4220 = vmatprep.subr.mxu0 0.0
    %4221 = vmatpush1.msra.mxu0 %v2092
    %4222 = vmatprep.subr.mxu0 0.0
    %4223 = vmatpush1.msra.mxu0 0.0
    %4224 = vmatprep.subr.mxu0 0.0
    %4225 = vmatpush1.msra.mxu0 0.0
    %4226 = vmatprep.subr.mxu0 0.0
    %4227 = vmatpush1.msra.mxu0 0.0
    %4228 = vmatprep.subr.mxu0 0.0
    %4229 = vmatpush1.msra.mxu0 0.0
    %4230 = vmatprep.subr.mxu0 0.0
    %4231 = vmatpush1.msra.mxu0 0.0
    %4232 = vmatprep.subr.mxu0 0.0
    %4233 = vmatpush1.msra.mxu0 0.0
    %4234 = vmatprep.subr.mxu0 0.0
    %4235 = vmatpush1.msra.mxu0 0.0
    %4236 = vmatprep.subr.mxu0 0.0
    %4237 = vmatpush1.msra.mxu0 0.0
    %4238 = vmatprep.subr.mxu0 0.0
    %4239 = vmatpush1.msra.mxu0 0.0
    %4240 = vmatprep.subr.mxu0 0.0
    %4241 = vmatpush1.msra.mxu0 0.0
    %4242 = vmatprep.subr.mxu0 0.0
    %4243 = vmatpush1.msra.mxu0 0.0
    %4244 = vmatprep.subr.mxu0 0.0
    %4245 = vmatpush1.msra.mxu0 0.0
    %4246 = vmatprep.subr.mxu0 0.0
    %4247 = vmatpush1.msra.mxu0 0.0
    %4248 = vmatprep.subr.mxu0 0.0
    %4249 = vmatpush1.msra.mxu0 0.0
    %4250 = vmatprep.subr.mxu0 0.0
    %4251 = vmatpush1.msra.mxu0 0.0
    %4252 = vmatprep.subr.mxu0 0.0
    %4253 = vmatpush1.msra.mxu0 0.0
    %4254 = vmatprep.subr.mxu0 0.0
    %4255 = vmatpush1.msra.mxu0 0.0
    %4256 = vmatprep.subr.mxu0 0.0
    %4257 = vmatpush1.msra.mxu0 0.0
    %4258 = vmatprep.subr.mxu0 0.0
    %4259 = vmatpush1.msra.mxu0 0.0
    %4260 = vmatprep.subr.mxu0 0.0
    %4261 = vmatpush1.msra.mxu0 0.0
    %4262 = vmatprep.subr.mxu0 0.0
    %4263 = vmatpush1.msra.mxu0 0.0
    %4264 = vmatprep.subr.mxu0 0.0
    %4265 = vmatpush1.msra.mxu0 0.0
    %4266 = vmatprep.subr.mxu0 0.0
    %4267 = vmatpush1.msra.mxu0 0.0
    %4268 = vmatprep.subr.mxu0 0.0
    %4269 = vmatpush1.msra.mxu0 0.0
    %4270 = vmatprep.subr.mxu0 0.0
    %4271 = vmatpush1.msra.mxu0 0.0
    %4272 = vmatprep.subr.mxu0 0.0
    %4273 = vmatpush1.msra.mxu0 0.0
    %4274 = vmatprep.subr.mxu0 0.0
    %4275 = vmatpush1.msra.mxu0 0.0
    %4276 = vmatprep.subr.mxu0 0.0
    %4277 = vmatpush1.msra.mxu0 0.0
    %4278 = vmatprep.mubr.f32.mxu0 0.0
    %4279 = vmatmul.mubr.f32.gmra.mrb[0].mxu0 %v1868
    %v4280 = vpop.f32.mrb[0].mxu0
    %v4281 = vadd.f32 0.0, %v4280
    %v4282 = vpop.f32.mrb[0].mxu0
    %4283 = vmatprep.mubr.f32.mxu0 0.0
    %4284 = vmatmul.mubr.f32.gmra.mrb[0].mxu0 %v1871
    %v4285 = vpop.f32.mrb[0].mxu0
    %v4286 = vadd.f32 0.0, %v4285
    %v4287 = vpop.f32.mrb[0].mxu0
    %4288 = vmatprep.mubr.f32.mxu0 0.0
    %4289 = vmatmul.mubr.f32.gmra.mrb[0].mxu0 %v1874
    %v4290 = vpop.f32.mrb[0].mxu0
    %v4291 = vadd.f32 0.0, %v4290
    %v4292 = vpop.f32.mrb[0].mxu0
    %4293 = vmatprep.mubr.f32.mxu0 0.0
    %4294 = vmatmul.mubr.f32.gmra.mrb[0].mxu0 %v1877
    %v4295 = vpop.f32.mrb[0].mxu0
    %v4296 = vadd.f32 0.0, %v4295
    %v4297 = vpop.f32.mrb[0].mxu0
    %4298 = vdwg.mxu0
    %s4299 = scalar_lea.vmem %s17, 19
    %v4300 = vld [vmem:[%s4299] sm:$0x1]
    %v4302 = vlaneseq
    %v4303 = vshrl.u32 %v4302, 7
    %v4304 = vsub.s32 0, %v4303
    %v4305 = vrot.slane %v4300, %v4304
    %v4307 = vmul.f32 %v4281, %v4305
    %v4308 = vmul.f32 %v4286, %v4305
    %v4309 = vmul.f32 %v4291, %v4305
    %v4310 = vmul.f32 %v4296, %v4305
    %v4311 = vadd.f32 %v4210, %v4307
    %v4312 = vadd.f32 %v4211, %v4308
    %v4313 = vadd.f32 %v4212, %v4309
    %v4314 = vadd.f32 %v4213, %v4310
    %s4315 = scalar_lea.vmem [#allocation7], 640
    %v4316 = vld [vmem:[%s4315] sm:$0xff]
    %v4317 = vld [vmem:[%s4315 + $0x8] sm:$0xff]
    %v4318 = vld [vmem:[%s4315 + $0x10] sm:$0xff]
    %v4319 = vld [vmem:[%s4315 + $0x18] sm:$0xff]
    %v4321 = vsel %vm440, %v4316, 0
    %v4324 = vsel %vm440, %v4317, 0
    %v4327 = vsel %vm440, %v4318, 0
    %v4330 = vsel %vm440, %v4319, 0
    %4332 = vmatprep.subr.mxu0 0.0
    %4333 = vmatpush1.msra.mxu0 %v2089
    %4334 = vmatprep.subr.mxu0 0.0
    %4335 = vmatpush1.msra.mxu0 %v2090
    %4336 = vmatprep.subr.mxu0 0.0
    %4337 = vmatpush1.msra.mxu0 %v2091
    %4338 = vmatprep.subr.mxu0 0.0
    %4339 = vmatpush1.msra.mxu0 %v2092
    %4340 = vmatprep.subr.mxu0 0.0
    %4341 = vmatpush1.msra.mxu0 0.0
    %4342 = vmatprep.subr.mxu0 0.0
    %4343 = vmatpush1.msra.mxu0 0.0
    %4344 = vmatprep.subr.mxu0 0.0
    %4345 = vmatpush1.msra.mxu0 0.0
    %4346 = vmatprep.subr.mxu0 0.0
    %4347 = vmatpush1.msra.mxu0 0.0
    %4348 = vmatprep.subr.mxu0 0.0
    %4349 = vmatpush1.msra.mxu0 0.0
    %4350 = vmatprep.subr.mxu0 0.0
    %4351 = vmatpush1.msra.mxu0 0.0
    %4352 = vmatprep.subr.mxu0 0.0
    %4353 = vmatpush1.msra.mxu0 0.0
    %4354 = vmatprep.subr.mxu0 0.0
    %4355 = vmatpush1.msra.mxu0 0.0
    %4356 = vmatprep.subr.mxu0 0.0
    %4357 = vmatpush1.msra.mxu0 0.0
    %4358 = vmatprep.subr.mxu0 0.0
    %4359 = vmatpush1.msra.mxu0 0.0
    %4360 = vmatprep.subr.mxu0 0.0
    %4361 = vmatpush1.msra.mxu0 0.0
    %4362 = vmatprep.subr.mxu0 0.0
    %4363 = vmatpush1.msra.mxu0 0.0
    %4364 = vmatprep.subr.mxu0 0.0
    %4365 = vmatpush1.msra.mxu0 0.0
    %4366 = vmatprep.subr.mxu0 0.0
    %4367 = vmatpush1.msra.mxu0 0.0
    %4368 = vmatprep.subr.mxu0 0.0
    %4369 = vmatpush1.msra.mxu0 0.0
    %4370 = vmatprep.subr.mxu0 0.0
    %4371 = vmatpush1.msra.mxu0 0.0
    %4372 = vmatprep.subr.mxu0 0.0
    %4373 = vmatpush1.msra.mxu0 0.0
    %4374 = vmatprep.subr.mxu0 0.0
    %4375 = vmatpush1.msra.mxu0 0.0
    %4376 = vmatprep.subr.mxu0 0.0
    %4377 = vmatpush1.msra.mxu0 0.0
    %4378 = vmatprep.subr.mxu0 0.0
    %4379 = vmatpush1.msra.mxu0 0.0
    %4380 = vmatprep.subr.mxu0 0.0
    %4381 = vmatpush1.msra.mxu0 0.0
    %4382 = vmatprep.subr.mxu0 0.0
    %4383 = vmatpush1.msra.mxu0 0.0
    %4384 = vmatprep.subr.mxu0 0.0
    %4385 = vmatpush1.msra.mxu0 0.0
    %4386 = vmatprep.subr.mxu0 0.0
    %4387 = vmatpush1.msra.mxu0 0.0
    %4388 = vmatprep.subr.mxu0 0.0
    %4389 = vmatpush1.msra.mxu0 0.0
    %4390 = vmatprep.subr.mxu0 0.0
    %4391 = vmatpush1.msra.mxu0 0.0
    %4392 = vmatprep.subr.mxu0 0.0
    %4393 = vmatpush1.msra.mxu0 0.0
    %4394 = vmatprep.subr.mxu0 0.0
    %4395 = vmatpush1.msra.mxu0 0.0
    %4396 = vmatprep.mubr.f32.mxu0 0.0
    %4397 = vmatmul.mubr.f32.gmra.mrb[0].mxu0 %v4321
    %v4398 = vpop.f32.mrb[0].mxu0
    %v4399 = vadd.f32 0.0, %v4398
    %v4400 = vpop.f32.mrb[0].mxu0
    %4401 = vmatprep.mubr.f32.mxu0 0.0
    %4402 = vmatmul.mubr.f32.gmra.mrb[0].mxu0 %v4324
    %v4403 = vpop.f32.mrb[0].mxu0
    %v4404 = vadd.f32 0.0, %v4403
    %v4405 = vpop.f32.mrb[0].mxu0
    %4406 = vmatprep.mubr.f32.mxu0 0.0
    %4407 = vmatmul.mubr.f32.gmra.mrb[0].mxu0 %v4327
    %v4408 = vpop.f32.mrb[0].mxu0
    %v4409 = vadd.f32 0.0, %v4408
    %v4410 = vpop.f32.mrb[0].mxu0
    %4411 = vmatprep.mubr.f32.mxu0 0.0
    %4412 = vmatmul.mubr.f32.gmra.mrb[0].mxu0 %v4330
    %v4413 = vpop.f32.mrb[0].mxu0
    %v4414 = vadd.f32 0.0, %v4413
    %v4415 = vpop.f32.mrb[0].mxu0
    %4416 = vdwg.mxu0
    %s4417 = scalar_lea.vmem %s17, 20
    %v4418 = vld [vmem:[%s4417] sm:$0x1]
    %v4420 = vlaneseq
    %v4421 = vshrl.u32 %v4420, 7
    %v4422 = vsub.s32 0, %v4421
    %v4423 = vrot.slane %v4418, %v4422
    %v4425 = vmul.f32 %v4399, %v4423
    %v4426 = vmul.f32 %v4404, %v4423
    %v4427 = vmul.f32 %v4409, %v4423
    %v4428 = vmul.f32 %v4414, %v4423
    %v4429 = vadd.f32 %v4311, %v4425
    %v4430 = vadd.f32 %v4312, %v4426
    %v4431 = vadd.f32 %v4313, %v4427
    %v4432 = vadd.f32 %v4314, %v4428
    %s4433 = scalar_lea.vmem [#allocation7], 672
    %v4434 = vld [vmem:[%s4433] sm:$0xff]
    %v4435 = vld [vmem:[%s4433 + $0x8] sm:$0xff]
    %v4436 = vld [vmem:[%s4433 + $0x10] sm:$0xff]
    %v4437 = vld [vmem:[%s4433 + $0x18] sm:$0xff]
    %v4439 = vsel %vm440, %v4434, 0
    %v4442 = vsel %vm440, %v4435, 0
    %v4445 = vsel %vm440, %v4436, 0
    %v4448 = vsel %vm440, %v4437, 0
    %4450 = vmatprep.subr.mxu0 0.0
    %4451 = vmatpush1.msra.mxu0 %v2089
    %4452 = vmatprep.subr.mxu0 0.0
    %4453 = vmatpush1.msra.mxu0 %v2090
    %4454 = vmatprep.subr.mxu0 0.0
    %4455 = vmatpush1.msra.mxu0 %v2091
    %4456 = vmatprep.subr.mxu0 0.0
    %4457 = vmatpush1.msra.mxu0 %v2092
    %4458 = vmatprep.subr.mxu0 0.0
    %4459 = vmatpush1.msra.mxu0 0.0
    %4460 = vmatprep.subr.mxu0 0.0
    %4461 = vmatpush1.msra.mxu0 0.0
    %4462 = vmatprep.subr.mxu0 0.0
    %4463 = vmatpush1.msra.mxu0 0.0
    %4464 = vmatprep.subr.mxu0 0.0
    %4465 = vmatpush1.msra.mxu0 0.0
    %4466 = vmatprep.subr.mxu0 0.0
    %4467 = vmatpush1.msra.mxu0 0.0
    %4468 = vmatprep.subr.mxu0 0.0
    %4469 = vmatpush1.msra.mxu0 0.0
    %4470 = vmatprep.subr.mxu0 0.0
    %4471 = vmatpush1.msra.mxu0 0.0
    %4472 = vmatprep.subr.mxu0 0.0
    %4473 = vmatpush1.msra.mxu0 0.0
    %4474 = vmatprep.subr.mxu0 0.0
    %4475 = vmatpush1.msra.mxu0 0.0
    %4476 = vmatprep.subr.mxu0 0.0
    %4477 = vmatpush1.msra.mxu0 0.0
    %4478 = vmatprep.subr.mxu0 0.0
    %4479 = vmatpush1.msra.mxu0 0.0
    %4480 = vmatprep.subr.mxu0 0.0
    %4481 = vmatpush1.msra.mxu0 0.0
    %4482 = vmatprep.subr.mxu0 0.0
    %4483 = vmatpush1.msra.mxu0 0.0
    %4484 = vmatprep.subr.mxu0 0.0
    %4485 = vmatpush1.msra.mxu0 0.0
    %4486 = vmatprep.subr.mxu0 0.0
    %4487 = vmatpush1.msra.mxu0 0.0
    %4488 = vmatprep.subr.mxu0 0.0
    %4489 = vmatpush1.msra.mxu0 0.0
    %4490 = vmatprep.subr.mxu0 0.0
    %4491 = vmatpush1.msra.mxu0 0.0
    %4492 = vmatprep.subr.mxu0 0.0
    %4493 = vmatpush1.msra.mxu0 0.0
    %4494 = vmatprep.subr.mxu0 0.0
    %4495 = vmatpush1.msra.mxu0 0.0
    %4496 = vmatprep.subr.mxu0 0.0
    %4497 = vmatpush1.msra.mxu0 0.0
    %4498 = vmatprep.subr.mxu0 0.0
    %4499 = vmatpush1.msra.mxu0 0.0
    %4500 = vmatprep.subr.mxu0 0.0
    %4501 = vmatpush1.msra.mxu0 0.0
    %4502 = vmatprep.subr.mxu0 0.0
    %4503 = vmatpush1.msra.mxu0 0.0
    %4504 = vmatprep.subr.mxu0 0.0
    %4505 = vmatpush1.msra.mxu0 0.0
    %4506 = vmatprep.subr.mxu0 0.0
    %4507 = vmatpush1.msra.mxu0 0.0
    %4508 = vmatprep.subr.mxu0 0.0
    %4509 = vmatpush1.msra.mxu0 0.0
    %4510 = vmatprep.subr.mxu0 0.0
    %4511 = vmatpush1.msra.mxu0 0.0
    %4512 = vmatprep.subr.mxu0 0.0
    %4513 = vmatpush1.msra.mxu0 0.0
    %4514 = vmatprep.mubr.f32.mxu0 0.0
    %4515 = vmatmul.mubr.f32.gmra.mrb[0].mxu0 %v4439
    %v4516 = vpop.f32.mrb[0].mxu0
    %v4517 = vadd.f32 0.0, %v4516
    %v4518 = vpop.f32.mrb[0].mxu0
    %4519 = vmatprep.mubr.f32.mxu0 0.0
    %4520 = vmatmul.mubr.f32.gmra.mrb[0].mxu0 %v4442
    %v4521 = vpop.f32.mrb[0].mxu0
    %v4522 = vadd.f32 0.0, %v4521
    %v4523 = vpop.f32.mrb[0].mxu0
    %4524 = vmatprep.mubr.f32.mxu0 0.0
    %4525 = vmatmul.mubr.f32.gmra.mrb[0].mxu0 %v4445
    %v4526 = vpop.f32.mrb[0].mxu0
    %v4527 = vadd.f32 0.0, %v4526
    %v4528 = vpop.f32.mrb[0].mxu0
    %4529 = vmatprep.mubr.f32.mxu0 0.0
    %4530 = vmatmul.mubr.f32.gmra.mrb[0].mxu0 %v4448
    %v4531 = vpop.f32.mrb[0].mxu0
    %v4532 = vadd.f32 0.0, %v4531
    %v4533 = vpop.f32.mrb[0].mxu0
    %4534 = vdwg.mxu0
    %s4535 = scalar_lea.vmem %s17, 21
    %v4536 = vld [vmem:[%s4535] sm:$0x1]
    %v4538 = vlaneseq
    %v4539 = vshrl.u32 %v4538, 7
    %v4540 = vsub.s32 0, %v4539
    %v4541 = vrot.slane %v4536, %v4540
    %v4543 = vmul.f32 %v4517, %v4541
    %v4544 = vmul.f32 %v4522, %v4541
    %v4545 = vmul.f32 %v4527, %v4541
    %v4546 = vmul.f32 %v4532, %v4541
    %v4547 = vadd.f32 %v4429, %v4543
    %v4548 = vadd.f32 %v4430, %v4544
    %v4549 = vadd.f32 %v4431, %v4545
    %v4550 = vadd.f32 %v4432, %v4546
    %s4551 = scalar_lea.vmem [#allocation7], 704
    %v4552 = vld [vmem:[%s4551] sm:$0xff]
    %v4553 = vld [vmem:[%s4551 + $0x8] sm:$0xff]
    %v4554 = vld [vmem:[%s4551 + $0x10] sm:$0xff]
    %v4555 = vld [vmem:[%s4551 + $0x18] sm:$0xff]
    %v4557 = vsel %vm440, %v4552, 0
    %v4560 = vsel %vm440, %v4553, 0
    %v4563 = vsel %vm440, %v4554, 0
    %v4566 = vsel %vm440, %v4555, 0
    %4568 = vmatprep.subr.mxu0 0.0
    %4569 = vmatpush1.msra.mxu0 %v2089
    %4570 = vmatprep.subr.mxu0 0.0
    %4571 = vmatpush1.msra.mxu0 %v2090
    %4572 = vmatprep.subr.mxu0 0.0
    %4573 = vmatpush1.msra.mxu0 %v2091
    %4574 = vmatprep.subr.mxu0 0.0
    %4575 = vmatpush1.msra.mxu0 %v2092
    %4576 = vmatprep.subr.mxu0 0.0
    %4577 = vmatpush1.msra.mxu0 0.0
    %4578 = vmatprep.subr.mxu0 0.0
    %4579 = vmatpush1.msra.mxu0 0.0
    %4580 = vmatprep.subr.mxu0 0.0
    %4581 = vmatpush1.msra.mxu0 0.0
    %4582 = vmatprep.subr.mxu0 0.0
    %4583 = vmatpush1.msra.mxu0 0.0
    %4584 = vmatprep.subr.mxu0 0.0
    %4585 = vmatpush1.msra.mxu0 0.0
    %4586 = vmatprep.subr.mxu0 0.0
    %4587 = vmatpush1.msra.mxu0 0.0
    %4588 = vmatprep.subr.mxu0 0.0
    %4589 = vmatpush1.msra.mxu0 0.0
    %4590 = vmatprep.subr.mxu0 0.0
    %4591 = vmatpush1.msra.mxu0 0.0
    %4592 = vmatprep.subr.mxu0 0.0
    %4593 = vmatpush1.msra.mxu0 0.0
    %4594 = vmatprep.subr.mxu0 0.0
    %4595 = vmatpush1.msra.mxu0 0.0
    %4596 = vmatprep.subr.mxu0 0.0
    %4597 = vmatpush1.msra.mxu0 0.0
    %4598 = vmatprep.subr.mxu0 0.0
    %4599 = vmatpush1.msra.mxu0 0.0
    %4600 = vmatprep.subr.mxu0 0.0
    %4601 = vmatpush1.msra.mxu0 0.0
    %4602 = vmatprep.subr.mxu0 0.0
    %4603 = vmatpush1.msra.mxu0 0.0
    %4604 = vmatprep.subr.mxu0 0.0
    %4605 = vmatpush1.msra.mxu0 0.0
    %4606 = vmatprep.subr.mxu0 0.0
    %4607 = vmatpush1.msra.mxu0 0.0
    %4608 = vmatprep.subr.mxu0 0.0
    %4609 = vmatpush1.msra.mxu0 0.0
    %4610 = vmatprep.subr.mxu0 0.0
    %4611 = vmatpush1.msra.mxu0 0.0
    %4612 = vmatprep.subr.mxu0 0.0
    %4613 = vmatpush1.msra.mxu0 0.0
    %4614 = vmatprep.subr.mxu0 0.0
    %4615 = vmatpush1.msra.mxu0 0.0
    %4616 = vmatprep.subr.mxu0 0.0
    %4617 = vmatpush1.msra.mxu0 0.0
    %4618 = vmatprep.subr.mxu0 0.0
    %4619 = vmatpush1.msra.mxu0 0.0
    %4620 = vmatprep.subr.mxu0 0.0
    %4621 = vmatpush1.msra.mxu0 0.0
    %4622 = vmatprep.subr.mxu0 0.0
    %4623 = vmatpush1.msra.mxu0 0.0
    %4624 = vmatprep.subr.mxu0 0.0
    %4625 = vmatpush1.msra.mxu0 0.0
    %4626 = vmatprep.subr.mxu0 0.0
    %4627 = vmatpush1.msra.mxu0 0.0
    %4628 = vmatprep.subr.mxu0 0.0
    %4629 = vmatpush1.msra.mxu0 0.0
    %4630 = vmatprep.subr.mxu0 0.0
    %4631 = vmatpush1.msra.mxu0 0.0
    %4632 = vmatprep.mubr.f32.mxu0 0.0
    %4633 = vmatmul.mubr.f32.gmra.mrb[0].mxu0 %v4557
    %v4634 = vpop.f32.mrb[0].mxu0
    %v4635 = vadd.f32 0.0, %v4634
    %v4636 = vpop.f32.mrb[0].mxu0
    %4637 = vmatprep.mubr.f32.mxu0 0.0
    %4638 = vmatmul.mubr.f32.gmra.mrb[0].mxu0 %v4560
    %v4639 = vpop.f32.mrb[0].mxu0
    %v4640 = vadd.f32 0.0, %v4639
    %v4641 = vpop.f32.mrb[0].mxu0
    %4642 = vmatprep.mubr.f32.mxu0 0.0
    %4643 = vmatmul.mubr.f32.gmra.mrb[0].mxu0 %v4563
    %v4644 = vpop.f32.mrb[0].mxu0
    %v4645 = vadd.f32 0.0, %v4644
    %v4646 = vpop.f32.mrb[0].mxu0
    %4647 = vmatprep.mubr.f32.mxu0 0.0
    %4648 = vmatmul.mubr.f32.gmra.mrb[0].mxu0 %v4566
    %v4649 = vpop.f32.mrb[0].mxu0
    %v4650 = vadd.f32 0.0, %v4649
    %v4651 = vpop.f32.mrb[0].mxu0
    %4652 = vdwg.mxu0
    %s4653 = scalar_lea.vmem %s17, 22
    %v4654 = vld [vmem:[%s4653] sm:$0x1]
    %v4656 = vlaneseq
    %v4657 = vshrl.u32 %v4656, 7
    %v4658 = vsub.s32 0, %v4657
    %v4659 = vrot.slane %v4654, %v4658
    %v4661 = vmul.f32 %v4635, %v4659
    %v4662 = vmul.f32 %v4640, %v4659
    %v4663 = vmul.f32 %v4645, %v4659
    %v4664 = vmul.f32 %v4650, %v4659
    %v4665 = vadd.f32 %v4547, %v4661
    %v4666 = vadd.f32 %v4548, %v4662
    %v4667 = vadd.f32 %v4549, %v4663
    %v4668 = vadd.f32 %v4550, %v4664
    %s4669 = scalar_lea.vmem [#allocation7], 736
    %v4670 = vld [vmem:[%s4669] sm:$0xff]
    %v4671 = vld [vmem:[%s4669 + $0x8] sm:$0xff]
    %v4672 = vld [vmem:[%s4669 + $0x10] sm:$0xff]
    %v4673 = vld [vmem:[%s4669 + $0x18] sm:$0xff]
    %v4675 = vsel %vm440, %v4670, 0
    %v4678 = vsel %vm440, %v4671, 0
    %v4681 = vsel %vm440, %v4672, 0
    %v4684 = vsel %vm440, %v4673, 0
    %4686 = vmatprep.subr.mxu0 0.0
    %4687 = vmatpush1.msra.mxu0 %v2089
    %4688 = vmatprep.subr.mxu0 0.0
    %4689 = vmatpush1.msra.mxu0 %v2090
    %4690 = vmatprep.subr.mxu0 0.0
    %4691 = vmatpush1.msra.mxu0 %v2091
    %4692 = vmatprep.subr.mxu0 0.0
    %4693 = vmatpush1.msra.mxu0 %v2092
    %4694 = vmatprep.subr.mxu0 0.0
    %4695 = vmatpush1.msra.mxu0 0.0
    %4696 = vmatprep.subr.mxu0 0.0
    %4697 = vmatpush1.msra.mxu0 0.0
    %4698 = vmatprep.subr.mxu0 0.0
    %4699 = vmatpush1.msra.mxu0 0.0
    %4700 = vmatprep.subr.mxu0 0.0
    %4701 = vmatpush1.msra.mxu0 0.0
    %4702 = vmatprep.subr.mxu0 0.0
    %4703 = vmatpush1.msra.mxu0 0.0
    %4704 = vmatprep.subr.mxu0 0.0
    %4705 = vmatpush1.msra.mxu0 0.0
    %4706 = vmatprep.subr.mxu0 0.0
    %4707 = vmatpush1.msra.mxu0 0.0
    %4708 = vmatprep.subr.mxu0 0.0
    %4709 = vmatpush1.msra.mxu0 0.0
    %4710 = vmatprep.subr.mxu0 0.0
    %4711 = vmatpush1.msra.mxu0 0.0
    %4712 = vmatprep.subr.mxu0 0.0
    %4713 = vmatpush1.msra.mxu0 0.0
    %4714 = vmatprep.subr.mxu0 0.0
    %4715 = vmatpush1.msra.mxu0 0.0
    %4716 = vmatprep.subr.mxu0 0.0
    %4717 = vmatpush1.msra.mxu0 0.0
    %4718 = vmatprep.subr.mxu0 0.0
    %4719 = vmatpush1.msra.mxu0 0.0
    %4720 = vmatprep.subr.mxu0 0.0
    %4721 = vmatpush1.msra.mxu0 0.0
    %4722 = vmatprep.subr.mxu0 0.0
    %4723 = vmatpush1.msra.mxu0 0.0
    %4724 = vmatprep.subr.mxu0 0.0
    %4725 = vmatpush1.msra.mxu0 0.0
    %4726 = vmatprep.subr.mxu0 0.0
    %4727 = vmatpush1.msra.mxu0 0.0
    %4728 = vmatprep.subr.mxu0 0.0
    %4729 = vmatpush1.msra.mxu0 0.0
    %4730 = vmatprep.subr.mxu0 0.0
    %4731 = vmatpush1.msra.mxu0 0.0
    %4732 = vmatprep.subr.mxu0 0.0
    %4733 = vmatpush1.msra.mxu0 0.0
    %4734 = vmatprep.subr.mxu0 0.0
    %4735 = vmatpush1.msra.mxu0 0.0
    %4736 = vmatprep.subr.mxu0 0.0
    %4737 = vmatpush1.msra.mxu0 0.0
    %4738 = vmatprep.subr.mxu0 0.0
    %4739 = vmatpush1.msra.mxu0 0.0
    %4740 = vmatprep.subr.mxu0 0.0
    %4741 = vmatpush1.msra.mxu0 0.0
    %4742 = vmatprep.subr.mxu0 0.0
    %4743 = vmatpush1.msra.mxu0 0.0
    %4744 = vmatprep.subr.mxu0 0.0
    %4745 = vmatpush1.msra.mxu0 0.0
    %4746 = vmatprep.subr.mxu0 0.0
    %4747 = vmatpush1.msra.mxu0 0.0
    %4748 = vmatprep.subr.mxu0 0.0
    %4749 = vmatpush1.msra.mxu0 0.0
    %4750 = vmatprep.mubr.f32.mxu0 0.0
    %4751 = vmatmul.mubr.f32.gmra.mrb[0].mxu0 %v4675
    %v4752 = vpop.f32.mrb[0].mxu0
    %v4753 = vadd.f32 0.0, %v4752
    %v4754 = vpop.f32.mrb[0].mxu0
    %4755 = vmatprep.mubr.f32.mxu0 0.0
    %4756 = vmatmul.mubr.f32.gmra.mrb[0].mxu0 %v4678
    %v4757 = vpop.f32.mrb[0].mxu0
    %v4758 = vadd.f32 0.0, %v4757
    %v4759 = vpop.f32.mrb[0].mxu0
    %4760 = vmatprep.mubr.f32.mxu0 0.0
    %4761 = vmatmul.mubr.f32.gmra.mrb[0].mxu0 %v4681
    %v4762 = vpop.f32.mrb[0].mxu0
    %v4763 = vadd.f32 0.0, %v4762
    %v4764 = vpop.f32.mrb[0].mxu0
    %4765 = vmatprep.mubr.f32.mxu0 0.0
    %4766 = vmatmul.mubr.f32.gmra.mrb[0].mxu0 %v4684
    %v4767 = vpop.f32.mrb[0].mxu0
    %v4768 = vadd.f32 0.0, %v4767
    %v4769 = vpop.f32.mrb[0].mxu0
    %4770 = vdwg.mxu0
    %s4771 = scalar_lea.vmem %s17, 23
    %v4772 = vld [vmem:[%s4771] sm:$0x1]
    %v4774 = vlaneseq
    %v4775 = vshrl.u32 %v4774, 7
    %v4776 = vsub.s32 0, %v4775
    %v4777 = vrot.slane %v4772, %v4776
    %v4779 = vmul.f32 %v4753, %v4777
    %v4780 = vmul.f32 %v4758, %v4777
    %v4781 = vmul.f32 %v4763, %v4777
    %v4782 = vmul.f32 %v4768, %v4777
    %v4783 = vadd.f32 %v4665, %v4779
    %v4784 = vadd.f32 %v4666, %v4780
    %v4785 = vadd.f32 %v4667, %v4781
    %v4786 = vadd.f32 %v4668, %v4782
    %s4787 = scalar_lea.vmem [#allocation7], 768
    %v4788 = vld [vmem:[%s4787] sm:$0xff]
    %v4789 = vld [vmem:[%s4787 + $0x8] sm:$0xff]
    %v4790 = vld [vmem:[%s4787 + $0x10] sm:$0xff]
    %v4791 = vld [vmem:[%s4787 + $0x18] sm:$0xff]
    %v4793 = vsel %vm440, %v4788, 0
    %v4796 = vsel %vm440, %v4789, 0
    %v4799 = vsel %vm440, %v4790, 0
    %v4802 = vsel %vm440, %v4791, 0
    %4804 = vmatprep.subr.mxu0 0.0
    %4805 = vmatpush1.msra.mxu0 %v2089
    %4806 = vmatprep.subr.mxu0 0.0
    %4807 = vmatpush1.msra.mxu0 %v2090
    %4808 = vmatprep.subr.mxu0 0.0
    %4809 = vmatpush1.msra.mxu0 %v2091
    %4810 = vmatprep.subr.mxu0 0.0
    %4811 = vmatpush1.msra.mxu0 %v2092
    %4812 = vmatprep.subr.mxu0 0.0
    %4813 = vmatpush1.msra.mxu0 0.0
    %4814 = vmatprep.subr.mxu0 0.0
    %4815 = vmatpush1.msra.mxu0 0.0
    %4816 = vmatprep.subr.mxu0 0.0
    %4817 = vmatpush1.msra.mxu0 0.0
    %4818 = vmatprep.subr.mxu0 0.0
    %4819 = vmatpush1.msra.mxu0 0.0
    %4820 = vmatprep.subr.mxu0 0.0
    %4821 = vmatpush1.msra.mxu0 0.0
    %4822 = vmatprep.subr.mxu0 0.0
    %4823 = vmatpush1.msra.mxu0 0.0
    %4824 = vmatprep.subr.mxu0 0.0
    %4825 = vmatpush1.msra.mxu0 0.0
    %4826 = vmatprep.subr.mxu0 0.0
    %4827 = vmatpush1.msra.mxu0 0.0
    %4828 = vmatprep.subr.mxu0 0.0
    %4829 = vmatpush1.msra.mxu0 0.0
    %4830 = vmatprep.subr.mxu0 0.0
    %4831 = vmatpush1.msra.mxu0 0.0
    %4832 = vmatprep.subr.mxu0 0.0
    %4833 = vmatpush1.msra.mxu0 0.0
    %4834 = vmatprep.subr.mxu0 0.0
    %4835 = vmatpush1.msra.mxu0 0.0
    %4836 = vmatprep.subr.mxu0 0.0
    %4837 = vmatpush1.msra.mxu0 0.0
    %4838 = vmatprep.subr.mxu0 0.0
    %4839 = vmatpush1.msra.mxu0 0.0
    %4840 = vmatprep.subr.mxu0 0.0
    %4841 = vmatpush1.msra.mxu0 0.0
    %4842 = vmatprep.subr.mxu0 0.0
    %4843 = vmatpush1.msra.mxu0 0.0
    %4844 = vmatprep.subr.mxu0 0.0
    %4845 = vmatpush1.msra.mxu0 0.0
    %4846 = vmatprep.subr.mxu0 0.0
    %4847 = vmatpush1.msra.mxu0 0.0
    %4848 = vmatprep.subr.mxu0 0.0
    %4849 = vmatpush1.msra.mxu0 0.0
    %4850 = vmatprep.subr.mxu0 0.0
    %4851 = vmatpush1.msra.mxu0 0.0
    %4852 = vmatprep.subr.mxu0 0.0
    %4853 = vmatpush1.msra.mxu0 0.0
    %4854 = vmatprep.subr.mxu0 0.0
    %4855 = vmatpush1.msra.mxu0 0.0
    %4856 = vmatprep.subr.mxu0 0.0
    %4857 = vmatpush1.msra.mxu0 0.0
    %4858 = vmatprep.subr.mxu0 0.0
    %4859 = vmatpush1.msra.mxu0 0.0
    %4860 = vmatprep.subr.mxu0 0.0
    %4861 = vmatpush1.msra.mxu0 0.0
    %4862 = vmatprep.subr.mxu0 0.0
    %4863 = vmatpush1.msra.mxu0 0.0
    %4864 = vmatprep.subr.mxu0 0.0
    %4865 = vmatpush1.msra.mxu0 0.0
    %4866 = vmatprep.subr.mxu0 0.0
    %4867 = vmatpush1.msra.mxu0 0.0
    %4868 = vmatprep.mubr.f32.mxu0 0.0
    %4869 = vmatmul.mubr.f32.gmra.mrb[0].mxu0 %v4793
    %v4870 = vpop.f32.mrb[0].mxu0
    %v4871 = vadd.f32 0.0, %v4870
    %v4872 = vpop.f32.mrb[0].mxu0
    %4873 = vmatprep.mubr.f32.mxu0 0.0
    %4874 = vmatmul.mubr.f32.gmra.mrb[0].mxu0 %v4796
    %v4875 = vpop.f32.mrb[0].mxu0
    %v4876 = vadd.f32 0.0, %v4875
    %v4877 = vpop.f32.mrb[0].mxu0
    %4878 = vmatprep.mubr.f32.mxu0 0.0
    %4879 = vmatmul.mubr.f32.gmra.mrb[0].mxu0 %v4799
    %v4880 = vpop.f32.mrb[0].mxu0
    %v4881 = vadd.f32 0.0, %v4880
    %v4882 = vpop.f32.mrb[0].mxu0
    %4883 = vmatprep.mubr.f32.mxu0 0.0
    %4884 = vmatmul.mubr.f32.gmra.mrb[0].mxu0 %v4802
    %v4885 = vpop.f32.mrb[0].mxu0
    %v4886 = vadd.f32 0.0, %v4885
    %v4887 = vpop.f32.mrb[0].mxu0
    %4888 = vdwg.mxu0
    %s4889 = scalar_lea.vmem %s17, 24
    %v4890 = vld [vmem:[%s4889] sm:$0x1]
    %v4892 = vlaneseq
    %v4893 = vshrl.u32 %v4892, 7
    %v4894 = vsub.s32 0, %v4893
    %v4895 = vrot.slane %v4890, %v4894
    %v4897 = vmul.f32 %v4871, %v4895
    %v4898 = vmul.f32 %v4876, %v4895
    %v4899 = vmul.f32 %v4881, %v4895
    %v4900 = vmul.f32 %v4886, %v4895
    %v4901 = vadd.f32 %v4783, %v4897
    %v4902 = vadd.f32 %v4784, %v4898
    %v4903 = vadd.f32 %v4785, %v4899
    %v4904 = vadd.f32 %v4786, %v4900
    %s4905 = scalar_lea.vmem [#allocation7], 800
    %v4906 = vld [vmem:[%s4905] sm:$0xff]
    %v4907 = vld [vmem:[%s4905 + $0x8] sm:$0xff]
    %v4908 = vld [vmem:[%s4905 + $0x10] sm:$0xff]
    %v4909 = vld [vmem:[%s4905 + $0x18] sm:$0xff]
    %v4911 = vsel %vm440, %v4906, 0
    %v4914 = vsel %vm440, %v4907, 0
    %v4917 = vsel %vm440, %v4908, 0
    %v4920 = vsel %vm440, %v4909, 0
    %4922 = vmatprep.subr.mxu0 0.0
    %4923 = vmatpush1.msra.mxu0 %v2089
    %4924 = vmatprep.subr.mxu0 0.0
    %4925 = vmatpush1.msra.mxu0 %v2090
    %4926 = vmatprep.subr.mxu0 0.0
    %4927 = vmatpush1.msra.mxu0 %v2091
    %4928 = vmatprep.subr.mxu0 0.0
    %4929 = vmatpush1.msra.mxu0 %v2092
    %4930 = vmatprep.subr.mxu0 0.0
    %4931 = vmatpush1.msra.mxu0 0.0
    %4932 = vmatprep.subr.mxu0 0.0
    %4933 = vmatpush1.msra.mxu0 0.0
    %4934 = vmatprep.subr.mxu0 0.0
    %4935 = vmatpush1.msra.mxu0 0.0
    %4936 = vmatprep.subr.mxu0 0.0
    %4937 = vmatpush1.msra.mxu0 0.0
    %4938 = vmatprep.subr.mxu0 0.0
    %4939 = vmatpush1.msra.mxu0 0.0
    %4940 = vmatprep.subr.mxu0 0.0
    %4941 = vmatpush1.msra.mxu0 0.0
    %4942 = vmatprep.subr.mxu0 0.0
    %4943 = vmatpush1.msra.mxu0 0.0
    %4944 = vmatprep.subr.mxu0 0.0
    %4945 = vmatpush1.msra.mxu0 0.0
    %4946 = vmatprep.subr.mxu0 0.0
    %4947 = vmatpush1.msra.mxu0 0.0
    %4948 = vmatprep.subr.mxu0 0.0
    %4949 = vmatpush1.msra.mxu0 0.0
    %4950 = vmatprep.subr.mxu0 0.0
    %4951 = vmatpush1.msra.mxu0 0.0
    %4952 = vmatprep.subr.mxu0 0.0
    %4953 = vmatpush1.msra.mxu0 0.0
    %4954 = vmatprep.subr.mxu0 0.0
    %4955 = vmatpush1.msra.mxu0 0.0
    %4956 = vmatprep.subr.mxu0 0.0
    %4957 = vmatpush1.msra.mxu0 0.0
    %4958 = vmatprep.subr.mxu0 0.0
    %4959 = vmatpush1.msra.mxu0 0.0
    %4960 = vmatprep.subr.mxu0 0.0
    %4961 = vmatpush1.msra.mxu0 0.0
    %4962 = vmatprep.subr.mxu0 0.0
    %4963 = vmatpush1.msra.mxu0 0.0
    %4964 = vmatprep.subr.mxu0 0.0
    %4965 = vmatpush1.msra.mxu0 0.0
    %4966 = vmatprep.subr.mxu0 0.0
    %4967 = vmatpush1.msra.mxu0 0.0
    %4968 = vmatprep.subr.mxu0 0.0
    %4969 = vmatpush1.msra.mxu0 0.0
    %4970 = vmatprep.subr.mxu0 0.0
    %4971 = vmatpush1.msra.mxu0 0.0
    %4972 = vmatprep.subr.mxu0 0.0
    %4973 = vmatpush1.msra.mxu0 0.0
    %4974 = vmatprep.subr.mxu0 0.0
    %4975 = vmatpush1.msra.mxu0 0.0
    %4976 = vmatprep.subr.mxu0 0.0
    %4977 = vmatpush1.msra.mxu0 0.0
    %4978 = vmatprep.subr.mxu0 0.0
    %4979 = vmatpush1.msra.mxu0 0.0
    %4980 = vmatprep.subr.mxu0 0.0
    %4981 = vmatpush1.msra.mxu0 0.0
    %4982 = vmatprep.subr.mxu0 0.0
    %4983 = vmatpush1.msra.mxu0 0.0
    %4984 = vmatprep.subr.mxu0 0.0
    %4985 = vmatpush1.msra.mxu0 0.0
    %4986 = vmatprep.mubr.f32.mxu0 0.0
    %4987 = vmatmul.mubr.f32.gmra.mrb[0].mxu0 %v4911
    %v4988 = vpop.f32.mrb[0].mxu0
    %v4989 = vadd.f32 0.0, %v4988
    %v4990 = vpop.f32.mrb[0].mxu0
    %4991 = vmatprep.mubr.f32.mxu0 0.0
    %4992 = vmatmul.mubr.f32.gmra.mrb[0].mxu0 %v4914
    %v4993 = vpop.f32.mrb[0].mxu0
    %v4994 = vadd.f32 0.0, %v4993
    %v4995 = vpop.f32.mrb[0].mxu0
    %4996 = vmatprep.mubr.f32.mxu0 0.0
    %4997 = vmatmul.mubr.f32.gmra.mrb[0].mxu0 %v4917
    %v4998 = vpop.f32.mrb[0].mxu0
    %v4999 = vadd.f32 0.0, %v4998
    %v5000 = vpop.f32.mrb[0].mxu0
    %5001 = vmatprep.mubr.f32.mxu0 0.0
    %5002 = vmatmul.mubr.f32.gmra.mrb[0].mxu0 %v4920
    %v5003 = vpop.f32.mrb[0].mxu0
    %v5004 = vadd.f32 0.0, %v5003
    %v5005 = vpop.f32.mrb[0].mxu0
    %5006 = vdwg.mxu0
    %s5007 = scalar_lea.vmem %s17, 25
    %v5008 = vld [vmem:[%s5007] sm:$0x1]
    %v5010 = vlaneseq
    %v5011 = vshrl.u32 %v5010, 7
    %v5012 = vsub.s32 0, %v5011
    %v5013 = vrot.slane %v5008, %v5012
    %v5015 = vmul.f32 %v4989, %v5013
    %v5016 = vmul.f32 %v4994, %v5013
    %v5017 = vmul.f32 %v4999, %v5013
    %v5018 = vmul.f32 %v5004, %v5013
    %v5019 = vadd.f32 %v4901, %v5015
    %v5020 = vadd.f32 %v4902, %v5016
    %v5021 = vadd.f32 %v4903, %v5017
    %v5022 = vadd.f32 %v4904, %v5018
    %s5023 = scalar_lea.vmem [#allocation7], 832
    %v5024 = vld [vmem:[%s5023] sm:$0xff]
    %v5025 = vld [vmem:[%s5023 + $0x8] sm:$0xff]
    %v5026 = vld [vmem:[%s5023 + $0x10] sm:$0xff]
    %v5027 = vld [vmem:[%s5023 + $0x18] sm:$0xff]
    %v5029 = vsel %vm440, %v5024, 0
    %v5032 = vsel %vm440, %v5025, 0
    %v5035 = vsel %vm440, %v5026, 0
    %v5038 = vsel %vm440, %v5027, 0
    %5040 = vmatprep.subr.mxu0 0.0
    %5041 = vmatpush1.msra.mxu0 %v2089
    %5042 = vmatprep.subr.mxu0 0.0
    %5043 = vmatpush1.msra.mxu0 %v2090
    %5044 = vmatprep.subr.mxu0 0.0
    %5045 = vmatpush1.msra.mxu0 %v2091
    %5046 = vmatprep.subr.mxu0 0.0
    %5047 = vmatpush1.msra.mxu0 %v2092
    %5048 = vmatprep.subr.mxu0 0.0
    %5049 = vmatpush1.msra.mxu0 0.0
    %5050 = vmatprep.subr.mxu0 0.0
    %5051 = vmatpush1.msra.mxu0 0.0
    %5052 = vmatprep.subr.mxu0 0.0
    %5053 = vmatpush1.msra.mxu0 0.0
    %5054 = vmatprep.subr.mxu0 0.0
    %5055 = vmatpush1.msra.mxu0 0.0
    %5056 = vmatprep.subr.mxu0 0.0
    %5057 = vmatpush1.msra.mxu0 0.0
    %5058 = vmatprep.subr.mxu0 0.0
    %5059 = vmatpush1.msra.mxu0 0.0
    %5060 = vmatprep.subr.mxu0 0.0
    %5061 = vmatpush1.msra.mxu0 0.0
    %5062 = vmatprep.subr.mxu0 0.0
    %5063 = vmatpush1.msra.mxu0 0.0
    %5064 = vmatprep.subr.mxu0 0.0
    %5065 = vmatpush1.msra.mxu0 0.0
    %5066 = vmatprep.subr.mxu0 0.0
    %5067 = vmatpush1.msra.mxu0 0.0
    %5068 = vmatprep.subr.mxu0 0.0
    %5069 = vmatpush1.msra.mxu0 0.0
    %5070 = vmatprep.subr.mxu0 0.0
    %5071 = vmatpush1.msra.mxu0 0.0
    %5072 = vmatprep.subr.mxu0 0.0
    %5073 = vmatpush1.msra.mxu0 0.0
    %5074 = vmatprep.subr.mxu0 0.0
    %5075 = vmatpush1.msra.mxu0 0.0
    %5076 = vmatprep.subr.mxu0 0.0
    %5077 = vmatpush1.msra.mxu0 0.0
    %5078 = vmatprep.subr.mxu0 0.0
    %5079 = vmatpush1.msra.mxu0 0.0
    %5080 = vmatprep.subr.mxu0 0.0
    %5081 = vmatpush1.msra.mxu0 0.0
    %5082 = vmatprep.subr.mxu0 0.0
    %5083 = vmatpush1.msra.mxu0 0.0
    %5084 = vmatprep.subr.mxu0 0.0
    %5085 = vmatpush1.msra.mxu0 0.0
    %5086 = vmatprep.subr.mxu0 0.0
    %5087 = vmatpush1.msra.mxu0 0.0
    %5088 = vmatprep.subr.mxu0 0.0
    %5089 = vmatpush1.msra.mxu0 0.0
    %5090 = vmatprep.subr.mxu0 0.0
    %5091 = vmatpush1.msra.mxu0 0.0
    %5092 = vmatprep.subr.mxu0 0.0
    %5093 = vmatpush1.msra.mxu0 0.0
    %5094 = vmatprep.subr.mxu0 0.0
    %5095 = vmatpush1.msra.mxu0 0.0
    %5096 = vmatprep.subr.mxu0 0.0
    %5097 = vmatpush1.msra.mxu0 0.0
    %5098 = vmatprep.subr.mxu0 0.0
    %5099 = vmatpush1.msra.mxu0 0.0
    %5100 = vmatprep.subr.mxu0 0.0
    %5101 = vmatpush1.msra.mxu0 0.0
    %5102 = vmatprep.subr.mxu0 0.0
    %5103 = vmatpush1.msra.mxu0 0.0
    %5104 = vmatprep.mubr.f32.mxu0 0.0
    %5105 = vmatmul.mubr.f32.gmra.mrb[0].mxu0 %v5029
    %v5106 = vpop.f32.mrb[0].mxu0
    %v5107 = vadd.f32 0.0, %v5106
    %v5108 = vpop.f32.mrb[0].mxu0
    %5109 = vmatprep.mubr.f32.mxu0 0.0
    %5110 = vmatmul.mubr.f32.gmra.mrb[0].mxu0 %v5032
    %v5111 = vpop.f32.mrb[0].mxu0
    %v5112 = vadd.f32 0.0, %v5111
    %v5113 = vpop.f32.mrb[0].mxu0
    %5114 = vmatprep.mubr.f32.mxu0 0.0
    %5115 = vmatmul.mubr.f32.gmra.mrb[0].mxu0 %v5035
    %v5116 = vpop.f32.mrb[0].mxu0
    %v5117 = vadd.f32 0.0, %v5116
    %v5118 = vpop.f32.mrb[0].mxu0
    %5119 = vmatprep.mubr.f32.mxu0 0.0
    %5120 = vmatmul.mubr.f32.gmra.mrb[0].mxu0 %v5038
    %v5121 = vpop.f32.mrb[0].mxu0
    %v5122 = vadd.f32 0.0, %v5121
    %v5123 = vpop.f32.mrb[0].mxu0
    %5124 = vdwg.mxu0
    %s5125 = scalar_lea.vmem %s17, 26
    %v5126 = vld [vmem:[%s5125] sm:$0x1]
    %v5128 = vlaneseq
    %v5129 = vshrl.u32 %v5128, 7
    %v5130 = vsub.s32 0, %v5129
    %v5131 = vrot.slane %v5126, %v5130
    %v5133 = vmul.f32 %v5107, %v5131
    %v5134 = vmul.f32 %v5112, %v5131
    %v5135 = vmul.f32 %v5117, %v5131
    %v5136 = vmul.f32 %v5122, %v5131
    %v5137 = vadd.f32 %v5019, %v5133
    %v5138 = vadd.f32 %v5020, %v5134
    %v5139 = vadd.f32 %v5021, %v5135
    %v5140 = vadd.f32 %v5022, %v5136
    %s5141 = scalar_lea.vmem [#allocation7], 864
    %v5142 = vld [vmem:[%s5141] sm:$0xff]
    %v5143 = vld [vmem:[%s5141 + $0x8] sm:$0xff]
    %v5144 = vld [vmem:[%s5141 + $0x10] sm:$0xff]
    %v5145 = vld [vmem:[%s5141 + $0x18] sm:$0xff]
    %v5147 = vsel %vm440, %v5142, 0
    %v5150 = vsel %vm440, %v5143, 0
    %v5153 = vsel %vm440, %v5144, 0
    %v5156 = vsel %vm440, %v5145, 0
    %5158 = vmatprep.subr.mxu0 0.0
    %5159 = vmatpush1.msra.mxu0 %v2089
    %5160 = vmatprep.subr.mxu0 0.0
    %5161 = vmatpush1.msra.mxu0 %v2090
    %5162 = vmatprep.subr.mxu0 0.0
    %5163 = vmatpush1.msra.mxu0 %v2091
    %5164 = vmatprep.subr.mxu0 0.0
    %5165 = vmatpush1.msra.mxu0 %v2092
    %5166 = vmatprep.subr.mxu0 0.0
    %5167 = vmatpush1.msra.mxu0 0.0
    %5168 = vmatprep.subr.mxu0 0.0
    %5169 = vmatpush1.msra.mxu0 0.0
    %5170 = vmatprep.subr.mxu0 0.0
    %5171 = vmatpush1.msra.mxu0 0.0
    %5172 = vmatprep.subr.mxu0 0.0
    %5173 = vmatpush1.msra.mxu0 0.0
    %5174 = vmatprep.subr.mxu0 0.0
    %5175 = vmatpush1.msra.mxu0 0.0
    %5176 = vmatprep.subr.mxu0 0.0
    %5177 = vmatpush1.msra.mxu0 0.0
    %5178 = vmatprep.subr.mxu0 0.0
    %5179 = vmatpush1.msra.mxu0 0.0
    %5180 = vmatprep.subr.mxu0 0.0
    %5181 = vmatpush1.msra.mxu0 0.0
    %5182 = vmatprep.subr.mxu0 0.0
    %5183 = vmatpush1.msra.mxu0 0.0
    %5184 = vmatprep.subr.mxu0 0.0
    %5185 = vmatpush1.msra.mxu0 0.0
    %5186 = vmatprep.subr.mxu0 0.0
    %5187 = vmatpush1.msra.mxu0 0.0
    %5188 = vmatprep.subr.mxu0 0.0
    %5189 = vmatpush1.msra.mxu0 0.0
    %5190 = vmatprep.subr.mxu0 0.0
    %5191 = vmatpush1.msra.mxu0 0.0
    %5192 = vmatprep.subr.mxu0 0.0
    %5193 = vmatpush1.msra.mxu0 0.0
    %5194 = vmatprep.subr.mxu0 0.0
    %5195 = vmatpush1.msra.mxu0 0.0
    %5196 = vmatprep.subr.mxu0 0.0
    %5197 = vmatpush1.msra.mxu0 0.0
    %5198 = vmatprep.subr.mxu0 0.0
    %5199 = vmatpush1.msra.mxu0 0.0
    %5200 = vmatprep.subr.mxu0 0.0
    %5201 = vmatpush1.msra.mxu0 0.0
    %5202 = vmatprep.subr.mxu0 0.0
    %5203 = vmatpush1.msra.mxu0 0.0
    %5204 = vmatprep.subr.mxu0 0.0
    %5205 = vmatpush1.msra.mxu0 0.0
    %5206 = vmatprep.subr.mxu0 0.0
    %5207 = vmatpush1.msra.mxu0 0.0
    %5208 = vmatprep.subr.mxu0 0.0
    %5209 = vmatpush1.msra.mxu0 0.0
    %5210 = vmatprep.subr.mxu0 0.0
    %5211 = vmatpush1.msra.mxu0 0.0
    %5212 = vmatprep.subr.mxu0 0.0
    %5213 = vmatpush1.msra.mxu0 0.0
    %5214 = vmatprep.subr.mxu0 0.0
    %5215 = vmatpush1.msra.mxu0 0.0
    %5216 = vmatprep.subr.mxu0 0.0
    %5217 = vmatpush1.msra.mxu0 0.0
    %5218 = vmatprep.subr.mxu0 0.0
    %5219 = vmatpush1.msra.mxu0 0.0
    %5220 = vmatprep.subr.mxu0 0.0
    %5221 = vmatpush1.msra.mxu0 0.0
    %5222 = vmatprep.mubr.f32.mxu0 0.0
    %5223 = vmatmul.mubr.f32.gmra.mrb[0].mxu0 %v5147
    %v5224 = vpop.f32.mrb[0].mxu0
    %v5225 = vadd.f32 0.0, %v5224
    %v5226 = vpop.f32.mrb[0].mxu0
    %5227 = vmatprep.mubr.f32.mxu0 0.0
    %5228 = vmatmul.mubr.f32.gmra.mrb[0].mxu0 %v5150
    %v5229 = vpop.f32.mrb[0].mxu0
    %v5230 = vadd.f32 0.0, %v5229
    %v5231 = vpop.f32.mrb[0].mxu0
    %5232 = vmatprep.mubr.f32.mxu0 0.0
    %5233 = vmatmul.mubr.f32.gmra.mrb[0].mxu0 %v5153
    %v5234 = vpop.f32.mrb[0].mxu0
    %v5235 = vadd.f32 0.0, %v5234
    %v5236 = vpop.f32.mrb[0].mxu0
    %5237 = vmatprep.mubr.f32.mxu0 0.0
    %5238 = vmatmul.mubr.f32.gmra.mrb[0].mxu0 %v5156
    %v5239 = vpop.f32.mrb[0].mxu0
    %v5240 = vadd.f32 0.0, %v5239
    %v5241 = vpop.f32.mrb[0].mxu0
    %5242 = vdwg.mxu0
    %s5243 = scalar_lea.vmem %s17, 27
    %v5244 = vld [vmem:[%s5243] sm:$0x1]
    %v5246 = vlaneseq
    %v5247 = vshrl.u32 %v5246, 7
    %v5248 = vsub.s32 0, %v5247
    %v5249 = vrot.slane %v5244, %v5248
    %v5251 = vmul.f32 %v5225, %v5249
    %v5252 = vmul.f32 %v5230, %v5249
    %v5253 = vmul.f32 %v5235, %v5249
    %v5254 = vmul.f32 %v5240, %v5249
    %v5255 = vadd.f32 %v5137, %v5251
    %v5256 = vadd.f32 %v5138, %v5252
    %v5257 = vadd.f32 %v5139, %v5253
    %v5258 = vadd.f32 %v5140, %v5254
    %s5259 = scalar_lea.vmem [#allocation7], 896
    %v5260 = vld [vmem:[%s5259] sm:$0xff]
    %v5261 = vld [vmem:[%s5259 + $0x8] sm:$0xff]
    %v5262 = vld [vmem:[%s5259 + $0x10] sm:$0xff]
    %v5263 = vld [vmem:[%s5259 + $0x18] sm:$0xff]
    %v5265 = vsel %vm440, %v5260, 0
    %v5268 = vsel %vm440, %v5261, 0
    %v5271 = vsel %vm440, %v5262, 0
    %v5274 = vsel %vm440, %v5263, 0
    %5276 = vmatprep.subr.mxu0 0.0
    %5277 = vmatpush1.msra.mxu0 %v2089
    %5278 = vmatprep.subr.mxu0 0.0
    %5279 = vmatpush1.msra.mxu0 %v2090
    %5280 = vmatprep.subr.mxu0 0.0
    %5281 = vmatpush1.msra.mxu0 %v2091
    %5282 = vmatprep.subr.mxu0 0.0
    %5283 = vmatpush1.msra.mxu0 %v2092
    %5284 = vmatprep.subr.mxu0 0.0
    %5285 = vmatpush1.msra.mxu0 0.0
    %5286 = vmatprep.subr.mxu0 0.0
    %5287 = vmatpush1.msra.mxu0 0.0
    %5288 = vmatprep.subr.mxu0 0.0
    %5289 = vmatpush1.msra.mxu0 0.0
    %5290 = vmatprep.subr.mxu0 0.0
    %5291 = vmatpush1.msra.mxu0 0.0
    %5292 = vmatprep.subr.mxu0 0.0
    %5293 = vmatpush1.msra.mxu0 0.0
    %5294 = vmatprep.subr.mxu0 0.0
    %5295 = vmatpush1.msra.mxu0 0.0
    %5296 = vmatprep.subr.mxu0 0.0
    %5297 = vmatpush1.msra.mxu0 0.0
    %5298 = vmatprep.subr.mxu0 0.0
    %5299 = vmatpush1.msra.mxu0 0.0
    %5300 = vmatprep.subr.mxu0 0.0
    %5301 = vmatpush1.msra.mxu0 0.0
    %5302 = vmatprep.subr.mxu0 0.0
    %5303 = vmatpush1.msra.mxu0 0.0
    %5304 = vmatprep.subr.mxu0 0.0
    %5305 = vmatpush1.msra.mxu0 0.0
    %5306 = vmatprep.subr.mxu0 0.0
    %5307 = vmatpush1.msra.mxu0 0.0
    %5308 = vmatprep.subr.mxu0 0.0
    %5309 = vmatpush1.msra.mxu0 0.0
    %5310 = vmatprep.subr.mxu0 0.0
    %5311 = vmatpush1.msra.mxu0 0.0
    %5312 = vmatprep.subr.mxu0 0.0
    %5313 = vmatpush1.msra.mxu0 0.0
    %5314 = vmatprep.subr.mxu0 0.0
    %5315 = vmatpush1.msra.mxu0 0.0
    %5316 = vmatprep.subr.mxu0 0.0
    %5317 = vmatpush1.msra.mxu0 0.0
    %5318 = vmatprep.subr.mxu0 0.0
    %5319 = vmatpush1.msra.mxu0 0.0
    %5320 = vmatprep.subr.mxu0 0.0
    %5321 = vmatpush1.msra.mxu0 0.0
    %5322 = vmatprep.subr.mxu0 0.0
    %5323 = vmatpush1.msra.mxu0 0.0
    %5324 = vmatprep.subr.mxu0 0.0
    %5325 = vmatpush1.msra.mxu0 0.0
    %5326 = vmatprep.subr.mxu0 0.0
    %5327 = vmatpush1.msra.mxu0 0.0
    %5328 = vmatprep.subr.mxu0 0.0
    %5329 = vmatpush1.msra.mxu0 0.0
    %5330 = vmatprep.subr.mxu0 0.0
    %5331 = vmatpush1.msra.mxu0 0.0
    %5332 = vmatprep.subr.mxu0 0.0
    %5333 = vmatpush1.msra.mxu0 0.0
    %5334 = vmatprep.subr.mxu0 0.0
    %5335 = vmatpush1.msra.mxu0 0.0
    %5336 = vmatprep.subr.mxu0 0.0
    %5337 = vmatpush1.msra.mxu0 0.0
    %5338 = vmatprep.subr.mxu0 0.0
    %5339 = vmatpush1.msra.mxu0 0.0
    %5340 = vmatprep.mubr.f32.mxu0 0.0
    %5341 = vmatmul.mubr.f32.gmra.mrb[0].mxu0 %v5265
    %v5342 = vpop.f32.mrb[0].mxu0
    %v5343 = vadd.f32 0.0, %v5342
    %v5344 = vpop.f32.mrb[0].mxu0
    %5345 = vmatprep.mubr.f32.mxu0 0.0
    %5346 = vmatmul.mubr.f32.gmra.mrb[0].mxu0 %v5268
    %v5347 = vpop.f32.mrb[0].mxu0
    %v5348 = vadd.f32 0.0, %v5347
    %v5349 = vpop.f32.mrb[0].mxu0
    %5350 = vmatprep.mubr.f32.mxu0 0.0
    %5351 = vmatmul.mubr.f32.gmra.mrb[0].mxu0 %v5271
    %v5352 = vpop.f32.mrb[0].mxu0
    %v5353 = vadd.f32 0.0, %v5352
    %v5354 = vpop.f32.mrb[0].mxu0
    %5355 = vmatprep.mubr.f32.mxu0 0.0
    %5356 = vmatmul.mubr.f32.gmra.mrb[0].mxu0 %v5274
    %v5357 = vpop.f32.mrb[0].mxu0
    %v5358 = vadd.f32 0.0, %v5357
    %v5359 = vpop.f32.mrb[0].mxu0
    %5360 = vdwg.mxu0
    %s5361 = scalar_lea.vmem %s17, 28
    %v5362 = vld [vmem:[%s5361] sm:$0x1]
    %v5364 = vlaneseq
    %v5365 = vshrl.u32 %v5364, 7
    %v5366 = vsub.s32 0, %v5365
    %v5367 = vrot.slane %v5362, %v5366
    %v5369 = vmul.f32 %v5343, %v5367
    %v5370 = vmul.f32 %v5348, %v5367
    %v5371 = vmul.f32 %v5353, %v5367
    %v5372 = vmul.f32 %v5358, %v5367
    %v5373 = vadd.f32 %v5255, %v5369
    %v5374 = vadd.f32 %v5256, %v5370
    %v5375 = vadd.f32 %v5257, %v5371
    %v5376 = vadd.f32 %v5258, %v5372
    %s5377 = scalar_lea.vmem [#allocation7], 928
    %v5378 = vld [vmem:[%s5377] sm:$0xff]
    %v5379 = vld [vmem:[%s5377 + $0x8] sm:$0xff]
    %v5380 = vld [vmem:[%s5377 + $0x10] sm:$0xff]
    %v5381 = vld [vmem:[%s5377 + $0x18] sm:$0xff]
    %v5383 = vsel %vm440, %v5378, 0
    %v5386 = vsel %vm440, %v5379, 0
    %v5389 = vsel %vm440, %v5380, 0
    %v5392 = vsel %vm440, %v5381, 0
    %5394 = vmatprep.subr.mxu0 0.0
    %5395 = vmatpush1.msra.mxu0 %v2089
    %5396 = vmatprep.subr.mxu0 0.0
    %5397 = vmatpush1.msra.mxu0 %v2090
    %5398 = vmatprep.subr.mxu0 0.0
    %5399 = vmatpush1.msra.mxu0 %v2091
    %5400 = vmatprep.subr.mxu0 0.0
    %5401 = vmatpush1.msra.mxu0 %v2092
    %5402 = vmatprep.subr.mxu0 0.0
    %5403 = vmatpush1.msra.mxu0 0.0
    %5404 = vmatprep.subr.mxu0 0.0
    %5405 = vmatpush1.msra.mxu0 0.0
    %5406 = vmatprep.subr.mxu0 0.0
    %5407 = vmatpush1.msra.mxu0 0.0
    %5408 = vmatprep.subr.mxu0 0.0
    %5409 = vmatpush1.msra.mxu0 0.0
    %5410 = vmatprep.subr.mxu0 0.0
    %5411 = vmatpush1.msra.mxu0 0.0
    %5412 = vmatprep.subr.mxu0 0.0
    %5413 = vmatpush1.msra.mxu0 0.0
    %5414 = vmatprep.subr.mxu0 0.0
    %5415 = vmatpush1.msra.mxu0 0.0
    %5416 = vmatprep.subr.mxu0 0.0
    %5417 = vmatpush1.msra.mxu0 0.0
    %5418 = vmatprep.subr.mxu0 0.0
    %5419 = vmatpush1.msra.mxu0 0.0
    %5420 = vmatprep.subr.mxu0 0.0
    %5421 = vmatpush1.msra.mxu0 0.0
    %5422 = vmatprep.subr.mxu0 0.0
    %5423 = vmatpush1.msra.mxu0 0.0
    %5424 = vmatprep.subr.mxu0 0.0
    %5425 = vmatpush1.msra.mxu0 0.0
    %5426 = vmatprep.subr.mxu0 0.0
    %5427 = vmatpush1.msra.mxu0 0.0
    %5428 = vmatprep.subr.mxu0 0.0
    %5429 = vmatpush1.msra.mxu0 0.0
    %5430 = vmatprep.subr.mxu0 0.0
    %5431 = vmatpush1.msra.mxu0 0.0
    %5432 = vmatprep.subr.mxu0 0.0
    %5433 = vmatpush1.msra.mxu0 0.0
    %5434 = vmatprep.subr.mxu0 0.0
    %5435 = vmatpush1.msra.mxu0 0.0
    %5436 = vmatprep.subr.mxu0 0.0
    %5437 = vmatpush1.msra.mxu0 0.0
    %5438 = vmatprep.subr.mxu0 0.0
    %5439 = vmatpush1.msra.mxu0 0.0
    %5440 = vmatprep.subr.mxu0 0.0
    %5441 = vmatpush1.msra.mxu0 0.0
    %5442 = vmatprep.subr.mxu0 0.0
    %5443 = vmatpush1.msra.mxu0 0.0
    %5444 = vmatprep.subr.mxu0 0.0
    %5445 = vmatpush1.msra.mxu0 0.0
    %5446 = vmatprep.subr.mxu0 0.0
    %5447 = vmatpush1.msra.mxu0 0.0
    %5448 = vmatprep.subr.mxu0 0.0
    %5449 = vmatpush1.msra.mxu0 0.0
    %5450 = vmatprep.subr.mxu0 0.0
    %5451 = vmatpush1.msra.mxu0 0.0
    %5452 = vmatprep.subr.mxu0 0.0
    %5453 = vmatpush1.msra.mxu0 0.0
    %5454 = vmatprep.subr.mxu0 0.0
    %5455 = vmatpush1.msra.mxu0 0.0
    %5456 = vmatprep.subr.mxu0 0.0
    %5457 = vmatpush1.msra.mxu0 0.0
    %5458 = vmatprep.mubr.f32.mxu0 0.0
    %5459 = vmatmul.mubr.f32.gmra.mrb[0].mxu0 %v5383
    %v5460 = vpop.f32.mrb[0].mxu0
    %v5461 = vadd.f32 0.0, %v5460
    %v5462 = vpop.f32.mrb[0].mxu0
    %5463 = vmatprep.mubr.f32.mxu0 0.0
    %5464 = vmatmul.mubr.f32.gmra.mrb[0].mxu0 %v5386
    %v5465 = vpop.f32.mrb[0].mxu0
    %v5466 = vadd.f32 0.0, %v5465
    %v5467 = vpop.f32.mrb[0].mxu0
    %5468 = vmatprep.mubr.f32.mxu0 0.0
    %5469 = vmatmul.mubr.f32.gmra.mrb[0].mxu0 %v5389
    %v5470 = vpop.f32.mrb[0].mxu0
    %v5471 = vadd.f32 0.0, %v5470
    %v5472 = vpop.f32.mrb[0].mxu0
    %5473 = vmatprep.mubr.f32.mxu0 0.0
    %5474 = vmatmul.mubr.f32.gmra.mrb[0].mxu0 %v5392
    %v5475 = vpop.f32.mrb[0].mxu0
    %v5476 = vadd.f32 0.0, %v5475
    %v5477 = vpop.f32.mrb[0].mxu0
    %5478 = vdwg.mxu0
    %s5479 = scalar_lea.vmem %s17, 29
    %v5480 = vld [vmem:[%s5479] sm:$0x1]
    %v5482 = vlaneseq
    %v5483 = vshrl.u32 %v5482, 7
    %v5484 = vsub.s32 0, %v5483
    %v5485 = vrot.slane %v5480, %v5484
    %v5487 = vmul.f32 %v5461, %v5485
    %v5488 = vmul.f32 %v5466, %v5485
    %v5489 = vmul.f32 %v5471, %v5485
    %v5490 = vmul.f32 %v5476, %v5485
    %v5491 = vadd.f32 %v5373, %v5487
    %v5492 = vadd.f32 %v5374, %v5488
    %v5493 = vadd.f32 %v5375, %v5489
    %v5494 = vadd.f32 %v5376, %v5490
    %s5495 = scalar_lea.vmem [#allocation7], 960
    %v5496 = vld [vmem:[%s5495] sm:$0xff]
    %v5497 = vld [vmem:[%s5495 + $0x8] sm:$0xff]
    %v5498 = vld [vmem:[%s5495 + $0x10] sm:$0xff]
    %v5499 = vld [vmem:[%s5495 + $0x18] sm:$0xff]
    %v5501 = vsel %vm440, %v5496, 0
    %v5504 = vsel %vm440, %v5497, 0
    %v5507 = vsel %vm440, %v5498, 0
    %v5510 = vsel %vm440, %v5499, 0
    %5512 = vmatprep.subr.mxu0 0.0
    %5513 = vmatpush1.msra.mxu0 %v2089
    %5514 = vmatprep.subr.mxu0 0.0
    %5515 = vmatpush1.msra.mxu0 %v2090
    %5516 = vmatprep.subr.mxu0 0.0
    %5517 = vmatpush1.msra.mxu0 %v2091
    %5518 = vmatprep.subr.mxu0 0.0
    %5519 = vmatpush1.msra.mxu0 %v2092
    %5520 = vmatprep.subr.mxu0 0.0
    %5521 = vmatpush1.msra.mxu0 0.0
    %5522 = vmatprep.subr.mxu0 0.0
    %5523 = vmatpush1.msra.mxu0 0.0
    %5524 = vmatprep.subr.mxu0 0.0
    %5525 = vmatpush1.msra.mxu0 0.0
    %5526 = vmatprep.subr.mxu0 0.0
    %5527 = vmatpush1.msra.mxu0 0.0
    %5528 = vmatprep.subr.mxu0 0.0
    %5529 = vmatpush1.msra.mxu0 0.0
    %5530 = vmatprep.subr.mxu0 0.0
    %5531 = vmatpush1.msra.mxu0 0.0
    %5532 = vmatprep.subr.mxu0 0.0
    %5533 = vmatpush1.msra.mxu0 0.0
    %5534 = vmatprep.subr.mxu0 0.0
    %5535 = vmatpush1.msra.mxu0 0.0
    %5536 = vmatprep.subr.mxu0 0.0
    %5537 = vmatpush1.msra.mxu0 0.0
    %5538 = vmatprep.subr.mxu0 0.0
    %5539 = vmatpush1.msra.mxu0 0.0
    %5540 = vmatprep.subr.mxu0 0.0
    %5541 = vmatpush1.msra.mxu0 0.0
    %5542 = vmatprep.subr.mxu0 0.0
    %5543 = vmatpush1.msra.mxu0 0.0
    %5544 = vmatprep.subr.mxu0 0.0
    %5545 = vmatpush1.msra.mxu0 0.0
    %5546 = vmatprep.subr.mxu0 0.0
    %5547 = vmatpush1.msra.mxu0 0.0
    %5548 = vmatprep.subr.mxu0 0.0
    %5549 = vmatpush1.msra.mxu0 0.0
    %5550 = vmatprep.subr.mxu0 0.0
    %5551 = vmatpush1.msra.mxu0 0.0
    %5552 = vmatprep.subr.mxu0 0.0
    %5553 = vmatpush1.msra.mxu0 0.0
    %5554 = vmatprep.subr.mxu0 0.0
    %5555 = vmatpush1.msra.mxu0 0.0
    %5556 = vmatprep.subr.mxu0 0.0
    %5557 = vmatpush1.msra.mxu0 0.0
    %5558 = vmatprep.subr.mxu0 0.0
    %5559 = vmatpush1.msra.mxu0 0.0
    %5560 = vmatprep.subr.mxu0 0.0
    %5561 = vmatpush1.msra.mxu0 0.0
    %5562 = vmatprep.subr.mxu0 0.0
    %5563 = vmatpush1.msra.mxu0 0.0
    %5564 = vmatprep.subr.mxu0 0.0
    %5565 = vmatpush1.msra.mxu0 0.0
    %5566 = vmatprep.subr.mxu0 0.0
    %5567 = vmatpush1.msra.mxu0 0.0
    %5568 = vmatprep.subr.mxu0 0.0
    %5569 = vmatpush1.msra.mxu0 0.0
    %5570 = vmatprep.subr.mxu0 0.0
    %5571 = vmatpush1.msra.mxu0 0.0
    %5572 = vmatprep.subr.mxu0 0.0
    %5573 = vmatpush1.msra.mxu0 0.0
    %5574 = vmatprep.subr.mxu0 0.0
    %5575 = vmatpush1.msra.mxu0 0.0
    %5576 = vmatprep.mubr.f32.mxu0 0.0
    %5577 = vmatmul.mubr.f32.gmra.mrb[0].mxu0 %v5501
    %v5578 = vpop.f32.mrb[0].mxu0
    %v5579 = vadd.f32 0.0, %v5578
    %v5580 = vpop.f32.mrb[0].mxu0
    %5581 = vmatprep.mubr.f32.mxu0 0.0
    %5582 = vmatmul.mubr.f32.gmra.mrb[0].mxu0 %v5504
    %v5583 = vpop.f32.mrb[0].mxu0
    %v5584 = vadd.f32 0.0, %v5583
    %v5585 = vpop.f32.mrb[0].mxu0
    %5586 = vmatprep.mubr.f32.mxu0 0.0
    %5587 = vmatmul.mubr.f32.gmra.mrb[0].mxu0 %v5507
    %v5588 = vpop.f32.mrb[0].mxu0
    %v5589 = vadd.f32 0.0, %v5588
    %v5590 = vpop.f32.mrb[0].mxu0
    %5591 = vmatprep.mubr.f32.mxu0 0.0
    %5592 = vmatmul.mubr.f32.gmra.mrb[0].mxu0 %v5510
    %v5593 = vpop.f32.mrb[0].mxu0
    %v5594 = vadd.f32 0.0, %v5593
    %v5595 = vpop.f32.mrb[0].mxu0
    %5596 = vdwg.mxu0
    %s5597 = scalar_lea.vmem %s17, 30
    %v5598 = vld [vmem:[%s5597] sm:$0x1]
    %v5600 = vlaneseq
    %v5601 = vshrl.u32 %v5600, 7
    %v5602 = vsub.s32 0, %v5601
    %v5603 = vrot.slane %v5598, %v5602
    %v5605 = vmul.f32 %v5579, %v5603
    %v5606 = vmul.f32 %v5584, %v5603
    %v5607 = vmul.f32 %v5589, %v5603
    %v5608 = vmul.f32 %v5594, %v5603
    %v5609 = vadd.f32 %v5491, %v5605
    %v5610 = vadd.f32 %v5492, %v5606
    %v5611 = vadd.f32 %v5493, %v5607
    %v5612 = vadd.f32 %v5494, %v5608
    %v5613 = vld [vmem:[%s19] sm:$0xff]
    %v5614 = vld [vmem:[%s19 + $0x8] sm:$0xff]
    %v5615 = vld [vmem:[%s19 + $0x10] sm:$0xff]
    %v5616 = vld [vmem:[%s19 + $0x18] sm:$0xff]
    %v5618 = vsel %vm440, %v5609, 0
    %v5621 = vsel %vm440, %v5610, 0
    %v5624 = vsel %vm440, %v5611, 0
    %v5627 = vsel %vm440, %v5612, 0
    %5629 = vmatprep.subr.mxu0 0.0
    %5630 = vmatpush1.msra.mxu0 %v5613
    %5631 = vmatprep.subr.mxu0 0.0
    %5632 = vmatpush1.msra.mxu0 %v5614
    %5633 = vmatprep.subr.mxu0 0.0
    %5634 = vmatpush1.msra.mxu0 %v5615
    %5635 = vmatprep.subr.mxu0 0.0
    %5636 = vmatpush1.msra.mxu0 %v5616
    %5637 = vmatprep.subr.mxu0 0.0
    %5638 = vmatpush1.msra.mxu0 0.0
    %5639 = vmatprep.subr.mxu0 0.0
    %5640 = vmatpush1.msra.mxu0 0.0
    %5641 = vmatprep.subr.mxu0 0.0
    %5642 = vmatpush1.msra.mxu0 0.0
    %5643 = vmatprep.subr.mxu0 0.0
    %5644 = vmatpush1.msra.mxu0 0.0
    %5645 = vmatprep.subr.mxu0 0.0
    %5646 = vmatpush1.msra.mxu0 0.0
    %5647 = vmatprep.subr.mxu0 0.0
    %5648 = vmatpush1.msra.mxu0 0.0
    %5649 = vmatprep.subr.mxu0 0.0
    %5650 = vmatpush1.msra.mxu0 0.0
    %5651 = vmatprep.subr.mxu0 0.0
    %5652 = vmatpush1.msra.mxu0 0.0
    %5653 = vmatprep.subr.mxu0 0.0
    %5654 = vmatpush1.msra.mxu0 0.0
    %5655 = vmatprep.subr.mxu0 0.0
    %5656 = vmatpush1.msra.mxu0 0.0
    %5657 = vmatprep.subr.mxu0 0.0
    %5658 = vmatpush1.msra.mxu0 0.0
    %5659 = vmatprep.subr.mxu0 0.0
    %5660 = vmatpush1.msra.mxu0 0.0
    %5661 = vmatprep.subr.mxu0 0.0
    %5662 = vmatpush1.msra.mxu0 0.0
    %5663 = vmatprep.subr.mxu0 0.0
    %5664 = vmatpush1.msra.mxu0 0.0
    %5665 = vmatprep.subr.mxu0 0.0
    %5666 = vmatpush1.msra.mxu0 0.0
    %5667 = vmatprep.subr.mxu0 0.0
    %5668 = vmatpush1.msra.mxu0 0.0
    %5669 = vmatprep.subr.mxu0 0.0
    %5670 = vmatpush1.msra.mxu0 0.0
    %5671 = vmatprep.subr.mxu0 0.0
    %5672 = vmatpush1.msra.mxu0 0.0
    %5673 = vmatprep.subr.mxu0 0.0
    %5674 = vmatpush1.msra.mxu0 0.0
    %5675 = vmatprep.subr.mxu0 0.0
    %5676 = vmatpush1.msra.mxu0 0.0
    %5677 = vmatprep.subr.mxu0 0.0
    %5678 = vmatpush1.msra.mxu0 0.0
    %5679 = vmatprep.subr.mxu0 0.0
    %5680 = vmatpush1.msra.mxu0 0.0
    %5681 = vmatprep.subr.mxu0 0.0
    %5682 = vmatpush1.msra.mxu0 0.0
    %5683 = vmatprep.subr.mxu0 0.0
    %5684 = vmatpush1.msra.mxu0 0.0
    %5685 = vmatprep.subr.mxu0 0.0
    %5686 = vmatpush1.msra.mxu0 0.0
    %5687 = vmatprep.subr.mxu0 0.0
    %5688 = vmatpush1.msra.mxu0 0.0
    %5689 = vmatprep.subr.mxu0 0.0
    %5690 = vmatpush1.msra.mxu0 0.0
    %5691 = vmatprep.subr.mxu0 0.0
    %5692 = vmatpush1.msra.mxu0 0.0
    %5693 = vmatprep.mubr.f32.mxu0 0.0
    %5694 = vmatmul.mubr.f32.gmra.mrb[0].mxu0 %v5618
    %v5695 = vpop.f32.mrb[0].mxu0
    %v5696 = vadd.f32 0.0, %v5695
    %v5697 = vpop.f32.mrb[0].mxu0
    %5698 = vmatprep.mubr.f32.mxu0 0.0
    %5699 = vmatmul.mubr.f32.gmra.mrb[0].mxu0 %v5621
    %v5700 = vpop.f32.mrb[0].mxu0
    %v5701 = vadd.f32 0.0, %v5700
    %v5702 = vpop.f32.mrb[0].mxu0
    %5703 = vmatprep.mubr.f32.mxu0 0.0
    %5704 = vmatmul.mubr.f32.gmra.mrb[0].mxu0 %v5624
    %v5705 = vpop.f32.mrb[0].mxu0
    %v5706 = vadd.f32 0.0, %v5705
    %v5707 = vpop.f32.mrb[0].mxu0
    %5708 = vmatprep.mubr.f32.mxu0 0.0
    %5709 = vmatmul.mubr.f32.gmra.mrb[0].mxu0 %v5627
    %v5710 = vpop.f32.mrb[0].mxu0
    %v5711 = vadd.f32 0.0, %v5710
    %v5712 = vpop.f32.mrb[0].mxu0
    %5713 = vdwg.mxu0
    %v5714 = vld [vmem:[%s21] sm:$0x1]
    %v5716 = vlaneseq
    %v5717 = vshrl.u32 %v5716, 7
    %v5718 = vsub.s32 0, %v5717
    %v5719 = vrot.slane %v5714, %v5718
    %v5721 = vmul.f32 %v5696, %v5719
    %v5722 = vmul.f32 %v5701, %v5719
    %v5723 = vmul.f32 %v5706, %v5719
    %v5724 = vmul.f32 %v5711, %v5719
    %v5725 = vld [vmem:[#allocation10] sm:$0x1]
    %v5727 = vlaneseq
    %v5728 = vshrl.u32 %v5727, 7
    %v5729 = vsub.s32 0, %v5728
    %v5730 = vrot.slane %v5725, %v5729
    %v5732 = vadd.f32 %v5721, %v5730
    %v5733 = vadd.f32 %v5722, %v5730
    %v5734 = vadd.f32 %v5723, %v5730
    %v5735 = vadd.f32 %v5724, %v5730
    %v5736 = vmax.f32 %v5732, 0.0
    %v5737 = vmax.f32 %v5733, 0.0
    %v5738 = vmax.f32 %v5734, 0.0
    %v5739 = vmax.f32 %v5735, 0.0
    %v5740 = vld [vmem:[%s25] sm:$0xff]
    %v5741 = vld [vmem:[%s25 + $0x8] sm:$0xff]
    %v5742 = vld [vmem:[%s25 + $0x10] sm:$0xff]
    %v5743 = vld [vmem:[%s25 + $0x18] sm:$0xff]
    %v5744 = vld [vmem:[%s27] sm:$0xff]
    %v5745 = vld [vmem:[%s27 + $0x8] sm:$0xff]
    %v5746 = vld [vmem:[%s27 + $0x10] sm:$0xff]
    %v5747 = vld [vmem:[%s27 + $0x18] sm:$0xff]
    %v5748 = vld [vmem:[%s29] sm:$0xff]
    %v5749 = vld [vmem:[%s29 + $0x8] sm:$0xff]
    %v5750 = vld [vmem:[%s29 + $0x10] sm:$0xff]
    %v5751 = vld [vmem:[%s29 + $0x18] sm:$0xff]
    %v5752 = vld [vmem:[#allocation11] sm:$0x1]
    %v5753 = vld [vmem:[#allocation13] sm:$0x1]
    %v5754 = vld [vmem:[#allocation14] sm:$0x1]
    %v5755 = vld [vmem:[#allocation16] sm:$0x1]
    %v5756 = vadd.f32 %v5736, %v5740
    %v5757 = vadd.f32 %v5737, %v5741
    %v5758 = vadd.f32 %v5738, %v5742
    %v5759 = vadd.f32 %v5739, %v5743
    %v5760 = vld [vmem:[%s33] sm:$0xff]
    %v5761 = vld [vmem:[%s33 + $0x8] sm:$0xff]
    %vm5762 = vcmask 130048
    %v5764 = vsel %vm5762, %v5756, 0
    %v5767 = vsel %vm5762, %v5757, 0
    %v5770 = vsel %vm5762, %v5758, 0
    %v5773 = vsel %vm5762, %v5759, 0
    %5775 = vmatprep.subr.mxu0 0.0
    %5776 = vmatpush1.msra.mxu0 %v5760
    %5777 = vmatprep.subr.mxu0 0.0
    %5778 = vmatpush1.msra.mxu0 %v5761
    %5779 = vmatprep.subr.mxu0 0.0
    %5780 = vmatpush1.msra.mxu0 0.0
    %5781 = vmatprep.subr.mxu0 0.0
    %5782 = vmatpush1.msra.mxu0 0.0
    %5783 = vmatprep.subr.mxu0 0.0
    %5784 = vmatpush1.msra.mxu0 0.0
    %5785 = vmatprep.subr.mxu0 0.0
    %5786 = vmatpush1.msra.mxu0 0.0
    %5787 = vmatprep.subr.mxu0 0.0
    %5788 = vmatpush1.msra.mxu0 0.0
    %5789 = vmatprep.subr.mxu0 0.0
    %5790 = vmatpush1.msra.mxu0 0.0
    %5791 = vmatprep.subr.mxu0 0.0
    %5792 = vmatpush1.msra.mxu0 0.0
    %5793 = vmatprep.subr.mxu0 0.0
    %5794 = vmatpush1.msra.mxu0 0.0
    %5795 = vmatprep.subr.mxu0 0.0
    %5796 = vmatpush1.msra.mxu0 0.0
    %5797 = vmatprep.subr.mxu0 0.0
    %5798 = vmatpush1.msra.mxu0 0.0
    %5799 = vmatprep.subr.mxu0 0.0
    %5800 = vmatpush1.msra.mxu0 0.0
    %5801 = vmatprep.subr.mxu0 0.0
    %5802 = vmatpush1.msra.mxu0 0.0
    %5803 = vmatprep.subr.mxu0 0.0
    %5804 = vmatpush1.msra.mxu0 0.0
    %5805 = vmatprep.subr.mxu0 0.0
    %5806 = vmatpush1.msra.mxu0 0.0
    %5807 = vmatprep.subr.mxu0 0.0
    %5808 = vmatpush1.msra.mxu0 0.0
    %5809 = vmatprep.subr.mxu0 0.0
    %5810 = vmatpush1.msra.mxu0 0.0
    %5811 = vmatprep.subr.mxu0 0.0
    %5812 = vmatpush1.msra.mxu0 0.0
    %5813 = vmatprep.subr.mxu0 0.0
    %5814 = vmatpush1.msra.mxu0 0.0
    %5815 = vmatprep.subr.mxu0 0.0
    %5816 = vmatpush1.msra.mxu0 0.0
    %5817 = vmatprep.subr.mxu0 0.0
    %5818 = vmatpush1.msra.mxu0 0.0
    %5819 = vmatprep.subr.mxu0 0.0
    %5820 = vmatpush1.msra.mxu0 0.0
    %5821 = vmatprep.subr.mxu0 0.0
    %5822 = vmatpush1.msra.mxu0 0.0
    %5823 = vmatprep.subr.mxu0 0.0
    %5824 = vmatpush1.msra.mxu0 0.0
    %5825 = vmatprep.subr.mxu0 0.0
    %5826 = vmatpush1.msra.mxu0 0.0
    %5827 = vmatprep.subr.mxu0 0.0
    %5828 = vmatpush1.msra.mxu0 0.0
    %5829 = vmatprep.subr.mxu0 0.0
    %5830 = vmatpush1.msra.mxu0 0.0
    %5831 = vmatprep.subr.mxu0 0.0
    %5832 = vmatpush1.msra.mxu0 0.0
    %5833 = vmatprep.subr.mxu0 0.0
    %5834 = vmatpush1.msra.mxu0 0.0
    %5835 = vmatprep.subr.mxu0 0.0
    %5836 = vmatpush1.msra.mxu0 0.0
    %5837 = vmatprep.subr.mxu0 0.0
    %5838 = vmatpush1.msra.mxu0 0.0
    %5839 = vmatprep.mubr.f32.mxu0 0.0
    %5840 = vmatmul.mubr.f32.gmra.mrb[0].mxu0 %v5764
    %v5841 = vpop.f32.mrb[0].mxu0
    %v5842 = vadd.f32 0.0, %v5841
    %v5843 = vpop.f32.mrb[0].mxu0
    %5844 = vmatprep.mubr.f32.mxu0 0.0
    %5845 = vmatmul.mubr.f32.gmra.mrb[0].mxu0 %v5767
    %v5846 = vpop.f32.mrb[0].mxu0
    %v5847 = vadd.f32 0.0, %v5846
    %v5848 = vpop.f32.mrb[0].mxu0
    %5849 = vmatprep.mubr.f32.mxu0 0.0
    %5850 = vmatmul.mubr.f32.gmra.mrb[0].mxu0 %v5770
    %v5851 = vpop.f32.mrb[0].mxu0
    %v5852 = vadd.f32 0.0, %v5851
    %v5853 = vpop.f32.mrb[0].mxu0
    %5854 = vmatprep.mubr.f32.mxu0 0.0
    %5855 = vmatmul.mubr.f32.gmra.mrb[0].mxu0 %v5773
    %v5856 = vpop.f32.mrb[0].mxu0
    %v5857 = vadd.f32 0.0, %v5856
    %v5858 = vpop.f32.mrb[0].mxu0
    %5859 = vdwg.mxu0
    %v5860 = vld [vmem:[%s31] sm:$0xff]
    %v5861 = vld [vmem:[%s31 + $0x8] sm:$0xff]
    %5862 = vmatprep.subr.mxu0 0.0
    %5863 = vmatpush1.msra.mxu0 %v5860
    %5864 = vmatprep.subr.mxu0 0.0
    %5865 = vmatpush1.msra.mxu0 %v5861
    %5866 = vmatprep.subr.mxu0 0.0
    %5867 = vmatpush1.msra.mxu0 0.0
    %5868 = vmatprep.subr.mxu0 0.0
    %5869 = vmatpush1.msra.mxu0 0.0
    %5870 = vmatprep.subr.mxu0 0.0
    %5871 = vmatpush1.msra.mxu0 0.0
    %5872 = vmatprep.subr.mxu0 0.0
    %5873 = vmatpush1.msra.mxu0 0.0
    %5874 = vmatprep.subr.mxu0 0.0
    %5875 = vmatpush1.msra.mxu0 0.0
    %5876 = vmatprep.subr.mxu0 0.0
    %5877 = vmatpush1.msra.mxu0 0.0
    %5878 = vmatprep.subr.mxu0 0.0
    %5879 = vmatpush1.msra.mxu0 0.0
    %5880 = vmatprep.subr.mxu0 0.0
    %5881 = vmatpush1.msra.mxu0 0.0
    %5882 = vmatprep.subr.mxu0 0.0
    %5883 = vmatpush1.msra.mxu0 0.0
    %5884 = vmatprep.subr.mxu0 0.0
    %5885 = vmatpush1.msra.mxu0 0.0
    %5886 = vmatprep.subr.mxu0 0.0
    %5887 = vmatpush1.msra.mxu0 0.0
    %5888 = vmatprep.subr.mxu0 0.0
    %5889 = vmatpush1.msra.mxu0 0.0
    %5890 = vmatprep.subr.mxu0 0.0
    %5891 = vmatpush1.msra.mxu0 0.0
    %5892 = vmatprep.subr.mxu0 0.0
    %5893 = vmatpush1.msra.mxu0 0.0
    %5894 = vmatprep.subr.mxu0 0.0
    %5895 = vmatpush1.msra.mxu0 0.0
    %5896 = vmatprep.subr.mxu0 0.0
    %5897 = vmatpush1.msra.mxu0 0.0
    %5898 = vmatprep.subr.mxu0 0.0
    %5899 = vmatpush1.msra.mxu0 0.0
    %5900 = vmatprep.subr.mxu0 0.0
    %5901 = vmatpush1.msra.mxu0 0.0
    %5902 = vmatprep.subr.mxu0 0.0
    %5903 = vmatpush1.msra.mxu0 0.0
    %5904 = vmatprep.subr.mxu0 0.0
    %5905 = vmatpush1.msra.mxu0 0.0
    %5906 = vmatprep.subr.mxu0 0.0
    %5907 = vmatpush1.msra.mxu0 0.0
    %5908 = vmatprep.subr.mxu0 0.0
    %5909 = vmatpush1.msra.mxu0 0.0
    %5910 = vmatprep.subr.mxu0 0.0
    %5911 = vmatpush1.msra.mxu0 0.0
    %5912 = vmatprep.subr.mxu0 0.0
    %5913 = vmatpush1.msra.mxu0 0.0
    %5914 = vmatprep.subr.mxu0 0.0
    %5915 = vmatpush1.msra.mxu0 0.0
    %5916 = vmatprep.subr.mxu0 0.0
    %5917 = vmatpush1.msra.mxu0 0.0
    %5918 = vmatprep.subr.mxu0 0.0
    %5919 = vmatpush1.msra.mxu0 0.0
    %5920 = vmatprep.subr.mxu0 0.0
    %5921 = vmatpush1.msra.mxu0 0.0
    %5922 = vmatprep.subr.mxu0 0.0
    %5923 = vmatpush1.msra.mxu0 0.0
    %5924 = vmatprep.subr.mxu0 0.0
    %5925 = vmatpush1.msra.mxu0 0.0
    %5926 = vmatprep.mubr.f32.mxu0 0.0
    %5927 = vmatmul.mubr.f32.gmra.mrb[0].mxu0 %v5764
    %v5928 = vpop.f32.mrb[0].mxu0
    %v5929 = vadd.f32 0.0, %v5928
    %v5930 = vpop.f32.mrb[0].mxu0
    %5931 = vmatprep.mubr.f32.mxu0 0.0
    %5932 = vmatmul.mubr.f32.gmra.mrb[0].mxu0 %v5767
    %v5933 = vpop.f32.mrb[0].mxu0
    %v5934 = vadd.f32 0.0, %v5933
    %v5935 = vpop.f32.mrb[0].mxu0
    %5936 = vmatprep.mubr.f32.mxu0 0.0
    %5937 = vmatmul.mubr.f32.gmra.mrb[0].mxu0 %v5770
    %v5938 = vpop.f32.mrb[0].mxu0
    %v5939 = vadd.f32 0.0, %v5938
    %v5940 = vpop.f32.mrb[0].mxu0
    %5941 = vmatprep.mubr.f32.mxu0 0.0
    %5942 = vmatmul.mubr.f32.gmra.mrb[0].mxu0 %v5773
    %v5943 = vpop.f32.mrb[0].mxu0
    %v5944 = vadd.f32 0.0, %v5943
    %v5945 = vpop.f32.mrb[0].mxu0
    %5946 = vdwg.mxu0
    %v5948 = vsel %vm5762, %v5929, 0
    %v5951 = vsel %vm5762, %v5934, 0
    %v5954 = vsel %vm5762, %v5939, 0
    %v5957 = vsel %vm5762, %v5944, 0
    %5959 = vmatprep.subr.mxu0 0.0
    %5960 = vmatpush1.xpose.msra.mxu0 %v5764
    %5961 = vmatprep.subr.mxu0 0.0
    %5962 = vmatpush1.xpose.msra.mxu0 %v5767
    %5963 = vmatprep.subr.mxu0 0.0
    %5964 = vmatpush1.xpose.msra.mxu0 %v5770
    %5965 = vmatprep.subr.mxu0 0.0
    %5966 = vmatpush1.xpose.msra.mxu0 %v5773
    %5967 = vmatprep.subr.mxu0 0.0
    %5968 = vmatpush1.xpose.msra.mxu0 0.0
    %5969 = vmatprep.subr.mxu0 0.0
    %5970 = vmatpush1.xpose.msra.mxu0 0.0
    %5971 = vmatprep.subr.mxu0 0.0
    %5972 = vmatpush1.xpose.msra.mxu0 0.0
    %5973 = vmatprep.subr.mxu0 0.0
    %5974 = vmatpush1.xpose.msra.mxu0 0.0
    %5975 = vmatprep.subr.mxu0 0.0
    %5976 = vmatpush1.xpose.msra.mxu0 0.0
    %5977 = vmatprep.subr.mxu0 0.0
    %5978 = vmatpush1.xpose.msra.mxu0 0.0
    %5979 = vmatprep.subr.mxu0 0.0
    %5980 = vmatpush1.xpose.msra.mxu0 0.0
    %5981 = vmatprep.subr.mxu0 0.0
    %5982 = vmatpush1.xpose.msra.mxu0 0.0
    %5983 = vmatprep.subr.mxu0 0.0
    %5984 = vmatpush1.xpose.msra.mxu0 0.0
    %5985 = vmatprep.subr.mxu0 0.0
    %5986 = vmatpush1.xpose.msra.mxu0 0.0
    %5987 = vmatprep.subr.mxu0 0.0
    %5988 = vmatpush1.xpose.msra.mxu0 0.0
    %5989 = vmatprep.subr.mxu0 0.0
    %5990 = vmatpush1.xpose.msra.mxu0 0.0
    %5991 = vmatprep.subr.mxu0 0.0
    %5992 = vmatpush1.xpose.msra.mxu0 0.0
    %5993 = vmatprep.subr.mxu0 0.0
    %5994 = vmatpush1.xpose.msra.mxu0 0.0
    %5995 = vmatprep.subr.mxu0 0.0
    %5996 = vmatpush1.xpose.msra.mxu0 0.0
    %5997 = vmatprep.subr.mxu0 0.0
    %5998 = vmatpush1.xpose.msra.mxu0 0.0
    %5999 = vmatprep.subr.mxu0 0.0
    %6000 = vmatpush1.xpose.msra.mxu0 0.0
    %6001 = vmatprep.subr.mxu0 0.0
    %6002 = vmatpush1.xpose.msra.mxu0 0.0
    %6003 = vmatprep.subr.mxu0 0.0
    %6004 = vmatpush1.xpose.msra.mxu0 0.0
    %6005 = vmatprep.subr.mxu0 0.0
    %6006 = vmatpush1.xpose.msra.mxu0 0.0
    %6007 = vmatprep.subr.mxu0 0.0
    %6008 = vmatpush1.xpose.msra.mxu0 0.0
    %6009 = vmatprep.subr.mxu0 0.0
    %6010 = vmatpush1.xpose.msra.mxu0 0.0
    %6011 = vmatprep.subr.mxu0 0.0
    %6012 = vmatpush1.xpose.msra.mxu0 0.0
    %6013 = vmatprep.subr.mxu0 0.0
    %6014 = vmatpush1.xpose.msra.mxu0 0.0
    %6015 = vmatprep.subr.mxu0 0.0
    %6016 = vmatpush1.xpose.msra.mxu0 0.0
    %6017 = vmatprep.subr.mxu0 0.0
    %6018 = vmatpush1.xpose.msra.mxu0 0.0
    %6019 = vmatprep.subr.mxu0 0.0
    %6020 = vmatpush1.xpose.msra.mxu0 0.0
    %6021 = vmatprep.subr.mxu0 0.0
    %6022 = vmatpush1.xpose.msra.mxu0 0.0
    %6023 = vmatprep.mubr.f32.mxu0 0.0
    %6024 = vmatmul.mubr.f32.gmra.mrb[0].mxu0 %v5948
    %v6025 = vpop.f32.mrb[0].mxu0
    %v6026 = vadd.f32 0.0, %v6025
    %v6027 = vpop.f32.mrb[0].mxu0
    %6028 = vmatprep.mubr.f32.mxu0 0.0
    %6029 = vmatmul.mubr.f32.gmra.mrb[0].mxu0 %v5951
    %v6030 = vpop.f32.mrb[0].mxu0
    %v6031 = vadd.f32 0.0, %v6030
    %v6032 = vpop.f32.mrb[0].mxu0
    %6033 = vmatprep.mubr.f32.mxu0 0.0
    %6034 = vmatmul.mubr.f32.gmra.mrb[0].mxu0 %v5954
    %v6035 = vpop.f32.mrb[0].mxu0
    %v6036 = vadd.f32 0.0, %v6035
    %v6037 = vpop.f32.mrb[0].mxu0
    %6038 = vmatprep.mubr.f32.mxu0 0.0
    %6039 = vmatmul.mubr.f32.gmra.mrb[0].mxu0 %v5957
    %v6040 = vpop.f32.mrb[0].mxu0
    %v6041 = vadd.f32 0.0, %v6040
    %v6042 = vpop.f32.mrb[0].mxu0
    %6043 = vdwg.mxu0
    %v6044 = vmul.f32 %v6026, %v5744
    %v6045 = vmul.f32 %v6031, %v5745
    %v6046 = vmul.f32 %v6036, %v5746
    %v6047 = vmul.f32 %v6041, %v5747
    %v6048 = vadd.f32 %v6044, %v5748
    %v6049 = vadd.f32 %v6045, %v5749
    %v6050 = vadd.f32 %v6046, %v5750
    %v6051 = vadd.f32 %v6047, %v5751
    %v6052 = vsel %vm440, %v6048, -inf
    %6053 = vmax.xlane.f32.xlu0 %v6052
    %v6054 = vpop.xlane.xlu0 %6053
    %v6055 = vsel %vm440, %v6049, -inf
    %6056 = vmax.xlane.f32.xlu0 %v6055
    %v6057 = vpop.xlane.xlu0 %6056
    %v6058 = vsel %vm440, %v6050, -inf
    %6059 = vmax.xlane.f32.xlu0 %v6058
    %v6060 = vpop.xlane.xlu0 %6059
    %v6061 = vsel %vm440, %v6051, -inf
    %6062 = vmax.xlane.f32.xlu0 %v6061
    %v6063 = vpop.xlane.xlu0 %6062
    %v6064 = vsub.f32 %v6048, %v6054
    %v6065 = vsub.f32 %v6049, %v6057
    %v6066 = vsub.f32 %v6050, %v6060
    %v6067 = vsub.f32 %v6051, %v6063
    %v6068 = vmul.f32 %v6064, 1.442695
    %v6069 = vpow.pop %v6068
    %v6070 = vmul.f32 %v6065, 1.442695
    %v6071 = vpow.pop %v6070
    %v6072 = vmul.f32 %v6066, 1.442695
    %v6073 = vpow.pop %v6072
    %v6074 = vmul.f32 %v6067, 1.442695
    %v6075 = vpow.pop %v6074
    %v6076 = vsel %vm440, %v6069, 0.0
    %6077 = vadd.xlane.f32.xlu0 %v6076
    %v6078 = vpop.xlane.xlu0 %6077
    %v6079 = vsel %vm440, %v6071, 0.0
    %6080 = vadd.xlane.f32.xlu0 %v6079
    %v6081 = vpop.xlane.xlu0 %6080
    %v6082 = vsel %vm440, %v6073, 0.0
    %6083 = vadd.xlane.f32.xlu0 %v6082
    %v6084 = vpop.xlane.xlu0 %6083
    %v6085 = vsel %vm440, %v6075, 0.0
    %6086 = vadd.xlane.f32.xlu0 %v6085
    %v6087 = vpop.xlane.xlu0 %6086
    %v6088 = vrcp.pop %v6078
    %v6089 = vrcp.pop %v6081
    %v6090 = vrcp.pop %v6084
    %v6091 = vrcp.pop %v6087
    %v6092 = vmul.f32 %v6069, %v6088
    %v6093 = vmul.f32 %v6071, %v6089
    %v6094 = vmul.f32 %v6073, %v6090
    %v6095 = vmul.f32 %v6075, %v6091
    %v6096 = vld [vmem:[%s35] sm:$0x1]
    %v6098 = vlaneseq
    %v6099 = vshrl.u32 %v6098, 7
    %v6100 = vsub.s32 0, %v6099
    %v6101 = vrot.slane %v6096, %v6100
    %v6103 = vmul.f32 %v5842, %v6101
    %v6104 = vmul.f32 %v5847, %v6101
    %v6105 = vmul.f32 %v5852, %v6101
    %v6106 = vmul.f32 %v5857, %v6101
    %s6107 = scalar_lea.vmem %s31, 16
    %v6108 = vld [vmem:[%s6107] sm:$0xff]
    %v6109 = vld [vmem:[%s6107 + $0x8] sm:$0xff]
    %6110 = vmatprep.subr.mxu0 0.0
    %6111 = vmatpush1.msra.mxu0 %v6108
    %6112 = vmatprep.subr.mxu0 0.0
    %6113 = vmatpush1.msra.mxu0 %v6109
    %6114 = vmatprep.subr.mxu0 0.0
    %6115 = vmatpush1.msra.mxu0 0.0
    %6116 = vmatprep.subr.mxu0 0.0
    %6117 = vmatpush1.msra.mxu0 0.0
    %6118 = vmatprep.subr.mxu0 0.0
    %6119 = vmatpush1.msra.mxu0 0.0
    %6120 = vmatprep.subr.mxu0 0.0
    %6121 = vmatpush1.msra.mxu0 0.0
    %6122 = vmatprep.subr.mxu0 0.0
    %6123 = vmatpush1.msra.mxu0 0.0
    %6124 = vmatprep.subr.mxu0 0.0
    %6125 = vmatpush1.msra.mxu0 0.0
    %6126 = vmatprep.subr.mxu0 0.0
    %6127 = vmatpush1.msra.mxu0 0.0
    %6128 = vmatprep.subr.mxu0 0.0
    %6129 = vmatpush1.msra.mxu0 0.0
    %6130 = vmatprep.subr.mxu0 0.0
    %6131 = vmatpush1.msra.mxu0 0.0
    %6132 = vmatprep.subr.mxu0 0.0
    %6133 = vmatpush1.msra.mxu0 0.0
    %6134 = vmatprep.subr.mxu0 0.0
    %6135 = vmatpush1.msra.mxu0 0.0
    %6136 = vmatprep.subr.mxu0 0.0
    %6137 = vmatpush1.msra.mxu0 0.0
    %6138 = vmatprep.subr.mxu0 0.0
    %6139 = vmatpush1.msra.mxu0 0.0
    %6140 = vmatprep.subr.mxu0 0.0
    %6141 = vmatpush1.msra.mxu0 0.0
    %6142 = vmatprep.subr.mxu0 0.0
    %6143 = vmatpush1.msra.mxu0 0.0
    %6144 = vmatprep.subr.mxu0 0.0
    %6145 = vmatpush1.msra.mxu0 0.0
    %6146 = vmatprep.subr.mxu0 0.0
    %6147 = vmatpush1.msra.mxu0 0.0
    %6148 = vmatprep.subr.mxu0 0.0
    %6149 = vmatpush1.msra.mxu0 0.0
    %6150 = vmatprep.subr.mxu0 0.0
    %6151 = vmatpush1.msra.mxu0 0.0
    %6152 = vmatprep.subr.mxu0 0.0
    %6153 = vmatpush1.msra.mxu0 0.0
    %6154 = vmatprep.subr.mxu0 0.0
    %6155 = vmatpush1.msra.mxu0 0.0
    %6156 = vmatprep.subr.mxu0 0.0
    %6157 = vmatpush1.msra.mxu0 0.0
    %6158 = vmatprep.subr.mxu0 0.0
    %6159 = vmatpush1.msra.mxu0 0.0
    %6160 = vmatprep.subr.mxu0 0.0
    %6161 = vmatpush1.msra.mxu0 0.0
    %6162 = vmatprep.subr.mxu0 0.0
    %6163 = vmatpush1.msra.mxu0 0.0
    %6164 = vmatprep.subr.mxu0 0.0
    %6165 = vmatpush1.msra.mxu0 0.0
    %6166 = vmatprep.subr.mxu0 0.0
    %6167 = vmatpush1.msra.mxu0 0.0
    %6168 = vmatprep.subr.mxu0 0.0
    %6169 = vmatpush1.msra.mxu0 0.0
    %6170 = vmatprep.subr.mxu0 0.0
    %6171 = vmatpush1.msra.mxu0 0.0
    %6172 = vmatprep.subr.mxu0 0.0
    %6173 = vmatpush1.msra.mxu0 0.0
    %6174 = vmatprep.mubr.f32.mxu0 0.0
    %6175 = vmatmul.mubr.f32.gmra.mrb[0].mxu0 %v5764
    %v6176 = vpop.f32.mrb[0].mxu0
    %v6177 = vadd.f32 0.0, %v6176
    %v6178 = vpop.f32.mrb[0].mxu0
    %6179 = vmatprep.mubr.f32.mxu0 0.0
    %6180 = vmatmul.mubr.f32.gmra.mrb[0].mxu0 %v5767
    %v6181 = vpop.f32.mrb[0].mxu0
    %v6182 = vadd.f32 0.0, %v6181
    %v6183 = vpop.f32.mrb[0].mxu0
    %6184 = vmatprep.mubr.f32.mxu0 0.0
    %6185 = vmatmul.mubr.f32.gmra.mrb[0].mxu0 %v5770
    %v6186 = vpop.f32.mrb[0].mxu0
    %v6187 = vadd.f32 0.0, %v6186
    %v6188 = vpop.f32.mrb[0].mxu0
    %6189 = vmatprep.mubr.f32.mxu0 0.0
    %6190 = vmatmul.mubr.f32.gmra.mrb[0].mxu0 %v5773
    %v6191 = vpop.f32.mrb[0].mxu0
    %v6192 = vadd.f32 0.0, %v6191
    %v6193 = vpop.f32.mrb[0].mxu0
    %6194 = vdwg.mxu0
    %v6196 = vsel %vm5762, %v6177, 0
    %v6199 = vsel %vm5762, %v6182, 0
    %v6202 = vsel %vm5762, %v6187, 0
    %v6205 = vsel %vm5762, %v6192, 0
    %6207 = vmatprep.subr.mxu0 0.0
    %6208 = vmatpush1.xpose.msra.mxu0 %v5764
    %6209 = vmatprep.subr.mxu0 0.0
    %6210 = vmatpush1.xpose.msra.mxu0 %v5767
    %6211 = vmatprep.subr.mxu0 0.0
    %6212 = vmatpush1.xpose.msra.mxu0 %v5770
    %6213 = vmatprep.subr.mxu0 0.0
    %6214 = vmatpush1.xpose.msra.mxu0 %v5773
    %6215 = vmatprep.subr.mxu0 0.0
    %6216 = vmatpush1.xpose.msra.mxu0 0.0
    %6217 = vmatprep.subr.mxu0 0.0
    %6218 = vmatpush1.xpose.msra.mxu0 0.0
    %6219 = vmatprep.subr.mxu0 0.0
    %6220 = vmatpush1.xpose.msra.mxu0 0.0
    %6221 = vmatprep.subr.mxu0 0.0
    %6222 = vmatpush1.xpose.msra.mxu0 0.0
    %6223 = vmatprep.subr.mxu0 0.0
    %6224 = vmatpush1.xpose.msra.mxu0 0.0
    %6225 = vmatprep.subr.mxu0 0.0
    %6226 = vmatpush1.xpose.msra.mxu0 0.0
    %6227 = vmatprep.subr.mxu0 0.0
    %6228 = vmatpush1.xpose.msra.mxu0 0.0
    %6229 = vmatprep.subr.mxu0 0.0
    %6230 = vmatpush1.xpose.msra.mxu0 0.0
    %6231 = vmatprep.subr.mxu0 0.0
    %6232 = vmatpush1.xpose.msra.mxu0 0.0
    %6233 = vmatprep.subr.mxu0 0.0
    %6234 = vmatpush1.xpose.msra.mxu0 0.0
    %6235 = vmatprep.subr.mxu0 0.0
    %6236 = vmatpush1.xpose.msra.mxu0 0.0
    %6237 = vmatprep.subr.mxu0 0.0
    %6238 = vmatpush1.xpose.msra.mxu0 0.0
    %6239 = vmatprep.subr.mxu0 0.0
    %6240 = vmatpush1.xpose.msra.mxu0 0.0
    %6241 = vmatprep.subr.mxu0 0.0
    %6242 = vmatpush1.xpose.msra.mxu0 0.0
    %6243 = vmatprep.subr.mxu0 0.0
    %6244 = vmatpush1.xpose.msra.mxu0 0.0
    %6245 = vmatprep.subr.mxu0 0.0
    %6246 = vmatpush1.xpose.msra.mxu0 0.0
    %6247 = vmatprep.subr.mxu0 0.0
    %6248 = vmatpush1.xpose.msra.mxu0 0.0
    %6249 = vmatprep.subr.mxu0 0.0
    %6250 = vmatpush1.xpose.msra.mxu0 0.0
    %6251 = vmatprep.subr.mxu0 0.0
    %6252 = vmatpush1.xpose.msra.mxu0 0.0
    %6253 = vmatprep.subr.mxu0 0.0
    %6254 = vmatpush1.xpose.msra.mxu0 0.0
    %6255 = vmatprep.subr.mxu0 0.0
    %6256 = vmatpush1.xpose.msra.mxu0 0.0
    %6257 = vmatprep.subr.mxu0 0.0
    %6258 = vmatpush1.xpose.msra.mxu0 0.0
    %6259 = vmatprep.subr.mxu0 0.0
    %6260 = vmatpush1.xpose.msra.mxu0 0.0
    %6261 = vmatprep.subr.mxu0 0.0
    %6262 = vmatpush1.xpose.msra.mxu0 0.0
    %6263 = vmatprep.subr.mxu0 0.0
    %6264 = vmatpush1.xpose.msra.mxu0 0.0
    %6265 = vmatprep.subr.mxu0 0.0
    %6266 = vmatpush1.xpose.msra.mxu0 0.0
    %6267 = vmatprep.subr.mxu0 0.0
    %6268 = vmatpush1.xpose.msra.mxu0 0.0
    %6269 = vmatprep.subr.mxu0 0.0
    %6270 = vmatpush1.xpose.msra.mxu0 0.0
    %6271 = vmatprep.mubr.f32.mxu0 0.0
    %6272 = vmatmul.mubr.f32.gmra.mrb[0].mxu0 %v6196
    %v6273 = vpop.f32.mrb[0].mxu0
    %v6274 = vadd.f32 0.0, %v6273
    %v6275 = vpop.f32.mrb[0].mxu0
    %6276 = vmatprep.mubr.f32.mxu0 0.0
    %6277 = vmatmul.mubr.f32.gmra.mrb[0].mxu0 %v6199
    %v6278 = vpop.f32.mrb[0].mxu0
    %v6279 = vadd.f32 0.0, %v6278
    %v6280 = vpop.f32.mrb[0].mxu0
    %6281 = vmatprep.mubr.f32.mxu0 0.0
    %6282 = vmatmul.mubr.f32.gmra.mrb[0].mxu0 %v6202
    %v6283 = vpop.f32.mrb[0].mxu0
    %v6284 = vadd.f32 0.0, %v6283
    %v6285 = vpop.f32.mrb[0].mxu0
    %6286 = vmatprep.mubr.f32.mxu0 0.0
    %6287 = vmatmul.mubr.f32.gmra.mrb[0].mxu0 %v6205
    %v6288 = vpop.f32.mrb[0].mxu0
    %v6289 = vadd.f32 0.0, %v6288
    %v6290 = vpop.f32.mrb[0].mxu0
    %6291 = vdwg.mxu0
    %v6292 = vmul.f32 %v6274, %v5744
    %v6293 = vmul.f32 %v6279, %v5745
    %v6294 = vmul.f32 %v6284, %v5746
    %v6295 = vmul.f32 %v6289, %v5747
    %v6296 = vadd.f32 %v6292, %v5748
    %v6297 = vadd.f32 %v6293, %v5749
    %v6298 = vadd.f32 %v6294, %v5750
    %v6299 = vadd.f32 %v6295, %v5751
    %v6300 = vsel %vm440, %v6296, -inf
    %6301 = vmax.xlane.f32.xlu0 %v6300
    %v6302 = vpop.xlane.xlu0 %6301
    %v6303 = vsel %vm440, %v6297, -inf
    %6304 = vmax.xlane.f32.xlu0 %v6303
    %v6305 = vpop.xlane.xlu0 %6304
    %v6306 = vsel %vm440, %v6298, -inf
    %6307 = vmax.xlane.f32.xlu0 %v6306
    %v6308 = vpop.xlane.xlu0 %6307
    %v6309 = vsel %vm440, %v6299, -inf
    %6310 = vmax.xlane.f32.xlu0 %v6309
    %v6311 = vpop.xlane.xlu0 %6310
    %v6312 = vsub.f32 %v6296, %v6302
    %v6313 = vsub.f32 %v6297, %v6305
    %v6314 = vsub.f32 %v6298, %v6308
    %v6315 = vsub.f32 %v6299, %v6311
    %v6316 = vmul.f32 %v6312, 1.442695
    %v6317 = vpow.pop %v6316
    %v6318 = vmul.f32 %v6313, 1.442695
    %v6319 = vpow.pop %v6318
    %v6320 = vmul.f32 %v6314, 1.442695
    %v6321 = vpow.pop %v6320
    %v6322 = vmul.f32 %v6315, 1.442695
    %v6323 = vpow.pop %v6322
    %v6324 = vsel %vm440, %v6317, 0.0
    %6325 = vadd.xlane.f32.xlu0 %v6324
    %v6326 = vpop.xlane.xlu0 %6325
    %v6327 = vsel %vm440, %v6319, 0.0
    %6328 = vadd.xlane.f32.xlu0 %v6327
    %v6329 = vpop.xlane.xlu0 %6328
    %v6330 = vsel %vm440, %v6321, 0.0
    %6331 = vadd.xlane.f32.xlu0 %v6330
    %v6332 = vpop.xlane.xlu0 %6331
    %v6333 = vsel %vm440, %v6323, 0.0
    %6334 = vadd.xlane.f32.xlu0 %v6333
    %v6335 = vpop.xlane.xlu0 %6334
    %v6336 = vrcp.pop %v6326
    %v6337 = vrcp.pop %v6329
    %v6338 = vrcp.pop %v6332
    %v6339 = vrcp.pop %v6335
    %v6340 = vmul.f32 %v6317, %v6336
    %v6341 = vmul.f32 %v6319, %v6337
    %v6342 = vmul.f32 %v6321, %v6338
    %v6343 = vmul.f32 %v6323, %v6339
    %s6344 = scalar_lea.vmem %s35, 1
    %v6345 = vld [vmem:[%s6344] sm:$0x1]
    %v6347 = vlaneseq
    %v6348 = vshrl.u32 %v6347, 7
    %v6349 = vsub.s32 0, %v6348
    %v6350 = vrot.slane %v6345, %v6349
    %v6352 = vmul.f32 %v5842, %v6350
    %v6353 = vmul.f32 %v5847, %v6350
    %v6354 = vmul.f32 %v5852, %v6350
    %v6355 = vmul.f32 %v5857, %v6350
    %v6357 = vsel %vm440, %v6340, 0
    %v6360 = vsel %vm440, %v6341, 0
    %v6363 = vsel %vm440, %v6342, 0
    %v6366 = vsel %vm440, %v6343, 0
    %6368 = vmatprep.subr.mxu0 0.0
    %6369 = vmatpush1.msra.mxu0 %v6352
    %6370 = vmatprep.subr.mxu0 0.0
    %6371 = vmatpush1.msra.mxu0 %v6353
    %6372 = vmatprep.subr.mxu0 0.0
    %6373 = vmatpush1.msra.mxu0 %v6354
    %6374 = vmatprep.subr.mxu0 0.0
    %6375 = vmatpush1.msra.mxu0 %v6355
    %6376 = vmatprep.subr.mxu0 0.0
    %6377 = vmatpush1.msra.mxu0 0.0
    %6378 = vmatprep.subr.mxu0 0.0
    %6379 = vmatpush1.msra.mxu0 0.0
    %6380 = vmatprep.subr.mxu0 0.0
    %6381 = vmatpush1.msra.mxu0 0.0
    %6382 = vmatprep.subr.mxu0 0.0
    %6383 = vmatpush1.msra.mxu0 0.0
    %6384 = vmatprep.subr.mxu0 0.0
    %6385 = vmatpush1.msra.mxu0 0.0
    %6386 = vmatprep.subr.mxu0 0.0
    %6387 = vmatpush1.msra.mxu0 0.0
    %6388 = vmatprep.subr.mxu0 0.0
    %6389 = vmatpush1.msra.mxu0 0.0
    %6390 = vmatprep.subr.mxu0 0.0
    %6391 = vmatpush1.msra.mxu0 0.0
    %6392 = vmatprep.subr.mxu0 0.0
    %6393 = vmatpush1.msra.mxu0 0.0
    %6394 = vmatprep.subr.mxu0 0.0
    %6395 = vmatpush1.msra.mxu0 0.0
    %6396 = vmatprep.subr.mxu0 0.0
    %6397 = vmatpush1.msra.mxu0 0.0
    %6398 = vmatprep.subr.mxu0 0.0
    %6399 = vmatpush1.msra.mxu0 0.0
    %6400 = vmatprep.subr.mxu0 0.0
    %6401 = vmatpush1.msra.mxu0 0.0
    %6402 = vmatprep.subr.mxu0 0.0
    %6403 = vmatpush1.msra.mxu0 0.0
    %6404 = vmatprep.subr.mxu0 0.0
    %6405 = vmatpush1.msra.mxu0 0.0
    %6406 = vmatprep.subr.mxu0 0.0
    %6407 = vmatpush1.msra.mxu0 0.0
    %6408 = vmatprep.subr.mxu0 0.0
    %6409 = vmatpush1.msra.mxu0 0.0
    %6410 = vmatprep.subr.mxu0 0.0
    %6411 = vmatpush1.msra.mxu0 0.0
    %6412 = vmatprep.subr.mxu0 0.0
    %6413 = vmatpush1.msra.mxu0 0.0
    %6414 = vmatprep.subr.mxu0 0.0
    %6415 = vmatpush1.msra.mxu0 0.0
    %6416 = vmatprep.subr.mxu0 0.0
    %6417 = vmatpush1.msra.mxu0 0.0
    %6418 = vmatprep.subr.mxu0 0.0
    %6419 = vmatpush1.msra.mxu0 0.0
    %6420 = vmatprep.subr.mxu0 0.0
    %6421 = vmatpush1.msra.mxu0 0.0
    %6422 = vmatprep.subr.mxu0 0.0
    %6423 = vmatpush1.msra.mxu0 0.0
    %6424 = vmatprep.subr.mxu0 0.0
    %6425 = vmatpush1.msra.mxu0 0.0
    %6426 = vmatprep.subr.mxu0 0.0
    %6427 = vmatpush1.msra.mxu0 0.0
    %6428 = vmatprep.subr.mxu0 0.0
    %6429 = vmatpush1.msra.mxu0 0.0
    %6430 = vmatprep.subr.mxu0 0.0
    %6431 = vmatpush1.msra.mxu0 0.0
    %6432 = vmatprep.mubr.f32.mxu0 0.0
    %6433 = vmatmul.mubr.f32.gmra.mrb[0].mxu0 %v6357
    %v6434 = vpop.f32.mrb[0].mxu0
    %v6435 = vadd.f32 0.0, %v6434
    %v6436 = vpop.f32.mrb[0].mxu0
    %6437 = vmatprep.mubr.f32.mxu0 0.0
    %6438 = vmatmul.mubr.f32.gmra.mrb[0].mxu0 %v6360
    %v6439 = vpop.f32.mrb[0].mxu0
    %v6440 = vadd.f32 0.0, %v6439
    %v6441 = vpop.f32.mrb[0].mxu0
    %6442 = vmatprep.mubr.f32.mxu0 0.0
    %6443 = vmatmul.mubr.f32.gmra.mrb[0].mxu0 %v6363
    %v6444 = vpop.f32.mrb[0].mxu0
    %v6445 = vadd.f32 0.0, %v6444
    %v6446 = vpop.f32.mrb[0].mxu0
    %6447 = vmatprep.mubr.f32.mxu0 0.0
    %6448 = vmatmul.mubr.f32.gmra.mrb[0].mxu0 %v6366
    %v6449 = vpop.f32.mrb[0].mxu0
    %v6450 = vadd.f32 0.0, %v6449
    %v6451 = vpop.f32.mrb[0].mxu0
    %6452 = vdwg.mxu0
    %v6454 = vsel %vm440, %v6092, 0
    %v6457 = vsel %vm440, %v6093, 0
    %v6460 = vsel %vm440, %v6094, 0
    %v6463 = vsel %vm440, %v6095, 0
    %6465 = vmatprep.subr.mxu0 0.0
    %6466 = vmatpush1.msra.mxu0 %v6103
    %6467 = vmatprep.subr.mxu0 0.0
    %6468 = vmatpush1.msra.mxu0 %v6104
    %6469 = vmatprep.subr.mxu0 0.0
    %6470 = vmatpush1.msra.mxu0 %v6105
    %6471 = vmatprep.subr.mxu0 0.0
    %6472 = vmatpush1.msra.mxu0 %v6106
    %6473 = vmatprep.subr.mxu0 0.0
    %6474 = vmatpush1.msra.mxu0 0.0
    %6475 = vmatprep.subr.mxu0 0.0
    %6476 = vmatpush1.msra.mxu0 0.0
    %6477 = vmatprep.subr.mxu0 0.0
    %6478 = vmatpush1.msra.mxu0 0.0
    %6479 = vmatprep.subr.mxu0 0.0
    %6480 = vmatpush1.msra.mxu0 0.0
    %6481 = vmatprep.subr.mxu0 0.0
    %6482 = vmatpush1.msra.mxu0 0.0
    %6483 = vmatprep.subr.mxu0 0.0
    %6484 = vmatpush1.msra.mxu0 0.0
    %6485 = vmatprep.subr.mxu0 0.0
    %6486 = vmatpush1.msra.mxu0 0.0
    %6487 = vmatprep.subr.mxu0 0.0
    %6488 = vmatpush1.msra.mxu0 0.0
    %6489 = vmatprep.subr.mxu0 0.0
    %6490 = vmatpush1.msra.mxu0 0.0
    %6491 = vmatprep.subr.mxu0 0.0
    %6492 = vmatpush1.msra.mxu0 0.0
    %6493 = vmatprep.subr.mxu0 0.0
    %6494 = vmatpush1.msra.mxu0 0.0
    %6495 = vmatprep.subr.mxu0 0.0
    %6496 = vmatpush1.msra.mxu0 0.0
    %6497 = vmatprep.subr.mxu0 0.0
    %6498 = vmatpush1.msra.mxu0 0.0
    %6499 = vmatprep.subr.mxu0 0.0
    %6500 = vmatpush1.msra.mxu0 0.0
    %6501 = vmatprep.subr.mxu0 0.0
    %6502 = vmatpush1.msra.mxu0 0.0
    %6503 = vmatprep.subr.mxu0 0.0
    %6504 = vmatpush1.msra.mxu0 0.0
    %6505 = vmatprep.subr.mxu0 0.0
    %6506 = vmatpush1.msra.mxu0 0.0
    %6507 = vmatprep.subr.mxu0 0.0
    %6508 = vmatpush1.msra.mxu0 0.0
    %6509 = vmatprep.subr.mxu0 0.0
    %6510 = vmatpush1.msra.mxu0 0.0
    %6511 = vmatprep.subr.mxu0 0.0
    %6512 = vmatpush1.msra.mxu0 0.0
    %6513 = vmatprep.subr.mxu0 0.0
    %6514 = vmatpush1.msra.mxu0 0.0
    %6515 = vmatprep.subr.mxu0 0.0
    %6516 = vmatpush1.msra.mxu0 0.0
    %6517 = vmatprep.subr.mxu0 0.0
    %6518 = vmatpush1.msra.mxu0 0.0
    %6519 = vmatprep.subr.mxu0 0.0
    %6520 = vmatpush1.msra.mxu0 0.0
    %6521 = vmatprep.subr.mxu0 0.0
    %6522 = vmatpush1.msra.mxu0 0.0
    %6523 = vmatprep.subr.mxu0 0.0
    %6524 = vmatpush1.msra.mxu0 0.0
    %6525 = vmatprep.subr.mxu0 0.0
    %6526 = vmatpush1.msra.mxu0 0.0
    %6527 = vmatprep.subr.mxu0 0.0
    %6528 = vmatpush1.msra.mxu0 0.0
    %6529 = vmatprep.mubr.f32.mxu0 0.0
    %6530 = vmatmul.mubr.f32.gmra.mrb[0].mxu0 %v6454
    %v6531 = vpop.f32.mrb[0].mxu0
    %v6532 = vadd.f32 %v6435, %v6531
    %v6533 = vpop.f32.mrb[0].mxu0
    %6534 = vmatprep.mubr.f32.mxu0 0.0
    %6535 = vmatmul.mubr.f32.gmra.mrb[0].mxu0 %v6457
    %v6536 = vpop.f32.mrb[0].mxu0
    %v6537 = vadd.f32 %v6440, %v6536
    %v6538 = vpop.f32.mrb[0].mxu0
    %6539 = vmatprep.mubr.f32.mxu0 0.0
    %6540 = vmatmul.mubr.f32.gmra.mrb[0].mxu0 %v6460
    %v6541 = vpop.f32.mrb[0].mxu0
    %v6542 = vadd.f32 %v6445, %v6541
    %v6543 = vpop.f32.mrb[0].mxu0
    %6544 = vmatprep.mubr.f32.mxu0 0.0
    %6545 = vmatmul.mubr.f32.gmra.mrb[0].mxu0 %v6463
    %v6546 = vpop.f32.mrb[0].mxu0
    %v6547 = vadd.f32 %v6450, %v6546
    %v6548 = vpop.f32.mrb[0].mxu0
    %6549 = vdwg.mxu0
    %s6550 = scalar_lea.vmem %s31, 32
    %v6551 = vld [vmem:[%s6550] sm:$0xff]
    %v6552 = vld [vmem:[%s6550 + $0x8] sm:$0xff]
    %6553 = vmatprep.subr.mxu0 0.0
    %6554 = vmatpush1.msra.mxu0 %v6551
    %6555 = vmatprep.subr.mxu0 0.0
    %6556 = vmatpush1.msra.mxu0 %v6552
    %6557 = vmatprep.subr.mxu0 0.0
    %6558 = vmatpush1.msra.mxu0 0.0
    %6559 = vmatprep.subr.mxu0 0.0
    %6560 = vmatpush1.msra.mxu0 0.0
    %6561 = vmatprep.subr.mxu0 0.0
    %6562 = vmatpush1.msra.mxu0 0.0
    %6563 = vmatprep.subr.mxu0 0.0
    %6564 = vmatpush1.msra.mxu0 0.0
    %6565 = vmatprep.subr.mxu0 0.0
    %6566 = vmatpush1.msra.mxu0 0.0
    %6567 = vmatprep.subr.mxu0 0.0
    %6568 = vmatpush1.msra.mxu0 0.0
    %6569 = vmatprep.subr.mxu0 0.0
    %6570 = vmatpush1.msra.mxu0 0.0
    %6571 = vmatprep.subr.mxu0 0.0
    %6572 = vmatpush1.msra.mxu0 0.0
    %6573 = vmatprep.subr.mxu0 0.0
    %6574 = vmatpush1.msra.mxu0 0.0
    %6575 = vmatprep.subr.mxu0 0.0
    %6576 = vmatpush1.msra.mxu0 0.0
    %6577 = vmatprep.subr.mxu0 0.0
    %6578 = vmatpush1.msra.mxu0 0.0
    %6579 = vmatprep.subr.mxu0 0.0
    %6580 = vmatpush1.msra.mxu0 0.0
    %6581 = vmatprep.subr.mxu0 0.0
    %6582 = vmatpush1.msra.mxu0 0.0
    %6583 = vmatprep.subr.mxu0 0.0
    %6584 = vmatpush1.msra.mxu0 0.0
    %6585 = vmatprep.subr.mxu0 0.0
    %6586 = vmatpush1.msra.mxu0 0.0
    %6587 = vmatprep.subr.mxu0 0.0
    %6588 = vmatpush1.msra.mxu0 0.0
    %6589 = vmatprep.subr.mxu0 0.0
    %6590 = vmatpush1.msra.mxu0 0.0
    %6591 = vmatprep.subr.mxu0 0.0
    %6592 = vmatpush1.msra.mxu0 0.0
    %6593 = vmatprep.subr.mxu0 0.0
    %6594 = vmatpush1.msra.mxu0 0.0
    %6595 = vmatprep.subr.mxu0 0.0
    %6596 = vmatpush1.msra.mxu0 0.0
    %6597 = vmatprep.subr.mxu0 0.0
    %6598 = vmatpush1.msra.mxu0 0.0
    %6599 = vmatprep.subr.mxu0 0.0
    %6600 = vmatpush1.msra.mxu0 0.0
    %6601 = vmatprep.subr.mxu0 0.0
    %6602 = vmatpush1.msra.mxu0 0.0
    %6603 = vmatprep.subr.mxu0 0.0
    %6604 = vmatpush1.msra.mxu0 0.0
    %6605 = vmatprep.subr.mxu0 0.0
    %6606 = vmatpush1.msra.mxu0 0.0
    %6607 = vmatprep.subr.mxu0 0.0
    %6608 = vmatpush1.msra.mxu0 0.0
    %6609 = vmatprep.subr.mxu0 0.0
    %6610 = vmatpush1.msra.mxu0 0.0
    %6611 = vmatprep.subr.mxu0 0.0
    %6612 = vmatpush1.msra.mxu0 0.0
    %6613 = vmatprep.subr.mxu0 0.0
    %6614 = vmatpush1.msra.mxu0 0.0
    %6615 = vmatprep.subr.mxu0 0.0
    %6616 = vmatpush1.msra.mxu0 0.0
    %6617 = vmatprep.mubr.f32.mxu0 0.0
    %6618 = vmatmul.mubr.f32.gmra.mrb[0].mxu0 %v5764
    %v6619 = vpop.f32.mrb[0].mxu0
    %v6620 = vadd.f32 0.0, %v6619
    %v6621 = vpop.f32.mrb[0].mxu0
    %6622 = vmatprep.mubr.f32.mxu0 0.0
    %6623 = vmatmul.mubr.f32.gmra.mrb[0].mxu0 %v5767
    %v6624 = vpop.f32.mrb[0].mxu0
    %v6625 = vadd.f32 0.0, %v6624
    %v6626 = vpop.f32.mrb[0].mxu0
    %6627 = vmatprep.mubr.f32.mxu0 0.0
    %6628 = vmatmul.mubr.f32.gmra.mrb[0].mxu0 %v5770
    %v6629 = vpop.f32.mrb[0].mxu0
    %v6630 = vadd.f32 0.0, %v6629
    %v6631 = vpop.f32.mrb[0].mxu0
    %6632 = vmatprep.mubr.f32.mxu0 0.0
    %6633 = vmatmul.mubr.f32.gmra.mrb[0].mxu0 %v5773
    %v6634 = vpop.f32.mrb[0].mxu0
    %v6635 = vadd.f32 0.0, %v6634
    %v6636 = vpop.f32.mrb[0].mxu0
    %6637 = vdwg.mxu0
    %v6639 = vsel %vm5762, %v6620, 0
    %v6642 = vsel %vm5762, %v6625, 0
    %v6645 = vsel %vm5762, %v6630, 0
    %v6648 = vsel %vm5762, %v6635, 0
    %6650 = vmatprep.subr.mxu0 0.0
    %6651 = vmatpush1.xpose.msra.mxu0 %v5764
    %6652 = vmatprep.subr.mxu0 0.0
    %6653 = vmatpush1.xpose.msra.mxu0 %v5767
    %6654 = vmatprep.subr.mxu0 0.0
    %6655 = vmatpush1.xpose.msra.mxu0 %v5770
    %6656 = vmatprep.subr.mxu0 0.0
    %6657 = vmatpush1.xpose.msra.mxu0 %v5773
    %6658 = vmatprep.subr.mxu0 0.0
    %6659 = vmatpush1.xpose.msra.mxu0 0.0
    %6660 = vmatprep.subr.mxu0 0.0
    %6661 = vmatpush1.xpose.msra.mxu0 0.0
    %6662 = vmatprep.subr.mxu0 0.0
    %6663 = vmatpush1.xpose.msra.mxu0 0.0
    %6664 = vmatprep.subr.mxu0 0.0
    %6665 = vmatpush1.xpose.msra.mxu0 0.0
    %6666 = vmatprep.subr.mxu0 0.0
    %6667 = vmatpush1.xpose.msra.mxu0 0.0
    %6668 = vmatprep.subr.mxu0 0.0
    %6669 = vmatpush1.xpose.msra.mxu0 0.0
    %6670 = vmatprep.subr.mxu0 0.0
    %6671 = vmatpush1.xpose.msra.mxu0 0.0
    %6672 = vmatprep.subr.mxu0 0.0
    %6673 = vmatpush1.xpose.msra.mxu0 0.0
    %6674 = vmatprep.subr.mxu0 0.0
    %6675 = vmatpush1.xpose.msra.mxu0 0.0
    %6676 = vmatprep.subr.mxu0 0.0
    %6677 = vmatpush1.xpose.msra.mxu0 0.0
    %6678 = vmatprep.subr.mxu0 0.0
    %6679 = vmatpush1.xpose.msra.mxu0 0.0
    %6680 = vmatprep.subr.mxu0 0.0
    %6681 = vmatpush1.xpose.msra.mxu0 0.0
    %6682 = vmatprep.subr.mxu0 0.0
    %6683 = vmatpush1.xpose.msra.mxu0 0.0
    %6684 = vmatprep.subr.mxu0 0.0
    %6685 = vmatpush1.xpose.msra.mxu0 0.0
    %6686 = vmatprep.subr.mxu0 0.0
    %6687 = vmatpush1.xpose.msra.mxu0 0.0
    %6688 = vmatprep.subr.mxu0 0.0
    %6689 = vmatpush1.xpose.msra.mxu0 0.0
    %6690 = vmatprep.subr.mxu0 0.0
    %6691 = vmatpush1.xpose.msra.mxu0 0.0
    %6692 = vmatprep.subr.mxu0 0.0
    %6693 = vmatpush1.xpose.msra.mxu0 0.0
    %6694 = vmatprep.subr.mxu0 0.0
    %6695 = vmatpush1.xpose.msra.mxu0 0.0
    %6696 = vmatprep.subr.mxu0 0.0
    %6697 = vmatpush1.xpose.msra.mxu0 0.0
    %6698 = vmatprep.subr.mxu0 0.0
    %6699 = vmatpush1.xpose.msra.mxu0 0.0
    %6700 = vmatprep.subr.mxu0 0.0
    %6701 = vmatpush1.xpose.msra.mxu0 0.0
    %6702 = vmatprep.subr.mxu0 0.0
    %6703 = vmatpush1.xpose.msra.mxu0 0.0
    %6704 = vmatprep.subr.mxu0 0.0
    %6705 = vmatpush1.xpose.msra.mxu0 0.0
    %6706 = vmatprep.subr.mxu0 0.0
    %6707 = vmatpush1.xpose.msra.mxu0 0.0
    %6708 = vmatprep.subr.mxu0 0.0
    %6709 = vmatpush1.xpose.msra.mxu0 0.0
    %6710 = vmatprep.subr.mxu0 0.0
    %6711 = vmatpush1.xpose.msra.mxu0 0.0
    %6712 = vmatprep.subr.mxu0 0.0
    %6713 = vmatpush1.xpose.msra.mxu0 0.0
    %6714 = vmatprep.mubr.f32.mxu0 0.0
    %6715 = vmatmul.mubr.f32.gmra.mrb[0].mxu0 %v6639
    %v6716 = vpop.f32.mrb[0].mxu0
    %v6717 = vadd.f32 0.0, %v6716
    %v6718 = vpop.f32.mrb[0].mxu0
    %6719 = vmatprep.mubr.f32.mxu0 0.0
    %6720 = vmatmul.mubr.f32.gmra.mrb[0].mxu0 %v6642
    %v6721 = vpop.f32.mrb[0].mxu0
    %v6722 = vadd.f32 0.0, %v6721
    %v6723 = vpop.f32.mrb[0].mxu0
    %6724 = vmatprep.mubr.f32.mxu0 0.0
    %6725 = vmatmul.mubr.f32.gmra.mrb[0].mxu0 %v6645
    %v6726 = vpop.f32.mrb[0].mxu0
    %v6727 = vadd.f32 0.0, %v6726
    %v6728 = vpop.f32.mrb[0].mxu0
    %6729 = vmatprep.mubr.f32.mxu0 0.0
    %6730 = vmatmul.mubr.f32.gmra.mrb[0].mxu0 %v6648
    %v6731 = vpop.f32.mrb[0].mxu0
    %v6732 = vadd.f32 0.0, %v6731
    %v6733 = vpop.f32.mrb[0].mxu0
    %6734 = vdwg.mxu0
    %v6735 = vmul.f32 %v6717, %v5744
    %v6736 = vmul.f32 %v6722, %v5745
    %v6737 = vmul.f32 %v6727, %v5746
    %v6738 = vmul.f32 %v6732, %v5747
    %v6739 = vadd.f32 %v6735, %v5748
    %v6740 = vadd.f32 %v6736, %v5749
    %v6741 = vadd.f32 %v6737, %v5750
    %v6742 = vadd.f32 %v6738, %v5751
    %v6743 = vsel %vm440, %v6739, -inf
    %6744 = vmax.xlane.f32.xlu0 %v6743
    %v6745 = vpop.xlane.xlu0 %6744
    %v6746 = vsel %vm440, %v6740, -inf
    %6747 = vmax.xlane.f32.xlu0 %v6746
    %v6748 = vpop.xlane.xlu0 %6747
    %v6749 = vsel %vm440, %v6741, -inf
    %6750 = vmax.xlane.f32.xlu0 %v6749
    %v6751 = vpop.xlane.xlu0 %6750
    %v6752 = vsel %vm440, %v6742, -inf
    %6753 = vmax.xlane.f32.xlu0 %v6752
    %v6754 = vpop.xlane.xlu0 %6753
    %v6755 = vsub.f32 %v6739, %v6745
    %v6756 = vsub.f32 %v6740, %v6748
    %v6757 = vsub.f32 %v6741, %v6751
    %v6758 = vsub.f32 %v6742, %v6754
    %v6759 = vmul.f32 %v6755, 1.442695
    %v6760 = vpow.pop %v6759
    %v6761 = vmul.f32 %v6756, 1.442695
    %v6762 = vpow.pop %v6761
    %v6763 = vmul.f32 %v6757, 1.442695
    %v6764 = vpow.pop %v6763
    %v6765 = vmul.f32 %v6758, 1.442695
    %v6766 = vpow.pop %v6765
    %v6767 = vsel %vm440, %v6760, 0.0
    %6768 = vadd.xlane.f32.xlu0 %v6767
    %v6769 = vpop.xlane.xlu0 %6768
    %v6770 = vsel %vm440, %v6762, 0.0
    %6771 = vadd.xlane.f32.xlu0 %v6770
    %v6772 = vpop.xlane.xlu0 %6771
    %v6773 = vsel %vm440, %v6764, 0.0
    %6774 = vadd.xlane.f32.xlu0 %v6773
    %v6775 = vpop.xlane.xlu0 %6774
    %v6776 = vsel %vm440, %v6766, 0.0
    %6777 = vadd.xlane.f32.xlu0 %v6776
    %v6778 = vpop.xlane.xlu0 %6777
    %v6779 = vrcp.pop %v6769
    %v6780 = vrcp.pop %v6772
    %v6781 = vrcp.pop %v6775
    %v6782 = vrcp.pop %v6778
    %v6783 = vmul.f32 %v6760, %v6779
    %v6784 = vmul.f32 %v6762, %v6780
    %v6785 = vmul.f32 %v6764, %v6781
    %v6786 = vmul.f32 %v6766, %v6782
    %s6787 = scalar_lea.vmem %s35, 2
    %v6788 = vld [vmem:[%s6787] sm:$0x1]
    %v6790 = vlaneseq
    %v6791 = vshrl.u32 %v6790, 7
    %v6792 = vsub.s32 0, %v6791
    %v6793 = vrot.slane %v6788, %v6792
    %v6795 = vmul.f32 %v5842, %v6793
    %v6796 = vmul.f32 %v5847, %v6793
    %v6797 = vmul.f32 %v5852, %v6793
    %v6798 = vmul.f32 %v5857, %v6793
    %v6800 = vsel %vm440, %v6783, 0
    %v6803 = vsel %vm440, %v6784, 0
    %v6806 = vsel %vm440, %v6785, 0
    %v6809 = vsel %vm440, %v6786, 0
    %6811 = vmatprep.subr.mxu0 0.0
    %6812 = vmatpush1.msra.mxu0 %v6795
    %6813 = vmatprep.subr.mxu0 0.0
    %6814 = vmatpush1.msra.mxu0 %v6796
    %6815 = vmatprep.subr.mxu0 0.0
    %6816 = vmatpush1.msra.mxu0 %v6797
    %6817 = vmatprep.subr.mxu0 0.0
    %6818 = vmatpush1.msra.mxu0 %v6798
    %6819 = vmatprep.subr.mxu0 0.0
    %6820 = vmatpush1.msra.mxu0 0.0
    %6821 = vmatprep.subr.mxu0 0.0
    %6822 = vmatpush1.msra.mxu0 0.0
    %6823 = vmatprep.subr.mxu0 0.0
    %6824 = vmatpush1.msra.mxu0 0.0
    %6825 = vmatprep.subr.mxu0 0.0
    %6826 = vmatpush1.msra.mxu0 0.0
    %6827 = vmatprep.subr.mxu0 0.0
    %6828 = vmatpush1.msra.mxu0 0.0
    %6829 = vmatprep.subr.mxu0 0.0
    %6830 = vmatpush1.msra.mxu0 0.0
    %6831 = vmatprep.subr.mxu0 0.0
    %6832 = vmatpush1.msra.mxu0 0.0
    %6833 = vmatprep.subr.mxu0 0.0
    %6834 = vmatpush1.msra.mxu0 0.0
    %6835 = vmatprep.subr.mxu0 0.0
    %6836 = vmatpush1.msra.mxu0 0.0
    %6837 = vmatprep.subr.mxu0 0.0
    %6838 = vmatpush1.msra.mxu0 0.0
    %6839 = vmatprep.subr.mxu0 0.0
    %6840 = vmatpush1.msra.mxu0 0.0
    %6841 = vmatprep.subr.mxu0 0.0
    %6842 = vmatpush1.msra.mxu0 0.0
    %6843 = vmatprep.subr.mxu0 0.0
    %6844 = vmatpush1.msra.mxu0 0.0
    %6845 = vmatprep.subr.mxu0 0.0
    %6846 = vmatpush1.msra.mxu0 0.0
    %6847 = vmatprep.subr.mxu0 0.0
    %6848 = vmatpush1.msra.mxu0 0.0
    %6849 = vmatprep.subr.mxu0 0.0
    %6850 = vmatpush1.msra.mxu0 0.0
    %6851 = vmatprep.subr.mxu0 0.0
    %6852 = vmatpush1.msra.mxu0 0.0
    %6853 = vmatprep.subr.mxu0 0.0
    %6854 = vmatpush1.msra.mxu0 0.0
    %6855 = vmatprep.subr.mxu0 0.0
    %6856 = vmatpush1.msra.mxu0 0.0
    %6857 = vmatprep.subr.mxu0 0.0
    %6858 = vmatpush1.msra.mxu0 0.0
    %6859 = vmatprep.subr.mxu0 0.0
    %6860 = vmatpush1.msra.mxu0 0.0
    %6861 = vmatprep.subr.mxu0 0.0
    %6862 = vmatpush1.msra.mxu0 0.0
    %6863 = vmatprep.subr.mxu0 0.0
    %6864 = vmatpush1.msra.mxu0 0.0
    %6865 = vmatprep.subr.mxu0 0.0
    %6866 = vmatpush1.msra.mxu0 0.0
    %6867 = vmatprep.subr.mxu0 0.0
    %6868 = vmatpush1.msra.mxu0 0.0
    %6869 = vmatprep.subr.mxu0 0.0
    %6870 = vmatpush1.msra.mxu0 0.0
    %6871 = vmatprep.subr.mxu0 0.0
    %6872 = vmatpush1.msra.mxu0 0.0
    %6873 = vmatprep.subr.mxu0 0.0
    %6874 = vmatpush1.msra.mxu0 0.0
    %6875 = vmatprep.mubr.f32.mxu0 0.0
    %6876 = vmatmul.mubr.f32.gmra.mrb[0].mxu0 %v6800
    %v6877 = vpop.f32.mrb[0].mxu0
    %v6878 = vadd.f32 0.0, %v6877
    %v6879 = vpop.f32.mrb[0].mxu0
    %6880 = vmatprep.mubr.f32.mxu0 0.0
    %6881 = vmatmul.mubr.f32.gmra.mrb[0].mxu0 %v6803
    %v6882 = vpop.f32.mrb[0].mxu0
    %v6883 = vadd.f32 0.0, %v6882
    %v6884 = vpop.f32.mrb[0].mxu0
    %6885 = vmatprep.mubr.f32.mxu0 0.0
    %6886 = vmatmul.mubr.f32.gmra.mrb[0].mxu0 %v6806
    %v6887 = vpop.f32.mrb[0].mxu0
    %v6888 = vadd.f32 0.0, %v6887
    %v6889 = vpop.f32.mrb[0].mxu0
    %6890 = vmatprep.mubr.f32.mxu0 0.0
    %6891 = vmatmul.mubr.f32.gmra.mrb[0].mxu0 %v6809
    %v6892 = vpop.f32.mrb[0].mxu0
    %v6893 = vadd.f32 0.0, %v6892
    %v6894 = vpop.f32.mrb[0].mxu0
    %6895 = vdwg.mxu0
    %v6896 = vadd.f32 %v6532, %v6878
    %v6897 = vadd.f32 %v6537, %v6883
    %v6898 = vadd.f32 %v6542, %v6888
    %v6899 = vadd.f32 %v6547, %v6893
    %s6900 = scalar_lea.vmem %s31, 48
    %v6901 = vld [vmem:[%s6900] sm:$0xff]
    %v6902 = vld [vmem:[%s6900 + $0x8] sm:$0xff]
    %6903 = vmatprep.subr.mxu0 0.0
    %6904 = vmatpush1.msra.mxu0 %v6901
    %6905 = vmatprep.subr.mxu0 0.0
    %6906 = vmatpush1.msra.mxu0 %v6902
    %6907 = vmatprep.subr.mxu0 0.0
    %6908 = vmatpush1.msra.mxu0 0.0
    %6909 = vmatprep.subr.mxu0 0.0
    %6910 = vmatpush1.msra.mxu0 0.0
    %6911 = vmatprep.subr.mxu0 0.0
    %6912 = vmatpush1.msra.mxu0 0.0
    %6913 = vmatprep.subr.mxu0 0.0
    %6914 = vmatpush1.msra.mxu0 0.0
    %6915 = vmatprep.subr.mxu0 0.0
    %6916 = vmatpush1.msra.mxu0 0.0
    %6917 = vmatprep.subr.mxu0 0.0
    %6918 = vmatpush1.msra.mxu0 0.0
    %6919 = vmatprep.subr.mxu0 0.0
    %6920 = vmatpush1.msra.mxu0 0.0
    %6921 = vmatprep.subr.mxu0 0.0
    %6922 = vmatpush1.msra.mxu0 0.0
    %6923 = vmatprep.subr.mxu0 0.0
    %6924 = vmatpush1.msra.mxu0 0.0
    %6925 = vmatprep.subr.mxu0 0.0
    %6926 = vmatpush1.msra.mxu0 0.0
    %6927 = vmatprep.subr.mxu0 0.0
    %6928 = vmatpush1.msra.mxu0 0.0
    %6929 = vmatprep.subr.mxu0 0.0
    %6930 = vmatpush1.msra.mxu0 0.0
    %6931 = vmatprep.subr.mxu0 0.0
    %6932 = vmatpush1.msra.mxu0 0.0
    %6933 = vmatprep.subr.mxu0 0.0
    %6934 = vmatpush1.msra.mxu0 0.0
    %6935 = vmatprep.subr.mxu0 0.0
    %6936 = vmatpush1.msra.mxu0 0.0
    %6937 = vmatprep.subr.mxu0 0.0
    %6938 = vmatpush1.msra.mxu0 0.0
    %6939 = vmatprep.subr.mxu0 0.0
    %6940 = vmatpush1.msra.mxu0 0.0
    %6941 = vmatprep.subr.mxu0 0.0
    %6942 = vmatpush1.msra.mxu0 0.0
    %6943 = vmatprep.subr.mxu0 0.0
    %6944 = vmatpush1.msra.mxu0 0.0
    %6945 = vmatprep.subr.mxu0 0.0
    %6946 = vmatpush1.msra.mxu0 0.0
    %6947 = vmatprep.subr.mxu0 0.0
    %6948 = vmatpush1.msra.mxu0 0.0
    %6949 = vmatprep.subr.mxu0 0.0
    %6950 = vmatpush1.msra.mxu0 0.0
    %6951 = vmatprep.subr.mxu0 0.0
    %6952 = vmatpush1.msra.mxu0 0.0
    %6953 = vmatprep.subr.mxu0 0.0
    %6954 = vmatpush1.msra.mxu0 0.0
    %6955 = vmatprep.subr.mxu0 0.0
    %6956 = vmatpush1.msra.mxu0 0.0
    %6957 = vmatprep.subr.mxu0 0.0
    %6958 = vmatpush1.msra.mxu0 0.0
    %6959 = vmatprep.subr.mxu0 0.0
    %6960 = vmatpush1.msra.mxu0 0.0
    %6961 = vmatprep.subr.mxu0 0.0
    %6962 = vmatpush1.msra.mxu0 0.0
    %6963 = vmatprep.subr.mxu0 0.0
    %6964 = vmatpush1.msra.mxu0 0.0
    %6965 = vmatprep.subr.mxu0 0.0
    %6966 = vmatpush1.msra.mxu0 0.0
    %6967 = vmatprep.mubr.f32.mxu0 0.0
    %6968 = vmatmul.mubr.f32.gmra.mrb[0].mxu0 %v5764
    %v6969 = vpop.f32.mrb[0].mxu0
    %v6970 = vadd.f32 0.0, %v6969
    %v6971 = vpop.f32.mrb[0].mxu0
    %6972 = vmatprep.mubr.f32.mxu0 0.0
    %6973 = vmatmul.mubr.f32.gmra.mrb[0].mxu0 %v5767
    %v6974 = vpop.f32.mrb[0].mxu0
    %v6975 = vadd.f32 0.0, %v6974
    %v6976 = vpop.f32.mrb[0].mxu0
    %6977 = vmatprep.mubr.f32.mxu0 0.0
    %6978 = vmatmul.mubr.f32.gmra.mrb[0].mxu0 %v5770
    %v6979 = vpop.f32.mrb[0].mxu0
    %v6980 = vadd.f32 0.0, %v6979
    %v6981 = vpop.f32.mrb[0].mxu0
    %6982 = vmatprep.mubr.f32.mxu0 0.0
    %6983 = vmatmul.mubr.f32.gmra.mrb[0].mxu0 %v5773
    %v6984 = vpop.f32.mrb[0].mxu0
    %v6985 = vadd.f32 0.0, %v6984
    %v6986 = vpop.f32.mrb[0].mxu0
    %6987 = vdwg.mxu0
    %v6989 = vsel %vm5762, %v6970, 0
    %v6992 = vsel %vm5762, %v6975, 0
    %v6995 = vsel %vm5762, %v6980, 0
    %v6998 = vsel %vm5762, %v6985, 0
    %7000 = vmatprep.subr.mxu0 0.0
    %7001 = vmatpush1.xpose.msra.mxu0 %v5764
    %7002 = vmatprep.subr.mxu0 0.0
    %7003 = vmatpush1.xpose.msra.mxu0 %v5767
    %7004 = vmatprep.subr.mxu0 0.0
    %7005 = vmatpush1.xpose.msra.mxu0 %v5770
    %7006 = vmatprep.subr.mxu0 0.0
    %7007 = vmatpush1.xpose.msra.mxu0 %v5773
    %7008 = vmatprep.subr.mxu0 0.0
    %7009 = vmatpush1.xpose.msra.mxu0 0.0
    %7010 = vmatprep.subr.mxu0 0.0
    %7011 = vmatpush1.xpose.msra.mxu0 0.0
    %7012 = vmatprep.subr.mxu0 0.0
    %7013 = vmatpush1.xpose.msra.mxu0 0.0
    %7014 = vmatprep.subr.mxu0 0.0
    %7015 = vmatpush1.xpose.msra.mxu0 0.0
    %7016 = vmatprep.subr.mxu0 0.0
    %7017 = vmatpush1.xpose.msra.mxu0 0.0
    %7018 = vmatprep.subr.mxu0 0.0
    %7019 = vmatpush1.xpose.msra.mxu0 0.0
    %7020 = vmatprep.subr.mxu0 0.0
    %7021 = vmatpush1.xpose.msra.mxu0 0.0
    %7022 = vmatprep.subr.mxu0 0.0
    %7023 = vmatpush1.xpose.msra.mxu0 0.0
    %7024 = vmatprep.subr.mxu0 0.0
    %7025 = vmatpush1.xpose.msra.mxu0 0.0
    %7026 = vmatprep.subr.mxu0 0.0
    %7027 = vmatpush1.xpose.msra.mxu0 0.0
    %7028 = vmatprep.subr.mxu0 0.0
    %7029 = vmatpush1.xpose.msra.mxu0 0.0
    %7030 = vmatprep.subr.mxu0 0.0
    %7031 = vmatpush1.xpose.msra.mxu0 0.0
    %7032 = vmatprep.subr.mxu0 0.0
    %7033 = vmatpush1.xpose.msra.mxu0 0.0
    %7034 = vmatprep.subr.mxu0 0.0
    %7035 = vmatpush1.xpose.msra.mxu0 0.0
    %7036 = vmatprep.subr.mxu0 0.0
    %7037 = vmatpush1.xpose.msra.mxu0 0.0
    %7038 = vmatprep.subr.mxu0 0.0
    %7039 = vmatpush1.xpose.msra.mxu0 0.0
    %7040 = vmatprep.subr.mxu0 0.0
    %7041 = vmatpush1.xpose.msra.mxu0 0.0
    %7042 = vmatprep.subr.mxu0 0.0
    %7043 = vmatpush1.xpose.msra.mxu0 0.0
    %7044 = vmatprep.subr.mxu0 0.0
    %7045 = vmatpush1.xpose.msra.mxu0 0.0
    %7046 = vmatprep.subr.mxu0 0.0
    %7047 = vmatpush1.xpose.msra.mxu0 0.0
    %7048 = vmatprep.subr.mxu0 0.0
    %7049 = vmatpush1.xpose.msra.mxu0 0.0
    %7050 = vmatprep.subr.mxu0 0.0
    %7051 = vmatpush1.xpose.msra.mxu0 0.0
    %7052 = vmatprep.subr.mxu0 0.0
    %7053 = vmatpush1.xpose.msra.mxu0 0.0
    %7054 = vmatprep.subr.mxu0 0.0
    %7055 = vmatpush1.xpose.msra.mxu0 0.0
    %7056 = vmatprep.subr.mxu0 0.0
    %7057 = vmatpush1.xpose.msra.mxu0 0.0
    %7058 = vmatprep.subr.mxu0 0.0
    %7059 = vmatpush1.xpose.msra.mxu0 0.0
    %7060 = vmatprep.subr.mxu0 0.0
    %7061 = vmatpush1.xpose.msra.mxu0 0.0
    %7062 = vmatprep.subr.mxu0 0.0
    %7063 = vmatpush1.xpose.msra.mxu0 0.0
    %7064 = vmatprep.mubr.f32.mxu0 0.0
    %7065 = vmatmul.mubr.f32.gmra.mrb[0].mxu0 %v6989
    %v7066 = vpop.f32.mrb[0].mxu0
    %v7067 = vadd.f32 0.0, %v7066
    %v7068 = vpop.f32.mrb[0].mxu0
    %7069 = vmatprep.mubr.f32.mxu0 0.0
    %7070 = vmatmul.mubr.f32.gmra.mrb[0].mxu0 %v6992
    %v7071 = vpop.f32.mrb[0].mxu0
    %v7072 = vadd.f32 0.0, %v7071
    %v7073 = vpop.f32.mrb[0].mxu0
    %7074 = vmatprep.mubr.f32.mxu0 0.0
    %7075 = vmatmul.mubr.f32.gmra.mrb[0].mxu0 %v6995
    %v7076 = vpop.f32.mrb[0].mxu0
    %v7077 = vadd.f32 0.0, %v7076
    %v7078 = vpop.f32.mrb[0].mxu0
    %7079 = vmatprep.mubr.f32.mxu0 0.0
    %7080 = vmatmul.mubr.f32.gmra.mrb[0].mxu0 %v6998
    %v7081 = vpop.f32.mrb[0].mxu0
    %v7082 = vadd.f32 0.0, %v7081
    %v7083 = vpop.f32.mrb[0].mxu0
    %7084 = vdwg.mxu0
    %v7085 = vmul.f32 %v7067, %v5744
    %v7086 = vmul.f32 %v7072, %v5745
    %v7087 = vmul.f32 %v7077, %v5746
    %v7088 = vmul.f32 %v7082, %v5747
    %v7089 = vadd.f32 %v7085, %v5748
    %v7090 = vadd.f32 %v7086, %v5749
    %v7091 = vadd.f32 %v7087, %v5750
    %v7092 = vadd.f32 %v7088, %v5751
    %v7093 = vsel %vm440, %v7089, -inf
    %7094 = vmax.xlane.f32.xlu0 %v7093
    %v7095 = vpop.xlane.xlu0 %7094
    %v7096 = vsel %vm440, %v7090, -inf
    %7097 = vmax.xlane.f32.xlu0 %v7096
    %v7098 = vpop.xlane.xlu0 %7097
    %v7099 = vsel %vm440, %v7091, -inf
    %7100 = vmax.xlane.f32.xlu0 %v7099
    %v7101 = vpop.xlane.xlu0 %7100
    %v7102 = vsel %vm440, %v7092, -inf
    %7103 = vmax.xlane.f32.xlu0 %v7102
    %v7104 = vpop.xlane.xlu0 %7103
    %v7105 = vsub.f32 %v7089, %v7095
    %v7106 = vsub.f32 %v7090, %v7098
    %v7107 = vsub.f32 %v7091, %v7101
    %v7108 = vsub.f32 %v7092, %v7104
    %v7109 = vmul.f32 %v7105, 1.442695
    %v7110 = vpow.pop %v7109
    %v7111 = vmul.f32 %v7106, 1.442695
    %v7112 = vpow.pop %v7111
    %v7113 = vmul.f32 %v7107, 1.442695
    %v7114 = vpow.pop %v7113
    %v7115 = vmul.f32 %v7108, 1.442695
    %v7116 = vpow.pop %v7115
    %v7117 = vsel %vm440, %v7110, 0.0
    %7118 = vadd.xlane.f32.xlu0 %v7117
    %v7119 = vpop.xlane.xlu0 %7118
    %v7120 = vsel %vm440, %v7112, 0.0
    %7121 = vadd.xlane.f32.xlu0 %v7120
    %v7122 = vpop.xlane.xlu0 %7121
    %v7123 = vsel %vm440, %v7114, 0.0
    %7124 = vadd.xlane.f32.xlu0 %v7123
    %v7125 = vpop.xlane.xlu0 %7124
    %v7126 = vsel %vm440, %v7116, 0.0
    %7127 = vadd.xlane.f32.xlu0 %v7126
    %v7128 = vpop.xlane.xlu0 %7127
    %v7129 = vrcp.pop %v7119
    %v7130 = vrcp.pop %v7122
    %v7131 = vrcp.pop %v7125
    %v7132 = vrcp.pop %v7128
    %v7133 = vmul.f32 %v7110, %v7129
    %v7134 = vmul.f32 %v7112, %v7130
    %v7135 = vmul.f32 %v7114, %v7131
    %v7136 = vmul.f32 %v7116, %v7132
    %s7137 = scalar_lea.vmem %s35, 3
    %v7138 = vld [vmem:[%s7137] sm:$0x1]
    %v7140 = vlaneseq
    %v7141 = vshrl.u32 %v7140, 7
    %v7142 = vsub.s32 0, %v7141
    %v7143 = vrot.slane %v7138, %v7142
    %v7145 = vmul.f32 %v5842, %v7143
    %v7146 = vmul.f32 %v5847, %v7143
    %v7147 = vmul.f32 %v5852, %v7143
    %v7148 = vmul.f32 %v5857, %v7143
    %v7150 = vsel %vm440, %v7133, 0
    %v7153 = vsel %vm440, %v7134, 0
    %v7156 = vsel %vm440, %v7135, 0
    %v7159 = vsel %vm440, %v7136, 0
    %7161 = vmatprep.subr.mxu0 0.0
    %7162 = vmatpush1.msra.mxu0 %v7145
    %7163 = vmatprep.subr.mxu0 0.0
    %7164 = vmatpush1.msra.mxu0 %v7146
    %7165 = vmatprep.subr.mxu0 0.0
    %7166 = vmatpush1.msra.mxu0 %v7147
    %7167 = vmatprep.subr.mxu0 0.0
    %7168 = vmatpush1.msra.mxu0 %v7148
    %7169 = vmatprep.subr.mxu0 0.0
    %7170 = vmatpush1.msra.mxu0 0.0
    %7171 = vmatprep.subr.mxu0 0.0
    %7172 = vmatpush1.msra.mxu0 0.0
    %7173 = vmatprep.subr.mxu0 0.0
    %7174 = vmatpush1.msra.mxu0 0.0
    %7175 = vmatprep.subr.mxu0 0.0
    %7176 = vmatpush1.msra.mxu0 0.0
    %7177 = vmatprep.subr.mxu0 0.0
    %7178 = vmatpush1.msra.mxu0 0.0
    %7179 = vmatprep.subr.mxu0 0.0
    %7180 = vmatpush1.msra.mxu0 0.0
    %7181 = vmatprep.subr.mxu0 0.0
    %7182 = vmatpush1.msra.mxu0 0.0
    %7183 = vmatprep.subr.mxu0 0.0
    %7184 = vmatpush1.msra.mxu0 0.0
    %7185 = vmatprep.subr.mxu0 0.0
    %7186 = vmatpush1.msra.mxu0 0.0
    %7187 = vmatprep.subr.mxu0 0.0
    %7188 = vmatpush1.msra.mxu0 0.0
    %7189 = vmatprep.subr.mxu0 0.0
    %7190 = vmatpush1.msra.mxu0 0.0
    %7191 = vmatprep.subr.mxu0 0.0
    %7192 = vmatpush1.msra.mxu0 0.0
    %7193 = vmatprep.subr.mxu0 0.0
    %7194 = vmatpush1.msra.mxu0 0.0
    %7195 = vmatprep.subr.mxu0 0.0
    %7196 = vmatpush1.msra.mxu0 0.0
    %7197 = vmatprep.subr.mxu0 0.0
    %7198 = vmatpush1.msra.mxu0 0.0
    %7199 = vmatprep.subr.mxu0 0.0
    %7200 = vmatpush1.msra.mxu0 0.0
    %7201 = vmatprep.subr.mxu0 0.0
    %7202 = vmatpush1.msra.mxu0 0.0
    %7203 = vmatprep.subr.mxu0 0.0
    %7204 = vmatpush1.msra.mxu0 0.0
    %7205 = vmatprep.subr.mxu0 0.0
    %7206 = vmatpush1.msra.mxu0 0.0
    %7207 = vmatprep.subr.mxu0 0.0
    %7208 = vmatpush1.msra.mxu0 0.0
    %7209 = vmatprep.subr.mxu0 0.0
    %7210 = vmatpush1.msra.mxu0 0.0
    %7211 = vmatprep.subr.mxu0 0.0
    %7212 = vmatpush1.msra.mxu0 0.0
    %7213 = vmatprep.subr.mxu0 0.0
    %7214 = vmatpush1.msra.mxu0 0.0
    %7215 = vmatprep.subr.mxu0 0.0
    %7216 = vmatpush1.msra.mxu0 0.0
    %7217 = vmatprep.subr.mxu0 0.0
    %7218 = vmatpush1.msra.mxu0 0.0
    %7219 = vmatprep.subr.mxu0 0.0
    %7220 = vmatpush1.msra.mxu0 0.0
    %7221 = vmatprep.subr.mxu0 0.0
    %7222 = vmatpush1.msra.mxu0 0.0
    %7223 = vmatprep.subr.mxu0 0.0
    %7224 = vmatpush1.msra.mxu0 0.0
    %7225 = vmatprep.mubr.f32.mxu0 0.0
    %7226 = vmatmul.mubr.f32.gmra.mrb[0].mxu0 %v7150
    %v7227 = vpop.f32.mrb[0].mxu0
    %v7228 = vadd.f32 0.0, %v7227
    %v7229 = vpop.f32.mrb[0].mxu0
    %7230 = vmatprep.mubr.f32.mxu0 0.0
    %7231 = vmatmul.mubr.f32.gmra.mrb[0].mxu0 %v7153
    %v7232 = vpop.f32.mrb[0].mxu0
    %v7233 = vadd.f32 0.0, %v7232
    %v7234 = vpop.f32.mrb[0].mxu0
    %7235 = vmatprep.mubr.f32.mxu0 0.0
    %7236 = vmatmul.mubr.f32.gmra.mrb[0].mxu0 %v7156
    %v7237 = vpop.f32.mrb[0].mxu0
    %v7238 = vadd.f32 0.0, %v7237
    %v7239 = vpop.f32.mrb[0].mxu0
    %7240 = vmatprep.mubr.f32.mxu0 0.0
    %7241 = vmatmul.mubr.f32.gmra.mrb[0].mxu0 %v7159
    %v7242 = vpop.f32.mrb[0].mxu0
    %v7243 = vadd.f32 0.0, %v7242
    %v7244 = vpop.f32.mrb[0].mxu0
    %7245 = vdwg.mxu0
    %v7246 = vadd.f32 %v6896, %v7228
    %v7247 = vadd.f32 %v6897, %v7233
    %v7248 = vadd.f32 %v6898, %v7238
    %v7249 = vadd.f32 %v6899, %v7243
    %v7250 = vsel %vm5762, %v7246, 0.0
    %7251 = vadd.xlane.f32.xlu0 %v7250
    %v7252 = vpop.xlane.xlu0 %7251
    %v7253 = vsel %vm5762, %v7247, 0.0
    %7254 = vadd.xlane.f32.xlu0 %v7253
    %v7255 = vpop.xlane.xlu0 %7254
    %v7256 = vsel %vm5762, %v7248, 0.0
    %7257 = vadd.xlane.f32.xlu0 %v7256
    %v7258 = vpop.xlane.xlu0 %7257
    %v7259 = vsel %vm5762, %v7249, 0.0
    %7260 = vadd.xlane.f32.xlu0 %v7259
    %v7261 = vpop.xlane.xlu0 %7260
    %v7262 = vrcp.pop 16.0
    %v7263 = vmul.f32 %v7252, %v7262
    %v7264 = vmul.f32 %v7255, %v7262
    %v7265 = vmul.f32 %v7258, %v7262
    %v7266 = vmul.f32 %v7261, %v7262
    %v7267 = vsub.f32 %v7246, %v7263
    %v7268 = vsub.f32 %v7247, %v7264
    %v7269 = vsub.f32 %v7248, %v7265
    %v7270 = vsub.f32 %v7249, %v7266
    %v7271 = vmul.f32 %v7267, %v7267
    %v7272 = vmul.f32 %v7268, %v7268
    %v7273 = vmul.f32 %v7269, %v7269
    %v7274 = vmul.f32 %v7270, %v7270
    %v7275 = vsel %vm5762, %v7271, 0.0
    %7276 = vadd.xlane.f32.xlu0 %v7275
    %v7277 = vpop.xlane.xlu0 %7276
    %v7278 = vsel %vm5762, %v7272, 0.0
    %7279 = vadd.xlane.f32.xlu0 %v7278
    %v7280 = vpop.xlane.xlu0 %7279
    %v7281 = vsel %vm5762, %v7273, 0.0
    %7282 = vadd.xlane.f32.xlu0 %v7281
    %v7283 = vpop.xlane.xlu0 %7282
    %v7284 = vsel %vm5762, %v7274, 0.0
    %7285 = vadd.xlane.f32.xlu0 %v7284
    %v7286 = vpop.xlane.xlu0 %7285
    %v7287 = vmul.f32 %v7277, %v7262
    %v7288 = vmul.f32 %v7280, %v7262
    %v7289 = vmul.f32 %v7283, %v7262
    %v7290 = vmul.f32 %v7286, %v7262
    %v7291 = vadd.f32 %v7287, 1e-05
    %v7292 = vadd.f32 %v7288, 1e-05
    %v7293 = vadd.f32 %v7289, 1e-05
    %v7294 = vadd.f32 %v7290, 1e-05
    %v7295 = vrsqrt.pop %v7291
    %v7296 = vrsqrt.pop %v7292
    %v7297 = vrsqrt.pop %v7293
    %v7298 = vrsqrt.pop %v7294
    %v7299 = vmul.f32 %v7267, %v7295
    %v7300 = vmul.f32 %v7268, %v7296
    %v7301 = vmul.f32 %v7269, %v7297
    %v7302 = vmul.f32 %v7270, %v7298
    %v7304 = vlaneseq
    %v7305 = vshrl.u32 %v7304, 7
    %v7306 = vsub.s32 0, %v7305
    %v7307 = vrot.slane %v5752, %v7306
    %v7309 = vmul.f32 %v7299, %v7307
    %v7310 = vmul.f32 %v7300, %v7307
    %v7311 = vmul.f32 %v7301, %v7307
    %v7312 = vmul.f32 %v7302, %v7307
    %v7314 = vlaneseq
    %v7315 = vshrl.u32 %v7314, 7
    %v7316 = vsub.s32 0, %v7315
    %v7317 = vrot.slane %v5753, %v7316
    %v7319 = vadd.f32 %v7309, %v7317
    %v7320 = vadd.f32 %v7310, %v7317
    %v7321 = vadd.f32 %v7311, %v7317
    %v7322 = vadd.f32 %v7312, %v7317
    %v7323 = vadd.f32 %v7319, %v5736
    %v7324 = vadd.f32 %v7320, %v5737
    %v7325 = vadd.f32 %v7321, %v5738
    %v7326 = vadd.f32 %v7322, %v5739
    %v7327 = vsel %vm5762, %v7323, 0.0
    %7328 = vadd.xlane.f32.xlu0 %v7327
    %v7329 = vpop.xlane.xlu0 %7328
    %v7330 = vsel %vm5762, %v7324, 0.0
    %7331 = vadd.xlane.f32.xlu0 %v7330
    %v7332 = vpop.xlane.xlu0 %7331
    %v7333 = vsel %vm5762, %v7325, 0.0
    %7334 = vadd.xlane.f32.xlu0 %v7333
    %v7335 = vpop.xlane.xlu0 %7334
    %v7336 = vsel %vm5762, %v7326, 0.0
    %7337 = vadd.xlane.f32.xlu0 %v7336
    %v7338 = vpop.xlane.xlu0 %7337
    %v7339 = vmul.f32 %v7329, %v7262
    %v7340 = vmul.f32 %v7332, %v7262
    %v7341 = vmul.f32 %v7335, %v7262
    %v7342 = vmul.f32 %v7338, %v7262
    %v7343 = vsub.f32 %v7323, %v7339
    %v7344 = vsub.f32 %v7324, %v7340
    %v7345 = vsub.f32 %v7325, %v7341
    %v7346 = vsub.f32 %v7326, %v7342
    %v7347 = vmul.f32 %v7343, %v7343
    %v7348 = vmul.f32 %v7344, %v7344
    %v7349 = vmul.f32 %v7345, %v7345
    %v7350 = vmul.f32 %v7346, %v7346
    %v7351 = vsel %vm5762, %v7347, 0.0
    %7352 = vadd.xlane.f32.xlu0 %v7351
    %v7353 = vpop.xlane.xlu0 %7352
    %v7354 = vsel %vm5762, %v7348, 0.0
    %7355 = vadd.xlane.f32.xlu0 %v7354
    %v7356 = vpop.xlane.xlu0 %7355
    %v7357 = vsel %vm5762, %v7349, 0.0
    %7358 = vadd.xlane.f32.xlu0 %v7357
    %v7359 = vpop.xlane.xlu0 %7358
    %v7360 = vsel %vm5762, %v7350, 0.0
    %7361 = vadd.xlane.f32.xlu0 %v7360
    %v7362 = vpop.xlane.xlu0 %7361
    %v7363 = vmul.f32 %v7353, %v7262
    %v7364 = vmul.f32 %v7356, %v7262
    %v7365 = vmul.f32 %v7359, %v7262
    %v7366 = vmul.f32 %v7362, %v7262
    %v7367 = vadd.f32 %v7363, 1e-05
    %v7368 = vadd.f32 %v7364, 1e-05
    %v7369 = vadd.f32 %v7365, 1e-05
    %v7370 = vadd.f32 %v7366, 1e-05
    %v7371 = vrsqrt.pop %v7367
    %v7372 = vrsqrt.pop %v7368
    %v7373 = vrsqrt.pop %v7369
    %v7374 = vrsqrt.pop %v7370
    %v7375 = vmul.f32 %v7343, %v7371
    %v7376 = vmul.f32 %v7344, %v7372
    %v7377 = vmul.f32 %v7345, %v7373
    %v7378 = vmul.f32 %v7346, %v7374
    %v7380 = vlaneseq
    %v7381 = vshrl.u32 %v7380, 7
    %v7382 = vsub.s32 0, %v7381
    %v7383 = vrot.slane %v5754, %v7382
    %v7385 = vmul.f32 %v7375, %v7383
    %v7386 = vmul.f32 %v7376, %v7383
    %v7387 = vmul.f32 %v7377, %v7383
    %v7388 = vmul.f32 %v7378, %v7383
    %v7390 = vlaneseq
    %v7391 = vshrl.u32 %v7390, 7
    %v7392 = vsub.s32 0, %v7391
    %v7393 = vrot.slane %v5755, %v7392
    %v7395 = vadd.f32 %v7385, %v7393
    %v7396 = vadd.f32 %v7386, %v7393
    %v7397 = vadd.f32 %v7387, %v7393
    %v7398 = vadd.f32 %v7388, %v7393
    %v7399 = vld [vmem:[#allocation17] sm:$0x1]
    %v7400 = vld [vmem:[#allocation19] sm:$0x1]
    %v7401 = vld [vmem:[#allocation20] sm:$0x1]
    %v7402 = vld [vmem:[#allocation22] sm:$0x1]
    %v7403 = vadd.f32 %v7395, %v5740
    %v7404 = vadd.f32 %v7396, %v5741
    %v7405 = vadd.f32 %v7397, %v5742
    %v7406 = vadd.f32 %v7398, %v5743
    %v7407 = vld [vmem:[%s47] sm:$0xff]
    %v7408 = vld [vmem:[%s47 + $0x8] sm:$0xff]
    %v7410 = vsel %vm5762, %v7403, 0
    %v7413 = vsel %vm5762, %v7404, 0
    %v7416 = vsel %vm5762, %v7405, 0
    %v7419 = vsel %vm5762, %v7406, 0
    %7421 = vmatprep.subr.mxu0 0.0
    %7422 = vmatpush1.msra.mxu0 %v7407
    %7423 = vmatprep.subr.mxu0 0.0
    %7424 = vmatpush1.msra.mxu0 %v7408
    %7425 = vmatprep.subr.mxu0 0.0
    %7426 = vmatpush1.msra.mxu0 0.0
    %7427 = vmatprep.subr.mxu0 0.0
    %7428 = vmatpush1.msra.mxu0 0.0
    %7429 = vmatprep.subr.mxu0 0.0
    %7430 = vmatpush1.msra.mxu0 0.0
    %7431 = vmatprep.subr.mxu0 0.0
    %7432 = vmatpush1.msra.mxu0 0.0
    %7433 = vmatprep.subr.mxu0 0.0
    %7434 = vmatpush1.msra.mxu0 0.0
    %7435 = vmatprep.subr.mxu0 0.0
    %7436 = vmatpush1.msra.mxu0 0.0
    %7437 = vmatprep.subr.mxu0 0.0
    %7438 = vmatpush1.msra.mxu0 0.0
    %7439 = vmatprep.subr.mxu0 0.0
    %7440 = vmatpush1.msra.mxu0 0.0
    %7441 = vmatprep.subr.mxu0 0.0
    %7442 = vmatpush1.msra.mxu0 0.0
    %7443 = vmatprep.subr.mxu0 0.0
    %7444 = vmatpush1.msra.mxu0 0.0
    %7445 = vmatprep.subr.mxu0 0.0
    %7446 = vmatpush1.msra.mxu0 0.0
    %7447 = vmatprep.subr.mxu0 0.0
    %7448 = vmatpush1.msra.mxu0 0.0
    %7449 = vmatprep.subr.mxu0 0.0
    %7450 = vmatpush1.msra.mxu0 0.0
    %7451 = vmatprep.subr.mxu0 0.0
    %7452 = vmatpush1.msra.mxu0 0.0
    %7453 = vmatprep.subr.mxu0 0.0
    %7454 = vmatpush1.msra.mxu0 0.0
    %7455 = vmatprep.subr.mxu0 0.0
    %7456 = vmatpush1.msra.mxu0 0.0
    %7457 = vmatprep.subr.mxu0 0.0
    %7458 = vmatpush1.msra.mxu0 0.0
    %7459 = vmatprep.subr.mxu0 0.0
    %7460 = vmatpush1.msra.mxu0 0.0
    %7461 = vmatprep.subr.mxu0 0.0
    %7462 = vmatpush1.msra.mxu0 0.0
    %7463 = vmatprep.subr.mxu0 0.0
    %7464 = vmatpush1.msra.mxu0 0.0
    %7465 = vmatprep.subr.mxu0 0.0
    %7466 = vmatpush1.msra.mxu0 0.0
    %7467 = vmatprep.subr.mxu0 0.0
    %7468 = vmatpush1.msra.mxu0 0.0
    %7469 = vmatprep.subr.mxu0 0.0
    %7470 = vmatpush1.msra.mxu0 0.0
    %7471 = vmatprep.subr.mxu0 0.0
    %7472 = vmatpush1.msra.mxu0 0.0
    %7473 = vmatprep.subr.mxu0 0.0
    %7474 = vmatpush1.msra.mxu0 0.0
    %7475 = vmatprep.subr.mxu0 0.0
    %7476 = vmatpush1.msra.mxu0 0.0
    %7477 = vmatprep.subr.mxu0 0.0
    %7478 = vmatpush1.msra.mxu0 0.0
    %7479 = vmatprep.subr.mxu0 0.0
    %7480 = vmatpush1.msra.mxu0 0.0
    %7481 = vmatprep.subr.mxu0 0.0
    %7482 = vmatpush1.msra.mxu0 0.0
    %7483 = vmatprep.subr.mxu0 0.0
    %7484 = vmatpush1.msra.mxu0 0.0
    %7485 = vmatprep.mubr.f32.mxu0 0.0
    %7486 = vmatmul.mubr.f32.gmra.mrb[0].mxu0 %v7410
    %v7487 = vpop.f32.mrb[0].mxu0
    %v7488 = vadd.f32 0.0, %v7487
    %v7489 = vpop.f32.mrb[0].mxu0
    %7490 = vmatprep.mubr.f32.mxu0 0.0
    %7491 = vmatmul.mubr.f32.gmra.mrb[0].mxu0 %v7413
    %v7492 = vpop.f32.mrb[0].mxu0
    %v7493 = vadd.f32 0.0, %v7492
    %v7494 = vpop.f32.mrb[0].mxu0
    %7495 = vmatprep.mubr.f32.mxu0 0.0
    %7496 = vmatmul.mubr.f32.gmra.mrb[0].mxu0 %v7416
    %v7497 = vpop.f32.mrb[0].mxu0
    %v7498 = vadd.f32 0.0, %v7497
    %v7499 = vpop.f32.mrb[0].mxu0
    %7500 = vmatprep.mubr.f32.mxu0 0.0
    %7501 = vmatmul.mubr.f32.gmra.mrb[0].mxu0 %v7419
    %v7502 = vpop.f32.mrb[0].mxu0
    %v7503 = vadd.f32 0.0, %v7502
    %v7504 = vpop.f32.mrb[0].mxu0
    %7505 = vdwg.mxu0
    %v7506 = vld [vmem:[%s45] sm:$0xff]
    %v7507 = vld [vmem:[%s45 + $0x8] sm:$0xff]
    %7508 = vmatprep.subr.mxu0 0.0
    %7509 = vmatpush1.msra.mxu0 %v7506
    %7510 = vmatprep.subr.mxu0 0.0
    %7511 = vmatpush1.msra.mxu0 %v7507
    %7512 = vmatprep.subr.mxu0 0.0
    %7513 = vmatpush1.msra.mxu0 0.0
    %7514 = vmatprep.subr.mxu0 0.0
    %7515 = vmatpush1.msra.mxu0 0.0
    %7516 = vmatprep.subr.mxu0 0.0
    %7517 = vmatpush1.msra.mxu0 0.0
    %7518 = vmatprep.subr.mxu0 0.0
    %7519 = vmatpush1.msra.mxu0 0.0
    %7520 = vmatprep.subr.mxu0 0.0
    %7521 = vmatpush1.msra.mxu0 0.0
    %7522 = vmatprep.subr.mxu0 0.0
    %7523 = vmatpush1.msra.mxu0 0.0
    %7524 = vmatprep.subr.mxu0 0.0
    %7525 = vmatpush1.msra.mxu0 0.0
    %7526 = vmatprep.subr.mxu0 0.0
    %7527 = vmatpush1.msra.mxu0 0.0
    %7528 = vmatprep.subr.mxu0 0.0
    %7529 = vmatpush1.msra.mxu0 0.0
    %7530 = vmatprep.subr.mxu0 0.0
    %7531 = vmatpush1.msra.mxu0 0.0
    %7532 = vmatprep.subr.mxu0 0.0
    %7533 = vmatpush1.msra.mxu0 0.0
    %7534 = vmatprep.subr.mxu0 0.0
    %7535 = vmatpush1.msra.mxu0 0.0
    %7536 = vmatprep.subr.mxu0 0.0
    %7537 = vmatpush1.msra.mxu0 0.0
    %7538 = vmatprep.subr.mxu0 0.0
    %7539 = vmatpush1.msra.mxu0 0.0
    %7540 = vmatprep.subr.mxu0 0.0
    %7541 = vmatpush1.msra.mxu0 0.0
    %7542 = vmatprep.subr.mxu0 0.0
    %7543 = vmatpush1.msra.mxu0 0.0
    %7544 = vmatprep.subr.mxu0 0.0
    %7545 = vmatpush1.msra.mxu0 0.0
    %7546 = vmatprep.subr.mxu0 0.0
    %7547 = vmatpush1.msra.mxu0 0.0
    %7548 = vmatprep.subr.mxu0 0.0
    %7549 = vmatpush1.msra.mxu0 0.0
    %7550 = vmatprep.subr.mxu0 0.0
    %7551 = vmatpush1.msra.mxu0 0.0
    %7552 = vmatprep.subr.mxu0 0.0
    %7553 = vmatpush1.msra.mxu0 0.0
    %7554 = vmatprep.subr.mxu0 0.0
    %7555 = vmatpush1.msra.mxu0 0.0
    %7556 = vmatprep.subr.mxu0 0.0
    %7557 = vmatpush1.msra.mxu0 0.0
    %7558 = vmatprep.subr.mxu0 0.0
    %7559 = vmatpush1.msra.mxu0 0.0
    %7560 = vmatprep.subr.mxu0 0.0
    %7561 = vmatpush1.msra.mxu0 0.0
    %7562 = vmatprep.subr.mxu0 0.0
    %7563 = vmatpush1.msra.mxu0 0.0
    %7564 = vmatprep.subr.mxu0 0.0
    %7565 = vmatpush1.msra.mxu0 0.0
    %7566 = vmatprep.subr.mxu0 0.0
    %7567 = vmatpush1.msra.mxu0 0.0
    %7568 = vmatprep.subr.mxu0 0.0
    %7569 = vmatpush1.msra.mxu0 0.0
    %7570 = vmatprep.subr.mxu0 0.0
    %7571 = vmatpush1.msra.mxu0 0.0
    %7572 = vmatprep.mubr.f32.mxu0 0.0
    %7573 = vmatmul.mubr.f32.gmra.mrb[0].mxu0 %v7410
    %v7574 = vpop.f32.mrb[0].mxu0
    %v7575 = vadd.f32 0.0, %v7574
    %v7576 = vpop.f32.mrb[0].mxu0
    %7577 = vmatprep.mubr.f32.mxu0 0.0
    %7578 = vmatmul.mubr.f32.gmra.mrb[0].mxu0 %v7413
    %v7579 = vpop.f32.mrb[0].mxu0
    %v7580 = vadd.f32 0.0, %v7579
    %v7581 = vpop.f32.mrb[0].mxu0
    %7582 = vmatprep.mubr.f32.mxu0 0.0
    %7583 = vmatmul.mubr.f32.gmra.mrb[0].mxu0 %v7416
    %v7584 = vpop.f32.mrb[0].mxu0
    %v7585 = vadd.f32 0.0, %v7584
    %v7586 = vpop.f32.mrb[0].mxu0
    %7587 = vmatprep.mubr.f32.mxu0 0.0
    %7588 = vmatmul.mubr.f32.gmra.mrb[0].mxu0 %v7419
    %v7589 = vpop.f32.mrb[0].mxu0
    %v7590 = vadd.f32 0.0, %v7589
    %v7591 = vpop.f32.mrb[0].mxu0
    %7592 = vdwg.mxu0
    %v7594 = vsel %vm5762, %v7575, 0
    %v7597 = vsel %vm5762, %v7580, 0
    %v7600 = vsel %vm5762, %v7585, 0
    %v7603 = vsel %vm5762, %v7590, 0
    %7605 = vmatprep.subr.mxu0 0.0
    %7606 = vmatpush1.xpose.msra.mxu0 %v7410
    %7607 = vmatprep.subr.mxu0 0.0
    %7608 = vmatpush1.xpose.msra.mxu0 %v7413
    %7609 = vmatprep.subr.mxu0 0.0
    %7610 = vmatpush1.xpose.msra.mxu0 %v7416
    %7611 = vmatprep.subr.mxu0 0.0
    %7612 = vmatpush1.xpose.msra.mxu0 %v7419
    %7613 = vmatprep.subr.mxu0 0.0
    %7614 = vmatpush1.xpose.msra.mxu0 0.0
    %7615 = vmatprep.subr.mxu0 0.0
    %7616 = vmatpush1.xpose.msra.mxu0 0.0
    %7617 = vmatprep.subr.mxu0 0.0
    %7618 = vmatpush1.xpose.msra.mxu0 0.0
    %7619 = vmatprep.subr.mxu0 0.0
    %7620 = vmatpush1.xpose.msra.mxu0 0.0
    %7621 = vmatprep.subr.mxu0 0.0
    %7622 = vmatpush1.xpose.msra.mxu0 0.0
    %7623 = vmatprep.subr.mxu0 0.0
    %7624 = vmatpush1.xpose.msra.mxu0 0.0
    %7625 = vmatprep.subr.mxu0 0.0
    %7626 = vmatpush1.xpose.msra.mxu0 0.0
    %7627 = vmatprep.subr.mxu0 0.0
    %7628 = vmatpush1.xpose.msra.mxu0 0.0
    %7629 = vmatprep.subr.mxu0 0.0
    %7630 = vmatpush1.xpose.msra.mxu0 0.0
    %7631 = vmatprep.subr.mxu0 0.0
    %7632 = vmatpush1.xpose.msra.mxu0 0.0
    %7633 = vmatprep.subr.mxu0 0.0
    %7634 = vmatpush1.xpose.msra.mxu0 0.0
    %7635 = vmatprep.subr.mxu0 0.0
    %7636 = vmatpush1.xpose.msra.mxu0 0.0
    %7637 = vmatprep.subr.mxu0 0.0
    %7638 = vmatpush1.xpose.msra.mxu0 0.0
    %7639 = vmatprep.subr.mxu0 0.0
    %7640 = vmatpush1.xpose.msra.mxu0 0.0
    %7641 = vmatprep.subr.mxu0 0.0
    %7642 = vmatpush1.xpose.msra.mxu0 0.0
    %7643 = vmatprep.subr.mxu0 0.0
    %7644 = vmatpush1.xpose.msra.mxu0 0.0
    %7645 = vmatprep.subr.mxu0 0.0
    %7646 = vmatpush1.xpose.msra.mxu0 0.0
    %7647 = vmatprep.subr.mxu0 0.0
    %7648 = vmatpush1.xpose.msra.mxu0 0.0
    %7649 = vmatprep.subr.mxu0 0.0
    %7650 = vmatpush1.xpose.msra.mxu0 0.0
    %7651 = vmatprep.subr.mxu0 0.0
    %7652 = vmatpush1.xpose.msra.mxu0 0.0
    %7653 = vmatprep.subr.mxu0 0.0
    %7654 = vmatpush1.xpose.msra.mxu0 0.0
    %7655 = vmatprep.subr.mxu0 0.0
    %7656 = vmatpush1.xpose.msra.mxu0 0.0
    %7657 = vmatprep.subr.mxu0 0.0
    %7658 = vmatpush1.xpose.msra.mxu0 0.0
    %7659 = vmatprep.subr.mxu0 0.0
    %7660 = vmatpush1.xpose.msra.mxu0 0.0
    %7661 = vmatprep.subr.mxu0 0.0
    %7662 = vmatpush1.xpose.msra.mxu0 0.0
    %7663 = vmatprep.subr.mxu0 0.0
    %7664 = vmatpush1.xpose.msra.mxu0 0.0
    %7665 = vmatprep.subr.mxu0 0.0
    %7666 = vmatpush1.xpose.msra.mxu0 0.0
    %7667 = vmatprep.subr.mxu0 0.0
    %7668 = vmatpush1.xpose.msra.mxu0 0.0
    %7669 = vmatprep.mubr.f32.mxu0 0.0
    %7670 = vmatmul.mubr.f32.gmra.mrb[0].mxu0 %v7594
    %v7671 = vpop.f32.mrb[0].mxu0
    %v7672 = vadd.f32 0.0, %v7671
    %v7673 = vpop.f32.mrb[0].mxu0
    %7674 = vmatprep.mubr.f32.mxu0 0.0
    %7675 = vmatmul.mubr.f32.gmra.mrb[0].mxu0 %v7597
    %v7676 = vpop.f32.mrb[0].mxu0
    %v7677 = vadd.f32 0.0, %v7676
    %v7678 = vpop.f32.mrb[0].mxu0
    %7679 = vmatprep.mubr.f32.mxu0 0.0
    %7680 = vmatmul.mubr.f32.gmra.mrb[0].mxu0 %v7600
    %v7681 = vpop.f32.mrb[0].mxu0
    %v7682 = vadd.f32 0.0, %v7681
    %v7683 = vpop.f32.mrb[0].mxu0
    %7684 = vmatprep.mubr.f32.mxu0 0.0
    %7685 = vmatmul.mubr.f32.gmra.mrb[0].mxu0 %v7603
    %v7686 = vpop.f32.mrb[0].mxu0
    %v7687 = vadd.f32 0.0, %v7686
    %v7688 = vpop.f32.mrb[0].mxu0
    %7689 = vdwg.mxu0
    %v7690 = vmul.f32 %v7672, %v5744
    %v7691 = vmul.f32 %v7677, %v5745
    %v7692 = vmul.f32 %v7682, %v5746
    %v7693 = vmul.f32 %v7687, %v5747
    %v7694 = vadd.f32 %v7690, %v5748
    %v7695 = vadd.f32 %v7691, %v5749
    %v7696 = vadd.f32 %v7692, %v5750
    %v7697 = vadd.f32 %v7693, %v5751
    %v7698 = vsel %vm440, %v7694, -inf
    %7699 = vmax.xlane.f32.xlu0 %v7698
    %v7700 = vpop.xlane.xlu0 %7699
    %v7701 = vsel %vm440, %v7695, -inf
    %7702 = vmax.xlane.f32.xlu0 %v7701
    %v7703 = vpop.xlane.xlu0 %7702
    %v7704 = vsel %vm440, %v7696, -inf
    %7705 = vmax.xlane.f32.xlu0 %v7704
    %v7706 = vpop.xlane.xlu0 %7705
    %v7707 = vsel %vm440, %v7697, -inf
    %7708 = vmax.xlane.f32.xlu0 %v7707
    %v7709 = vpop.xlane.xlu0 %7708
    %v7710 = vsub.f32 %v7694, %v7700
    %v7711 = vsub.f32 %v7695, %v7703
    %v7712 = vsub.f32 %v7696, %v7706
    %v7713 = vsub.f32 %v7697, %v7709
    %v7714 = vmul.f32 %v7710, 1.442695
    %v7715 = vpow.pop %v7714
    %v7716 = vmul.f32 %v7711, 1.442695
    %v7717 = vpow.pop %v7716
    %v7718 = vmul.f32 %v7712, 1.442695
    %v7719 = vpow.pop %v7718
    %v7720 = vmul.f32 %v7713, 1.442695
    %v7721 = vpow.pop %v7720
    %v7722 = vsel %vm440, %v7715, 0.0
    %7723 = vadd.xlane.f32.xlu0 %v7722
    %v7724 = vpop.xlane.xlu0 %7723
    %v7725 = vsel %vm440, %v7717, 0.0
    %7726 = vadd.xlane.f32.xlu0 %v7725
    %v7727 = vpop.xlane.xlu0 %7726
    %v7728 = vsel %vm440, %v7719, 0.0
    %7729 = vadd.xlane.f32.xlu0 %v7728
    %v7730 = vpop.xlane.xlu0 %7729
    %v7731 = vsel %vm440, %v7721, 0.0
    %7732 = vadd.xlane.f32.xlu0 %v7731
    %v7733 = vpop.xlane.xlu0 %7732
    %v7734 = vrcp.pop %v7724
    %v7735 = vrcp.pop %v7727
    %v7736 = vrcp.pop %v7730
    %v7737 = vrcp.pop %v7733
    %v7738 = vmul.f32 %v7715, %v7734
    %v7739 = vmul.f32 %v7717, %v7735
    %v7740 = vmul.f32 %v7719, %v7736
    %v7741 = vmul.f32 %v7721, %v7737
    %v7742 = vmul.f32 %v7488, %v6101
    %v7743 = vmul.f32 %v7493, %v6101
    %v7744 = vmul.f32 %v7498, %v6101
    %v7745 = vmul.f32 %v7503, %v6101
    %s7746 = scalar_lea.vmem %s45, 16
    %v7747 = vld [vmem:[%s7746] sm:$0xff]
    %v7748 = vld [vmem:[%s7746 + $0x8] sm:$0xff]
    %7749 = vmatprep.subr.mxu0 0.0
    %7750 = vmatpush1.msra.mxu0 %v7747
    %7751 = vmatprep.subr.mxu0 0.0
    %7752 = vmatpush1.msra.mxu0 %v7748
    %7753 = vmatprep.subr.mxu0 0.0
    %7754 = vmatpush1.msra.mxu0 0.0
    %7755 = vmatprep.subr.mxu0 0.0
    %7756 = vmatpush1.msra.mxu0 0.0
    %7757 = vmatprep.subr.mxu0 0.0
    %7758 = vmatpush1.msra.mxu0 0.0
    %7759 = vmatprep.subr.mxu0 0.0
    %7760 = vmatpush1.msra.mxu0 0.0
    %7761 = vmatprep.subr.mxu0 0.0
    %7762 = vmatpush1.msra.mxu0 0.0
    %7763 = vmatprep.subr.mxu0 0.0
    %7764 = vmatpush1.msra.mxu0 0.0
    %7765 = vmatprep.subr.mxu0 0.0
    %7766 = vmatpush1.msra.mxu0 0.0
    %7767 = vmatprep.subr.mxu0 0.0
    %7768 = vmatpush1.msra.mxu0 0.0
    %7769 = vmatprep.subr.mxu0 0.0
    %7770 = vmatpush1.msra.mxu0 0.0
    %7771 = vmatprep.subr.mxu0 0.0
    %7772 = vmatpush1.msra.mxu0 0.0
    %7773 = vmatprep.subr.mxu0 0.0
    %7774 = vmatpush1.msra.mxu0 0.0
    %7775 = vmatprep.subr.mxu0 0.0
    %7776 = vmatpush1.msra.mxu0 0.0
    %7777 = vmatprep.subr.mxu0 0.0
    %7778 = vmatpush1.msra.mxu0 0.0
    %7779 = vmatprep.subr.mxu0 0.0
    %7780 = vmatpush1.msra.mxu0 0.0
    %7781 = vmatprep.subr.mxu0 0.0
    %7782 = vmatpush1.msra.mxu0 0.0
    %7783 = vmatprep.subr.mxu0 0.0
    %7784 = vmatpush1.msra.mxu0 0.0
    %7785 = vmatprep.subr.mxu0 0.0
    %7786 = vmatpush1.msra.mxu0 0.0
    %7787 = vmatprep.subr.mxu0 0.0
    %7788 = vmatpush1.msra.mxu0 0.0
    %7789 = vmatprep.subr.mxu0 0.0
    %7790 = vmatpush1.msra.mxu0 0.0
    %7791 = vmatprep.subr.mxu0 0.0
    %7792 = vmatpush1.msra.mxu0 0.0
    %7793 = vmatprep.subr.mxu0 0.0
    %7794 = vmatpush1.msra.mxu0 0.0
    %7795 = vmatprep.subr.mxu0 0.0
    %7796 = vmatpush1.msra.mxu0 0.0
    %7797 = vmatprep.subr.mxu0 0.0
    %7798 = vmatpush1.msra.mxu0 0.0
    %7799 = vmatprep.subr.mxu0 0.0
    %7800 = vmatpush1.msra.mxu0 0.0
    %7801 = vmatprep.subr.mxu0 0.0
    %7802 = vmatpush1.msra.mxu0 0.0
    %7803 = vmatprep.subr.mxu0 0.0
    %7804 = vmatpush1.msra.mxu0 0.0
    %7805 = vmatprep.subr.mxu0 0.0
    %7806 = vmatpush1.msra.mxu0 0.0
    %7807 = vmatprep.subr.mxu0 0.0
    %7808 = vmatpush1.msra.mxu0 0.0
    %7809 = vmatprep.subr.mxu0 0.0
    %7810 = vmatpush1.msra.mxu0 0.0
    %7811 = vmatprep.subr.mxu0 0.0
    %7812 = vmatpush1.msra.mxu0 0.0
    %7813 = vmatprep.mubr.f32.mxu0 0.0
    %7814 = vmatmul.mubr.f32.gmra.mrb[0].mxu0 %v7410
    %v7815 = vpop.f32.mrb[0].mxu0
    %v7816 = vadd.f32 0.0, %v7815
    %v7817 = vpop.f32.mrb[0].mxu0
    %7818 = vmatprep.mubr.f32.mxu0 0.0
    %7819 = vmatmul.mubr.f32.gmra.mrb[0].mxu0 %v7413
    %v7820 = vpop.f32.mrb[0].mxu0
    %v7821 = vadd.f32 0.0, %v7820
    %v7822 = vpop.f32.mrb[0].mxu0
    %7823 = vmatprep.mubr.f32.mxu0 0.0
    %7824 = vmatmul.mubr.f32.gmra.mrb[0].mxu0 %v7416
    %v7825 = vpop.f32.mrb[0].mxu0
    %v7826 = vadd.f32 0.0, %v7825
    %v7827 = vpop.f32.mrb[0].mxu0
    %7828 = vmatprep.mubr.f32.mxu0 0.0
    %7829 = vmatmul.mubr.f32.gmra.mrb[0].mxu0 %v7419
    %v7830 = vpop.f32.mrb[0].mxu0
    %v7831 = vadd.f32 0.0, %v7830
    %v7832 = vpop.f32.mrb[0].mxu0
    %7833 = vdwg.mxu0
    %v7835 = vsel %vm5762, %v7816, 0
    %v7838 = vsel %vm5762, %v7821, 0
    %v7841 = vsel %vm5762, %v7826, 0
    %v7844 = vsel %vm5762, %v7831, 0
    %7846 = vmatprep.subr.mxu0 0.0
    %7847 = vmatpush1.xpose.msra.mxu0 %v7410
    %7848 = vmatprep.subr.mxu0 0.0
    %7849 = vmatpush1.xpose.msra.mxu0 %v7413
    %7850 = vmatprep.subr.mxu0 0.0
    %7851 = vmatpush1.xpose.msra.mxu0 %v7416
    %7852 = vmatprep.subr.mxu0 0.0
    %7853 = vmatpush1.xpose.msra.mxu0 %v7419
    %7854 = vmatprep.subr.mxu0 0.0
    %7855 = vmatpush1.xpose.msra.mxu0 0.0
    %7856 = vmatprep.subr.mxu0 0.0
    %7857 = vmatpush1.xpose.msra.mxu0 0.0
    %7858 = vmatprep.subr.mxu0 0.0
    %7859 = vmatpush1.xpose.msra.mxu0 0.0
    %7860 = vmatprep.subr.mxu0 0.0
    %7861 = vmatpush1.xpose.msra.mxu0 0.0
    %7862 = vmatprep.subr.mxu0 0.0
    %7863 = vmatpush1.xpose.msra.mxu0 0.0
    %7864 = vmatprep.subr.mxu0 0.0
    %7865 = vmatpush1.xpose.msra.mxu0 0.0
    %7866 = vmatprep.subr.mxu0 0.0
    %7867 = vmatpush1.xpose.msra.mxu0 0.0
    %7868 = vmatprep.subr.mxu0 0.0
    %7869 = vmatpush1.xpose.msra.mxu0 0.0
    %7870 = vmatprep.subr.mxu0 0.0
    %7871 = vmatpush1.xpose.msra.mxu0 0.0
    %7872 = vmatprep.subr.mxu0 0.0
    %7873 = vmatpush1.xpose.msra.mxu0 0.0
    %7874 = vmatprep.subr.mxu0 0.0
    %7875 = vmatpush1.xpose.msra.mxu0 0.0
    %7876 = vmatprep.subr.mxu0 0.0
    %7877 = vmatpush1.xpose.msra.mxu0 0.0
    %7878 = vmatprep.subr.mxu0 0.0
    %7879 = vmatpush1.xpose.msra.mxu0 0.0
    %7880 = vmatprep.subr.mxu0 0.0
    %7881 = vmatpush1.xpose.msra.mxu0 0.0
    %7882 = vmatprep.subr.mxu0 0.0
    %7883 = vmatpush1.xpose.msra.mxu0 0.0
    %7884 = vmatprep.subr.mxu0 0.0
    %7885 = vmatpush1.xpose.msra.mxu0 0.0
    %7886 = vmatprep.subr.mxu0 0.0
    %7887 = vmatpush1.xpose.msra.mxu0 0.0
    %7888 = vmatprep.subr.mxu0 0.0
    %7889 = vmatpush1.xpose.msra.mxu0 0.0
    %7890 = vmatprep.subr.mxu0 0.0
    %7891 = vmatpush1.xpose.msra.mxu0 0.0
    %7892 = vmatprep.subr.mxu0 0.0
    %7893 = vmatpush1.xpose.msra.mxu0 0.0
    %7894 = vmatprep.subr.mxu0 0.0
    %7895 = vmatpush1.xpose.msra.mxu0 0.0
    %7896 = vmatprep.subr.mxu0 0.0
    %7897 = vmatpush1.xpose.msra.mxu0 0.0
    %7898 = vmatprep.subr.mxu0 0.0
    %7899 = vmatpush1.xpose.msra.mxu0 0.0
    %7900 = vmatprep.subr.mxu0 0.0
    %7901 = vmatpush1.xpose.msra.mxu0 0.0
    %7902 = vmatprep.subr.mxu0 0.0
    %7903 = vmatpush1.xpose.msra.mxu0 0.0
    %7904 = vmatprep.subr.mxu0 0.0
    %7905 = vmatpush1.xpose.msra.mxu0 0.0
    %7906 = vmatprep.subr.mxu0 0.0
    %7907 = vmatpush1.xpose.msra.mxu0 0.0
    %7908 = vmatprep.subr.mxu0 0.0
    %7909 = vmatpush1.xpose.msra.mxu0 0.0
    %7910 = vmatprep.mubr.f32.mxu0 0.0
    %7911 = vmatmul.mubr.f32.gmra.mrb[0].mxu0 %v7835
    %v7912 = vpop.f32.mrb[0].mxu0
    %v7913 = vadd.f32 0.0, %v7912
    %v7914 = vpop.f32.mrb[0].mxu0
    %7915 = vmatprep.mubr.f32.mxu0 0.0
    %7916 = vmatmul.mubr.f32.gmra.mrb[0].mxu0 %v7838
    %v7917 = vpop.f32.mrb[0].mxu0
    %v7918 = vadd.f32 0.0, %v7917
    %v7919 = vpop.f32.mrb[0].mxu0
    %7920 = vmatprep.mubr.f32.mxu0 0.0
    %7921 = vmatmul.mubr.f32.gmra.mrb[0].mxu0 %v7841
    %v7922 = vpop.f32.mrb[0].mxu0
    %v7923 = vadd.f32 0.0, %v7922
    %v7924 = vpop.f32.mrb[0].mxu0
    %7925 = vmatprep.mubr.f32.mxu0 0.0
    %7926 = vmatmul.mubr.f32.gmra.mrb[0].mxu0 %v7844
    %v7927 = vpop.f32.mrb[0].mxu0
    %v7928 = vadd.f32 0.0, %v7927
    %v7929 = vpop.f32.mrb[0].mxu0
    %7930 = vdwg.mxu0
    %v7931 = vmul.f32 %v7913, %v5744
    %v7932 = vmul.f32 %v7918, %v5745
    %v7933 = vmul.f32 %v7923, %v5746
    %v7934 = vmul.f32 %v7928, %v5747
    %v7935 = vadd.f32 %v7931, %v5748
    %v7936 = vadd.f32 %v7932, %v5749
    %v7937 = vadd.f32 %v7933, %v5750
    %v7938 = vadd.f32 %v7934, %v5751
    %v7939 = vsel %vm440, %v7935, -inf
    %7940 = vmax.xlane.f32.xlu0 %v7939
    %v7941 = vpop.xlane.xlu0 %7940
    %v7942 = vsel %vm440, %v7936, -inf
    %7943 = vmax.xlane.f32.xlu0 %v7942
    %v7944 = vpop.xlane.xlu0 %7943
    %v7945 = vsel %vm440, %v7937, -inf
    %7946 = vmax.xlane.f32.xlu0 %v7945
    %v7947 = vpop.xlane.xlu0 %7946
    %v7948 = vsel %vm440, %v7938, -inf
    %7949 = vmax.xlane.f32.xlu0 %v7948
    %v7950 = vpop.xlane.xlu0 %7949
    %v7951 = vsub.f32 %v7935, %v7941
    %v7952 = vsub.f32 %v7936, %v7944
    %v7953 = vsub.f32 %v7937, %v7947
    %v7954 = vsub.f32 %v7938, %v7950
    %v7955 = vmul.f32 %v7951, 1.442695
    %v7956 = vpow.pop %v7955
    %v7957 = vmul.f32 %v7952, 1.442695
    %v7958 = vpow.pop %v7957
    %v7959 = vmul.f32 %v7953, 1.442695
    %v7960 = vpow.pop %v7959
    %v7961 = vmul.f32 %v7954, 1.442695
    %v7962 = vpow.pop %v7961
    %v7963 = vsel %vm440, %v7956, 0.0
    %7964 = vadd.xlane.f32.xlu0 %v7963
    %v7965 = vpop.xlane.xlu0 %7964
    %v7966 = vsel %vm440, %v7958, 0.0
    %7967 = vadd.xlane.f32.xlu0 %v7966
    %v7968 = vpop.xlane.xlu0 %7967
    %v7969 = vsel %vm440, %v7960, 0.0
    %7970 = vadd.xlane.f32.xlu0 %v7969
    %v7971 = vpop.xlane.xlu0 %7970
    %v7972 = vsel %vm440, %v7962, 0.0
    %7973 = vadd.xlane.f32.xlu0 %v7972
    %v7974 = vpop.xlane.xlu0 %7973
    %v7975 = vrcp.pop %v7965
    %v7976 = vrcp.pop %v7968
    %v7977 = vrcp.pop %v7971
    %v7978 = vrcp.pop %v7974
    %v7979 = vmul.f32 %v7956, %v7975
    %v7980 = vmul.f32 %v7958, %v7976
    %v7981 = vmul.f32 %v7960, %v7977
    %v7982 = vmul.f32 %v7962, %v7978
    %v7983 = vmul.f32 %v7488, %v6350
    %v7984 = vmul.f32 %v7493, %v6350
    %v7985 = vmul.f32 %v7498, %v6350
    %v7986 = vmul.f32 %v7503, %v6350
    %v7988 = vsel %vm440, %v7979, 0
    %v7991 = vsel %vm440, %v7980, 0
    %v7994 = vsel %vm440, %v7981, 0
    %v7997 = vsel %vm440, %v7982, 0
    %7999 = vmatprep.subr.mxu0 0.0
    %8000 = vmatpush1.msra.mxu0 %v7983
    %8001 = vmatprep.subr.mxu0 0.0
    %8002 = vmatpush1.msra.mxu0 %v7984
    %8003 = vmatprep.subr.mxu0 0.0
    %8004 = vmatpush1.msra.mxu0 %v7985
    %8005 = vmatprep.subr.mxu0 0.0
    %8006 = vmatpush1.msra.mxu0 %v7986
    %8007 = vmatprep.subr.mxu0 0.0
    %8008 = vmatpush1.msra.mxu0 0.0
    %8009 = vmatprep.subr.mxu0 0.0
    %8010 = vmatpush1.msra.mxu0 0.0
    %8011 = vmatprep.subr.mxu0 0.0
    %8012 = vmatpush1.msra.mxu0 0.0
    %8013 = vmatprep.subr.mxu0 0.0
    %8014 = vmatpush1.msra.mxu0 0.0
    %8015 = vmatprep.subr.mxu0 0.0
    %8016 = vmatpush1.msra.mxu0 0.0
    %8017 = vmatprep.subr.mxu0 0.0
    %8018 = vmatpush1.msra.mxu0 0.0
    %8019 = vmatprep.subr.mxu0 0.0
    %8020 = vmatpush1.msra.mxu0 0.0
    %8021 = vmatprep.subr.mxu0 0.0
    %8022 = vmatpush1.msra.mxu0 0.0
    %8023 = vmatprep.subr.mxu0 0.0
    %8024 = vmatpush1.msra.mxu0 0.0
    %8025 = vmatprep.subr.mxu0 0.0
    %8026 = vmatpush1.msra.mxu0 0.0
    %8027 = vmatprep.subr.mxu0 0.0
    %8028 = vmatpush1.msra.mxu0 0.0
    %8029 = vmatprep.subr.mxu0 0.0
    %8030 = vmatpush1.msra.mxu0 0.0
    %8031 = vmatprep.subr.mxu0 0.0
    %8032 = vmatpush1.msra.mxu0 0.0
    %8033 = vmatprep.subr.mxu0 0.0
    %8034 = vmatpush1.msra.mxu0 0.0
    %8035 = vmatprep.subr.mxu0 0.0
    %8036 = vmatpush1.msra.mxu0 0.0
    %8037 = vmatprep.subr.mxu0 0.0
    %8038 = vmatpush1.msra.mxu0 0.0
    %8039 = vmatprep.subr.mxu0 0.0
    %8040 = vmatpush1.msra.mxu0 0.0
    %8041 = vmatprep.subr.mxu0 0.0
    %8042 = vmatpush1.msra.mxu0 0.0
    %8043 = vmatprep.subr.mxu0 0.0
    %8044 = vmatpush1.msra.mxu0 0.0
    %8045 = vmatprep.subr.mxu0 0.0
    %8046 = vmatpush1.msra.mxu0 0.0
    %8047 = vmatprep.subr.mxu0 0.0
    %8048 = vmatpush1.msra.mxu0 0.0
    %8049 = vmatprep.subr.mxu0 0.0
    %8050 = vmatpush1.msra.mxu0 0.0
    %8051 = vmatprep.subr.mxu0 0.0
    %8052 = vmatpush1.msra.mxu0 0.0
    %8053 = vmatprep.subr.mxu0 0.0
    %8054 = vmatpush1.msra.mxu0 0.0
    %8055 = vmatprep.subr.mxu0 0.0
    %8056 = vmatpush1.msra.mxu0 0.0
    %8057 = vmatprep.subr.mxu0 0.0
    %8058 = vmatpush1.msra.mxu0 0.0
    %8059 = vmatprep.subr.mxu0 0.0
    %8060 = vmatpush1.msra.mxu0 0.0
    %8061 = vmatprep.subr.mxu0 0.0
    %8062 = vmatpush1.msra.mxu0 0.0
    %8063 = vmatprep.mubr.f32.mxu0 0.0
    %8064 = vmatmul.mubr.f32.gmra.mrb[0].mxu0 %v7988
    %v8065 = vpop.f32.mrb[0].mxu0
    %v8066 = vadd.f32 0.0, %v8065
    %v8067 = vpop.f32.mrb[0].mxu0
    %8068 = vmatprep.mubr.f32.mxu0 0.0
    %8069 = vmatmul.mubr.f32.gmra.mrb[0].mxu0 %v7991
    %v8070 = vpop.f32.mrb[0].mxu0
    %v8071 = vadd.f32 0.0, %v8070
    %v8072 = vpop.f32.mrb[0].mxu0
    %8073 = vmatprep.mubr.f32.mxu0 0.0
    %8074 = vmatmul.mubr.f32.gmra.mrb[0].mxu0 %v7994
    %v8075 = vpop.f32.mrb[0].mxu0
    %v8076 = vadd.f32 0.0, %v8075
    %v8077 = vpop.f32.mrb[0].mxu0
    %8078 = vmatprep.mubr.f32.mxu0 0.0
    %8079 = vmatmul.mubr.f32.gmra.mrb[0].mxu0 %v7997
    %v8080 = vpop.f32.mrb[0].mxu0
    %v8081 = vadd.f32 0.0, %v8080
    %v8082 = vpop.f32.mrb[0].mxu0
    %8083 = vdwg.mxu0
    %v8085 = vsel %vm440, %v7738, 0
    %v8088 = vsel %vm440, %v7739, 0
    %v8091 = vsel %vm440, %v7740, 0
    %v8094 = vsel %vm440, %v7741, 0
    %8096 = vmatprep.subr.mxu0 0.0
    %8097 = vmatpush1.msra.mxu0 %v7742
    %8098 = vmatprep.subr.mxu0 0.0
    %8099 = vmatpush1.msra.mxu0 %v7743
    %8100 = vmatprep.subr.mxu0 0.0
    %8101 = vmatpush1.msra.mxu0 %v7744
    %8102 = vmatprep.subr.mxu0 0.0
    %8103 = vmatpush1.msra.mxu0 %v7745
    %8104 = vmatprep.subr.mxu0 0.0
    %8105 = vmatpush1.msra.mxu0 0.0
    %8106 = vmatprep.subr.mxu0 0.0
    %8107 = vmatpush1.msra.mxu0 0.0
    %8108 = vmatprep.subr.mxu0 0.0
    %8109 = vmatpush1.msra.mxu0 0.0
    %8110 = vmatprep.subr.mxu0 0.0
    %8111 = vmatpush1.msra.mxu0 0.0
    %8112 = vmatprep.subr.mxu0 0.0
    %8113 = vmatpush1.msra.mxu0 0.0
    %8114 = vmatprep.subr.mxu0 0.0
    %8115 = vmatpush1.msra.mxu0 0.0
    %8116 = vmatprep.subr.mxu0 0.0
    %8117 = vmatpush1.msra.mxu0 0.0
    %8118 = vmatprep.subr.mxu0 0.0
    %8119 = vmatpush1.msra.mxu0 0.0
    %8120 = vmatprep.subr.mxu0 0.0
    %8121 = vmatpush1.msra.mxu0 0.0
    %8122 = vmatprep.subr.mxu0 0.0
    %8123 = vmatpush1.msra.mxu0 0.0
    %8124 = vmatprep.subr.mxu0 0.0
    %8125 = vmatpush1.msra.mxu0 0.0
    %8126 = vmatprep.subr.mxu0 0.0
    %8127 = vmatpush1.msra.mxu0 0.0
    %8128 = vmatprep.subr.mxu0 0.0
    %8129 = vmatpush1.msra.mxu0 0.0
    %8130 = vmatprep.subr.mxu0 0.0
    %8131 = vmatpush1.msra.mxu0 0.0
    %8132 = vmatprep.subr.mxu0 0.0
    %8133 = vmatpush1.msra.mxu0 0.0
    %8134 = vmatprep.subr.mxu0 0.0
    %8135 = vmatpush1.msra.mxu0 0.0
    %8136 = vmatprep.subr.mxu0 0.0
    %8137 = vmatpush1.msra.mxu0 0.0
    %8138 = vmatprep.subr.mxu0 0.0
    %8139 = vmatpush1.msra.mxu0 0.0
    %8140 = vmatprep.subr.mxu0 0.0
    %8141 = vmatpush1.msra.mxu0 0.0
    %8142 = vmatprep.subr.mxu0 0.0
    %8143 = vmatpush1.msra.mxu0 0.0
    %8144 = vmatprep.subr.mxu0 0.0
    %8145 = vmatpush1.msra.mxu0 0.0
    %8146 = vmatprep.subr.mxu0 0.0
    %8147 = vmatpush1.msra.mxu0 0.0
    %8148 = vmatprep.subr.mxu0 0.0
    %8149 = vmatpush1.msra.mxu0 0.0
    %8150 = vmatprep.subr.mxu0 0.0
    %8151 = vmatpush1.msra.mxu0 0.0
    %8152 = vmatprep.subr.mxu0 0.0
    %8153 = vmatpush1.msra.mxu0 0.0
    %8154 = vmatprep.subr.mxu0 0.0
    %8155 = vmatpush1.msra.mxu0 0.0
    %8156 = vmatprep.subr.mxu0 0.0
    %8157 = vmatpush1.msra.mxu0 0.0
    %8158 = vmatprep.subr.mxu0 0.0
    %8159 = vmatpush1.msra.mxu0 0.0
    %8160 = vmatprep.mubr.f32.mxu0 0.0
    %8161 = vmatmul.mubr.f32.gmra.mrb[0].mxu0 %v8085
    %v8162 = vpop.f32.mrb[0].mxu0
    %v8163 = vadd.f32 %v8066, %v8162
    %v8164 = vpop.f32.mrb[0].mxu0
    %8165 = vmatprep.mubr.f32.mxu0 0.0
    %8166 = vmatmul.mubr.f32.gmra.mrb[0].mxu0 %v8088
    %v8167 = vpop.f32.mrb[0].mxu0
    %v8168 = vadd.f32 %v8071, %v8167
    %v8169 = vpop.f32.mrb[0].mxu0
    %8170 = vmatprep.mubr.f32.mxu0 0.0
    %8171 = vmatmul.mubr.f32.gmra.mrb[0].mxu0 %v8091
    %v8172 = vpop.f32.mrb[0].mxu0
    %v8173 = vadd.f32 %v8076, %v8172
    %v8174 = vpop.f32.mrb[0].mxu0
    %8175 = vmatprep.mubr.f32.mxu0 0.0
    %8176 = vmatmul.mubr.f32.gmra.mrb[0].mxu0 %v8094
    %v8177 = vpop.f32.mrb[0].mxu0
    %v8178 = vadd.f32 %v8081, %v8177
    %v8179 = vpop.f32.mrb[0].mxu0
    %8180 = vdwg.mxu0
    %s8181 = scalar_lea.vmem %s45, 32
    %v8182 = vld [vmem:[%s8181] sm:$0xff]
    %v8183 = vld [vmem:[%s8181 + $0x8] sm:$0xff]
    %8184 = vmatprep.subr.mxu0 0.0
    %8185 = vmatpush1.msra.mxu0 %v8182
    %8186 = vmatprep.subr.mxu0 0.0
    %8187 = vmatpush1.msra.mxu0 %v8183
    %8188 = vmatprep.subr.mxu0 0.0
    %8189 = vmatpush1.msra.mxu0 0.0
    %8190 = vmatprep.subr.mxu0 0.0
    %8191 = vmatpush1.msra.mxu0 0.0
    %8192 = vmatprep.subr.mxu0 0.0
    %8193 = vmatpush1.msra.mxu0 0.0
    %8194 = vmatprep.subr.mxu0 0.0
    %8195 = vmatpush1.msra.mxu0 0.0
    %8196 = vmatprep.subr.mxu0 0.0
    %8197 = vmatpush1.msra.mxu0 0.0
    %8198 = vmatprep.subr.mxu0 0.0
    %8199 = vmatpush1.msra.mxu0 0.0
    %8200 = vmatprep.subr.mxu0 0.0
    %8201 = vmatpush1.msra.mxu0 0.0
    %8202 = vmatprep.subr.mxu0 0.0
    %8203 = vmatpush1.msra.mxu0 0.0
    %8204 = vmatprep.subr.mxu0 0.0
    %8205 = vmatpush1.msra.mxu0 0.0
    %8206 = vmatprep.subr.mxu0 0.0
    %8207 = vmatpush1.msra.mxu0 0.0
    %8208 = vmatprep.subr.mxu0 0.0
    %8209 = vmatpush1.msra.mxu0 0.0
    %8210 = vmatprep.subr.mxu0 0.0
    %8211 = vmatpush1.msra.mxu0 0.0
    %8212 = vmatprep.subr.mxu0 0.0
    %8213 = vmatpush1.msra.mxu0 0.0
    %8214 = vmatprep.subr.mxu0 0.0
    %8215 = vmatpush1.msra.mxu0 0.0
    %8216 = vmatprep.subr.mxu0 0.0
    %8217 = vmatpush1.msra.mxu0 0.0
    %8218 = vmatprep.subr.mxu0 0.0
    %8219 = vmatpush1.msra.mxu0 0.0
    %8220 = vmatprep.subr.mxu0 0.0
    %8221 = vmatpush1.msra.mxu0 0.0
    %8222 = vmatprep.subr.mxu0 0.0
    %8223 = vmatpush1.msra.mxu0 0.0
    %8224 = vmatprep.subr.mxu0 0.0
    %8225 = vmatpush1.msra.mxu0 0.0
    %8226 = vmatprep.subr.mxu0 0.0
    %8227 = vmatpush1.msra.mxu0 0.0
    %8228 = vmatprep.subr.mxu0 0.0
    %8229 = vmatpush1.msra.mxu0 0.0
    %8230 = vmatprep.subr.mxu0 0.0
    %8231 = vmatpush1.msra.mxu0 0.0
    %8232 = vmatprep.subr.mxu0 0.0
    %8233 = vmatpush1.msra.mxu0 0.0
    %8234 = vmatprep.subr.mxu0 0.0
    %8235 = vmatpush1.msra.mxu0 0.0
    %8236 = vmatprep.subr.mxu0 0.0
    %8237 = vmatpush1.msra.mxu0 0.0
    %8238 = vmatprep.subr.mxu0 0.0
    %8239 = vmatpush1.msra.mxu0 0.0
    %8240 = vmatprep.subr.mxu0 0.0
    %8241 = vmatpush1.msra.mxu0 0.0
    %8242 = vmatprep.subr.mxu0 0.0
    %8243 = vmatpush1.msra.mxu0 0.0
    %8244 = vmatprep.subr.mxu0 0.0
    %8245 = vmatpush1.msra.mxu0 0.0
    %8246 = vmatprep.subr.mxu0 0.0
    %8247 = vmatpush1.msra.mxu0 0.0
    %8248 = vmatprep.mubr.f32.mxu0 0.0
    %8249 = vmatmul.mubr.f32.gmra.mrb[0].mxu0 %v7410
    %v8250 = vpop.f32.mrb[0].mxu0
    %v8251 = vadd.f32 0.0, %v8250
    %v8252 = vpop.f32.mrb[0].mxu0
    %8253 = vmatprep.mubr.f32.mxu0 0.0
    %8254 = vmatmul.mubr.f32.gmra.mrb[0].mxu0 %v7413
    %v8255 = vpop.f32.mrb[0].mxu0
    %v8256 = vadd.f32 0.0, %v8255
    %v8257 = vpop.f32.mrb[0].mxu0
    %8258 = vmatprep.mubr.f32.mxu0 0.0
    %8259 = vmatmul.mubr.f32.gmra.mrb[0].mxu0 %v7416
    %v8260 = vpop.f32.mrb[0].mxu0
    %v8261 = vadd.f32 0.0, %v8260
    %v8262 = vpop.f32.mrb[0].mxu0
    %8263 = vmatprep.mubr.f32.mxu0 0.0
    %8264 = vmatmul.mubr.f32.gmra.mrb[0].mxu0 %v7419
    %v8265 = vpop.f32.mrb[0].mxu0
    %v8266 = vadd.f32 0.0, %v8265
    %v8267 = vpop.f32.mrb[0].mxu0
    %8268 = vdwg.mxu0
    %v8270 = vsel %vm5762, %v8251, 0
    %v8273 = vsel %vm5762, %v8256, 0
    %v8276 = vsel %vm5762, %v8261, 0
    %v8279 = vsel %vm5762, %v8266, 0
    %8281 = vmatprep.subr.mxu0 0.0
    %8282 = vmatpush1.xpose.msra.mxu0 %v7410
    %8283 = vmatprep.subr.mxu0 0.0
    %8284 = vmatpush1.xpose.msra.mxu0 %v7413
    %8285 = vmatprep.subr.mxu0 0.0
    %8286 = vmatpush1.xpose.msra.mxu0 %v7416
    %8287 = vmatprep.subr.mxu0 0.0
    %8288 = vmatpush1.xpose.msra.mxu0 %v7419
    %8289 = vmatprep.subr.mxu0 0.0
    %8290 = vmatpush1.xpose.msra.mxu0 0.0
    %8291 = vmatprep.subr.mxu0 0.0
    %8292 = vmatpush1.xpose.msra.mxu0 0.0
    %8293 = vmatprep.subr.mxu0 0.0
    %8294 = vmatpush1.xpose.msra.mxu0 0.0
    %8295 = vmatprep.subr.mxu0 0.0
    %8296 = vmatpush1.xpose.msra.mxu0 0.0
    %8297 = vmatprep.subr.mxu0 0.0
    %8298 = vmatpush1.xpose.msra.mxu0 0.0
    %8299 = vmatprep.subr.mxu0 0.0
    %8300 = vmatpush1.xpose.msra.mxu0 0.0
    %8301 = vmatprep.subr.mxu0 0.0
    %8302 = vmatpush1.xpose.msra.mxu0 0.0
    %8303 = vmatprep.subr.mxu0 0.0
    %8304 = vmatpush1.xpose.msra.mxu0 0.0
    %8305 = vmatprep.subr.mxu0 0.0
    %8306 = vmatpush1.xpose.msra.mxu0 0.0
    %8307 = vmatprep.subr.mxu0 0.0
    %8308 = vmatpush1.xpose.msra.mxu0 0.0
    %8309 = vmatprep.subr.mxu0 0.0
    %8310 = vmatpush1.xpose.msra.mxu0 0.0
    %8311 = vmatprep.subr.mxu0 0.0
    %8312 = vmatpush1.xpose.msra.mxu0 0.0
    %8313 = vmatprep.subr.mxu0 0.0
    %8314 = vmatpush1.xpose.msra.mxu0 0.0
    %8315 = vmatprep.subr.mxu0 0.0
    %8316 = vmatpush1.xpose.msra.mxu0 0.0
    %8317 = vmatprep.subr.mxu0 0.0
    %8318 = vmatpush1.xpose.msra.mxu0 0.0
    %8319 = vmatprep.subr.mxu0 0.0
    %8320 = vmatpush1.xpose.msra.mxu0 0.0
    %8321 = vmatprep.subr.mxu0 0.0
    %8322 = vmatpush1.xpose.msra.mxu0 0.0
    %8323 = vmatprep.subr.mxu0 0.0
    %8324 = vmatpush1.xpose.msra.mxu0 0.0
    %8325 = vmatprep.subr.mxu0 0.0
    %8326 = vmatpush1.xpose.msra.mxu0 0.0
    %8327 = vmatprep.subr.mxu0 0.0
    %8328 = vmatpush1.xpose.msra.mxu0 0.0
    %8329 = vmatprep.subr.mxu0 0.0
    %8330 = vmatpush1.xpose.msra.mxu0 0.0
    %8331 = vmatprep.subr.mxu0 0.0
    %8332 = vmatpush1.xpose.msra.mxu0 0.0
    %8333 = vmatprep.subr.mxu0 0.0
    %8334 = vmatpush1.xpose.msra.mxu0 0.0
    %8335 = vmatprep.subr.mxu0 0.0
    %8336 = vmatpush1.xpose.msra.mxu0 0.0
    %8337 = vmatprep.subr.mxu0 0.0
    %8338 = vmatpush1.xpose.msra.mxu0 0.0
    %8339 = vmatprep.subr.mxu0 0.0
    %8340 = vmatpush1.xpose.msra.mxu0 0.0
    %8341 = vmatprep.subr.mxu0 0.0
    %8342 = vmatpush1.xpose.msra.mxu0 0.0
    %8343 = vmatprep.subr.mxu0 0.0
    %8344 = vmatpush1.xpose.msra.mxu0 0.0
    %8345 = vmatprep.mubr.f32.mxu0 0.0
    %8346 = vmatmul.mubr.f32.gmra.mrb[0].mxu0 %v8270
    %v8347 = vpop.f32.mrb[0].mxu0
    %v8348 = vadd.f32 0.0, %v8347
    %v8349 = vpop.f32.mrb[0].mxu0
    %8350 = vmatprep.mubr.f32.mxu0 0.0
    %8351 = vmatmul.mubr.f32.gmra.mrb[0].mxu0 %v8273
    %v8352 = vpop.f32.mrb[0].mxu0
    %v8353 = vadd.f32 0.0, %v8352
    %v8354 = vpop.f32.mrb[0].mxu0
    %8355 = vmatprep.mubr.f32.mxu0 0.0
    %8356 = vmatmul.mubr.f32.gmra.mrb[0].mxu0 %v8276
    %v8357 = vpop.f32.mrb[0].mxu0
    %v8358 = vadd.f32 0.0, %v8357
    %v8359 = vpop.f32.mrb[0].mxu0
    %8360 = vmatprep.mubr.f32.mxu0 0.0
    %8361 = vmatmul.mubr.f32.gmra.mrb[0].mxu0 %v8279
    %v8362 = vpop.f32.mrb[0].mxu0
    %v8363 = vadd.f32 0.0, %v8362
    %v8364 = vpop.f32.mrb[0].mxu0
    %8365 = vdwg.mxu0
    %v8366 = vmul.f32 %v8348, %v5744
    %v8367 = vmul.f32 %v8353, %v5745
    %v8368 = vmul.f32 %v8358, %v5746
    %v8369 = vmul.f32 %v8363, %v5747
    %v8370 = vadd.f32 %v8366, %v5748
    %v8371 = vadd.f32 %v8367, %v5749
    %v8372 = vadd.f32 %v8368, %v5750
    %v8373 = vadd.f32 %v8369, %v5751
    %v8374 = vsel %vm440, %v8370, -inf
    %8375 = vmax.xlane.f32.xlu0 %v8374
    %v8376 = vpop.xlane.xlu0 %8375
    %v8377 = vsel %vm440, %v8371, -inf
    %8378 = vmax.xlane.f32.xlu0 %v8377
    %v8379 = vpop.xlane.xlu0 %8378
    %v8380 = vsel %vm440, %v8372, -inf
    %8381 = vmax.xlane.f32.xlu0 %v8380
    %v8382 = vpop.xlane.xlu0 %8381
    %v8383 = vsel %vm440, %v8373, -inf
    %8384 = vmax.xlane.f32.xlu0 %v8383
    %v8385 = vpop.xlane.xlu0 %8384
    %v8386 = vsub.f32 %v8370, %v8376
    %v8387 = vsub.f32 %v8371, %v8379
    %v8388 = vsub.f32 %v8372, %v8382
    %v8389 = vsub.f32 %v8373, %v8385
    %v8390 = vmul.f32 %v8386, 1.442695
    %v8391 = vpow.pop %v8390
    %v8392 = vmul.f32 %v8387, 1.442695
    %v8393 = vpow.pop %v8392
    %v8394 = vmul.f32 %v8388, 1.442695
    %v8395 = vpow.pop %v8394
    %v8396 = vmul.f32 %v8389, 1.442695
    %v8397 = vpow.pop %v8396
    %v8398 = vsel %vm440, %v8391, 0.0
    %8399 = vadd.xlane.f32.xlu0 %v8398
    %v8400 = vpop.xlane.xlu0 %8399
    %v8401 = vsel %vm440, %v8393, 0.0
    %8402 = vadd.xlane.f32.xlu0 %v8401
    %v8403 = vpop.xlane.xlu0 %8402
    %v8404 = vsel %vm440, %v8395, 0.0
    %8405 = vadd.xlane.f32.xlu0 %v8404
    %v8406 = vpop.xlane.xlu0 %8405
    %v8407 = vsel %vm440, %v8397, 0.0
    %8408 = vadd.xlane.f32.xlu0 %v8407
    %v8409 = vpop.xlane.xlu0 %8408
    %v8410 = vrcp.pop %v8400
    %v8411 = vrcp.pop %v8403
    %v8412 = vrcp.pop %v8406
    %v8413 = vrcp.pop %v8409
    %v8414 = vmul.f32 %v8391, %v8410
    %v8415 = vmul.f32 %v8393, %v8411
    %v8416 = vmul.f32 %v8395, %v8412
    %v8417 = vmul.f32 %v8397, %v8413
    %v8418 = vmul.f32 %v7488, %v6793
    %v8419 = vmul.f32 %v7493, %v6793
    %v8420 = vmul.f32 %v7498, %v6793
    %v8421 = vmul.f32 %v7503, %v6793
    %v8423 = vsel %vm440, %v8414, 0
    %v8426 = vsel %vm440, %v8415, 0
    %v8429 = vsel %vm440, %v8416, 0
    %v8432 = vsel %vm440, %v8417, 0
    %8434 = vmatprep.subr.mxu0 0.0
    %8435 = vmatpush1.msra.mxu0 %v8418
    %8436 = vmatprep.subr.mxu0 0.0
    %8437 = vmatpush1.msra.mxu0 %v8419
    %8438 = vmatprep.subr.mxu0 0.0
    %8439 = vmatpush1.msra.mxu0 %v8420
    %8440 = vmatprep.subr.mxu0 0.0
    %8441 = vmatpush1.msra.mxu0 %v8421
    %8442 = vmatprep.subr.mxu0 0.0
    %8443 = vmatpush1.msra.mxu0 0.0
    %8444 = vmatprep.subr.mxu0 0.0
    %8445 = vmatpush1.msra.mxu0 0.0
    %8446 = vmatprep.subr.mxu0 0.0
    %8447 = vmatpush1.msra.mxu0 0.0
    %8448 = vmatprep.subr.mxu0 0.0
    %8449 = vmatpush1.msra.mxu0 0.0
    %8450 = vmatprep.subr.mxu0 0.0
    %8451 = vmatpush1.msra.mxu0 0.0
    %8452 = vmatprep.subr.mxu0 0.0
    %8453 = vmatpush1.msra.mxu0 0.0
    %8454 = vmatprep.subr.mxu0 0.0
    %8455 = vmatpush1.msra.mxu0 0.0
    %8456 = vmatprep.subr.mxu0 0.0
    %8457 = vmatpush1.msra.mxu0 0.0
    %8458 = vmatprep.subr.mxu0 0.0
    %8459 = vmatpush1.msra.mxu0 0.0
    %8460 = vmatprep.subr.mxu0 0.0
    %8461 = vmatpush1.msra.mxu0 0.0
    %8462 = vmatprep.subr.mxu0 0.0
    %8463 = vmatpush1.msra.mxu0 0.0
    %8464 = vmatprep.subr.mxu0 0.0
    %8465 = vmatpush1.msra.mxu0 0.0
    %8466 = vmatprep.subr.mxu0 0.0
    %8467 = vmatpush1.msra.mxu0 0.0
    %8468 = vmatprep.subr.mxu0 0.0
    %8469 = vmatpush1.msra.mxu0 0.0
    %8470 = vmatprep.subr.mxu0 0.0
    %8471 = vmatpush1.msra.mxu0 0.0
    %8472 = vmatprep.subr.mxu0 0.0
    %8473 = vmatpush1.msra.mxu0 0.0
    %8474 = vmatprep.subr.mxu0 0.0
    %8475 = vmatpush1.msra.mxu0 0.0
    %8476 = vmatprep.subr.mxu0 0.0
    %8477 = vmatpush1.msra.mxu0 0.0
    %8478 = vmatprep.subr.mxu0 0.0
    %8479 = vmatpush1.msra.mxu0 0.0
    %8480 = vmatprep.subr.mxu0 0.0
    %8481 = vmatpush1.msra.mxu0 0.0
    %8482 = vmatprep.subr.mxu0 0.0
    %8483 = vmatpush1.msra.mxu0 0.0
    %8484 = vmatprep.subr.mxu0 0.0
    %8485 = vmatpush1.msra.mxu0 0.0
    %8486 = vmatprep.subr.mxu0 0.0
    %8487 = vmatpush1.msra.mxu0 0.0
    %8488 = vmatprep.subr.mxu0 0.0
    %8489 = vmatpush1.msra.mxu0 0.0
    %8490 = vmatprep.subr.mxu0 0.0
    %8491 = vmatpush1.msra.mxu0 0.0
    %8492 = vmatprep.subr.mxu0 0.0
    %8493 = vmatpush1.msra.mxu0 0.0
    %8494 = vmatprep.subr.mxu0 0.0
    %8495 = vmatpush1.msra.mxu0 0.0
    %8496 = vmatprep.subr.mxu0 0.0
    %8497 = vmatpush1.msra.mxu0 0.0
    %8498 = vmatprep.mubr.f32.mxu0 0.0
    %8499 = vmatmul.mubr.f32.gmra.mrb[0].mxu0 %v8423
    %v8500 = vpop.f32.mrb[0].mxu0
    %v8501 = vadd.f32 0.0, %v8500
    %v8502 = vpop.f32.mrb[0].mxu0
    %8503 = vmatprep.mubr.f32.mxu0 0.0
    %8504 = vmatmul.mubr.f32.gmra.mrb[0].mxu0 %v8426
    %v8505 = vpop.f32.mrb[0].mxu0
    %v8506 = vadd.f32 0.0, %v8505
    %v8507 = vpop.f32.mrb[0].mxu0
    %8508 = vmatprep.mubr.f32.mxu0 0.0
    %8509 = vmatmul.mubr.f32.gmra.mrb[0].mxu0 %v8429
    %v8510 = vpop.f32.mrb[0].mxu0
    %v8511 = vadd.f32 0.0, %v8510
    %v8512 = vpop.f32.mrb[0].mxu0
    %8513 = vmatprep.mubr.f32.mxu0 0.0
    %8514 = vmatmul.mubr.f32.gmra.mrb[0].mxu0 %v8432
    %v8515 = vpop.f32.mrb[0].mxu0
    %v8516 = vadd.f32 0.0, %v8515
    %v8517 = vpop.f32.mrb[0].mxu0
    %8518 = vdwg.mxu0
    %v8519 = vadd.f32 %v8163, %v8501
    %v8520 = vadd.f32 %v8168, %v8506
    %v8521 = vadd.f32 %v8173, %v8511
    %v8522 = vadd.f32 %v8178, %v8516
    %s8523 = scalar_lea.vmem %s45, 48
    %v8524 = vld [vmem:[%s8523] sm:$0xff]
    %v8525 = vld [vmem:[%s8523 + $0x8] sm:$0xff]
    %8526 = vmatprep.subr.mxu0 0.0
    %8527 = vmatpush1.msra.mxu0 %v8524
    %8528 = vmatprep.subr.mxu0 0.0
    %8529 = vmatpush1.msra.mxu0 %v8525
    %8530 = vmatprep.subr.mxu0 0.0
    %8531 = vmatpush1.msra.mxu0 0.0
    %8532 = vmatprep.subr.mxu0 0.0
    %8533 = vmatpush1.msra.mxu0 0.0
    %8534 = vmatprep.subr.mxu0 0.0
    %8535 = vmatpush1.msra.mxu0 0.0
    %8536 = vmatprep.subr.mxu0 0.0
    %8537 = vmatpush1.msra.mxu0 0.0
    %8538 = vmatprep.subr.mxu0 0.0
    %8539 = vmatpush1.msra.mxu0 0.0
    %8540 = vmatprep.subr.mxu0 0.0
    %8541 = vmatpush1.msra.mxu0 0.0
    %8542 = vmatprep.subr.mxu0 0.0
    %8543 = vmatpush1.msra.mxu0 0.0
    %8544 = vmatprep.subr.mxu0 0.0
    %8545 = vmatpush1.msra.mxu0 0.0
    %8546 = vmatprep.subr.mxu0 0.0
    %8547 = vmatpush1.msra.mxu0 0.0
    %8548 = vmatprep.subr.mxu0 0.0
    %8549 = vmatpush1.msra.mxu0 0.0
    %8550 = vmatprep.subr.mxu0 0.0
    %8551 = vmatpush1.msra.mxu0 0.0
    %8552 = vmatprep.subr.mxu0 0.0
    %8553 = vmatpush1.msra.mxu0 0.0
    %8554 = vmatprep.subr.mxu0 0.0
    %8555 = vmatpush1.msra.mxu0 0.0
    %8556 = vmatprep.subr.mxu0 0.0
    %8557 = vmatpush1.msra.mxu0 0.0
    %8558 = vmatprep.subr.mxu0 0.0
    %8559 = vmatpush1.msra.mxu0 0.0
    %8560 = vmatprep.subr.mxu0 0.0
    %8561 = vmatpush1.msra.mxu0 0.0
    %8562 = vmatprep.subr.mxu0 0.0
    %8563 = vmatpush1.msra.mxu0 0.0
    %8564 = vmatprep.subr.mxu0 0.0
    %8565 = vmatpush1.msra.mxu0 0.0
    %8566 = vmatprep.subr.mxu0 0.0
    %8567 = vmatpush1.msra.mxu0 0.0
    %8568 = vmatprep.subr.mxu0 0.0
    %8569 = vmatpush1.msra.mxu0 0.0
    %8570 = vmatprep.subr.mxu0 0.0
    %8571 = vmatpush1.msra.mxu0 0.0
    %8572 = vmatprep.subr.mxu0 0.0
    %8573 = vmatpush1.msra.mxu0 0.0
    %8574 = vmatprep.subr.mxu0 0.0
    %8575 = vmatpush1.msra.mxu0 0.0
    %8576 = vmatprep.subr.mxu0 0.0
    %8577 = vmatpush1.msra.mxu0 0.0
    %8578 = vmatprep.subr.mxu0 0.0
    %8579 = vmatpush1.msra.mxu0 0.0
    %8580 = vmatprep.subr.mxu0 0.0
    %8581 = vmatpush1.msra.mxu0 0.0
    %8582 = vmatprep.subr.mxu0 0.0
    %8583 = vmatpush1.msra.mxu0 0.0
    %8584 = vmatprep.subr.mxu0 0.0
    %8585 = vmatpush1.msra.mxu0 0.0
    %8586 = vmatprep.subr.mxu0 0.0
    %8587 = vmatpush1.msra.mxu0 0.0
    %8588 = vmatprep.subr.mxu0 0.0
    %8589 = vmatpush1.msra.mxu0 0.0
    %8590 = vmatprep.mubr.f32.mxu0 0.0
    %8591 = vmatmul.mubr.f32.gmra.mrb[0].mxu0 %v7410
    %v8592 = vpop.f32.mrb[0].mxu0
    %v8593 = vadd.f32 0.0, %v8592
    %v8594 = vpop.f32.mrb[0].mxu0
    %8595 = vmatprep.mubr.f32.mxu0 0.0
    %8596 = vmatmul.mubr.f32.gmra.mrb[0].mxu0 %v7413
    %v8597 = vpop.f32.mrb[0].mxu0
    %v8598 = vadd.f32 0.0, %v8597
    %v8599 = vpop.f32.mrb[0].mxu0
    %8600 = vmatprep.mubr.f32.mxu0 0.0
    %8601 = vmatmul.mubr.f32.gmra.mrb[0].mxu0 %v7416
    %v8602 = vpop.f32.mrb[0].mxu0
    %v8603 = vadd.f32 0.0, %v8602
    %v8604 = vpop.f32.mrb[0].mxu0
    %8605 = vmatprep.mubr.f32.mxu0 0.0
    %8606 = vmatmul.mubr.f32.gmra.mrb[0].mxu0 %v7419
    %v8607 = vpop.f32.mrb[0].mxu0
    %v8608 = vadd.f32 0.0, %v8607
    %v8609 = vpop.f32.mrb[0].mxu0
    %8610 = vdwg.mxu0
    %v8612 = vsel %vm5762, %v8593, 0
    %v8615 = vsel %vm5762, %v8598, 0
    %v8618 = vsel %vm5762, %v8603, 0
    %v8621 = vsel %vm5762, %v8608, 0
    %8623 = vmatprep.subr.mxu0 0.0
    %8624 = vmatpush1.xpose.msra.mxu0 %v7410
    %8625 = vmatprep.subr.mxu0 0.0
    %8626 = vmatpush1.xpose.msra.mxu0 %v7413
    %8627 = vmatprep.subr.mxu0 0.0
    %8628 = vmatpush1.xpose.msra.mxu0 %v7416
    %8629 = vmatprep.subr.mxu0 0.0
    %8630 = vmatpush1.xpose.msra.mxu0 %v7419
    %8631 = vmatprep.subr.mxu0 0.0
    %8632 = vmatpush1.xpose.msra.mxu0 0.0
    %8633 = vmatprep.subr.mxu0 0.0
    %8634 = vmatpush1.xpose.msra.mxu0 0.0
    %8635 = vmatprep.subr.mxu0 0.0
    %8636 = vmatpush1.xpose.msra.mxu0 0.0
    %8637 = vmatprep.subr.mxu0 0.0
    %8638 = vmatpush1.xpose.msra.mxu0 0.0
    %8639 = vmatprep.subr.mxu0 0.0
    %8640 = vmatpush1.xpose.msra.mxu0 0.0
    %8641 = vmatprep.subr.mxu0 0.0
    %8642 = vmatpush1.xpose.msra.mxu0 0.0
    %8643 = vmatprep.subr.mxu0 0.0
    %8644 = vmatpush1.xpose.msra.mxu0 0.0
    %8645 = vmatprep.subr.mxu0 0.0
    %8646 = vmatpush1.xpose.msra.mxu0 0.0
    %8647 = vmatprep.subr.mxu0 0.0
    %8648 = vmatpush1.xpose.msra.mxu0 0.0
    %8649 = vmatprep.subr.mxu0 0.0
    %8650 = vmatpush1.xpose.msra.mxu0 0.0
    %8651 = vmatprep.subr.mxu0 0.0
    %8652 = vmatpush1.xpose.msra.mxu0 0.0
    %8653 = vmatprep.subr.mxu0 0.0
    %8654 = vmatpush1.xpose.msra.mxu0 0.0
    %8655 = vmatprep.subr.mxu0 0.0
    %8656 = vmatpush1.xpose.msra.mxu0 0.0
    %8657 = vmatprep.subr.mxu0 0.0
    %8658 = vmatpush1.xpose.msra.mxu0 0.0
    %8659 = vmatprep.subr.mxu0 0.0
    %8660 = vmatpush1.xpose.msra.mxu0 0.0
    %8661 = vmatprep.subr.mxu0 0.0
    %8662 = vmatpush1.xpose.msra.mxu0 0.0
    %8663 = vmatprep.subr.mxu0 0.0
    %8664 = vmatpush1.xpose.msra.mxu0 0.0
    %8665 = vmatprep.subr.mxu0 0.0
    %8666 = vmatpush1.xpose.msra.mxu0 0.0
    %8667 = vmatprep.subr.mxu0 0.0
    %8668 = vmatpush1.xpose.msra.mxu0 0.0
    %8669 = vmatprep.subr.mxu0 0.0
    %8670 = vmatpush1.xpose.msra.mxu0 0.0
    %8671 = vmatprep.subr.mxu0 0.0
    %8672 = vmatpush1.xpose.msra.mxu0 0.0
    %8673 = vmatprep.subr.mxu0 0.0
    %8674 = vmatpush1.xpose.msra.mxu0 0.0
    %8675 = vmatprep.subr.mxu0 0.0
    %8676 = vmatpush1.xpose.msra.mxu0 0.0
    %8677 = vmatprep.subr.mxu0 0.0
    %8678 = vmatpush1.xpose.msra.mxu0 0.0
    %8679 = vmatprep.subr.mxu0 0.0
    %8680 = vmatpush1.xpose.msra.mxu0 0.0
    %8681 = vmatprep.subr.mxu0 0.0
    %8682 = vmatpush1.xpose.msra.mxu0 0.0
    %8683 = vmatprep.subr.mxu0 0.0
    %8684 = vmatpush1.xpose.msra.mxu0 0.0
    %8685 = vmatprep.subr.mxu0 0.0
    %8686 = vmatpush1.xpose.msra.mxu0 0.0
    %8687 = vmatprep.mubr.f32.mxu0 0.0
    %8688 = vmatmul.mubr.f32.gmra.mrb[0].mxu0 %v8612
    %v8689 = vpop.f32.mrb[0].mxu0
    %v8690 = vadd.f32 0.0, %v8689
    %v8691 = vpop.f32.mrb[0].mxu0
    %8692 = vmatprep.mubr.f32.mxu0 0.0
    %8693 = vmatmul.mubr.f32.gmra.mrb[0].mxu0 %v8615
    %v8694 = vpop.f32.mrb[0].mxu0
    %v8695 = vadd.f32 0.0, %v8694
    %v8696 = vpop.f32.mrb[0].mxu0
    %8697 = vmatprep.mubr.f32.mxu0 0.0
    %8698 = vmatmul.mubr.f32.gmra.mrb[0].mxu0 %v8618
    %v8699 = vpop.f32.mrb[0].mxu0
    %v8700 = vadd.f32 0.0, %v8699
    %v8701 = vpop.f32.mrb[0].mxu0
    %8702 = vmatprep.mubr.f32.mxu0 0.0
    %8703 = vmatmul.mubr.f32.gmra.mrb[0].mxu0 %v8621
    %v8704 = vpop.f32.mrb[0].mxu0
    %v8705 = vadd.f32 0.0, %v8704
    %v8706 = vpop.f32.mrb[0].mxu0
    %8707 = vdwg.mxu0
    %v8708 = vmul.f32 %v8690, %v5744
    %v8709 = vmul.f32 %v8695, %v5745
    %v8710 = vmul.f32 %v8700, %v5746
    %v8711 = vmul.f32 %v8705, %v5747
    %v8712 = vadd.f32 %v8708, %v5748
    %v8713 = vadd.f32 %v8709, %v5749
    %v8714 = vadd.f32 %v8710, %v5750
    %v8715 = vadd.f32 %v8711, %v5751
    %v8716 = vsel %vm440, %v8712, -inf
    %8717 = vmax.xlane.f32.xlu0 %v8716
    %v8718 = vpop.xlane.xlu0 %8717
    %v8719 = vsel %vm440, %v8713, -inf
    %8720 = vmax.xlane.f32.xlu0 %v8719
    %v8721 = vpop.xlane.xlu0 %8720
    %v8722 = vsel %vm440, %v8714, -inf
    %8723 = vmax.xlane.f32.xlu0 %v8722
    %v8724 = vpop.xlane.xlu0 %8723
    %v8725 = vsel %vm440, %v8715, -inf
    %8726 = vmax.xlane.f32.xlu0 %v8725
    %v8727 = vpop.xlane.xlu0 %8726
    %v8728 = vsub.f32 %v8712, %v8718
    %v8729 = vsub.f32 %v8713, %v8721
    %v8730 = vsub.f32 %v8714, %v8724
    %v8731 = vsub.f32 %v8715, %v8727
    %v8732 = vmul.f32 %v8728, 1.442695
    %v8733 = vpow.pop %v8732
    %v8734 = vmul.f32 %v8729, 1.442695
    %v8735 = vpow.pop %v8734
    %v8736 = vmul.f32 %v8730, 1.442695
    %v8737 = vpow.pop %v8736
    %v8738 = vmul.f32 %v8731, 1.442695
    %v8739 = vpow.pop %v8738
    %v8740 = vsel %vm440, %v8733, 0.0
    %8741 = vadd.xlane.f32.xlu0 %v8740
    %v8742 = vpop.xlane.xlu0 %8741
    %v8743 = vsel %vm440, %v8735, 0.0
    %8744 = vadd.xlane.f32.xlu0 %v8743
    %v8745 = vpop.xlane.xlu0 %8744
    %v8746 = vsel %vm440, %v8737, 0.0
    %8747 = vadd.xlane.f32.xlu0 %v8746
    %v8748 = vpop.xlane.xlu0 %8747
    %v8749 = vsel %vm440, %v8739, 0.0
    %8750 = vadd.xlane.f32.xlu0 %v8749
    %v8751 = vpop.xlane.xlu0 %8750
    %v8752 = vrcp.pop %v8742
    %v8753 = vrcp.pop %v8745
    %v8754 = vrcp.pop %v8748
    %v8755 = vrcp.pop %v8751
    %v8756 = vmul.f32 %v8733, %v8752
    %v8757 = vmul.f32 %v8735, %v8753
    %v8758 = vmul.f32 %v8737, %v8754
    %v8759 = vmul.f32 %v8739, %v8755
    %v8760 = vmul.f32 %v7488, %v7143
    %v8761 = vmul.f32 %v7493, %v7143
    %v8762 = vmul.f32 %v7498, %v7143
    %v8763 = vmul.f32 %v7503, %v7143
    %v8765 = vsel %vm440, %v8756, 0
    %v8768 = vsel %vm440, %v8757, 0
    %v8771 = vsel %vm440, %v8758, 0
    %v8774 = vsel %vm440, %v8759, 0
    %8776 = vmatprep.subr.mxu0 0.0
    %8777 = vmatpush1.msra.mxu0 %v8760
    %8778 = vmatprep.subr.mxu0 0.0
    %8779 = vmatpush1.msra.mxu0 %v8761
    %8780 = vmatprep.subr.mxu0 0.0
    %8781 = vmatpush1.msra.mxu0 %v8762
    %8782 = vmatprep.subr.mxu0 0.0
    %8783 = vmatpush1.msra.mxu0 %v8763
    %8784 = vmatprep.subr.mxu0 0.0
    %8785 = vmatpush1.msra.mxu0 0.0
    %8786 = vmatprep.subr.mxu0 0.0
    %8787 = vmatpush1.msra.mxu0 0.0
    %8788 = vmatprep.subr.mxu0 0.0
    %8789 = vmatpush1.msra.mxu0 0.0
    %8790 = vmatprep.subr.mxu0 0.0
    %8791 = vmatpush1.msra.mxu0 0.0
    %8792 = vmatprep.subr.mxu0 0.0
    %8793 = vmatpush1.msra.mxu0 0.0
    %8794 = vmatprep.subr.mxu0 0.0
    %8795 = vmatpush1.msra.mxu0 0.0
    %8796 = vmatprep.subr.mxu0 0.0
    %8797 = vmatpush1.msra.mxu0 0.0
    %8798 = vmatprep.subr.mxu0 0.0
    %8799 = vmatpush1.msra.mxu0 0.0
    %8800 = vmatprep.subr.mxu0 0.0
    %8801 = vmatpush1.msra.mxu0 0.0
    %8802 = vmatprep.subr.mxu0 0.0
    %8803 = vmatpush1.msra.mxu0 0.0
    %8804 = vmatprep.subr.mxu0 0.0
    %8805 = vmatpush1.msra.mxu0 0.0
    %8806 = vmatprep.subr.mxu0 0.0
    %8807 = vmatpush1.msra.mxu0 0.0
    %8808 = vmatprep.subr.mxu0 0.0
    %8809 = vmatpush1.msra.mxu0 0.0
    %8810 = vmatprep.subr.mxu0 0.0
    %8811 = vmatpush1.msra.mxu0 0.0
    %8812 = vmatprep.subr.mxu0 0.0
    %8813 = vmatpush1.msra.mxu0 0.0
    %8814 = vmatprep.subr.mxu0 0.0
    %8815 = vmatpush1.msra.mxu0 0.0
    %8816 = vmatprep.subr.mxu0 0.0
    %8817 = vmatpush1.msra.mxu0 0.0
    %8818 = vmatprep.subr.mxu0 0.0
    %8819 = vmatpush1.msra.mxu0 0.0
    %8820 = vmatprep.subr.mxu0 0.0
    %8821 = vmatpush1.msra.mxu0 0.0
    %8822 = vmatprep.subr.mxu0 0.0
    %8823 = vmatpush1.msra.mxu0 0.0
    %8824 = vmatprep.subr.mxu0 0.0
    %8825 = vmatpush1.msra.mxu0 0.0
    %8826 = vmatprep.subr.mxu0 0.0
    %8827 = vmatpush1.msra.mxu0 0.0
    %8828 = vmatprep.subr.mxu0 0.0
    %8829 = vmatpush1.msra.mxu0 0.0
    %8830 = vmatprep.subr.mxu0 0.0
    %8831 = vmatpush1.msra.mxu0 0.0
    %8832 = vmatprep.subr.mxu0 0.0
    %8833 = vmatpush1.msra.mxu0 0.0
    %8834 = vmatprep.subr.mxu0 0.0
    %8835 = vmatpush1.msra.mxu0 0.0
    %8836 = vmatprep.subr.mxu0 0.0
    %8837 = vmatpush1.msra.mxu0 0.0
    %8838 = vmatprep.subr.mxu0 0.0
    %8839 = vmatpush1.msra.mxu0 0.0
    %8840 = vmatprep.mubr.f32.mxu0 0.0
    %8841 = vmatmul.mubr.f32.gmra.mrb[0].mxu0 %v8765
    %v8842 = vpop.f32.mrb[0].mxu0
    %v8843 = vadd.f32 0.0, %v8842
    %v8844 = vpop.f32.mrb[0].mxu0
    %8845 = vmatprep.mubr.f32.mxu0 0.0
    %8846 = vmatmul.mubr.f32.gmra.mrb[0].mxu0 %v8768
    %v8847 = vpop.f32.mrb[0].mxu0
    %v8848 = vadd.f32 0.0, %v8847
    %v8849 = vpop.f32.mrb[0].mxu0
    %8850 = vmatprep.mubr.f32.mxu0 0.0
    %8851 = vmatmul.mubr.f32.gmra.mrb[0].mxu0 %v8771
    %v8852 = vpop.f32.mrb[0].mxu0
    %v8853 = vadd.f32 0.0, %v8852
    %v8854 = vpop.f32.mrb[0].mxu0
    %8855 = vmatprep.mubr.f32.mxu0 0.0
    %8856 = vmatmul.mubr.f32.gmra.mrb[0].mxu0 %v8774
    %v8857 = vpop.f32.mrb[0].mxu0
    %v8858 = vadd.f32 0.0, %v8857
    %v8859 = vpop.f32.mrb[0].mxu0
    %8860 = vdwg.mxu0
    %v8861 = vadd.f32 %v8519, %v8843
    %v8862 = vadd.f32 %v8520, %v8848
    %v8863 = vadd.f32 %v8521, %v8853
    %v8864 = vadd.f32 %v8522, %v8858
    %v8865 = vsel %vm5762, %v8861, 0.0
    %8866 = vadd.xlane.f32.xlu0 %v8865
    %v8867 = vpop.xlane.xlu0 %8866
    %v8868 = vsel %vm5762, %v8862, 0.0
    %8869 = vadd.xlane.f32.xlu0 %v8868
    %v8870 = vpop.xlane.xlu0 %8869
    %v8871 = vsel %vm5762, %v8863, 0.0
    %8872 = vadd.xlane.f32.xlu0 %v8871
    %v8873 = vpop.xlane.xlu0 %8872
    %v8874 = vsel %vm5762, %v8864, 0.0
    %8875 = vadd.xlane.f32.xlu0 %v8874
    %v8876 = vpop.xlane.xlu0 %8875
    %v8877 = vmul.f32 %v8867, %v7262
    %v8878 = vmul.f32 %v8870, %v7262
    %v8879 = vmul.f32 %v8873, %v7262
    %v8880 = vmul.f32 %v8876, %v7262
    %v8881 = vsub.f32 %v8861, %v8877
    %v8882 = vsub.f32 %v8862, %v8878
    %v8883 = vsub.f32 %v8863, %v8879
    %v8884 = vsub.f32 %v8864, %v8880
    %v8885 = vmul.f32 %v8881, %v8881
    %v8886 = vmul.f32 %v8882, %v8882
    %v8887 = vmul.f32 %v8883, %v8883
    %v8888 = vmul.f32 %v8884, %v8884
    %v8889 = vsel %vm5762, %v8885, 0.0
    %8890 = vadd.xlane.f32.xlu0 %v8889
    %v8891 = vpop.xlane.xlu0 %8890
    %v8892 = vsel %vm5762, %v8886, 0.0
    %8893 = vadd.xlane.f32.xlu0 %v8892
    %v8894 = vpop.xlane.xlu0 %8893
    %v8895 = vsel %vm5762, %v8887, 0.0
    %8896 = vadd.xlane.f32.xlu0 %v8895
    %v8897 = vpop.xlane.xlu0 %8896
    %v8898 = vsel %vm5762, %v8888, 0.0
    %8899 = vadd.xlane.f32.xlu0 %v8898
    %v8900 = vpop.xlane.xlu0 %8899
    %v8901 = vmul.f32 %v8891, %v7262
    %v8902 = vmul.f32 %v8894, %v7262
    %v8903 = vmul.f32 %v8897, %v7262
    %v8904 = vmul.f32 %v8900, %v7262
    %v8905 = vadd.f32 %v8901, 1e-05
    %v8906 = vadd.f32 %v8902, 1e-05
    %v8907 = vadd.f32 %v8903, 1e-05
    %v8908 = vadd.f32 %v8904, 1e-05
    %v8909 = vrsqrt.pop %v8905
    %v8910 = vrsqrt.pop %v8906
    %v8911 = vrsqrt.pop %v8907
    %v8912 = vrsqrt.pop %v8908
    %v8913 = vmul.f32 %v8881, %v8909
    %v8914 = vmul.f32 %v8882, %v8910
    %v8915 = vmul.f32 %v8883, %v8911
    %v8916 = vmul.f32 %v8884, %v8912
    %v8918 = vlaneseq
    %v8919 = vshrl.u32 %v8918, 7
    %v8920 = vsub.s32 0, %v8919
    %v8921 = vrot.slane %v7399, %v8920
    %v8923 = vmul.f32 %v8913, %v8921
    %v8924 = vmul.f32 %v8914, %v8921
    %v8925 = vmul.f32 %v8915, %v8921
    %v8926 = vmul.f32 %v8916, %v8921
    %v8928 = vlaneseq
    %v8929 = vshrl.u32 %v8928, 7
    %v8930 = vsub.s32 0, %v8929
    %v8931 = vrot.slane %v7400, %v8930
    %v8933 = vadd.f32 %v8923, %v8931
    %v8934 = vadd.f32 %v8924, %v8931
    %v8935 = vadd.f32 %v8925, %v8931
    %v8936 = vadd.f32 %v8926, %v8931
    %v8937 = vsel %vm5762, %v8933, 0.0
    %8938 = vadd.xlane.f32.xlu0 %v8937
    %v8939 = vpop.xlane.xlu0 %8938
    %v8940 = vsel %vm5762, %v8934, 0.0
    %8941 = vadd.xlane.f32.xlu0 %v8940
    %v8942 = vpop.xlane.xlu0 %8941
    %v8943 = vsel %vm5762, %v8935, 0.0
    %8944 = vadd.xlane.f32.xlu0 %v8943
    %v8945 = vpop.xlane.xlu0 %8944
    %v8946 = vsel %vm5762, %v8936, 0.0
    %8947 = vadd.xlane.f32.xlu0 %v8946
    %v8948 = vpop.xlane.xlu0 %8947
    %v8949 = vmul.f32 %v8939, %v7262
    %v8950 = vmul.f32 %v8942, %v7262
    %v8951 = vmul.f32 %v8945, %v7262
    %v8952 = vmul.f32 %v8948, %v7262
    %v8953 = vsub.f32 %v8933, %v8949
    %v8954 = vsub.f32 %v8934, %v8950
    %v8955 = vsub.f32 %v8935, %v8951
    %v8956 = vsub.f32 %v8936, %v8952
    %v8957 = vmul.f32 %v8953, %v8953
    %v8958 = vmul.f32 %v8954, %v8954
    %v8959 = vmul.f32 %v8955, %v8955
    %v8960 = vmul.f32 %v8956, %v8956
    %v8961 = vsel %vm5762, %v8957, 0.0
    %8962 = vadd.xlane.f32.xlu0 %v8961
    %v8963 = vpop.xlane.xlu0 %8962
    %v8964 = vsel %vm5762, %v8958, 0.0
    %8965 = vadd.xlane.f32.xlu0 %v8964
    %v8966 = vpop.xlane.xlu0 %8965
    %v8967 = vsel %vm5762, %v8959, 0.0
    %8968 = vadd.xlane.f32.xlu0 %v8967
    %v8969 = vpop.xlane.xlu0 %8968
    %v8970 = vsel %vm5762, %v8960, 0.0
    %8971 = vadd.xlane.f32.xlu0 %v8970
    %v8972 = vpop.xlane.xlu0 %8971
    %v8973 = vmul.f32 %v8963, %v7262
    %v8974 = vmul.f32 %v8966, %v7262
    %v8975 = vmul.f32 %v8969, %v7262
    %v8976 = vmul.f32 %v8972, %v7262
    %v8977 = vadd.f32 %v8973, 1e-05
    %v8978 = vadd.f32 %v8974, 1e-05
    %v8979 = vadd.f32 %v8975, 1e-05
    %v8980 = vadd.f32 %v8976, 1e-05
    %v8981 = vrsqrt.pop %v8977
    %v8982 = vrsqrt.pop %v8978
    %v8983 = vrsqrt.pop %v8979
    %v8984 = vrsqrt.pop %v8980
    %v8985 = vmul.f32 %v8953, %v8981
    %v8986 = vmul.f32 %v8954, %v8982
    %v8987 = vmul.f32 %v8955, %v8983
    %v8988 = vmul.f32 %v8956, %v8984
    %v8990 = vlaneseq
    %v8991 = vshrl.u32 %v8990, 7
    %v8992 = vsub.s32 0, %v8991
    %v8993 = vrot.slane %v7401, %v8992
    %v8995 = vmul.f32 %v8985, %v8993
    %v8996 = vmul.f32 %v8986, %v8993
    %v8997 = vmul.f32 %v8987, %v8993
    %v8998 = vmul.f32 %v8988, %v8993
    %v9000 = vlaneseq
    %v9001 = vshrl.u32 %v9000, 7
    %v9002 = vsub.s32 0, %v9001
    %v9003 = vrot.slane %v7402, %v9002
    %v9005 = vadd.f32 %v8995, %v9003
    %v9006 = vadd.f32 %v8996, %v9003
    %v9007 = vadd.f32 %v8997, %v9003
    %v9008 = vadd.f32 %v8998, %v9003
    %v9009 = vld [vmem:[#allocation23] sm:$0x3]
    %v9011 = vsel %vm440, %v9009, 0
    %9013 = vmatprep.subr.mxu0 0.0
    %9014 = vmatpush1.msra.mxu0 %v9005
    %9015 = vmatprep.subr.mxu0 0.0
    %9016 = vmatpush1.msra.mxu0 %v9006
    %9017 = vmatprep.subr.mxu0 0.0
    %9018 = vmatpush1.msra.mxu0 %v9007
    %9019 = vmatprep.subr.mxu0 0.0
    %9020 = vmatpush1.msra.mxu0 %v9008
    %9021 = vmatprep.subr.mxu0 0.0
    %9022 = vmatpush1.msra.mxu0 0.0
    %9023 = vmatprep.subr.mxu0 0.0
    %9024 = vmatpush1.msra.mxu0 0.0
    %9025 = vmatprep.subr.mxu0 0.0
    %9026 = vmatpush1.msra.mxu0 0.0
    %9027 = vmatprep.subr.mxu0 0.0
    %9028 = vmatpush1.msra.mxu0 0.0
    %9029 = vmatprep.subr.mxu0 0.0
    %9030 = vmatpush1.msra.mxu0 0.0
    %9031 = vmatprep.subr.mxu0 0.0
    %9032 = vmatpush1.msra.mxu0 0.0
    %9033 = vmatprep.subr.mxu0 0.0
    %9034 = vmatpush1.msra.mxu0 0.0
    %9035 = vmatprep.subr.mxu0 0.0
    %9036 = vmatpush1.msra.mxu0 0.0
    %9037 = vmatprep.subr.mxu0 0.0
    %9038 = vmatpush1.msra.mxu0 0.0
    %9039 = vmatprep.subr.mxu0 0.0
    %9040 = vmatpush1.msra.mxu0 0.0
    %9041 = vmatprep.subr.mxu0 0.0
    %9042 = vmatpush1.msra.mxu0 0.0
    %9043 = vmatprep.subr.mxu0 0.0
    %9044 = vmatpush1.msra.mxu0 0.0
    %9045 = vmatprep.subr.mxu0 0.0
    %9046 = vmatpush1.msra.mxu0 0.0
    %9047 = vmatprep.subr.mxu0 0.0
    %9048 = vmatpush1.msra.mxu0 0.0
    %9049 = vmatprep.subr.mxu0 0.0
    %9050 = vmatpush1.msra.mxu0 0.0
    %9051 = vmatprep.subr.mxu0 0.0
    %9052 = vmatpush1.msra.mxu0 0.0
    %9053 = vmatprep.subr.mxu0 0.0
    %9054 = vmatpush1.msra.mxu0 0.0
    %9055 = vmatprep.subr.mxu0 0.0
    %9056 = vmatpush1.msra.mxu0 0.0
    %9057 = vmatprep.subr.mxu0 0.0
    %9058 = vmatpush1.msra.mxu0 0.0
    %9059 = vmatprep.subr.mxu0 0.0
    %9060 = vmatpush1.msra.mxu0 0.0
    %9061 = vmatprep.subr.mxu0 0.0
    %9062 = vmatpush1.msra.mxu0 0.0
    %9063 = vmatprep.subr.mxu0 0.0
    %9064 = vmatpush1.msra.mxu0 0.0
    %9065 = vmatprep.subr.mxu0 0.0
    %9066 = vmatpush1.msra.mxu0 0.0
    %9067 = vmatprep.subr.mxu0 0.0
    %9068 = vmatpush1.msra.mxu0 0.0
    %9069 = vmatprep.subr.mxu0 0.0
    %9070 = vmatpush1.msra.mxu0 0.0
    %9071 = vmatprep.subr.mxu0 0.0
    %9072 = vmatpush1.msra.mxu0 0.0
    %9073 = vmatprep.subr.mxu0 0.0
    %9074 = vmatpush1.msra.mxu0 0.0
    %9075 = vmatprep.subr.mxu0 0.0
    %9076 = vmatpush1.msra.mxu0 0.0
    %9077 = vmatprep.mubr.f32.mxu0 0.0
    %9078 = vmatmul.mubr.f32.gmra.mrb[0].mxu0 %v9011
    %v9079 = vpop.f32.mrb[0].mxu0
    %v9080 = vadd.f32 0.0, %v9079
    %v9081 = vpop.f32.mrb[0].mxu0
    %9082 = vdwg.mxu0
    %v9083 = vld [vmem:[%s59] sm:$0xff]
    %v9084 = vld [vmem:[%s59 + $0x8] sm:$0xff]
    %v9085 = vld [vmem:[#allocation25] sm:$0x1]
    %v9087 = vlaneseq
    %v9088 = vshrl.u32 %v9087, 7
    %v9089 = vsub.s32 0, %v9088
    %v9090 = vrot.slane %v9085, %v9089
    %v9093 = vsel %vm5762, %v9080, 0
    %9095 = vmatprep.subr.mxu0 0.0
    %9096 = vmatpush1.msra.mxu0 %v9083
    %9097 = vmatprep.subr.mxu0 0.0
    %9098 = vmatpush1.msra.mxu0 %v9084
    %9099 = vmatprep.subr.mxu0 0.0
    %9100 = vmatpush1.msra.mxu0 0.0
    %9101 = vmatprep.subr.mxu0 0.0
    %9102 = vmatpush1.msra.mxu0 0.0
    %9103 = vmatprep.subr.mxu0 0.0
    %9104 = vmatpush1.msra.mxu0 0.0
    %9105 = vmatprep.subr.mxu0 0.0
    %9106 = vmatpush1.msra.mxu0 0.0
    %9107 = vmatprep.subr.mxu0 0.0
    %9108 = vmatpush1.msra.mxu0 0.0
    %9109 = vmatprep.subr.mxu0 0.0
    %9110 = vmatpush1.msra.mxu0 0.0
    %9111 = vmatprep.subr.mxu0 0.0
    %9112 = vmatpush1.msra.mxu0 0.0
    %9113 = vmatprep.subr.mxu0 0.0
    %9114 = vmatpush1.msra.mxu0 0.0
    %9115 = vmatprep.subr.mxu0 0.0
    %9116 = vmatpush1.msra.mxu0 0.0
    %9117 = vmatprep.subr.mxu0 0.0
    %9118 = vmatpush1.msra.mxu0 0.0
    %9119 = vmatprep.subr.mxu0 0.0
    %9120 = vmatpush1.msra.mxu0 0.0
    %9121 = vmatprep.subr.mxu0 0.0
    %9122 = vmatpush1.msra.mxu0 0.0
    %9123 = vmatprep.subr.mxu0 0.0
    %9124 = vmatpush1.msra.mxu0 0.0
    %9125 = vmatprep.subr.mxu0 0.0
    %9126 = vmatpush1.msra.mxu0 0.0
    %9127 = vmatprep.subr.mxu0 0.0
    %9128 = vmatpush1.msra.mxu0 0.0
    %9129 = vmatprep.subr.mxu0 0.0
    %9130 = vmatpush1.msra.mxu0 0.0
    %9131 = vmatprep.subr.mxu0 0.0
    %9132 = vmatpush1.msra.mxu0 0.0
    %9133 = vmatprep.subr.mxu0 0.0
    %9134 = vmatpush1.msra.mxu0 0.0
    %9135 = vmatprep.subr.mxu0 0.0
    %9136 = vmatpush1.msra.mxu0 0.0
    %9137 = vmatprep.subr.mxu0 0.0
    %9138 = vmatpush1.msra.mxu0 0.0
    %9139 = vmatprep.subr.mxu0 0.0
    %9140 = vmatpush1.msra.mxu0 0.0
    %9141 = vmatprep.subr.mxu0 0.0
    %9142 = vmatpush1.msra.mxu0 0.0
    %9143 = vmatprep.subr.mxu0 0.0
    %9144 = vmatpush1.msra.mxu0 0.0
    %9145 = vmatprep.subr.mxu0 0.0
    %9146 = vmatpush1.msra.mxu0 0.0
    %9147 = vmatprep.subr.mxu0 0.0
    %9148 = vmatpush1.msra.mxu0 0.0
    %9149 = vmatprep.subr.mxu0 0.0
    %9150 = vmatpush1.msra.mxu0 0.0
    %9151 = vmatprep.subr.mxu0 0.0
    %9152 = vmatpush1.msra.mxu0 0.0
    %9153 = vmatprep.subr.mxu0 0.0
    %9154 = vmatpush1.msra.mxu0 0.0
    %9155 = vmatprep.subr.mxu0 0.0
    %9156 = vmatpush1.msra.mxu0 0.0
    %9157 = vmatprep.subr.mxu0 0.0
    %9158 = vmatpush1.msra.mxu0 0.0
    %9159 = vmatprep.mubr.f32.mxu0 0.0
    %9160 = vmatmul.mubr.f32.gmra.mrb[0].mxu0 %v9093
    %v9161 = vpop.f32.mrb[0].mxu0
    %v9162 = vadd.f32 %v9090, %v9161
    %v9163 = vpop.f32.mrb[0].mxu0
    %9164 = vdwg.mxu0
    %vm9165 = vcmask 17408
    %9166 = vst.msk [vmem:[#allocation26] sm:$0x3] %vm9165, %v9162
    // Predicated region
    $region186: #{forward.1} parent=1 // pred_check
      _
    $region187: #{forward.1} parent=1 // pred_check_branch
      %9168 = sbr.rel (0) target = $region189
    $region188: #{forward.1} parent=1 // pred_region
      %s9170 = ssub.s32 32, 32
      %9171 = vsyncadd [#allocation4], %s9170
      %s9173 = sshll.u32 [#allocation26], 4
      %s9174 = int_to_ptr.vmem [resolvable:$true] %s9173
      %9176 = dma.vmem_to_hbm [thread:$0]  %s9174, 32, %s63, [#allocation4]
    $region189: #{forward.1} parent=1 // pred_fallthru
      _
    // Predicated region
    $region190: #{forward.1} parent=1 // pred_check
      _
    $region191: #{forward.1} parent=1 // pred_check_branch
      %9178 = sbr.rel (0) target = $region193
    $region192: #{forward.1} parent=1 // pred_region
      %9179 = dma.done [#allocation4], 32
    $region193: #{forward.1} parent=1 // pred_fallthru
      _
    %9180 = vsyncpa [#allocation3], 1
    %9181 = vsyncpa [#allocation6], 1
    %9182 = vsyncpa [#allocation9], 1
    %9183 = vsyncpa [#allocation12], 1
    %9184 = vsyncpa [#allocation15], 1
    %9185 = vsyncpa [#allocation18], 1
    %9186 = vsyncpa [#allocation21], 1
    %9187 = vsyncpa [#allocation24], 1
    %9188 = vsyncpa [#allocation4], 1

</llo_original>
